<compile_context>
chip_gen: v5e
topology: v5e:2x2
jax: 0.10.0
libtpu: 0.0.40
codegen_flags: <defaults>
</compile_context>

<pallas_src>
import math

import numpy as np
import jax
import jax.numpy as jnp
from jax.experimental import pallas as pl
from jax.experimental.pallas import tpu as pltpu


# ----------------------------------------------------------------------------
# Fused kernel factory: conv('same')+ReLU chain followed by PxP max pool,
# one batch element per grid step.
# ----------------------------------------------------------------------------
def _make_fused_block_kernel(H, W, Cin, F, K, reps, P):
    p = K // 2
    Hp, Wp = H + 2 * p, W + 2 * p
    Ho, Wo = H // P, W // P
    Cmax = max(Cin, F)

    def kernel(*args):
        x_ref = args[0]
        w_refs = args[1:1 + reps]                  # (K*K*cin_l, F) bf16
        b_refs = args[1 + reps:1 + 2 * reps]       # (1, F) f32
        o_ref = args[1 + 2 * reps]                 # (1, Ho, Wo, F)
        pad_ref, patch_ref, pool_ref = args[2 + 2 * reps:]

        # --- zero ONLY the p-wide halo, once per grid step -----------------
        # (interior is always fully overwritten; done unconditionally — not
        #  pl.when(pid==0) — so megacore sharding of the batch axis is safe)
        if p > 0:
            pad_ref[0:p, :, :] = jnp.zeros((p, Wp, Cmax), pad_ref.dtype)
            pad_ref[Hp - p:Hp, :, :] = jnp.zeros((p, Wp, Cmax), pad_ref.dtype)
            pad_ref[p:p + H, 0:p, :] = jnp.zeros((H, p, Cmax), pad_ref.dtype)
            pad_ref[p:p + H, Wp - p:Wp, :] = jnp.zeros((H, p, Cmax), pad_ref.dtype)

        def conv_relu(cin, w_ref, b_ref):
            cols = K * K * cin
            # im2col: write each (kh, kw) tap straight into the patch scratch
            # (taps live in the contraction dim -> single MXU matmul per layer,
            #  no partial-sum accumulator traffic).
            for kh in range(K):                                   # static unroll
                for kw in range(K):
                    c0 = (kh * K + kw) * cin
                    patch_ref[:, c0:c0 + cin] = (
                        pad_ref[kh:kh + H, kw:kw + W, 0:cin].reshape(H * W, cin))
            y = jnp.dot(patch_ref[:, 0:cols], w_ref[...],
                        preferred_element_type=jnp.float32)       # (H*W, F) f32
            return jnp.maximum(y + b_ref[...], 0.0)

        # ---- layer 0: stage the input into the padded scratch (bf16) ------
        pad_ref[p:p + H, p:p + W, 0:Cin] = x_ref[0].astype(pad_ref.dtype)
        y = conv_relu(Cin, w_refs[0], b_refs[0])

        # ---- layers 1..reps-1: activations stay in VMEM as bf16 -----------
        for l in range(1, reps):
            pad_ref[p:p + H, p:p + W, 0:F] = (
                y.reshape(H, W, F).astype(pad_ref.dtype))
            y = conv_relu(F, w_refs[l], b_refs[l])

        # ---- fused max pool PxP, stride P ----------------------------------
        # Pool along H: leading-dim reshape (layout-preserving) + elementwise max.
        y4 = y.reshape(Ho, P, W, F)
        hp = y4[:, 0]
        for j in range(1, P):
            hp = jnp.maximum(hp, y4[:, j])                        # (Ho, W, F)
        # Pool along W: stride-P sublane reads from a minimal f32 staging ref.
        pool_ref[...] = hp.reshape(Ho * W, F)
        wp = pool_ref[pl.ds(0, Ho * Wo, stride=P), :]
        for j in range(1, P):
            wp = jnp.maximum(wp, pool_ref[pl.ds(j, Ho * Wo, stride=P), :])
        o_ref[0] = wp.reshape(Ho, Wo, F).astype(o_ref.dtype)

    return kernel


def _nbytes(shape, dtype):
    return math.prod(shape) * np.dtype(dtype).itemsize


def _vmem_cap_bytes():
    # Generation-aware scoped-VMEM cap: ~3/4 of physical VMEM (128 MiB on
    # v5e/v6e, 64 MiB on v7x).  Falls back conservatively if the query fails.
    try:
        phys = int(pltpu.get_tpu_info().vmem_capacity_bytes)
    except Exception:
        phys = 64 * 1024 * 1024
    return max(16 * 1024 * 1024, (phys * 3) // 4)


# ----------------------------------------------------------------------------
# Wrapper: one fused pallas_call for the whole block (NHWC in/out).
# ----------------------------------------------------------------------------
def block_forward_pallas(x_nhwc, weights, biases, pool, stride):
    assert pool == stride, "only non-overlapping pooling implemented"
    N, H, W, Cin = x_nhwc.shape
    K = weights[0].shape[0]
    F = weights[0].shape[3]
    reps = len(weights)
    assert K % 2 == 1, "padding='same' implemented for odd kernel sizes"
    assert H % pool == 0 and W % pool == 0
    p = K // 2
    Hp, Wp = H + 2 * p, W + 2 * p
    Ho, Wo = H // pool, W // pool
    Cmax = max(Cin, F)

    # Fold (K, K, cin, F) -> (K*K*cin, F): every tap lives in the contraction
    # dim so each conv layer is a single MXU matmul; bf16 weights for the MXU.
    w_folded = [w.reshape(K * K * w.shape[2], F).astype(jnp.bfloat16)
                for w in weights]
    b_list = [b.astype(jnp.float32) for b in biases]

    kernel = _make_fused_block_kernel(H, W, Cin, F, K, reps, pool)

    in_specs = [pl.BlockSpec((1, H, W, Cin), lambda n: (n, 0, 0, 0))]
    for w in w_folded:
        in_specs.append(pl.BlockSpec(w.shape, lambda n: (0, 0)))
    for b in b_list:
        in_specs.append(pl.BlockSpec(b.shape, lambda n: (0, 0)))
    out_spec = pl.BlockSpec((1, Ho, Wo, F), lambda n: (n, 0, 0, 0))

    scratch_shapes = [
        pltpu.VMEM((Hp, Wp, Cmax), jnp.bfloat16),        # shared padded activation
        pltpu.VMEM((H * W, K * K * Cmax), jnp.bfloat16), # im2col patch (matmul LHS)
        pltpu.VMEM((Ho * W, F), jnp.float32),            # minimal W-pool staging
    ]

    # Size the scoped VMEM limit to the actual working set (with headroom).
    est = 2 * _nbytes((1, H, W, Cin), x_nhwc.dtype)      # double-buffered input
    est += 2 * _nbytes((1, Ho, Wo, F), x_nhwc.dtype)     # double-buffered output
    for w in w_folded:
        est += 2 * _nbytes(w.shape, jnp.bfloat16)        # (still double-buffered)
    for b in b_list:
        est += 2 * _nbytes(b.shape, jnp.float32)
    est += _nbytes((Hp, Wp, Cmax), jnp.bfloat16)
    est += _nbytes((H * W, K * K * Cmax), jnp.bfloat16)
    est += _nbytes((Ho * W, F), jnp.float32)
    vmem_limit = int(min(max(2 * est, 8 * 1024 * 1024), _vmem_cap_bytes()))

    return pl.pallas_call(
        kernel,
        out_shape=jax.ShapeDtypeStruct((N, Ho, Wo, F), x_nhwc.dtype),
        grid=(N,),
        in_specs=in_specs,
        out_specs=out_spec,
        scratch_shapes=scratch_shapes,
        compiler_params=pltpu.CompilerParams(
            dimension_semantics=("parallel",),   # batch axis shards across TCs
            vmem_limit_bytes=vmem_limit),
    )(x_nhwc, *w_folded, *b_list)


# ----------------------------------------------------------------------------
# Block module (Pallas version).
# ----------------------------------------------------------------------------
class BlockPallas:
    def __init__(self, in_channels, filters, kernel_size, repetitions,
                 pool_size=2, strides=2, key=jax.random.PRNGKey(0)):
        self.in_channels = in_channels
        self.filters = filters
        self.kernel_size = kernel_size
        self.repetitions = repetitions
        self.pool_size = pool_size
        self.strides = strides

        # Deterministic init mimicking PyTorch Conv2d default (uniform +-1/sqrt(fan_in)).
        self.weights = []
        self.biases = []
        cin = in_channels
        for _ in range(repetitions):
            key, kw_key, kb_key = jax.random.split(key, 3)
            fan_in = cin * kernel_size * kernel_size
            bound = 1.0 / math.sqrt(fan_in)
            w = jax.random.uniform(kw_key,
                                   (kernel_size, kernel_size, cin, filters),
                                   jnp.float32, minval=-bound, maxval=bound)
            b = jax.random.uniform(kb_key, (1, filters),
                                   jnp.float32, minval=-bound, maxval=bound)
            self.weights.append(w)
            self.biases.append(b)
            cin = filters

    def __call__(self, x_nchw):
        x = jnp.transpose(x_nchw, (0, 2, 3, 1))                      # NCHW -> NHWC
        y = block_forward_pallas(x, self.weights, self.biases,
                                 self.pool_size, self.strides)
        return jnp.transpose(y, (0, 3, 1, 2))                        # NHWC -> NCHW


# ----------------------------------------------------------------------------
# Plain-JAX reference (mirrors the kernel's bf16-matmul / f32-accumulate numerics).
# ----------------------------------------------------------------------------
def block_reference(x_nchw, weights, biases, pool, stride):
    y = x_nchw
    for w, b in zip(weights, biases):
        w_oihw = jnp.transpose(w, (3, 2, 0, 1)).astype(jnp.bfloat16)
        y = jax.lax.conv_general_dilated(
            y.astype(jnp.bfloat16), w_oihw, window_strides=(1, 1), padding="SAME",
            dimension_numbers=("NCHW", "OIHW", "NCHW"),
            preferred_element_type=jnp.float32)
        y = y + b.reshape(1, -1, 1, 1)
        y = jnp.maximum(y, 0.0)
    y = jax.lax.reduce_window(y, -jnp.inf, jax.lax.max,
                              (1, 1, pool, pool), (1, 1, stride, stride), "VALID")
    return y


if __name__ == "__main__":
    key = jax.random.PRNGKey(0)
    k_x, k_params = jax.random.split(key)

    # Small shapes: batch=2, in_channels=4, spatial=16x16, filters=8, K=3, reps=2
    N, Cin, H, W = 2, 4, 16, 16
    x = jax.random.normal(k_x, (N, Cin, H, W), dtype=jnp.float32)

    block = BlockPallas(in_channels=Cin, filters=8, kernel_size=3,
                        repetitions=2, pool_size=2, strides=2, key=k_params)

    out = jax.block_until_ready(block(x))

    ref = block_reference(x, block.weights, block.biases,
                          block.pool_size, block.strides)
    assert out.shape == (N, 8, H // 2, W // 2), out.shape
    max_err = float(jnp.max(jnp.abs(out - ref)))
    assert jnp.allclose(out, ref, atol=2e-2, rtol=2e-2), max_err

    print("KERNEL_OK")
</pallas_src>

<mosaic_0001>
module attributes {stable_mosaic.version = 11 : i64} {
  func.func @kernel(%arg0: i32, %arg1: memref<1x16x16x4xf32, #tpu.memory_space<vmem>>, %arg2: memref<36x8xbf16, #tpu.memory_space<vmem>>, %arg3: memref<72x8xbf16, #tpu.memory_space<vmem>>, %arg4: memref<1x8xf32, #tpu.memory_space<vmem>>, %arg5: memref<1x8xf32, #tpu.memory_space<vmem>>, %arg6: memref<1x8x8x8xf32, #tpu.memory_space<vmem>>, %arg7: memref<18x18x8xbf16, #tpu.memory_space<vmem>>, %arg8: memref<256x72xbf16, #tpu.memory_space<vmem>>, %arg9: memref<128x8xf32, #tpu.memory_space<vmem>>) attributes {dimension_semantics = [#tpu.dimension_semantics<parallel>], iteration_bounds = array<i64: 2>, scalar_prefetch = 0 : i64, scratch_operands = 3 : i64, tpu.core_type = #tpu.core_type<tc>, window_params = [{transform_indices = @transform_0, window_bounds = array<i64: 1, 16, 16, 4>}, {pipeline_mode = #tpu.pipeline_mode<synchronous>, transform_indices = @transform_1, window_bounds = array<i64: 36, 8>}, {pipeline_mode = #tpu.pipeline_mode<synchronous>, transform_indices = @transform_2, window_bounds = array<i64: 72, 8>}, {pipeline_mode = #tpu.pipeline_mode<synchronous>, transform_indices = @transform_3, window_bounds = array<i64: 1, 8>}, {pipeline_mode = #tpu.pipeline_mode<synchronous>, transform_indices = @transform_4, window_bounds = array<i64: 1, 8>}, {transform_indices = @transform_5, window_bounds = array<i64: 1, 8, 8, 8>}]} {
    %cst = arith.constant 0.000000e+00 : bf16
    %0 = vector.broadcast %cst : bf16 to vector<1x18x8xbf16>
    %c0 = arith.constant 0 : index
    %c0_0 = arith.constant 0 : index
    %c0_1 = arith.constant 0 : index
    %1 = vector.load %arg7[%c0, %c0_0, %c0_1] : memref<18x18x8xbf16, #tpu.memory_space<vmem>>, vector<1x18x8xbf16>
    tpu.vector_store %arg7[%c0, %c0_0, %c0_1], %0 {strides = array<i32>} : memref<18x18x8xbf16, #tpu.memory_space<vmem>>, vector<1x18x8xbf16>,
    %cst_2 = arith.constant 0.000000e+00 : bf16
    %2 = vector.broadcast %cst_2 : bf16 to vector<1x18x8xbf16>
    %c17 = arith.constant 17 : index
    %c0_3 = arith.constant 0 : index
    %c0_4 = arith.constant 0 : index
    %3 = vector.load %arg7[%c17, %c0_3, %c0_4] : memref<18x18x8xbf16, #tpu.memory_space<vmem>>, vector<1x18x8xbf16>
    tpu.vector_store %arg7[%c17, %c0_3, %c0_4], %2 {strides = array<i32>} : memref<18x18x8xbf16, #tpu.memory_space<vmem>>, vector<1x18x8xbf16>,
    %cst_5 = arith.constant 0.000000e+00 : bf16
    %4 = vector.broadcast %cst_5 : bf16 to vector<16x1x8xbf16>
    %c1 = arith.constant 1 : index
    %c0_6 = arith.constant 0 : index
    %c0_7 = arith.constant 0 : index
    %5 = vector.load %arg7[%c1, %c0_6, %c0_7] : memref<18x18x8xbf16, #tpu.memory_space<vmem>>, vector<16x1x8xbf16>
    tpu.vector_store %arg7[%c1, %c0_6, %c0_7], %4 {strides = array<i32>} : memref<18x18x8xbf16, #tpu.memory_space<vmem>>, vector<16x1x8xbf16>,
    %cst_8 = arith.constant 0.000000e+00 : bf16
    %6 = vector.broadcast %cst_8 : bf16 to vector<16x1x8xbf16>
    %c1_9 = arith.constant 1 : index
    %c17_10 = arith.constant 17 : index
    %c0_11 = arith.constant 0 : index
    %7 = vector.load %arg7[%c1_9, %c17_10, %c0_11] : memref<18x18x8xbf16, #tpu.memory_space<vmem>>, vector<16x1x8xbf16>
    tpu.vector_store %arg7[%c1_9, %c17_10, %c0_11], %6 {strides = array<i32>} : memref<18x18x8xbf16, #tpu.memory_space<vmem>>, vector<16x1x8xbf16>,
    %c0_12 = arith.constant 0 : index
    %c0_13 = arith.constant 0 : index
    %c0_14 = arith.constant 0 : index
    %c0_15 = arith.constant 0 : index
    %8 = vector.load %arg1[%c0_12, %c0_13, %c0_14, %c0_15] : memref<1x16x16x4xf32, #tpu.memory_space<vmem>>, vector<1x16x16x4xf32>
    %9 = vector.shape_cast %8 : vector<1x16x16x4xf32> to vector<16x16x4xf32>
    %10 = arith.truncf %9 : vector<16x16x4xf32> to vector<16x16x4xbf16>
    %c1_16 = arith.constant 1 : index
    %c1_17 = arith.constant 1 : index
    %c0_18 = arith.constant 0 : index
    %11 = vector.load %arg7[%c1_16, %c1_17, %c0_18] : memref<18x18x8xbf16, #tpu.memory_space<vmem>>, vector<16x16x4xbf16>
    tpu.vector_store %arg7[%c1_16, %c1_17, %c0_18], %10 {strides = array<i32>} : memref<18x18x8xbf16, #tpu.memory_space<vmem>>, vector<16x16x4xbf16>,
    %c0_19 = arith.constant 0 : index
    %c0_20 = arith.constant 0 : index
    %c0_21 = arith.constant 0 : index
    %12 = vector.load %arg7[%c0_19, %c0_20, %c0_21] : memref<18x18x8xbf16, #tpu.memory_space<vmem>>, vector<16x16x4xbf16>
    %13 = vector.shape_cast %12 : vector<16x16x4xbf16> to vector<256x4xbf16>
    %c0_22 = arith.constant 0 : index
    %c0_23 = arith.constant 0 : index
    %14 = vector.load %arg8[%c0_22, %c0_23] : memref<256x72xbf16, #tpu.memory_space<vmem>>, vector<256x4xbf16>
    tpu.vector_store %arg8[%c0_22, %c0_23], %13 {strides = array<i32>} : memref<256x72xbf16, #tpu.memory_space<vmem>>, vector<256x4xbf16>,
    %c0_24 = arith.constant 0 : index
    %c1_25 = arith.constant 1 : index
    %c0_26 = arith.constant 0 : index
    %15 = vector.load %arg7[%c0_24, %c1_25, %c0_26] : memref<18x18x8xbf16, #tpu.memory_space<vmem>>, vector<16x16x4xbf16>
    %16 = vector.shape_cast %15 : vector<16x16x4xbf16> to vector<256x4xbf16>
    %c0_27 = arith.constant 0 : index
    %c4 = arith.constant 4 : index
    %17 = vector.load %arg8[%c0_27, %c4] : memref<256x72xbf16, #tpu.memory_space<vmem>>, vector<256x4xbf16>
    tpu.vector_store %arg8[%c0_27, %c4], %16 {strides = array<i32>} : memref<256x72xbf16, #tpu.memory_space<vmem>>, vector<256x4xbf16>,
    %c0_28 = arith.constant 0 : index
    %c2 = arith.constant 2 : index
    %c0_29 = arith.constant 0 : index
    %18 = vector.load %arg7[%c0_28, %c2, %c0_29] : memref<18x18x8xbf16, #tpu.memory_space<vmem>>, vector<16x16x4xbf16>
    %19 = vector.shape_cast %18 : vector<16x16x4xbf16> to vector<256x4xbf16>
    %c0_30 = arith.constant 0 : index
    %c8 = arith.constant 8 : index
    %20 = vector.load %arg8[%c0_30, %c8] : memref<256x72xbf16, #tpu.memory_space<vmem>>, vector<256x4xbf16>
    tpu.vector_store %arg8[%c0_30, %c8], %19 {strides = array<i32>} : memref<256x72xbf16, #tpu.memory_space<vmem>>, vector<256x4xbf16>,
    %c1_31 = arith.constant 1 : index
    %c0_32 = arith.constant 0 : index
    %c0_33 = arith.constant 0 : index
    %21 = vector.load %arg7[%c1_31, %c0_32, %c0_33] : memref<18x18x8xbf16, #tpu.memory_space<vmem>>, vector<16x16x4xbf16>
    %22 = vector.shape_cast %21 : vector<16x16x4xbf16> to vector<256x4xbf16>
    %c0_34 = arith.constant 0 : index
    %c12 = arith.constant 12 : index
    %23 = vector.load %arg8[%c0_34, %c12] : memref<256x72xbf16, #tpu.memory_space<vmem>>, vector<256x4xbf16>
    tpu.vector_store %arg8[%c0_34, %c12], %22 {strides = array<i32>} : memref<256x72xbf16, #tpu.memory_space<vmem>>, vector<256x4xbf16>,
    %c1_35 = arith.constant 1 : index
    %c1_36 = arith.constant 1 : index
    %c0_37 = arith.constant 0 : index
    %24 = vector.load %arg7[%c1_35, %c1_36, %c0_37] : memref<18x18x8xbf16, #tpu.memory_space<vmem>>, vector<16x16x4xbf16>
    %25 = vector.shape_cast %24 : vector<16x16x4xbf16> to vector<256x4xbf16>
    %c0_38 = arith.constant 0 : index
    %c16 = arith.constant 16 : index
    %26 = vector.load %arg8[%c0_38, %c16] : memref<256x72xbf16, #tpu.memory_space<vmem>>, vector<256x4xbf16>
    tpu.vector_store %arg8[%c0_38, %c16], %25 {strides = array<i32>} : memref<256x72xbf16, #tpu.memory_space<vmem>>, vector<256x4xbf16>,
    %c1_39 = arith.constant 1 : index
    %c2_40 = arith.constant 2 : index
    %c0_41 = arith.constant 0 : index
    %27 = vector.load %arg7[%c1_39, %c2_40, %c0_41] : memref<18x18x8xbf16, #tpu.memory_space<vmem>>, vector<16x16x4xbf16>
    %28 = vector.shape_cast %27 : vector<16x16x4xbf16> to vector<256x4xbf16>
    %c0_42 = arith.constant 0 : index
    %c20 = arith.constant 20 : index
    %29 = vector.load %arg8[%c0_42, %c20] : memref<256x72xbf16, #tpu.memory_space<vmem>>, vector<256x4xbf16>
    tpu.vector_store %arg8[%c0_42, %c20], %28 {strides = array<i32>} : memref<256x72xbf16, #tpu.memory_space<vmem>>, vector<256x4xbf16>,
    %c2_43 = arith.constant 2 : index
    %c0_44 = arith.constant 0 : index
    %c0_45 = arith.constant 0 : index
    %30 = vector.load %arg7[%c2_43, %c0_44, %c0_45] : memref<18x18x8xbf16, #tpu.memory_space<vmem>>, vector<16x16x4xbf16>
    %31 = vector.shape_cast %30 : vector<16x16x4xbf16> to vector<256x4xbf16>
    %c0_46 = arith.constant 0 : index
    %c24 = arith.constant 24 : index
    %32 = vector.load %arg8[%c0_46, %c24] : memref<256x72xbf16, #tpu.memory_space<vmem>>, vector<256x4xbf16>
    tpu.vector_store %arg8[%c0_46, %c24], %31 {strides = array<i32>} : memref<256x72xbf16, #tpu.memory_space<vmem>>, vector<256x4xbf16>,
    %c2_47 = arith.constant 2 : index
    %c1_48 = arith.constant 1 : index
    %c0_49 = arith.constant 0 : index
    %33 = vector.load %arg7[%c2_47, %c1_48, %c0_49] : memref<18x18x8xbf16, #tpu.memory_space<vmem>>, vector<16x16x4xbf16>
    %34 = vector.shape_cast %33 : vector<16x16x4xbf16> to vector<256x4xbf16>
    %c0_50 = arith.constant 0 : index
    %c28 = arith.constant 28 : index
    %35 = vector.load %arg8[%c0_50, %c28] : memref<256x72xbf16, #tpu.memory_space<vmem>>, vector<256x4xbf16>
    tpu.vector_store %arg8[%c0_50, %c28], %34 {strides = array<i32>} : memref<256x72xbf16, #tpu.memory_space<vmem>>, vector<256x4xbf16>,
    %c2_51 = arith.constant 2 : index
    %c2_52 = arith.constant 2 : index
    %c0_53 = arith.constant 0 : index
    %36 = vector.load %arg7[%c2_51, %c2_52, %c0_53] : memref<18x18x8xbf16, #tpu.memory_space<vmem>>, vector<16x16x4xbf16>
    %37 = vector.shape_cast %36 : vector<16x16x4xbf16> to vector<256x4xbf16>
    %c0_54 = arith.constant 0 : index
    %c32 = arith.constant 32 : index
    %38 = vector.load %arg8[%c0_54, %c32] : memref<256x72xbf16, #tpu.memory_space<vmem>>, vector<256x4xbf16>
    tpu.vector_store %arg8[%c0_54, %c32], %37 {strides = array<i32>} : memref<256x72xbf16, #tpu.memory_space<vmem>>, vector<256x4xbf16>,
    %c0_55 = arith.constant 0 : index
    %c0_56 = arith.constant 0 : index
    %39 = vector.load %arg8[%c0_55, %c0_56] : memref<256x72xbf16, #tpu.memory_space<vmem>>, vector<256x36xbf16>
    %c0_57 = arith.constant 0 : index
    %c0_58 = arith.constant 0 : index
    %40 = vector.load %arg2[%c0_57, %c0_58] : memref<36x8xbf16, #tpu.memory_space<vmem>>, vector<36x8xbf16>
    %cst_59 = arith.constant dense<0.000000e+00> : vector<256x8xf32>
    %41 = tpu.matmul %39, %40, %cst_59 {dimension_numbers = #tpu.dot_dimension_numbers<[1], [0], [0], [1], [0, 0, 1, 1], [], []>} : vector<256x36xbf16>, vector<36x8xbf16>, vector<256x8xf32> -> vector<256x8xf32>
    %c0_60 = arith.constant 0 : index
    %c0_61 = arith.constant 0 : index
    %42 = vector.load %arg4[%c0_60, %c0_61] : memref<1x8xf32, #tpu.memory_space<vmem>>, vector<1x8xf32>
    %43 = vector.broadcast %42 : vector<1x8xf32> to vector<256x8xf32>
    %44 = arith.addf %41, %43 : vector<256x8xf32>
    %cst_62 = arith.constant 0.000000e+00 : f32
    %45 = vector.broadcast %cst_62 : f32 to vector<256x8xf32>
    %46 = arith.maximumf %44, %45 : vector<256x8xf32>
    %47 = vector.shape_cast %46 : vector<256x8xf32> to vector<16x16x8xf32>
    %48 = arith.truncf %47 : vector<16x16x8xf32> to vector<16x16x8xbf16>
    %c1_63 = arith.constant 1 : index
    %c1_64 = arith.constant 1 : index
    %c0_65 = arith.constant 0 : index
    %49 = vector.load %arg7[%c1_63, %c1_64, %c0_65] : memref<18x18x8xbf16, #tpu.memory_space<vmem>>, vector<16x16x8xbf16>
    tpu.vector_store %arg7[%c1_63, %c1_64, %c0_65], %48 {strides = array<i32>} : memref<18x18x8xbf16, #tpu.memory_space<vmem>>, vector<16x16x8xbf16>,
    %c0_66 = arith.constant 0 : index
    %c0_67 = arith.constant 0 : index
    %c0_68 = arith.constant 0 : index
    %50 = vector.load %arg7[%c0_66, %c0_67, %c0_68] : memref<18x18x8xbf16, #tpu.memory_space<vmem>>, vector<16x16x8xbf16>
    %51 = vector.shape_cast %50 : vector<16x16x8xbf16> to vector<256x8xbf16>
    %c0_69 = arith.constant 0 : index
    %c0_70 = arith.constant 0 : index
    %52 = vector.load %arg8[%c0_69, %c0_70] : memref<256x72xbf16, #tpu.memory_space<vmem>>, vector<256x8xbf16>
    tpu.vector_store %arg8[%c0_69, %c0_70], %51 {strides = array<i32>} : memref<256x72xbf16, #tpu.memory_space<vmem>>, vector<256x8xbf16>,
    %c0_71 = arith.constant 0 : index
    %c1_72 = arith.constant 1 : index
    %c0_73 = arith.constant 0 : index
    %53 = vector.load %arg7[%c0_71, %c1_72, %c0_73] : memref<18x18x8xbf16, #tpu.memory_space<vmem>>, vector<16x16x8xbf16>
    %54 = vector.shape_cast %53 : vector<16x16x8xbf16> to vector<256x8xbf16>
    %c0_74 = arith.constant 0 : index
    %c8_75 = arith.constant 8 : index
    %55 = vector.load %arg8[%c0_74, %c8_75] : memref<256x72xbf16, #tpu.memory_space<vmem>>, vector<256x8xbf16>
    tpu.vector_store %arg8[%c0_74, %c8_75], %54 {strides = array<i32>} : memref<256x72xbf16, #tpu.memory_space<vmem>>, vector<256x8xbf16>,
    %c0_76 = arith.constant 0 : index
    %c2_77 = arith.constant 2 : index
    %c0_78 = arith.constant 0 : index
    %56 = vector.load %arg7[%c0_76, %c2_77, %c0_78] : memref<18x18x8xbf16, #tpu.memory_space<vmem>>, vector<16x16x8xbf16>
    %57 = vector.shape_cast %56 : vector<16x16x8xbf16> to vector<256x8xbf16>
    %c0_79 = arith.constant 0 : index
    %c16_80 = arith.constant 16 : index
    %58 = vector.load %arg8[%c0_79, %c16_80] : memref<256x72xbf16, #tpu.memory_space<vmem>>, vector<256x8xbf16>
    tpu.vector_store %arg8[%c0_79, %c16_80], %57 {strides = array<i32>} : memref<256x72xbf16, #tpu.memory_space<vmem>>, vector<256x8xbf16>,
    %c1_81 = arith.constant 1 : index
    %c0_82 = arith.constant 0 : index
    %c0_83 = arith.constant 0 : index
    %59 = vector.load %arg7[%c1_81, %c0_82, %c0_83] : memref<18x18x8xbf16, #tpu.memory_space<vmem>>, vector<16x16x8xbf16>
    %60 = vector.shape_cast %59 : vector<16x16x8xbf16> to vector<256x8xbf16>
    %c0_84 = arith.constant 0 : index
    %c24_85 = arith.constant 24 : index
    %61 = vector.load %arg8[%c0_84, %c24_85] : memref<256x72xbf16, #tpu.memory_space<vmem>>, vector<256x8xbf16>
    tpu.vector_store %arg8[%c0_84, %c24_85], %60 {strides = array<i32>} : memref<256x72xbf16, #tpu.memory_space<vmem>>, vector<256x8xbf16>,
    %c1_86 = arith.constant 1 : index
    %c1_87 = arith.constant 1 : index
    %c0_88 = arith.constant 0 : index
    %62 = vector.load %arg7[%c1_86, %c1_87, %c0_88] : memref<18x18x8xbf16, #tpu.memory_space<vmem>>, vector<16x16x8xbf16>
    %63 = vector.shape_cast %62 : vector<16x16x8xbf16> to vector<256x8xbf16>
    %c0_89 = arith.constant 0 : index
    %c32_90 = arith.constant 32 : index
    %64 = vector.load %arg8[%c0_89, %c32_90] : memref<256x72xbf16, #tpu.memory_space<vmem>>, vector<256x8xbf16>
    tpu.vector_store %arg8[%c0_89, %c32_90], %63 {strides = array<i32>} : memref<256x72xbf16, #tpu.memory_space<vmem>>, vector<256x8xbf16>,
    %c1_91 = arith.constant 1 : index
    %c2_92 = arith.constant 2 : index
    %c0_93 = arith.constant 0 : index
    %65 = vector.load %arg7[%c1_91, %c2_92, %c0_93] : memref<18x18x8xbf16, #tpu.memory_space<vmem>>, vector<16x16x8xbf16>
    %66 = vector.shape_cast %65 : vector<16x16x8xbf16> to vector<256x8xbf16>
    %c0_94 = arith.constant 0 : index
    %c40 = arith.constant 40 : index
    %67 = vector.load %arg8[%c0_94, %c40] : memref<256x72xbf16, #tpu.memory_space<vmem>>, vector<256x8xbf16>
    tpu.vector_store %arg8[%c0_94, %c40], %66 {strides = array<i32>} : memref<256x72xbf16, #tpu.memory_space<vmem>>, vector<256x8xbf16>,
    %c2_95 = arith.constant 2 : index
    %c0_96 = arith.constant 0 : index
    %c0_97 = arith.constant 0 : index
    %68 = vector.load %arg7[%c2_95, %c0_96, %c0_97] : memref<18x18x8xbf16, #tpu.memory_space<vmem>>, vector<16x16x8xbf16>
    %69 = vector.shape_cast %68 : vector<16x16x8xbf16> to vector<256x8xbf16>
    %c0_98 = arith.constant 0 : index
    %c48 = arith.constant 48 : index
    %70 = vector.load %arg8[%c0_98, %c48] : memref<256x72xbf16, #tpu.memory_space<vmem>>, vector<256x8xbf16>
    tpu.vector_store %arg8[%c0_98, %c48], %69 {strides = array<i32>} : memref<256x72xbf16, #tpu.memory_space<vmem>>, vector<256x8xbf16>,
    %c2_99 = arith.constant 2 : index
    %c1_100 = arith.constant 1 : index
    %c0_101 = arith.constant 0 : index
    %71 = vector.load %arg7[%c2_99, %c1_100, %c0_101] : memref<18x18x8xbf16, #tpu.memory_space<vmem>>, vector<16x16x8xbf16>
    %72 = vector.shape_cast %71 : vector<16x16x8xbf16> to vector<256x8xbf16>
    %c0_102 = arith.constant 0 : index
    %c56 = arith.constant 56 : index
    %73 = vector.load %arg8[%c0_102, %c56] : memref<256x72xbf16, #tpu.memory_space<vmem>>, vector<256x8xbf16>
    tpu.vector_store %arg8[%c0_102, %c56], %72 {strides = array<i32>} : memref<256x72xbf16, #tpu.memory_space<vmem>>, vector<256x8xbf16>,
    %c2_103 = arith.constant 2 : index
    %c2_104 = arith.constant 2 : index
    %c0_105 = arith.constant 0 : index
    %74 = vector.load %arg7[%c2_103, %c2_104, %c0_105] : memref<18x18x8xbf16, #tpu.memory_space<vmem>>, vector<16x16x8xbf16>
    %75 = vector.shape_cast %74 : vector<16x16x8xbf16> to vector<256x8xbf16>
    %c0_106 = arith.constant 0 : index
    %c64 = arith.constant 64 : index
    %76 = vector.load %arg8[%c0_106, %c64] : memref<256x72xbf16, #tpu.memory_space<vmem>>, vector<256x8xbf16>
    tpu.vector_store %arg8[%c0_106, %c64], %75 {strides = array<i32>} : memref<256x72xbf16, #tpu.memory_space<vmem>>, vector<256x8xbf16>,
    %c0_107 = arith.constant 0 : index
    %c0_108 = arith.constant 0 : index
    %77 = vector.load %arg8[%c0_107, %c0_108] : memref<256x72xbf16, #tpu.memory_space<vmem>>, vector<256x72xbf16>
    %c0_109 = arith.constant 0 : index
    %c0_110 = arith.constant 0 : index
    %78 = vector.load %arg3[%c0_109, %c0_110] : memref<72x8xbf16, #tpu.memory_space<vmem>>, vector<72x8xbf16>
    %cst_111 = arith.constant dense<0.000000e+00> : vector<256x8xf32>
    %79 = tpu.matmul %77, %78, %cst_111 {dimension_numbers = #tpu.dot_dimension_numbers<[1], [0], [0], [1], [0, 0, 1, 1], [], []>} : vector<256x72xbf16>, vector<72x8xbf16>, vector<256x8xf32> -> vector<256x8xf32>
    %c0_112 = arith.constant 0 : index
    %c0_113 = arith.constant 0 : index
    %80 = vector.load %arg5[%c0_112, %c0_113] : memref<1x8xf32, #tpu.memory_space<vmem>>, vector<1x8xf32>
    %81 = vector.broadcast %80 : vector<1x8xf32> to vector<256x8xf32>
    %82 = arith.addf %79, %81 : vector<256x8xf32>
    %cst_114 = arith.constant 0.000000e+00 : f32
    %83 = vector.broadcast %cst_114 : f32 to vector<256x8xf32>
    %84 = arith.maximumf %82, %83 : vector<256x8xf32>
    %85 = vector.shape_cast %84 : vector<256x8xf32> to vector<8x2x16x8xf32>
    %86 = vector.extract_strided_slice %85 {offsets = [0, 0, 0, 0], sizes = [8, 1, 16, 8], strides = [1, 1, 1, 1]} : vector<8x2x16x8xf32> to vector<8x1x16x8xf32>
    %87 = vector.shape_cast %86 : vector<8x1x16x8xf32> to vector<8x16x8xf32>
    %88 = vector.extract_strided_slice %85 {offsets = [0, 1, 0, 0], sizes = [8, 1, 16, 8], strides = [1, 1, 1, 1]} : vector<8x2x16x8xf32> to vector<8x1x16x8xf32>
    %89 = vector.shape_cast %88 : vector<8x1x16x8xf32> to vector<8x16x8xf32>
    %90 = arith.maximumf %87, %89 : vector<8x16x8xf32>
    %91 = vector.shape_cast %90 : vector<8x16x8xf32> to vector<128x8xf32>
    %c0_115 = arith.constant 0 : index
    %c0_116 = arith.constant 0 : index
    %92 = vector.load %arg9[%c0_115, %c0_116] : memref<128x8xf32, #tpu.memory_space<vmem>>, vector<128x8xf32>
    tpu.vector_store %arg9[%c0_115, %c0_116], %91 {strides = array<i32>} : memref<128x8xf32, #tpu.memory_space<vmem>>, vector<128x8xf32>,
    %c0_117 = arith.constant 0 : index
    %c0_118 = arith.constant 0 : index
    %93 = tpu.strided_load %arg9[%c0_117, %c0_118] {strides = array<i32: 2, 1>} : memref<128x8xf32, #tpu.memory_space<vmem>>, vector<64x8xf32>
    %c1_119 = arith.constant 1 : index
    %c0_120 = arith.constant 0 : index
    %94 = tpu.strided_load %arg9[%c1_119, %c0_120] {strides = array<i32: 2, 1>} : memref<128x8xf32, #tpu.memory_space<vmem>>, vector<64x8xf32>
    %95 = arith.maximumf %93, %94 : vector<64x8xf32>
    %96 = vector.shape_cast %95 : vector<64x8xf32> to vector<8x8x8xf32>
    %c0_121 = arith.constant 0 : index
    %c0_122 = arith.constant 0 : index
    %c0_123 = arith.constant 0 : index
    %c0_124 = arith.constant 0 : index
    %97 = vector.load %arg6[%c0_121, %c0_122, %c0_123, %c0_124] : memref<1x8x8x8xf32, #tpu.memory_space<vmem>>, vector<1x8x8x8xf32>
    %98 = vector.shape_cast %97 : vector<1x8x8x8xf32> to vector<8x8x8xf32>
    %99 = vector.shape_cast %96 : vector<8x8x8xf32> to vector<1x8x8x8xf32>
    tpu.vector_store %arg6[%c0_121, %c0_122, %c0_123, %c0_124], %99 {strides = array<i32>} : memref<1x8x8x8xf32, #tpu.memory_space<vmem>>, vector<1x8x8x8xf32>,
    return
  }
  func.func @transform_0(%arg0: i32) -> (i32, i32, i32, i32) {
    %c0_i32 = arith.constant 0 : i32
    %c0_i32_0 = arith.constant 0 : i32
    %c0_i32_1 = arith.constant 0 : i32
    %c0_i32_2 = arith.constant 0 : i32
    return %arg0, %c0_i32, %c0_i32_0, %c0_i32_1 : i32, i32, i32, i32
  }
  func.func @transform_1(%arg0: i32) -> (i32, i32) {
    %c0_i32 = arith.constant 0 : i32
    %c0_i32_0 = arith.constant 0 : i32
    %c0_i32_1 = arith.constant 0 : i32
    return %c0_i32, %c0_i32_0 : i32, i32
  }
  func.func @transform_2(%arg0: i32) -> (i32, i32) {
    %c0_i32 = arith.constant 0 : i32
    %c0_i32_0 = arith.constant 0 : i32
    %c0_i32_1 = arith.constant 0 : i32
    return %c0_i32, %c0_i32_0 : i32, i32
  }
  func.func @transform_3(%arg0: i32) -> (i32, i32) {
    %c0_i32 = arith.constant 0 : i32
    %c0_i32_0 = arith.constant 0 : i32
    %c0_i32_1 = arith.constant 0 : i32
    return %c0_i32, %c0_i32_0 : i32, i32
  }
  func.func @transform_4(%arg0: i32) -> (i32, i32) {
    %c0_i32 = arith.constant 0 : i32
    %c0_i32_0 = arith.constant 0 : i32
    %c0_i32_1 = arith.constant 0 : i32
    return %c0_i32, %c0_i32_0 : i32, i32
  }
  func.func @transform_5(%arg0: i32) -> (i32, i32, i32, i32) {
    %c0_i32 = arith.constant 0 : i32
    %c0_i32_0 = arith.constant 0 : i32
    %c0_i32_1 = arith.constant 0 : i32
    %c0_i32_2 = arith.constant 0 : i32
    return %arg0, %c0_i32, %c0_i32_0, %c0_i32_1 : i32, i32, i32, i32
  }
}

</mosaic_0001>

<llo_original>
// kernel: tpu_custom_call.1
$region0: #{tpu_custom_call.1}
  #allocation0 [shape = 'u32[]', space=smem, size = 0x4, offset = 0x4, fixed_abs, tag = 'smem constant byte address 0x4 - core index']
  #allocation1 [shape = 'u32[72,128]{1,0:T(1,128)}', space=vmem, size = 0x9000, scoped, tag = 'internal scratch']
  #allocation2 [shape = 'bf16[18,18,8]{2,1,0:T(8,128)(2,1)}', space=vmem, size = 0x1b000, scoped, tag = 'scratch operand']
  #allocation3 [shape = 'bf16[256,72]{1,0:T(8,128)(2,1)}', space=vmem, size = 0x10000, scoped, tag = 'scratch operand']
  #allocation4 [shape = 'f32[128,8]{1,0:T(8,128)}', space=vmem, size = 0x10000, scoped, tag = 'scratch operand']
  %s0 = inlined_call_operand.vmem [shape: f32[2,16,16,4], index: 0, kind: input, shape index: {}]
  %s1 = inlined_call_operand.vmem [shape: bf16[36,8], index: 1, kind: input, shape index: {}]
  %s2 = inlined_call_operand.vmem [shape: bf16[72,8], index: 2, kind: input, shape index: {}]
  %s3 = inlined_call_operand.vmem [shape: f32[1,8], index: 3, kind: input, shape index: {}]
  %s4 = inlined_call_operand.vmem [shape: f32[1,8], index: 4, kind: input, shape index: {}]
  %s5 = inlined_call_operand.hbm [shape: f32[2,8,8,8], index: 5, kind: output, shape index: {}]
  %s6 = sld [smem:[#allocation0]]
  $region53: #{tpu_custom_call.1} parent=0
    _
  %s8 = ssub.s32 1, %s6
  %s9 = scalar_select 0, %s8, %s6
  $region1: #{tpu_custom_call.1} parent=0
    #allocation5 [shape = 'u8[65536]{0}', space=vmem, size = 0x10000, scoped, tag = 'output window, operand 0']
    #allocation6 [shape = 's32[2]{0}', space=sflag, size = 0x8, scoped, tag = 'scoped memory for tpu_custom_call.1']
    %10 = vsyncpa [#allocation6], 0
    %s11 = scalar_lea.sflag [#allocation6], 1
    %12 = vsyncpa %s11, 0
    loop: start=0, step=1, limit=4
    $region2: #{tpu_custom_call.1} parent=1 // loop_pre_header
      _
    $region3: #{tpu_custom_call.1} parent=1 // loop_header
      %s14 = sphi 0, %s18
      %p15 = scmp.ge.s32.totalorder %s14, 4
      %s24 = sphi 0, %s26
      %s27 = sphi 0, %s24
      %s28 = sphi 0, %s27
      %s44 = sphi 0, %s28
      %s48 = sphi 0, %s48
      %s50 = sphi 0, %s48
      %s51 = sphi 0, %s50
      %s65 = sphi 0, %s51
      %s69 = sphi 0, %s69
      %s71 = sphi 0, %s69
      %s72 = sphi 0, %s71
      %s86 = sphi 0, %s72
      %s90 = sphi 0, %s90
      %s92 = sphi 0, %s90
      %s93 = sphi 0, %s92
      %s107 = sphi 0, %s93
      %s111 = sphi 0, %s111
      %s113 = sphi 0, %s111
      %s114 = sphi 0, %s113
      %s128 = sphi 0, %s114
      %s134 = sphi 0, %s136
      %s137 = sphi 0, %s134
      %s138 = sphi 0, %s137
      %s154 = sphi 0, %s138
    $region4: #{tpu_custom_call.1} parent=1 // loop_header_branch
      %17 = sbr.rel (%p15) target = $region8
    $region5: #{tpu_custom_call.1} parent=1 // loop_body
      %s19 = ssub.s32 %s14, 1
      %s20 = ssub.s32 %s14, 2
      %s21 = sadd.s32 %s14, 1
      %s22 = ssub.s32 %s14, %s21
      %p23 = scmp.eq.s32.totalorder %s22, 0
      %s25 = sadd.s32 %s24, 1
      %s26 = scalar_select %p23, %s24, %s25
      %p29 = pneg %p23
      %p30 = scmp.eq.s32.totalorder %s14, 1
      %p31 = por %p29, %p30
      %p32 = scmp.ne.s32.totalorder %s24, %s27
      %p33 = scmp.eq.s32.totalorder %s14, 0
      %p34 = por %p32, %p33
      %p35 = scmp.ne.s32.totalorder %s24, %s27
      %p36 = scmp.eq.s32.totalorder %s19, 1
      %p37 = por %p35, %p36
      %p38 = scmp.ne.s32.totalorder %s27, %s28
      %p39 = scmp.eq.s32.totalorder %s19, 0
      %p40 = por %p38, %p39
      %p41 = scmp.ne.s32.totalorder %s27, %s28
      %p42 = scmp.eq.s32.totalorder %s20, 1
      %p43 = por %p41, %p42
      %p45 = scmp.ne.s32.totalorder %s28, %s44
      %p46 = scmp.eq.s32.totalorder %s20, 0
      %p47 = por %p45, %p46
      %s49 = sadd.s32 %s48, 1
      %p52 = scmp.eq.s32.totalorder %s14, 1
      %p53 = scmp.ne.s32.totalorder %s48, %s50
      %p54 = scmp.eq.s32.totalorder %s14, 0
      %p55 = por %p53, %p54
      %p56 = scmp.ne.s32.totalorder %s48, %s50
      %p57 = scmp.eq.s32.totalorder %s19, 1
      %p58 = por %p56, %p57
      %p59 = scmp.ne.s32.totalorder %s50, %s51
      %p60 = scmp.eq.s32.totalorder %s19, 0
      %p61 = por %p59, %p60
      %p62 = scmp.ne.s32.totalorder %s50, %s51
      %p63 = scmp.eq.s32.totalorder %s20, 1
      %p64 = por %p62, %p63
      %p66 = scmp.ne.s32.totalorder %s51, %s65
      %p67 = scmp.eq.s32.totalorder %s20, 0
      %p68 = por %p66, %p67
      %s70 = sadd.s32 %s69, 1
      %p73 = scmp.eq.s32.totalorder %s14, 1
      %p74 = scmp.ne.s32.totalorder %s69, %s71
      %p75 = scmp.eq.s32.totalorder %s14, 0
      %p76 = por %p74, %p75
      %p77 = scmp.ne.s32.totalorder %s69, %s71
      %p78 = scmp.eq.s32.totalorder %s19, 1
      %p79 = por %p77, %p78
      %p80 = scmp.ne.s32.totalorder %s71, %s72
      %p81 = scmp.eq.s32.totalorder %s19, 0
      %p82 = por %p80, %p81
      %p83 = scmp.ne.s32.totalorder %s71, %s72
      %p84 = scmp.eq.s32.totalorder %s20, 1
      %p85 = por %p83, %p84
      %p87 = scmp.ne.s32.totalorder %s72, %s86
      %p88 = scmp.eq.s32.totalorder %s20, 0
      %p89 = por %p87, %p88
      %s91 = sadd.s32 %s90, 1
      %p94 = scmp.eq.s32.totalorder %s14, 1
      %p95 = scmp.ne.s32.totalorder %s90, %s92
      %p96 = scmp.eq.s32.totalorder %s14, 0
      %p97 = por %p95, %p96
      %p98 = scmp.ne.s32.totalorder %s90, %s92
      %p99 = scmp.eq.s32.totalorder %s19, 1
      %p100 = por %p98, %p99
      %p101 = scmp.ne.s32.totalorder %s92, %s93
      %p102 = scmp.eq.s32.totalorder %s19, 0
      %p103 = por %p101, %p102
      %p104 = scmp.ne.s32.totalorder %s92, %s93
      %p105 = scmp.eq.s32.totalorder %s20, 1
      %p106 = por %p104, %p105
      %p108 = scmp.ne.s32.totalorder %s93, %s107
      %p109 = scmp.eq.s32.totalorder %s20, 0
      %p110 = por %p108, %p109
      %s112 = sadd.s32 %s111, 1
      %p115 = scmp.eq.s32.totalorder %s14, 1
      %p116 = scmp.ne.s32.totalorder %s111, %s113
      %p117 = scmp.eq.s32.totalorder %s14, 0
      %p118 = por %p116, %p117
      %p119 = scmp.ne.s32.totalorder %s111, %s113
      %p120 = scmp.eq.s32.totalorder %s19, 1
      %p121 = por %p119, %p120
      %p122 = scmp.ne.s32.totalorder %s113, %s114
      %p123 = scmp.eq.s32.totalorder %s19, 0
      %p124 = por %p122, %p123
      %p125 = scmp.ne.s32.totalorder %s113, %s114
      %p126 = scmp.eq.s32.totalorder %s20, 1
      %p127 = por %p125, %p126
      %p129 = scmp.ne.s32.totalorder %s114, %s128
      %p130 = scmp.eq.s32.totalorder %s20, 0
      %p131 = por %p129, %p130
      %s132 = ssub.s32 %s14, %s21
      %p133 = scmp.eq.s32.totalorder %s132, 0
      %s135 = sadd.s32 %s134, 1
      %s136 = scalar_select %p133, %s134, %s135
      %p139 = pneg %p133
      %p140 = scmp.eq.s32.totalorder %s14, 1
      %p141 = por %p139, %p140
      %p142 = scmp.ne.s32.totalorder %s134, %s137
      %p143 = scmp.eq.s32.totalorder %s14, 0
      %p144 = por %p142, %p143
      %p145 = scmp.ne.s32.totalorder %s134, %s137
      %p146 = scmp.eq.s32.totalorder %s19, 1
      %p147 = por %p145, %p146
      %p148 = scmp.ne.s32.totalorder %s137, %s138
      %p149 = scmp.eq.s32.totalorder %s19, 0
      %p150 = por %p148, %p149
      %p151 = scmp.ne.s32.totalorder %s137, %s138
      %p152 = scmp.eq.s32.totalorder %s20, 1
      %p153 = por %p151, %p152
      %p155 = scmp.ne.s32.totalorder %s138, %s154
      %p156 = scmp.eq.s32.totalorder %s20, 0
      %p157 = por %p155, %p156
      %p158 = scmp.le.s32.totalorder 1, %s14
      %p159 = scmp.lt.s32.totalorder %s14, 3
      %p160 = pnand %p158, %p159
      %p161 = pneg %p160
      // Predicated region
      $region9: #{tpu_custom_call.1} parent=5 // pred_check
        _
      $region10: #{tpu_custom_call.1} parent=5 // pred_check_branch
        %163 = sbr.rel (%p160) target = $region12
      $region11: #{tpu_custom_call.1} parent=5 // pred_region
        %s164 = ssub.s32 %s14, 1
        // Predicated region
        $region13: #{tpu_custom_call.1} parent=11 // pred_check
          %p165 = pneg %p61
        $region14: #{tpu_custom_call.1} parent=11 // pred_check_branch
          %167 = sbr.rel (%p165) target = $region16
        $region15: #{tpu_custom_call.1} parent=11 // pred_region
          _
        $region16: #{tpu_custom_call.1} parent=11 // pred_fallthru
          _
        // Predicated region
        $region17: #{tpu_custom_call.1} parent=11 // pred_check
          %p168 = pneg %p82
        $region18: #{tpu_custom_call.1} parent=11 // pred_check_branch
          %170 = sbr.rel (%p168) target = $region20
        $region19: #{tpu_custom_call.1} parent=11 // pred_region
          _
        $region20: #{tpu_custom_call.1} parent=11 // pred_fallthru
          _
        // Predicated region
        $region21: #{tpu_custom_call.1} parent=11 // pred_check
          %p171 = pneg %p103
        $region22: #{tpu_custom_call.1} parent=11 // pred_check_branch
          %173 = sbr.rel (%p171) target = $region24
        $region23: #{tpu_custom_call.1} parent=11 // pred_region
          _
        $region24: #{tpu_custom_call.1} parent=11 // pred_fallthru
          _
        // Predicated region
        $region25: #{tpu_custom_call.1} parent=11 // pred_check
          %p174 = pneg %p124
        $region26: #{tpu_custom_call.1} parent=11 // pred_check_branch
          %176 = sbr.rel (%p174) target = $region28
        $region27: #{tpu_custom_call.1} parent=11 // pred_region
          _
        $region28: #{tpu_custom_call.1} parent=11 // pred_fallthru
          _
      $region12: #{tpu_custom_call.1} parent=5 // pred_fallthru
        _
      %p177 = scmp.lt.s32.totalorder %s14, 2
      // Predicated region
      $region29: #{tpu_custom_call.1} parent=5 // pred_check
        %p178 = pneg %p177
      $region30: #{tpu_custom_call.1} parent=5 // pred_check_branch
        %180 = sbr.rel (%p178) target = $region32
      $region31: #{tpu_custom_call.1} parent=5 // pred_region
        // Predicated region
        $region33: #{tpu_custom_call.1} parent=31 // pred_check
          %p181 = pneg %p34
        $region34: #{tpu_custom_call.1} parent=31 // pred_check_branch
          %183 = sbr.rel (%p181) target = $region36
        $region35: #{tpu_custom_call.1} parent=31 // pred_region
          %p184 = scmp.lt.s32.totalorder %s14, 1
          %s185 = scalar_select %p184, %s14, 1
          %s186 = smul.addr %s185, 32
          %s187 = smul.addr %s186, 8
          %s188 = scalar_lea.vmem %s0, %s187
        $region36: #{tpu_custom_call.1} parent=31 // pred_fallthru
          _
      $region32: #{tpu_custom_call.1} parent=5 // pred_fallthru
        _
      %p189 = scmp.le.s32.totalorder 1, %s14
      %p190 = scmp.lt.s32.totalorder %s14, 3
      %p191 = pnand %p189, %p190
      %p192 = pneg %p191
      // Predicated region
      $region37: #{tpu_custom_call.1} parent=5 // pred_check
        _
      $region38: #{tpu_custom_call.1} parent=5 // pred_check_branch
        %194 = sbr.rel (%p191) target = $region40
      $region39: #{tpu_custom_call.1} parent=5 // pred_region
        %s195 = ssub.s32 %s14, 1
        %p196 = scmp.lt.s32.totalorder %s19, 1
        %s197 = scalar_select %p196, %s19, 1
        %s198 = smul.addr %s197, 32
        %s199 = smul.addr %s198, 8
        %s200 = scalar_lea.vmem %s0, %s199
        %p201 = pneg %p40
        %p202 = pneg %p37
        %p203 = pneg %p61
        %p204 = pneg %p58
        %p205 = pneg %p82
        %p206 = pneg %p79
        %p207 = pneg %p103
        %p208 = pneg %p100
        %p209 = pneg %p124
        %p210 = pneg %p121
        %p211 = pneg %p150
        %p212 = pneg %p147
        %s213 = sand.u32 %s137, 1
        %s214 = scalar_lea.sflag [#allocation6], %s213
        %s215 = sand.u32 %s137, 1
        %s216 = smul.addr %s215, 64
        %s217 = scalar_lea.vmem [#allocation5], %s216
        %p218 = scmp.lt.s32.totalorder %s19, 1
        %s219 = scalar_select %p218, %s19, 1
        %s220 = smul.addr %s219, 32
        %s221 = smul.addr %s220, 8
        %s222 = scalar_lea.vmem %s0, %s221
        %vm224 = vcmask 60416
        %225 = vst.msk [vmem:[#allocation2] sm:$0xf] %vm224, 0
        %226 = vst.msk [vmem:[#allocation2 + $0x4] sm:$0xf] %vm224, 0
        %vm227 = vcmask 57344
        %228 = vst.msk [vmem:[#allocation2 + $0x8] sm:$0x1] %vm227, 0
        %s229 = scalar_lea.vmem [#allocation2], 204
        %230 = vst.msk [vmem:[%s229] sm:$0xf] %vm224, 0
        %231 = vst.msk [vmem:[%s229 + $0x4] sm:$0xf] %vm224, 0
        %232 = vst.msk [vmem:[%s229 + $0x8] sm:$0x1] %vm227, 0
        %s233 = scalar_lea.vmem [#allocation2], 12
        %vm234 = vcmask 57344
        %vm235 = vsmask.f32 256
        %vm236 = vmand %vm234, %vm235
        %v237 = vld [vmem:[%s233] sm:$0x1]
        %v238 = vsel %vm236, 0, %v237
        %239 = vst [vmem:[%s233] sm:$0x1] %v238
        %v240 = vld [vmem:[%s233 + $0xc] sm:$0x1]
        %v241 = vsel %vm236, 0, %v240
        %242 = vst [vmem:[%s233 + $0xc] sm:$0x1] %v241
        %v243 = vld [vmem:[%s233 + $0x18] sm:$0x1]
        %v244 = vsel %vm236, 0, %v243
        %245 = vst [vmem:[%s233 + $0x18] sm:$0x1] %v244
        %v246 = vld [vmem:[%s233 + $0x24] sm:$0x1]
        %v247 = vsel %vm236, 0, %v246
        %248 = vst [vmem:[%s233 + $0x24] sm:$0x1] %v247
        %v249 = vld [vmem:[%s233 + $0x30] sm:$0x1]
        %v250 = vsel %vm236, 0, %v249
        %251 = vst [vmem:[%s233 + $0x30] sm:$0x1] %v250
        %v252 = vld [vmem:[%s233 + $0x3c] sm:$0x1]
        %v253 = vsel %vm236, 0, %v252
        %254 = vst [vmem:[%s233 + $0x3c] sm:$0x1] %v253
        %v255 = vld [vmem:[%s233 + $0x48] sm:$0x1]
        %v256 = vsel %vm236, 0, %v255
        %257 = vst [vmem:[%s233 + $0x48] sm:$0x1] %v256
        %v258 = vld [vmem:[%s233 + $0x54] sm:$0x1]
        %v259 = vsel %vm236, 0, %v258
        %260 = vst [vmem:[%s233 + $0x54] sm:$0x1] %v259
        %v261 = vld [vmem:[%s233 + $0x60] sm:$0x1]
        %v262 = vsel %vm236, 0, %v261
        %263 = vst [vmem:[%s233 + $0x60] sm:$0x1] %v262
        %v264 = vld [vmem:[%s233 + $0x6c] sm:$0x1]
        %v265 = vsel %vm236, 0, %v264
        %266 = vst [vmem:[%s233 + $0x6c] sm:$0x1] %v265
        %v267 = vld [vmem:[%s233 + $0x78] sm:$0x1]
        %v268 = vsel %vm236, 0, %v267
        %269 = vst [vmem:[%s233 + $0x78] sm:$0x1] %v268
        %v270 = vld [vmem:[%s233 + $0x84] sm:$0x1]
        %v271 = vsel %vm236, 0, %v270
        %272 = vst [vmem:[%s233 + $0x84] sm:$0x1] %v271
        %v273 = vld [vmem:[%s233 + $0x90] sm:$0x1]
        %v274 = vsel %vm236, 0, %v273
        %275 = vst [vmem:[%s233 + $0x90] sm:$0x1] %v274
        %v276 = vld [vmem:[%s233 + $0x9c] sm:$0x1]
        %v277 = vsel %vm236, 0, %v276
        %278 = vst [vmem:[%s233 + $0x9c] sm:$0x1] %v277
        %v279 = vld [vmem:[%s233 + $0xa8] sm:$0x1]
        %v280 = vsel %vm236, 0, %v279
        %281 = vst [vmem:[%s233 + $0xa8] sm:$0x1] %v280
        %v282 = vld [vmem:[%s233 + $0xb4] sm:$0x1]
        %v283 = vsel %vm236, 0, %v282
        %284 = vst [vmem:[%s233 + $0xb4] sm:$0x1] %v283
        %vm285 = vsmask.f32 7938
        %vm286 = vmand %vm234, %vm285
        %v287 = vld [vmem:[%s233 + $0x8] sm:$0x1]
        %v288 = vsel %vm286, 0, %v287
        %289 = vst [vmem:[%s233 + $0x8] sm:$0x1] %v288
        %v290 = vld [vmem:[%s233 + $0x14] sm:$0x1]
        %v291 = vsel %vm286, 0, %v290
        %292 = vst [vmem:[%s233 + $0x14] sm:$0x1] %v291
        %v293 = vld [vmem:[%s233 + $0x20] sm:$0x1]
        %v294 = vsel %vm286, 0, %v293
        %295 = vst [vmem:[%s233 + $0x20] sm:$0x1] %v294
        %v296 = vld [vmem:[%s233 + $0x2c] sm:$0x1]
        %v297 = vsel %vm286, 0, %v296
        %298 = vst [vmem:[%s233 + $0x2c] sm:$0x1] %v297
        %v299 = vld [vmem:[%s233 + $0x38] sm:$0x1]
        %v300 = vsel %vm286, 0, %v299
        %301 = vst [vmem:[%s233 + $0x38] sm:$0x1] %v300
        %v302 = vld [vmem:[%s233 + $0x44] sm:$0x1]
        %v303 = vsel %vm286, 0, %v302
        %304 = vst [vmem:[%s233 + $0x44] sm:$0x1] %v303
        %v305 = vld [vmem:[%s233 + $0x50] sm:$0x1]
        %v306 = vsel %vm286, 0, %v305
        %307 = vst [vmem:[%s233 + $0x50] sm:$0x1] %v306
        %v308 = vld [vmem:[%s233 + $0x5c] sm:$0x1]
        %v309 = vsel %vm286, 0, %v308
        %310 = vst [vmem:[%s233 + $0x5c] sm:$0x1] %v309
        %v311 = vld [vmem:[%s233 + $0x68] sm:$0x1]
        %v312 = vsel %vm286, 0, %v311
        %313 = vst [vmem:[%s233 + $0x68] sm:$0x1] %v312
        %v314 = vld [vmem:[%s233 + $0x74] sm:$0x1]
        %v315 = vsel %vm286, 0, %v314
        %316 = vst [vmem:[%s233 + $0x74] sm:$0x1] %v315
        %v317 = vld [vmem:[%s233 + $0x80] sm:$0x1]
        %v318 = vsel %vm286, 0, %v317
        %319 = vst [vmem:[%s233 + $0x80] sm:$0x1] %v318
        %v320 = vld [vmem:[%s233 + $0x8c] sm:$0x1]
        %v321 = vsel %vm286, 0, %v320
        %322 = vst [vmem:[%s233 + $0x8c] sm:$0x1] %v321
        %v323 = vld [vmem:[%s233 + $0x98] sm:$0x1]
        %v324 = vsel %vm286, 0, %v323
        %325 = vst [vmem:[%s233 + $0x98] sm:$0x1] %v324
        %v326 = vld [vmem:[%s233 + $0xa4] sm:$0x1]
        %v327 = vsel %vm286, 0, %v326
        %328 = vst [vmem:[%s233 + $0xa4] sm:$0x1] %v327
        %v329 = vld [vmem:[%s233 + $0xb0] sm:$0x1]
        %v330 = vsel %vm286, 0, %v329
        %331 = vst [vmem:[%s233 + $0xb0] sm:$0x1] %v330
        %v332 = vld [vmem:[%s233 + $0xbc] sm:$0x1]
        %v333 = vsel %vm286, 0, %v332
        %334 = vst [vmem:[%s233 + $0xbc] sm:$0x1] %v333
        %v335 = vld [vmem:[%s222] sm:$0xff]
        %v336 = vld [vmem:[%s222 + $0x8] sm:$0xff]
        %v337 = vld [vmem:[%s222 + $0x10] sm:$0xff]
        %v338 = vld [vmem:[%s222 + $0x18] sm:$0xff]
        %v339 = vld [vmem:[%s222 + $0x20] sm:$0xff]
        %v340 = vld [vmem:[%s222 + $0x28] sm:$0xff]
        %v341 = vld [vmem:[%s222 + $0x30] sm:$0xff]
        %v342 = vld [vmem:[%s222 + $0x38] sm:$0xff]
        %v343 = vld [vmem:[%s222 + $0x40] sm:$0xff]
        %v344 = vld [vmem:[%s222 + $0x48] sm:$0xff]
        %v345 = vld [vmem:[%s222 + $0x50] sm:$0xff]
        %v346 = vld [vmem:[%s222 + $0x58] sm:$0xff]
        %v347 = vld [vmem:[%s222 + $0x60] sm:$0xff]
        %v348 = vld [vmem:[%s222 + $0x68] sm:$0xff]
        %v349 = vld [vmem:[%s222 + $0x70] sm:$0xff]
        %v350 = vld [vmem:[%s222 + $0x78] sm:$0xff]
        %v351 = vld [vmem:[%s222 + $0x80] sm:$0xff]
        %v352 = vld [vmem:[%s222 + $0x88] sm:$0xff]
        %v353 = vld [vmem:[%s222 + $0x90] sm:$0xff]
        %v354 = vld [vmem:[%s222 + $0x98] sm:$0xff]
        %v355 = vld [vmem:[%s222 + $0xa0] sm:$0xff]
        %v356 = vld [vmem:[%s222 + $0xa8] sm:$0xff]
        %v357 = vld [vmem:[%s222 + $0xb0] sm:$0xff]
        %v358 = vld [vmem:[%s222 + $0xb8] sm:$0xff]
        %v359 = vld [vmem:[%s222 + $0xc0] sm:$0xff]
        %v360 = vld [vmem:[%s222 + $0xc8] sm:$0xff]
        %v361 = vld [vmem:[%s222 + $0xd0] sm:$0xff]
        %v362 = vld [vmem:[%s222 + $0xd8] sm:$0xff]
        %v363 = vld [vmem:[%s222 + $0xe0] sm:$0xff]
        %v364 = vld [vmem:[%s222 + $0xe8] sm:$0xff]
        %v365 = vld [vmem:[%s222 + $0xf0] sm:$0xff]
        %v366 = vld [vmem:[%s222 + $0xf8] sm:$0xff]
        %v367 = vpack.c.bf16 %v335, %v335
        %v368 = vpack.c.bf16 %v336, %v336
        %v369 = vpack.c.bf16 %v337, %v337
        %v370 = vpack.c.bf16 %v338, %v338
        %v371 = vpack.c.bf16 %v339, %v339
        %v372 = vpack.c.bf16 %v340, %v340
        %v373 = vpack.c.bf16 %v341, %v341
        %v374 = vpack.c.bf16 %v342, %v342
        %v375 = vpack.c.bf16 %v343, %v343
        %v376 = vpack.c.bf16 %v344, %v344
        %v377 = vpack.c.bf16 %v345, %v345
        %v378 = vpack.c.bf16 %v346, %v346
        %v379 = vpack.c.bf16 %v347, %v347
        %v380 = vpack.c.bf16 %v348, %v348
        %v381 = vpack.c.bf16 %v349, %v349
        %v382 = vpack.c.bf16 %v350, %v350
        %v383 = vpack.c.bf16 %v351, %v351
        %v384 = vpack.c.bf16 %v352, %v352
        %v385 = vpack.c.bf16 %v353, %v353
        %v386 = vpack.c.bf16 %v354, %v354
        %v387 = vpack.c.bf16 %v355, %v355
        %v388 = vpack.c.bf16 %v356, %v356
        %v389 = vpack.c.bf16 %v357, %v357
        %v390 = vpack.c.bf16 %v358, %v358
        %v391 = vpack.c.bf16 %v359, %v359
        %v392 = vpack.c.bf16 %v360, %v360
        %v393 = vpack.c.bf16 %v361, %v361
        %v394 = vpack.c.bf16 %v362, %v362
        %v395 = vpack.c.bf16 %v363, %v363
        %v396 = vpack.c.bf16 %v364, %v364
        %v397 = vpack.c.bf16 %v365, %v365
        %v398 = vpack.c.bf16 %v366, %v366
        %vm399 = vsmask.f32 4368
        %vm400 = vmor %vm235, %vm399
        %v402 = vshrl.u32 %v367, 16
        %v404 = vrot.slane %v402, 7
        %v405 = vshll.u32 %v367, 16
        %v407 = vor.u32 %v404, %v405
        %v408 = vrot.slane %v404, 4
        %v410 = vshrl.u32 %v368, 16
        %v412 = vrot.slane %v410, 7
        %v413 = vshll.u32 %v368, 16
        %v415 = vor.u32 %v412, %v413
        %v416 = vsel %vm400, %v408, %v415
        %v417 = vrot.slane %v412, 4
        %v419 = vshrl.u32 %v369, 16
        %v421 = vrot.slane %v419, 7
        %v422 = vshll.u32 %v369, 16
        %v424 = vor.u32 %v421, %v422
        %v425 = vrot.slane %v421, 4
        %v427 = vshrl.u32 %v370, 16
        %v429 = vrot.slane %v427, 7
        %v430 = vshll.u32 %v370, 16
        %v432 = vor.u32 %v429, %v430
        %v433 = vsel %vm400, %v425, %v432
        %v434 = vrot.slane %v429, 4
        %v436 = vshrl.u32 %v371, 16
        %v438 = vrot.slane %v436, 7
        %v439 = vshll.u32 %v371, 16
        %v441 = vor.u32 %v438, %v439
        %v442 = vrot.slane %v438, 4
        %v444 = vshrl.u32 %v372, 16
        %v446 = vrot.slane %v444, 7
        %v447 = vshll.u32 %v372, 16
        %v449 = vor.u32 %v446, %v447
        %v450 = vsel %vm400, %v442, %v449
        %v451 = vrot.slane %v446, 4
        %v453 = vshrl.u32 %v373, 16
        %v455 = vrot.slane %v453, 7
        %v456 = vshll.u32 %v373, 16
        %v458 = vor.u32 %v455, %v456
        %v459 = vrot.slane %v455, 4
        %v461 = vshrl.u32 %v374, 16
        %v463 = vrot.slane %v461, 7
        %v464 = vshll.u32 %v374, 16
        %v466 = vor.u32 %v463, %v464
        %v467 = vsel %vm400, %v459, %v466
        %v468 = vrot.slane %v463, 4
        %v470 = vshrl.u32 %v375, 16
        %v472 = vrot.slane %v470, 7
        %v473 = vshll.u32 %v375, 16
        %v475 = vor.u32 %v472, %v473
        %v476 = vrot.slane %v472, 4
        %v478 = vshrl.u32 %v376, 16
        %v480 = vrot.slane %v478, 7
        %v481 = vshll.u32 %v376, 16
        %v483 = vor.u32 %v480, %v481
        %v484 = vsel %vm400, %v476, %v483
        %v485 = vrot.slane %v480, 4
        %v487 = vshrl.u32 %v377, 16
        %v489 = vrot.slane %v487, 7
        %v490 = vshll.u32 %v377, 16
        %v492 = vor.u32 %v489, %v490
        %v493 = vrot.slane %v489, 4
        %v495 = vshrl.u32 %v378, 16
        %v497 = vrot.slane %v495, 7
        %v498 = vshll.u32 %v378, 16
        %v500 = vor.u32 %v497, %v498
        %v501 = vsel %vm400, %v493, %v500
        %v502 = vrot.slane %v497, 4
        %v504 = vshrl.u32 %v379, 16
        %v506 = vrot.slane %v504, 7
        %v507 = vshll.u32 %v379, 16
        %v509 = vor.u32 %v506, %v507
        %v510 = vrot.slane %v506, 4
        %v512 = vshrl.u32 %v380, 16
        %v514 = vrot.slane %v512, 7
        %v515 = vshll.u32 %v380, 16
        %v517 = vor.u32 %v514, %v515
        %v518 = vsel %vm400, %v510, %v517
        %v519 = vrot.slane %v514, 4
        %v521 = vshrl.u32 %v381, 16
        %v523 = vrot.slane %v521, 7
        %v524 = vshll.u32 %v381, 16
        %v526 = vor.u32 %v523, %v524
        %v527 = vrot.slane %v523, 4
        %v529 = vshrl.u32 %v382, 16
        %v531 = vrot.slane %v529, 7
        %v532 = vshll.u32 %v382, 16
        %v534 = vor.u32 %v531, %v532
        %v535 = vsel %vm400, %v527, %v534
        %v536 = vrot.slane %v531, 4
        %v538 = vshrl.u32 %v383, 16
        %v540 = vrot.slane %v538, 7
        %v541 = vshll.u32 %v383, 16
        %v543 = vor.u32 %v540, %v541
        %v544 = vrot.slane %v540, 4
        %v546 = vshrl.u32 %v384, 16
        %v548 = vrot.slane %v546, 7
        %v549 = vshll.u32 %v384, 16
        %v551 = vor.u32 %v548, %v549
        %v552 = vsel %vm400, %v544, %v551
        %v553 = vrot.slane %v548, 4
        %v555 = vshrl.u32 %v385, 16
        %v557 = vrot.slane %v555, 7
        %v558 = vshll.u32 %v385, 16
        %v560 = vor.u32 %v557, %v558
        %v561 = vrot.slane %v557, 4
        %v563 = vshrl.u32 %v386, 16
        %v565 = vrot.slane %v563, 7
        %v566 = vshll.u32 %v386, 16
        %v568 = vor.u32 %v565, %v566
        %v569 = vsel %vm400, %v561, %v568
        %v570 = vrot.slane %v565, 4
        %v572 = vshrl.u32 %v387, 16
        %v574 = vrot.slane %v572, 7
        %v575 = vshll.u32 %v387, 16
        %v577 = vor.u32 %v574, %v575
        %v578 = vrot.slane %v574, 4
        %v580 = vshrl.u32 %v388, 16
        %v582 = vrot.slane %v580, 7
        %v583 = vshll.u32 %v388, 16
        %v585 = vor.u32 %v582, %v583
        %v586 = vsel %vm400, %v578, %v585
        %v587 = vrot.slane %v582, 4
        %v589 = vshrl.u32 %v389, 16
        %v591 = vrot.slane %v589, 7
        %v592 = vshll.u32 %v389, 16
        %v594 = vor.u32 %v591, %v592
        %v595 = vrot.slane %v591, 4
        %v597 = vshrl.u32 %v390, 16
        %v599 = vrot.slane %v597, 7
        %v600 = vshll.u32 %v390, 16
        %v602 = vor.u32 %v599, %v600
        %v603 = vsel %vm400, %v595, %v602
        %v604 = vrot.slane %v599, 4
        %v606 = vshrl.u32 %v391, 16
        %v608 = vrot.slane %v606, 7
        %v609 = vshll.u32 %v391, 16
        %v611 = vor.u32 %v608, %v609
        %v612 = vrot.slane %v608, 4
        %v614 = vshrl.u32 %v392, 16
        %v616 = vrot.slane %v614, 7
        %v617 = vshll.u32 %v392, 16
        %v619 = vor.u32 %v616, %v617
        %v620 = vsel %vm400, %v612, %v619
        %v621 = vrot.slane %v616, 4
        %v623 = vshrl.u32 %v393, 16
        %v625 = vrot.slane %v623, 7
        %v626 = vshll.u32 %v393, 16
        %v628 = vor.u32 %v625, %v626
        %v629 = vrot.slane %v625, 4
        %v631 = vshrl.u32 %v394, 16
        %v633 = vrot.slane %v631, 7
        %v634 = vshll.u32 %v394, 16
        %v636 = vor.u32 %v633, %v634
        %v637 = vsel %vm400, %v629, %v636
        %v638 = vrot.slane %v633, 4
        %v640 = vshrl.u32 %v395, 16
        %v642 = vrot.slane %v640, 7
        %v643 = vshll.u32 %v395, 16
        %v645 = vor.u32 %v642, %v643
        %v646 = vrot.slane %v642, 4
        %v648 = vshrl.u32 %v396, 16
        %v650 = vrot.slane %v648, 7
        %v651 = vshll.u32 %v396, 16
        %v653 = vor.u32 %v650, %v651
        %v654 = vsel %vm400, %v646, %v653
        %v655 = vrot.slane %v650, 4
        %v657 = vshrl.u32 %v397, 16
        %v659 = vrot.slane %v657, 7
        %v660 = vshll.u32 %v397, 16
        %v662 = vor.u32 %v659, %v660
        %v663 = vrot.slane %v659, 4
        %v665 = vshrl.u32 %v398, 16
        %v667 = vrot.slane %v665, 7
        %v668 = vshll.u32 %v398, 16
        %v670 = vor.u32 %v667, %v668
        %v671 = vsel %vm400, %v663, %v670
        %v672 = vrot.slane %v667, 4
        %vm721 = vcmask 27648
        %vm722 = vmand %vm721, %vm285
        %v723 = vld [vmem:[%s233] sm:$0xf]
        %v724 = vsel %vm722, %v407, %v723
        %725 = vst [vmem:[%s233] sm:$0xf] %v724
        %vm726 = vcmask 27648
        %727 = vst.msk [vmem:[%s233 + $0x4] sm:$0xf] %vm726, %v416
        %vm728 = vcmask 24576
        %vm729 = vmand %vm728, %vm235
        %v730 = vld [vmem:[%s233 + $0x8] sm:$0x1]
        %v731 = vsel %vm729, %v417, %v730
        %732 = vst [vmem:[%s233 + $0x8] sm:$0x1] %v731
        %v733 = vld [vmem:[%s233 + $0xc] sm:$0xf]
        %v734 = vsel %vm722, %v424, %v733
        %735 = vst [vmem:[%s233 + $0xc] sm:$0xf] %v734
        %736 = vst.msk [vmem:[%s233 + $0x10] sm:$0xf] %vm726, %v433
        %v737 = vld [vmem:[%s233 + $0x14] sm:$0x1]
        %v738 = vsel %vm729, %v434, %v737
        %739 = vst [vmem:[%s233 + $0x14] sm:$0x1] %v738
        %v740 = vld [vmem:[%s233 + $0x18] sm:$0xf]
        %v741 = vsel %vm722, %v441, %v740
        %742 = vst [vmem:[%s233 + $0x18] sm:$0xf] %v741
        %743 = vst.msk [vmem:[%s233 + $0x1c] sm:$0xf] %vm726, %v450
        %v744 = vld [vmem:[%s233 + $0x20] sm:$0x1]
        %v745 = vsel %vm729, %v451, %v744
        %746 = vst [vmem:[%s233 + $0x20] sm:$0x1] %v745
        %v747 = vld [vmem:[%s233 + $0x24] sm:$0xf]
        %v748 = vsel %vm722, %v458, %v747
        %749 = vst [vmem:[%s233 + $0x24] sm:$0xf] %v748
        %750 = vst.msk [vmem:[%s233 + $0x28] sm:$0xf] %vm726, %v467
        %v751 = vld [vmem:[%s233 + $0x2c] sm:$0x1]
        %v752 = vsel %vm729, %v468, %v751
        %753 = vst [vmem:[%s233 + $0x2c] sm:$0x1] %v752
        %v754 = vld [vmem:[%s233 + $0x30] sm:$0xf]
        %v755 = vsel %vm722, %v475, %v754
        %756 = vst [vmem:[%s233 + $0x30] sm:$0xf] %v755
        %757 = vst.msk [vmem:[%s233 + $0x34] sm:$0xf] %vm726, %v484
        %v758 = vld [vmem:[%s233 + $0x38] sm:$0x1]
        %v759 = vsel %vm729, %v485, %v758
        %760 = vst [vmem:[%s233 + $0x38] sm:$0x1] %v759
        %v761 = vld [vmem:[%s233 + $0x3c] sm:$0xf]
        %v762 = vsel %vm722, %v492, %v761
        %763 = vst [vmem:[%s233 + $0x3c] sm:$0xf] %v762
        %764 = vst.msk [vmem:[%s233 + $0x40] sm:$0xf] %vm726, %v501
        %v765 = vld [vmem:[%s233 + $0x44] sm:$0x1]
        %v766 = vsel %vm729, %v502, %v765
        %767 = vst [vmem:[%s233 + $0x44] sm:$0x1] %v766
        %v768 = vld [vmem:[%s233 + $0x48] sm:$0xf]
        %v769 = vsel %vm722, %v509, %v768
        %770 = vst [vmem:[%s233 + $0x48] sm:$0xf] %v769
        %771 = vst.msk [vmem:[%s233 + $0x4c] sm:$0xf] %vm726, %v518
        %v772 = vld [vmem:[%s233 + $0x50] sm:$0x1]
        %v773 = vsel %vm729, %v519, %v772
        %774 = vst [vmem:[%s233 + $0x50] sm:$0x1] %v773
        %v775 = vld [vmem:[%s233 + $0x54] sm:$0xf]
        %v776 = vsel %vm722, %v526, %v775
        %777 = vst [vmem:[%s233 + $0x54] sm:$0xf] %v776
        %778 = vst.msk [vmem:[%s233 + $0x58] sm:$0xf] %vm726, %v535
        %v779 = vld [vmem:[%s233 + $0x5c] sm:$0x1]
        %v780 = vsel %vm729, %v536, %v779
        %781 = vst [vmem:[%s233 + $0x5c] sm:$0x1] %v780
        %v782 = vld [vmem:[%s233 + $0x60] sm:$0xf]
        %v783 = vsel %vm722, %v543, %v782
        %784 = vst [vmem:[%s233 + $0x60] sm:$0xf] %v783
        %785 = vst.msk [vmem:[%s233 + $0x64] sm:$0xf] %vm726, %v552
        %v786 = vld [vmem:[%s233 + $0x68] sm:$0x1]
        %v787 = vsel %vm729, %v553, %v786
        %788 = vst [vmem:[%s233 + $0x68] sm:$0x1] %v787
        %v789 = vld [vmem:[%s233 + $0x6c] sm:$0xf]
        %v790 = vsel %vm722, %v560, %v789
        %791 = vst [vmem:[%s233 + $0x6c] sm:$0xf] %v790
        %792 = vst.msk [vmem:[%s233 + $0x70] sm:$0xf] %vm726, %v569
        %v793 = vld [vmem:[%s233 + $0x74] sm:$0x1]
        %v794 = vsel %vm729, %v570, %v793
        %795 = vst [vmem:[%s233 + $0x74] sm:$0x1] %v794
        %v796 = vld [vmem:[%s233 + $0x78] sm:$0xf]
        %v797 = vsel %vm722, %v577, %v796
        %798 = vst [vmem:[%s233 + $0x78] sm:$0xf] %v797
        %799 = vst.msk [vmem:[%s233 + $0x7c] sm:$0xf] %vm726, %v586
        %v800 = vld [vmem:[%s233 + $0x80] sm:$0x1]
        %v801 = vsel %vm729, %v587, %v800
        %802 = vst [vmem:[%s233 + $0x80] sm:$0x1] %v801
        %v803 = vld [vmem:[%s233 + $0x84] sm:$0xf]
        %v804 = vsel %vm722, %v594, %v803
        %805 = vst [vmem:[%s233 + $0x84] sm:$0xf] %v804
        %806 = vst.msk [vmem:[%s233 + $0x88] sm:$0xf] %vm726, %v603
        %v807 = vld [vmem:[%s233 + $0x8c] sm:$0x1]
        %v808 = vsel %vm729, %v604, %v807
        %809 = vst [vmem:[%s233 + $0x8c] sm:$0x1] %v808
        %v810 = vld [vmem:[%s233 + $0x90] sm:$0xf]
        %v811 = vsel %vm722, %v611, %v810
        %812 = vst [vmem:[%s233 + $0x90] sm:$0xf] %v811
        %813 = vst.msk [vmem:[%s233 + $0x94] sm:$0xf] %vm726, %v620
        %v814 = vld [vmem:[%s233 + $0x98] sm:$0x1]
        %v815 = vsel %vm729, %v621, %v814
        %816 = vst [vmem:[%s233 + $0x98] sm:$0x1] %v815
        %v817 = vld [vmem:[%s233 + $0x9c] sm:$0xf]
        %v818 = vsel %vm722, %v628, %v817
        %819 = vst [vmem:[%s233 + $0x9c] sm:$0xf] %v818
        %820 = vst.msk [vmem:[%s233 + $0xa0] sm:$0xf] %vm726, %v637
        %v821 = vld [vmem:[%s233 + $0xa4] sm:$0x1]
        %v822 = vsel %vm729, %v638, %v821
        %823 = vst [vmem:[%s233 + $0xa4] sm:$0x1] %v822
        %v824 = vld [vmem:[%s233 + $0xa8] sm:$0xf]
        %v825 = vsel %vm722, %v645, %v824
        %826 = vst [vmem:[%s233 + $0xa8] sm:$0xf] %v825
        %827 = vst.msk [vmem:[%s233 + $0xac] sm:$0xf] %vm726, %v654
        %v828 = vld [vmem:[%s233 + $0xb0] sm:$0x1]
        %v829 = vsel %vm729, %v655, %v828
        %830 = vst [vmem:[%s233 + $0xb0] sm:$0x1] %v829
        %v831 = vld [vmem:[%s233 + $0xb4] sm:$0xf]
        %v832 = vsel %vm722, %v662, %v831
        %833 = vst [vmem:[%s233 + $0xb4] sm:$0xf] %v832
        %834 = vst.msk [vmem:[%s233 + $0xb8] sm:$0xf] %vm726, %v671
        %v835 = vld [vmem:[%s233 + $0xbc] sm:$0x1]
        %v836 = vsel %vm729, %v672, %v835
        %837 = vst [vmem:[%s233 + $0xbc] sm:$0x1] %v836
        %v838 = vld [vmem:[#allocation2] sm:$0xf]
        %v839 = vld [vmem:[#allocation2 + $0x4] sm:$0xf]
        %v840 = vld [vmem:[#allocation2 + $0xc] sm:$0xf]
        %v841 = vld [vmem:[#allocation2 + $0x10] sm:$0xf]
        %v842 = vld [vmem:[#allocation2 + $0x18] sm:$0xf]
        %v843 = vld [vmem:[#allocation2 + $0x1c] sm:$0xf]
        %v844 = vld [vmem:[#allocation2 + $0x24] sm:$0xf]
        %v845 = vld [vmem:[#allocation2 + $0x28] sm:$0xf]
        %v846 = vld [vmem:[#allocation2 + $0x30] sm:$0xf]
        %v847 = vld [vmem:[#allocation2 + $0x34] sm:$0xf]
        %v848 = vld [vmem:[#allocation2 + $0x3c] sm:$0xf]
        %v849 = vld [vmem:[#allocation2 + $0x40] sm:$0xf]
        %v850 = vld [vmem:[#allocation2 + $0x48] sm:$0xf]
        %v851 = vld [vmem:[#allocation2 + $0x4c] sm:$0xf]
        %v852 = vld [vmem:[#allocation2 + $0x54] sm:$0xf]
        %v853 = vld [vmem:[#allocation2 + $0x58] sm:$0xf]
        %v854 = vld [vmem:[#allocation2 + $0x60] sm:$0xf]
        %v855 = vld [vmem:[#allocation2 + $0x64] sm:$0xf]
        %v856 = vld [vmem:[#allocation2 + $0x6c] sm:$0xf]
        %v857 = vld [vmem:[#allocation2 + $0x70] sm:$0xf]
        %v858 = vld [vmem:[#allocation2 + $0x78] sm:$0xf]
        %v859 = vld [vmem:[#allocation2 + $0x7c] sm:$0xf]
        %v860 = vld [vmem:[#allocation2 + $0x84] sm:$0xf]
        %v861 = vld [vmem:[#allocation2 + $0x88] sm:$0xf]
        %v862 = vld [vmem:[#allocation2 + $0x90] sm:$0xf]
        %v863 = vld [vmem:[#allocation2 + $0x94] sm:$0xf]
        %v864 = vld [vmem:[#allocation2 + $0x9c] sm:$0xf]
        %v865 = vld [vmem:[#allocation2 + $0xa0] sm:$0xf]
        %v866 = vld [vmem:[#allocation2 + $0xa8] sm:$0xf]
        %v867 = vld [vmem:[#allocation2 + $0xac] sm:$0xf]
        %v868 = vld [vmem:[#allocation2 + $0xb4] sm:$0xf]
        %v869 = vld [vmem:[#allocation2 + $0xb8] sm:$0xf]
        %870 = vst.msk [vmem:[#allocation3] sm:$0xf] %vm726, %v838
        %871 = vst.msk [vmem:[#allocation3 + $0x4] sm:$0xf] %vm726, %v839
        %872 = vst.msk [vmem:[#allocation3 + $0x8] sm:$0xf] %vm726, %v840
        %873 = vst.msk [vmem:[#allocation3 + $0xc] sm:$0xf] %vm726, %v841
        %874 = vst.msk [vmem:[#allocation3 + $0x10] sm:$0xf] %vm726, %v842
        %875 = vst.msk [vmem:[#allocation3 + $0x14] sm:$0xf] %vm726, %v843
        %876 = vst.msk [vmem:[#allocation3 + $0x18] sm:$0xf] %vm726, %v844
        %877 = vst.msk [vmem:[#allocation3 + $0x1c] sm:$0xf] %vm726, %v845
        %878 = vst.msk [vmem:[#allocation3 + $0x20] sm:$0xf] %vm726, %v846
        %879 = vst.msk [vmem:[#allocation3 + $0x24] sm:$0xf] %vm726, %v847
        %880 = vst.msk [vmem:[#allocation3 + $0x28] sm:$0xf] %vm726, %v848
        %881 = vst.msk [vmem:[#allocation3 + $0x2c] sm:$0xf] %vm726, %v849
        %882 = vst.msk [vmem:[#allocation3 + $0x30] sm:$0xf] %vm726, %v850
        %883 = vst.msk [vmem:[#allocation3 + $0x34] sm:$0xf] %vm726, %v851
        %884 = vst.msk [vmem:[#allocation3 + $0x38] sm:$0xf] %vm726, %v852
        %885 = vst.msk [vmem:[#allocation3 + $0x3c] sm:$0xf] %vm726, %v853
        %886 = vst.msk [vmem:[#allocation3 + $0x40] sm:$0xf] %vm726, %v854
        %887 = vst.msk [vmem:[#allocation3 + $0x44] sm:$0xf] %vm726, %v855
        %888 = vst.msk [vmem:[#allocation3 + $0x48] sm:$0xf] %vm726, %v856
        %889 = vst.msk [vmem:[#allocation3 + $0x4c] sm:$0xf] %vm726, %v857
        %890 = vst.msk [vmem:[#allocation3 + $0x50] sm:$0xf] %vm726, %v858
        %891 = vst.msk [vmem:[#allocation3 + $0x54] sm:$0xf] %vm726, %v859
        %892 = vst.msk [vmem:[#allocation3 + $0x58] sm:$0xf] %vm726, %v860
        %893 = vst.msk [vmem:[#allocation3 + $0x5c] sm:$0xf] %vm726, %v861
        %894 = vst.msk [vmem:[#allocation3 + $0x60] sm:$0xf] %vm726, %v862
        %895 = vst.msk [vmem:[#allocation3 + $0x64] sm:$0xf] %vm726, %v863
        %896 = vst.msk [vmem:[#allocation3 + $0x68] sm:$0xf] %vm726, %v864
        %897 = vst.msk [vmem:[#allocation3 + $0x6c] sm:$0xf] %vm726, %v865
        %898 = vst.msk [vmem:[#allocation3 + $0x70] sm:$0xf] %vm726, %v866
        %899 = vst.msk [vmem:[#allocation3 + $0x74] sm:$0xf] %vm726, %v867
        %900 = vst.msk [vmem:[#allocation3 + $0x78] sm:$0xf] %vm726, %v868
        %901 = vst.msk [vmem:[#allocation3 + $0x7c] sm:$0xf] %vm726, %v869
        %v902 = vld [vmem:[#allocation2] sm:$0xf]
        %v903 = vld [vmem:[#allocation2 + $0x4] sm:$0xf]
        %v904 = vld [vmem:[#allocation2 + $0x8] sm:$0x1]
        %v905 = vld [vmem:[#allocation2 + $0xc] sm:$0xf]
        %v906 = vld [vmem:[#allocation2 + $0x10] sm:$0xf]
        %v907 = vld [vmem:[#allocation2 + $0x14] sm:$0x1]
        %v908 = vld [vmem:[#allocation2 + $0x18] sm:$0xf]
        %v909 = vld [vmem:[#allocation2 + $0x1c] sm:$0xf]
        %v910 = vld [vmem:[#allocation2 + $0x20] sm:$0x1]
        %v911 = vld [vmem:[#allocation2 + $0x24] sm:$0xf]
        %v912 = vld [vmem:[#allocation2 + $0x28] sm:$0xf]
        %v913 = vld [vmem:[#allocation2 + $0x2c] sm:$0x1]
        %v914 = vld [vmem:[#allocation2 + $0x30] sm:$0xf]
        %v915 = vld [vmem:[#allocation2 + $0x34] sm:$0xf]
        %v916 = vld [vmem:[#allocation2 + $0x38] sm:$0x1]
        %v917 = vld [vmem:[#allocation2 + $0x3c] sm:$0xf]
        %v918 = vld [vmem:[#allocation2 + $0x40] sm:$0xf]
        %v919 = vld [vmem:[#allocation2 + $0x44] sm:$0x1]
        %v920 = vld [vmem:[#allocation2 + $0x48] sm:$0xf]
        %v921 = vld [vmem:[#allocation2 + $0x4c] sm:$0xf]
        %v922 = vld [vmem:[#allocation2 + $0x50] sm:$0x1]
        %v923 = vld [vmem:[#allocation2 + $0x54] sm:$0xf]
        %v924 = vld [vmem:[#allocation2 + $0x58] sm:$0xf]
        %v925 = vld [vmem:[#allocation2 + $0x5c] sm:$0x1]
        %v926 = vld [vmem:[#allocation2 + $0x60] sm:$0xf]
        %v927 = vld [vmem:[#allocation2 + $0x64] sm:$0xf]
        %v928 = vld [vmem:[#allocation2 + $0x68] sm:$0x1]
        %v929 = vld [vmem:[#allocation2 + $0x6c] sm:$0xf]
        %v930 = vld [vmem:[#allocation2 + $0x70] sm:$0xf]
        %v931 = vld [vmem:[#allocation2 + $0x74] sm:$0x1]
        %v932 = vld [vmem:[#allocation2 + $0x78] sm:$0xf]
        %v933 = vld [vmem:[#allocation2 + $0x7c] sm:$0xf]
        %v934 = vld [vmem:[#allocation2 + $0x80] sm:$0x1]
        %v935 = vld [vmem:[#allocation2 + $0x84] sm:$0xf]
        %v936 = vld [vmem:[#allocation2 + $0x88] sm:$0xf]
        %v937 = vld [vmem:[#allocation2 + $0x8c] sm:$0x1]
        %v938 = vld [vmem:[#allocation2 + $0x90] sm:$0xf]
        %v939 = vld [vmem:[#allocation2 + $0x94] sm:$0xf]
        %v940 = vld [vmem:[#allocation2 + $0x98] sm:$0x1]
        %v941 = vld [vmem:[#allocation2 + $0x9c] sm:$0xf]
        %v942 = vld [vmem:[#allocation2 + $0xa0] sm:$0xf]
        %v943 = vld [vmem:[#allocation2 + $0xa4] sm:$0x1]
        %v944 = vld [vmem:[#allocation2 + $0xa8] sm:$0xf]
        %v945 = vld [vmem:[#allocation2 + $0xac] sm:$0xf]
        %v946 = vld [vmem:[#allocation2 + $0xb0] sm:$0x1]
        %v947 = vld [vmem:[#allocation2 + $0xb4] sm:$0xf]
        %v948 = vld [vmem:[#allocation2 + $0xb8] sm:$0xf]
        %v949 = vld [vmem:[#allocation2 + $0xbc] sm:$0x1]
        %vm950 = vsmask.f32 3328
        %vm951 = vsmask.f32 7440
        %vm952 = vmor %vm950, %vm951
        %v954 = vshrl.u32 %v902, 16
        %v956 = vrot.slane %v954, 4
        %v957 = vshll.u32 %v902, 16
        %v959 = vrot.slane %v957, 5
        %v960 = vor.u32 %v956, %v959
        %v961 = vrot.slane %v960, 4
        %v963 = vshll.u32 %v903, 16
        %v965 = vrot.slane %v963, 5
        %v966 = vsel %vm952, %v961, %v965
        %v967 = vshrl.u32 %v903, 16
        %v969 = vrot.slane %v967, 4
        %v970 = vor.u32 %v969, %v965
        %v971 = vrot.slane %v970, 4
        %v973 = vshll.u32 %v904, 16
        %v975 = vrot.slane %v973, 5
        %v976 = vsel %vm952, %v971, %v975
        %v978 = vshrl.u32 %v905, 16
        %v980 = vrot.slane %v978, 4
        %v981 = vshll.u32 %v905, 16
        %v983 = vrot.slane %v981, 5
        %v984 = vor.u32 %v980, %v983
        %v985 = vrot.slane %v984, 4
        %v987 = vshll.u32 %v906, 16
        %v989 = vrot.slane %v987, 5
        %v990 = vsel %vm952, %v985, %v989
        %v991 = vshrl.u32 %v906, 16
        %v993 = vrot.slane %v991, 4
        %v994 = vor.u32 %v993, %v989
        %v995 = vrot.slane %v994, 4
        %v997 = vshll.u32 %v907, 16
        %v999 = vrot.slane %v997, 5
        %v1000 = vsel %vm952, %v995, %v999
        %v1002 = vshrl.u32 %v908, 16
        %v1004 = vrot.slane %v1002, 4
        %v1005 = vshll.u32 %v908, 16
        %v1007 = vrot.slane %v1005, 5
        %v1008 = vor.u32 %v1004, %v1007
        %v1009 = vrot.slane %v1008, 4
        %v1011 = vshll.u32 %v909, 16
        %v1013 = vrot.slane %v1011, 5
        %v1014 = vsel %vm952, %v1009, %v1013
        %v1015 = vshrl.u32 %v909, 16
        %v1017 = vrot.slane %v1015, 4
        %v1018 = vor.u32 %v1017, %v1013
        %v1019 = vrot.slane %v1018, 4
        %v1021 = vshll.u32 %v910, 16
        %v1023 = vrot.slane %v1021, 5
        %v1024 = vsel %vm952, %v1019, %v1023
        %v1026 = vshrl.u32 %v911, 16
        %v1028 = vrot.slane %v1026, 4
        %v1029 = vshll.u32 %v911, 16
        %v1031 = vrot.slane %v1029, 5
        %v1032 = vor.u32 %v1028, %v1031
        %v1033 = vrot.slane %v1032, 4
        %v1035 = vshll.u32 %v912, 16
        %v1037 = vrot.slane %v1035, 5
        %v1038 = vsel %vm952, %v1033, %v1037
        %v1039 = vshrl.u32 %v912, 16
        %v1041 = vrot.slane %v1039, 4
        %v1042 = vor.u32 %v1041, %v1037
        %v1043 = vrot.slane %v1042, 4
        %v1045 = vshll.u32 %v913, 16
        %v1047 = vrot.slane %v1045, 5
        %v1048 = vsel %vm952, %v1043, %v1047
        %v1050 = vshrl.u32 %v914, 16
        %v1052 = vrot.slane %v1050, 4
        %v1053 = vshll.u32 %v914, 16
        %v1055 = vrot.slane %v1053, 5
        %v1056 = vor.u32 %v1052, %v1055
        %v1057 = vrot.slane %v1056, 4
        %v1059 = vshll.u32 %v915, 16
        %v1061 = vrot.slane %v1059, 5
        %v1062 = vsel %vm952, %v1057, %v1061
        %v1063 = vshrl.u32 %v915, 16
        %v1065 = vrot.slane %v1063, 4
        %v1066 = vor.u32 %v1065, %v1061
        %v1067 = vrot.slane %v1066, 4
        %v1069 = vshll.u32 %v916, 16
        %v1071 = vrot.slane %v1069, 5
        %v1072 = vsel %vm952, %v1067, %v1071
        %v1074 = vshrl.u32 %v917, 16
        %v1076 = vrot.slane %v1074, 4
        %v1077 = vshll.u32 %v917, 16
        %v1079 = vrot.slane %v1077, 5
        %v1080 = vor.u32 %v1076, %v1079
        %v1081 = vrot.slane %v1080, 4
        %v1083 = vshll.u32 %v918, 16
        %v1085 = vrot.slane %v1083, 5
        %v1086 = vsel %vm952, %v1081, %v1085
        %v1087 = vshrl.u32 %v918, 16
        %v1089 = vrot.slane %v1087, 4
        %v1090 = vor.u32 %v1089, %v1085
        %v1091 = vrot.slane %v1090, 4
        %v1093 = vshll.u32 %v919, 16
        %v1095 = vrot.slane %v1093, 5
        %v1096 = vsel %vm952, %v1091, %v1095
        %v1098 = vshrl.u32 %v920, 16
        %v1100 = vrot.slane %v1098, 4
        %v1101 = vshll.u32 %v920, 16
        %v1103 = vrot.slane %v1101, 5
        %v1104 = vor.u32 %v1100, %v1103
        %v1105 = vrot.slane %v1104, 4
        %v1107 = vshll.u32 %v921, 16
        %v1109 = vrot.slane %v1107, 5
        %v1110 = vsel %vm952, %v1105, %v1109
        %v1111 = vshrl.u32 %v921, 16
        %v1113 = vrot.slane %v1111, 4
        %v1114 = vor.u32 %v1113, %v1109
        %v1115 = vrot.slane %v1114, 4
        %v1117 = vshll.u32 %v922, 16
        %v1119 = vrot.slane %v1117, 5
        %v1120 = vsel %vm952, %v1115, %v1119
        %v1122 = vshrl.u32 %v923, 16
        %v1124 = vrot.slane %v1122, 4
        %v1125 = vshll.u32 %v923, 16
        %v1127 = vrot.slane %v1125, 5
        %v1128 = vor.u32 %v1124, %v1127
        %v1129 = vrot.slane %v1128, 4
        %v1131 = vshll.u32 %v924, 16
        %v1133 = vrot.slane %v1131, 5
        %v1134 = vsel %vm952, %v1129, %v1133
        %v1135 = vshrl.u32 %v924, 16
        %v1137 = vrot.slane %v1135, 4
        %v1138 = vor.u32 %v1137, %v1133
        %v1139 = vrot.slane %v1138, 4
        %v1141 = vshll.u32 %v925, 16
        %v1143 = vrot.slane %v1141, 5
        %v1144 = vsel %vm952, %v1139, %v1143
        %v1146 = vshrl.u32 %v926, 16
        %v1148 = vrot.slane %v1146, 4
        %v1149 = vshll.u32 %v926, 16
        %v1151 = vrot.slane %v1149, 5
        %v1152 = vor.u32 %v1148, %v1151
        %v1153 = vrot.slane %v1152, 4
        %v1155 = vshll.u32 %v927, 16
        %v1157 = vrot.slane %v1155, 5
        %v1158 = vsel %vm952, %v1153, %v1157
        %v1159 = vshrl.u32 %v927, 16
        %v1161 = vrot.slane %v1159, 4
        %v1162 = vor.u32 %v1161, %v1157
        %v1163 = vrot.slane %v1162, 4
        %v1165 = vshll.u32 %v928, 16
        %v1167 = vrot.slane %v1165, 5
        %v1168 = vsel %vm952, %v1163, %v1167
        %v1170 = vshrl.u32 %v929, 16
        %v1172 = vrot.slane %v1170, 4
        %v1173 = vshll.u32 %v929, 16
        %v1175 = vrot.slane %v1173, 5
        %v1176 = vor.u32 %v1172, %v1175
        %v1177 = vrot.slane %v1176, 4
        %v1179 = vshll.u32 %v930, 16
        %v1181 = vrot.slane %v1179, 5
        %v1182 = vsel %vm952, %v1177, %v1181
        %v1183 = vshrl.u32 %v930, 16
        %v1185 = vrot.slane %v1183, 4
        %v1186 = vor.u32 %v1185, %v1181
        %v1187 = vrot.slane %v1186, 4
        %v1189 = vshll.u32 %v931, 16
        %v1191 = vrot.slane %v1189, 5
        %v1192 = vsel %vm952, %v1187, %v1191
        %v1194 = vshrl.u32 %v932, 16
        %v1196 = vrot.slane %v1194, 4
        %v1197 = vshll.u32 %v932, 16
        %v1199 = vrot.slane %v1197, 5
        %v1200 = vor.u32 %v1196, %v1199
        %v1201 = vrot.slane %v1200, 4
        %v1203 = vshll.u32 %v933, 16
        %v1205 = vrot.slane %v1203, 5
        %v1206 = vsel %vm952, %v1201, %v1205
        %v1207 = vshrl.u32 %v933, 16
        %v1209 = vrot.slane %v1207, 4
        %v1210 = vor.u32 %v1209, %v1205
        %v1211 = vrot.slane %v1210, 4
        %v1213 = vshll.u32 %v934, 16
        %v1215 = vrot.slane %v1213, 5
        %v1216 = vsel %vm952, %v1211, %v1215
        %v1218 = vshrl.u32 %v935, 16
        %v1220 = vrot.slane %v1218, 4
        %v1221 = vshll.u32 %v935, 16
        %v1223 = vrot.slane %v1221, 5
        %v1224 = vor.u32 %v1220, %v1223
        %v1225 = vrot.slane %v1224, 4
        %v1227 = vshll.u32 %v936, 16
        %v1229 = vrot.slane %v1227, 5
        %v1230 = vsel %vm952, %v1225, %v1229
        %v1231 = vshrl.u32 %v936, 16
        %v1233 = vrot.slane %v1231, 4
        %v1234 = vor.u32 %v1233, %v1229
        %v1235 = vrot.slane %v1234, 4
        %v1237 = vshll.u32 %v937, 16
        %v1239 = vrot.slane %v1237, 5
        %v1240 = vsel %vm952, %v1235, %v1239
        %v1242 = vshrl.u32 %v938, 16
        %v1244 = vrot.slane %v1242, 4
        %v1245 = vshll.u32 %v938, 16
        %v1247 = vrot.slane %v1245, 5
        %v1248 = vor.u32 %v1244, %v1247
        %v1249 = vrot.slane %v1248, 4
        %v1251 = vshll.u32 %v939, 16
        %v1253 = vrot.slane %v1251, 5
        %v1254 = vsel %vm952, %v1249, %v1253
        %v1255 = vshrl.u32 %v939, 16
        %v1257 = vrot.slane %v1255, 4
        %v1258 = vor.u32 %v1257, %v1253
        %v1259 = vrot.slane %v1258, 4
        %v1261 = vshll.u32 %v940, 16
        %v1263 = vrot.slane %v1261, 5
        %v1264 = vsel %vm952, %v1259, %v1263
        %v1266 = vshrl.u32 %v941, 16
        %v1268 = vrot.slane %v1266, 4
        %v1269 = vshll.u32 %v941, 16
        %v1271 = vrot.slane %v1269, 5
        %v1272 = vor.u32 %v1268, %v1271
        %v1273 = vrot.slane %v1272, 4
        %v1275 = vshll.u32 %v942, 16
        %v1277 = vrot.slane %v1275, 5
        %v1278 = vsel %vm952, %v1273, %v1277
        %v1279 = vshrl.u32 %v942, 16
        %v1281 = vrot.slane %v1279, 4
        %v1282 = vor.u32 %v1281, %v1277
        %v1283 = vrot.slane %v1282, 4
        %v1285 = vshll.u32 %v943, 16
        %v1287 = vrot.slane %v1285, 5
        %v1288 = vsel %vm952, %v1283, %v1287
        %v1290 = vshrl.u32 %v944, 16
        %v1292 = vrot.slane %v1290, 4
        %v1293 = vshll.u32 %v944, 16
        %v1295 = vrot.slane %v1293, 5
        %v1296 = vor.u32 %v1292, %v1295
        %v1297 = vrot.slane %v1296, 4
        %v1299 = vshll.u32 %v945, 16
        %v1301 = vrot.slane %v1299, 5
        %v1302 = vsel %vm952, %v1297, %v1301
        %v1303 = vshrl.u32 %v945, 16
        %v1305 = vrot.slane %v1303, 4
        %v1306 = vor.u32 %v1305, %v1301
        %v1307 = vrot.slane %v1306, 4
        %v1309 = vshll.u32 %v946, 16
        %v1311 = vrot.slane %v1309, 5
        %v1312 = vsel %vm952, %v1307, %v1311
        %v1314 = vshrl.u32 %v947, 16
        %v1316 = vrot.slane %v1314, 4
        %v1317 = vshll.u32 %v947, 16
        %v1319 = vrot.slane %v1317, 5
        %v1320 = vor.u32 %v1316, %v1319
        %v1321 = vrot.slane %v1320, 4
        %v1323 = vshll.u32 %v948, 16
        %v1325 = vrot.slane %v1323, 5
        %v1326 = vsel %vm952, %v1321, %v1325
        %v1327 = vshrl.u32 %v948, 16
        %v1329 = vrot.slane %v1327, 4
        %v1330 = vor.u32 %v1329, %v1325
        %v1331 = vrot.slane %v1330, 4
        %v1333 = vshll.u32 %v949, 16
        %v1335 = vrot.slane %v1333, 5
        %v1336 = vsel %vm952, %v1331, %v1335
        %1337 = vrot.lane.b32.xlu0 %v966, 4
        %v1338 = vpop.permute.xlu0 %1337
        %1339 = vrot.lane.b32.xlu0 %v976, 4
        %v1340 = vpop.permute.xlu0 %1339
        %1341 = vrot.lane.b32.xlu0 %v990, 4
        %v1342 = vpop.permute.xlu0 %1341
        %1343 = vrot.lane.b32.xlu0 %v1000, 4
        %v1344 = vpop.permute.xlu0 %1343
        %1345 = vrot.lane.b32.xlu0 %v1014, 4
        %v1346 = vpop.permute.xlu0 %1345
        %1347 = vrot.lane.b32.xlu0 %v1024, 4
        %v1348 = vpop.permute.xlu0 %1347
        %1349 = vrot.lane.b32.xlu0 %v1038, 4
        %v1350 = vpop.permute.xlu0 %1349
        %1351 = vrot.lane.b32.xlu0 %v1048, 4
        %v1352 = vpop.permute.xlu0 %1351
        %1353 = vrot.lane.b32.xlu0 %v1062, 4
        %v1354 = vpop.permute.xlu0 %1353
        %1355 = vrot.lane.b32.xlu0 %v1072, 4
        %v1356 = vpop.permute.xlu0 %1355
        %1357 = vrot.lane.b32.xlu0 %v1086, 4
        %v1358 = vpop.permute.xlu0 %1357
        %1359 = vrot.lane.b32.xlu0 %v1096, 4
        %v1360 = vpop.permute.xlu0 %1359
        %1361 = vrot.lane.b32.xlu0 %v1110, 4
        %v1362 = vpop.permute.xlu0 %1361
        %1363 = vrot.lane.b32.xlu0 %v1120, 4
        %v1364 = vpop.permute.xlu0 %1363
        %1365 = vrot.lane.b32.xlu0 %v1134, 4
        %v1366 = vpop.permute.xlu0 %1365
        %1367 = vrot.lane.b32.xlu0 %v1144, 4
        %v1368 = vpop.permute.xlu0 %1367
        %1369 = vrot.lane.b32.xlu0 %v1158, 4
        %v1370 = vpop.permute.xlu0 %1369
        %1371 = vrot.lane.b32.xlu0 %v1168, 4
        %v1372 = vpop.permute.xlu0 %1371
        %1373 = vrot.lane.b32.xlu0 %v1182, 4
        %v1374 = vpop.permute.xlu0 %1373
        %1375 = vrot.lane.b32.xlu0 %v1192, 4
        %v1376 = vpop.permute.xlu0 %1375
        %1377 = vrot.lane.b32.xlu0 %v1206, 4
        %v1378 = vpop.permute.xlu0 %1377
        %1379 = vrot.lane.b32.xlu0 %v1216, 4
        %v1380 = vpop.permute.xlu0 %1379
        %1381 = vrot.lane.b32.xlu0 %v1230, 4
        %v1382 = vpop.permute.xlu0 %1381
        %1383 = vrot.lane.b32.xlu0 %v1240, 4
        %v1384 = vpop.permute.xlu0 %1383
        %1385 = vrot.lane.b32.xlu0 %v1254, 4
        %v1386 = vpop.permute.xlu0 %1385
        %1387 = vrot.lane.b32.xlu0 %v1264, 4
        %v1388 = vpop.permute.xlu0 %1387
        %1389 = vrot.lane.b32.xlu0 %v1278, 4
        %v1390 = vpop.permute.xlu0 %1389
        %1391 = vrot.lane.b32.xlu0 %v1288, 4
        %v1392 = vpop.permute.xlu0 %1391
        %1393 = vrot.lane.b32.xlu0 %v1302, 4
        %v1394 = vpop.permute.xlu0 %1393
        %1395 = vrot.lane.b32.xlu0 %v1312, 4
        %v1396 = vpop.permute.xlu0 %1395
        %1397 = vrot.lane.b32.xlu0 %v1326, 4
        %v1398 = vpop.permute.xlu0 %1397
        %1399 = vrot.lane.b32.xlu0 %v1336, 4
        %v1400 = vpop.permute.xlu0 %1399
        %vm1433 = vcmask 60448
        %1434 = vst.msk [vmem:[#allocation3] sm:$0xf] %vm1433, %v1338
        %1435 = vst.msk [vmem:[#allocation3 + $0x4] sm:$0xf] %vm1433, %v1340
        %1436 = vst.msk [vmem:[#allocation3 + $0x8] sm:$0xf] %vm1433, %v1342
        %1437 = vst.msk [vmem:[#allocation3 + $0xc] sm:$0xf] %vm1433, %v1344
        %1438 = vst.msk [vmem:[#allocation3 + $0x10] sm:$0xf] %vm1433, %v1346
        %1439 = vst.msk [vmem:[#allocation3 + $0x14] sm:$0xf] %vm1433, %v1348
        %1440 = vst.msk [vmem:[#allocation3 + $0x18] sm:$0xf] %vm1433, %v1350
        %1441 = vst.msk [vmem:[#allocation3 + $0x1c] sm:$0xf] %vm1433, %v1352
        %1442 = vst.msk [vmem:[#allocation3 + $0x20] sm:$0xf] %vm1433, %v1354
        %1443 = vst.msk [vmem:[#allocation3 + $0x24] sm:$0xf] %vm1433, %v1356
        %1444 = vst.msk [vmem:[#allocation3 + $0x28] sm:$0xf] %vm1433, %v1358
        %1445 = vst.msk [vmem:[#allocation3 + $0x2c] sm:$0xf] %vm1433, %v1360
        %1446 = vst.msk [vmem:[#allocation3 + $0x30] sm:$0xf] %vm1433, %v1362
        %1447 = vst.msk [vmem:[#allocation3 + $0x34] sm:$0xf] %vm1433, %v1364
        %1448 = vst.msk [vmem:[#allocation3 + $0x38] sm:$0xf] %vm1433, %v1366
        %1449 = vst.msk [vmem:[#allocation3 + $0x3c] sm:$0xf] %vm1433, %v1368
        %1450 = vst.msk [vmem:[#allocation3 + $0x40] sm:$0xf] %vm1433, %v1370
        %1451 = vst.msk [vmem:[#allocation3 + $0x44] sm:$0xf] %vm1433, %v1372
        %1452 = vst.msk [vmem:[#allocation3 + $0x48] sm:$0xf] %vm1433, %v1374
        %1453 = vst.msk [vmem:[#allocation3 + $0x4c] sm:$0xf] %vm1433, %v1376
        %1454 = vst.msk [vmem:[#allocation3 + $0x50] sm:$0xf] %vm1433, %v1378
        %1455 = vst.msk [vmem:[#allocation3 + $0x54] sm:$0xf] %vm1433, %v1380
        %1456 = vst.msk [vmem:[#allocation3 + $0x58] sm:$0xf] %vm1433, %v1382
        %1457 = vst.msk [vmem:[#allocation3 + $0x5c] sm:$0xf] %vm1433, %v1384
        %1458 = vst.msk [vmem:[#allocation3 + $0x60] sm:$0xf] %vm1433, %v1386
        %1459 = vst.msk [vmem:[#allocation3 + $0x64] sm:$0xf] %vm1433, %v1388
        %1460 = vst.msk [vmem:[#allocation3 + $0x68] sm:$0xf] %vm1433, %v1390
        %1461 = vst.msk [vmem:[#allocation3 + $0x6c] sm:$0xf] %vm1433, %v1392
        %1462 = vst.msk [vmem:[#allocation3 + $0x70] sm:$0xf] %vm1433, %v1394
        %1463 = vst.msk [vmem:[#allocation3 + $0x74] sm:$0xf] %vm1433, %v1396
        %1464 = vst.msk [vmem:[#allocation3 + $0x78] sm:$0xf] %vm1433, %v1398
        %1465 = vst.msk [vmem:[#allocation3 + $0x7c] sm:$0xf] %vm1433, %v1400
        %v1466 = vld [vmem:[#allocation2] sm:$0xe]
        %v1467 = vld [vmem:[#allocation2 + $0x4] sm:$0xf]
        %v1468 = vld [vmem:[#allocation2 + $0x8] sm:$0x1]
        %v1469 = vld [vmem:[#allocation2 + $0xc] sm:$0xe]
        %v1470 = vld [vmem:[#allocation2 + $0x10] sm:$0xf]
        %v1471 = vld [vmem:[#allocation2 + $0x14] sm:$0x1]
        %v1472 = vld [vmem:[#allocation2 + $0x18] sm:$0xe]
        %v1473 = vld [vmem:[#allocation2 + $0x1c] sm:$0xf]
        %v1474 = vld [vmem:[#allocation2 + $0x20] sm:$0x1]
        %v1475 = vld [vmem:[#allocation2 + $0x24] sm:$0xe]
        %v1476 = vld [vmem:[#allocation2 + $0x28] sm:$0xf]
        %v1477 = vld [vmem:[#allocation2 + $0x2c] sm:$0x1]
        %v1478 = vld [vmem:[#allocation2 + $0x30] sm:$0xe]
        %v1479 = vld [vmem:[#allocation2 + $0x34] sm:$0xf]
        %v1480 = vld [vmem:[#allocation2 + $0x38] sm:$0x1]
        %v1481 = vld [vmem:[#allocation2 + $0x3c] sm:$0xe]
        %v1482 = vld [vmem:[#allocation2 + $0x40] sm:$0xf]
        %v1483 = vld [vmem:[#allocation2 + $0x44] sm:$0x1]
        %v1484 = vld [vmem:[#allocation2 + $0x48] sm:$0xe]
        %v1485 = vld [vmem:[#allocation2 + $0x4c] sm:$0xf]
        %v1486 = vld [vmem:[#allocation2 + $0x50] sm:$0x1]
        %v1487 = vld [vmem:[#allocation2 + $0x54] sm:$0xe]
        %v1488 = vld [vmem:[#allocation2 + $0x58] sm:$0xf]
        %v1489 = vld [vmem:[#allocation2 + $0x5c] sm:$0x1]
        %v1490 = vld [vmem:[#allocation2 + $0x60] sm:$0xe]
        %v1491 = vld [vmem:[#allocation2 + $0x64] sm:$0xf]
        %v1492 = vld [vmem:[#allocation2 + $0x68] sm:$0x1]
        %v1493 = vld [vmem:[#allocation2 + $0x6c] sm:$0xe]
        %v1494 = vld [vmem:[#allocation2 + $0x70] sm:$0xf]
        %v1495 = vld [vmem:[#allocation2 + $0x74] sm:$0x1]
        %v1496 = vld [vmem:[#allocation2 + $0x78] sm:$0xe]
        %v1497 = vld [vmem:[#allocation2 + $0x7c] sm:$0xf]
        %v1498 = vld [vmem:[#allocation2 + $0x80] sm:$0x1]
        %v1499 = vld [vmem:[#allocation2 + $0x84] sm:$0xe]
        %v1500 = vld [vmem:[#allocation2 + $0x88] sm:$0xf]
        %v1501 = vld [vmem:[#allocation2 + $0x8c] sm:$0x1]
        %v1502 = vld [vmem:[#allocation2 + $0x90] sm:$0xe]
        %v1503 = vld [vmem:[#allocation2 + $0x94] sm:$0xf]
        %v1504 = vld [vmem:[#allocation2 + $0x98] sm:$0x1]
        %v1505 = vld [vmem:[#allocation2 + $0x9c] sm:$0xe]
        %v1506 = vld [vmem:[#allocation2 + $0xa0] sm:$0xf]
        %v1507 = vld [vmem:[#allocation2 + $0xa4] sm:$0x1]
        %v1508 = vld [vmem:[#allocation2 + $0xa8] sm:$0xe]
        %v1509 = vld [vmem:[#allocation2 + $0xac] sm:$0xf]
        %v1510 = vld [vmem:[#allocation2 + $0xb0] sm:$0x1]
        %v1511 = vld [vmem:[#allocation2 + $0xb4] sm:$0xe]
        %v1512 = vld [vmem:[#allocation2 + $0xb8] sm:$0xf]
        %v1513 = vld [vmem:[#allocation2 + $0xbc] sm:$0x1]
        %vm1562 = vcmask 1042432
        %vm1563 = vcmask 1046532
        %vm1564 = vmor %vm1562, %vm1563
        %v1565 = vrot.slane %v1466, 5
        %v1566 = vrot.slane %v1565, 4
        %v1567 = vrot.slane %v1467, 5
        %v1568 = vsel %vm1564, %v1566, %v1567
        %v1569 = vrot.slane %v1567, 4
        %v1570 = vrot.slane %v1468, 5
        %v1571 = vsel %vm1564, %v1569, %v1570
        %v1572 = vrot.slane %v1469, 5
        %v1573 = vrot.slane %v1572, 4
        %v1574 = vrot.slane %v1470, 5
        %v1575 = vsel %vm1564, %v1573, %v1574
        %v1576 = vrot.slane %v1574, 4
        %v1577 = vrot.slane %v1471, 5
        %v1578 = vsel %vm1564, %v1576, %v1577
        %v1579 = vrot.slane %v1472, 5
        %v1580 = vrot.slane %v1579, 4
        %v1581 = vrot.slane %v1473, 5
        %v1582 = vsel %vm1564, %v1580, %v1581
        %v1583 = vrot.slane %v1581, 4
        %v1584 = vrot.slane %v1474, 5
        %v1585 = vsel %vm1564, %v1583, %v1584
        %v1586 = vrot.slane %v1475, 5
        %v1587 = vrot.slane %v1586, 4
        %v1588 = vrot.slane %v1476, 5
        %v1589 = vsel %vm1564, %v1587, %v1588
        %v1590 = vrot.slane %v1588, 4
        %v1591 = vrot.slane %v1477, 5
        %v1592 = vsel %vm1564, %v1590, %v1591
        %v1593 = vrot.slane %v1478, 5
        %v1594 = vrot.slane %v1593, 4
        %v1595 = vrot.slane %v1479, 5
        %v1596 = vsel %vm1564, %v1594, %v1595
        %v1597 = vrot.slane %v1595, 4
        %v1598 = vrot.slane %v1480, 5
        %v1599 = vsel %vm1564, %v1597, %v1598
        %v1600 = vrot.slane %v1481, 5
        %v1601 = vrot.slane %v1600, 4
        %v1602 = vrot.slane %v1482, 5
        %v1603 = vsel %vm1564, %v1601, %v1602
        %v1604 = vrot.slane %v1602, 4
        %v1605 = vrot.slane %v1483, 5
        %v1606 = vsel %vm1564, %v1604, %v1605
        %v1607 = vrot.slane %v1484, 5
        %v1608 = vrot.slane %v1607, 4
        %v1609 = vrot.slane %v1485, 5
        %v1610 = vsel %vm1564, %v1608, %v1609
        %v1611 = vrot.slane %v1609, 4
        %v1612 = vrot.slane %v1486, 5
        %v1613 = vsel %vm1564, %v1611, %v1612
        %v1614 = vrot.slane %v1487, 5
        %v1615 = vrot.slane %v1614, 4
        %v1616 = vrot.slane %v1488, 5
        %v1617 = vsel %vm1564, %v1615, %v1616
        %v1618 = vrot.slane %v1616, 4
        %v1619 = vrot.slane %v1489, 5
        %v1620 = vsel %vm1564, %v1618, %v1619
        %v1621 = vrot.slane %v1490, 5
        %v1622 = vrot.slane %v1621, 4
        %v1623 = vrot.slane %v1491, 5
        %v1624 = vsel %vm1564, %v1622, %v1623
        %v1625 = vrot.slane %v1623, 4
        %v1626 = vrot.slane %v1492, 5
        %v1627 = vsel %vm1564, %v1625, %v1626
        %v1628 = vrot.slane %v1493, 5
        %v1629 = vrot.slane %v1628, 4
        %v1630 = vrot.slane %v1494, 5
        %v1631 = vsel %vm1564, %v1629, %v1630
        %v1632 = vrot.slane %v1630, 4
        %v1633 = vrot.slane %v1495, 5
        %v1634 = vsel %vm1564, %v1632, %v1633
        %v1635 = vrot.slane %v1496, 5
        %v1636 = vrot.slane %v1635, 4
        %v1637 = vrot.slane %v1497, 5
        %v1638 = vsel %vm1564, %v1636, %v1637
        %v1639 = vrot.slane %v1637, 4
        %v1640 = vrot.slane %v1498, 5
        %v1641 = vsel %vm1564, %v1639, %v1640
        %v1642 = vrot.slane %v1499, 5
        %v1643 = vrot.slane %v1642, 4
        %v1644 = vrot.slane %v1500, 5
        %v1645 = vsel %vm1564, %v1643, %v1644
        %v1646 = vrot.slane %v1644, 4
        %v1647 = vrot.slane %v1501, 5
        %v1648 = vsel %vm1564, %v1646, %v1647
        %v1649 = vrot.slane %v1502, 5
        %v1650 = vrot.slane %v1649, 4
        %v1651 = vrot.slane %v1503, 5
        %v1652 = vsel %vm1564, %v1650, %v1651
        %v1653 = vrot.slane %v1651, 4
        %v1654 = vrot.slane %v1504, 5
        %v1655 = vsel %vm1564, %v1653, %v1654
        %v1656 = vrot.slane %v1505, 5
        %v1657 = vrot.slane %v1656, 4
        %v1658 = vrot.slane %v1506, 5
        %v1659 = vsel %vm1564, %v1657, %v1658
        %v1660 = vrot.slane %v1658, 4
        %v1661 = vrot.slane %v1507, 5
        %v1662 = vsel %vm1564, %v1660, %v1661
        %v1663 = vrot.slane %v1508, 5
        %v1664 = vrot.slane %v1663, 4
        %v1665 = vrot.slane %v1509, 5
        %v1666 = vsel %vm1564, %v1664, %v1665
        %v1667 = vrot.slane %v1665, 4
        %v1668 = vrot.slane %v1510, 5
        %v1669 = vsel %vm1564, %v1667, %v1668
        %v1670 = vrot.slane %v1511, 5
        %v1671 = vrot.slane %v1670, 4
        %v1672 = vrot.slane %v1512, 5
        %v1673 = vsel %vm1564, %v1671, %v1672
        %v1674 = vrot.slane %v1672, 4
        %v1675 = vrot.slane %v1513, 5
        %v1676 = vsel %vm1564, %v1674, %v1675
        %1677 = vrot.lane.b32.xlu0 %v1568, 8
        %v1678 = vpop.permute.xlu0 %1677
        %1679 = vrot.lane.b32.xlu0 %v1571, 8
        %v1680 = vpop.permute.xlu0 %1679
        %1681 = vrot.lane.b32.xlu0 %v1575, 8
        %v1682 = vpop.permute.xlu0 %1681
        %1683 = vrot.lane.b32.xlu0 %v1578, 8
        %v1684 = vpop.permute.xlu0 %1683
        %1685 = vrot.lane.b32.xlu0 %v1582, 8
        %v1686 = vpop.permute.xlu0 %1685
        %1687 = vrot.lane.b32.xlu0 %v1585, 8
        %v1688 = vpop.permute.xlu0 %1687
        %1689 = vrot.lane.b32.xlu0 %v1589, 8
        %v1690 = vpop.permute.xlu0 %1689
        %1691 = vrot.lane.b32.xlu0 %v1592, 8
        %v1692 = vpop.permute.xlu0 %1691
        %1693 = vrot.lane.b32.xlu0 %v1596, 8
        %v1694 = vpop.permute.xlu0 %1693
        %1695 = vrot.lane.b32.xlu0 %v1599, 8
        %v1696 = vpop.permute.xlu0 %1695
        %1697 = vrot.lane.b32.xlu0 %v1603, 8
        %v1698 = vpop.permute.xlu0 %1697
        %1699 = vrot.lane.b32.xlu0 %v1606, 8
        %v1700 = vpop.permute.xlu0 %1699
        %1701 = vrot.lane.b32.xlu0 %v1610, 8
        %v1702 = vpop.permute.xlu0 %1701
        %1703 = vrot.lane.b32.xlu0 %v1613, 8
        %v1704 = vpop.permute.xlu0 %1703
        %1705 = vrot.lane.b32.xlu0 %v1617, 8
        %v1706 = vpop.permute.xlu0 %1705
        %1707 = vrot.lane.b32.xlu0 %v1620, 8
        %v1708 = vpop.permute.xlu0 %1707
        %1709 = vrot.lane.b32.xlu0 %v1624, 8
        %v1710 = vpop.permute.xlu0 %1709
        %1711 = vrot.lane.b32.xlu0 %v1627, 8
        %v1712 = vpop.permute.xlu0 %1711
        %1713 = vrot.lane.b32.xlu0 %v1631, 8
        %v1714 = vpop.permute.xlu0 %1713
        %1715 = vrot.lane.b32.xlu0 %v1634, 8
        %v1716 = vpop.permute.xlu0 %1715
        %1717 = vrot.lane.b32.xlu0 %v1638, 8
        %v1718 = vpop.permute.xlu0 %1717
        %1719 = vrot.lane.b32.xlu0 %v1641, 8
        %v1720 = vpop.permute.xlu0 %1719
        %1721 = vrot.lane.b32.xlu0 %v1645, 8
        %v1722 = vpop.permute.xlu0 %1721
        %1723 = vrot.lane.b32.xlu0 %v1648, 8
        %v1724 = vpop.permute.xlu0 %1723
        %1725 = vrot.lane.b32.xlu0 %v1652, 8
        %v1726 = vpop.permute.xlu0 %1725
        %1727 = vrot.lane.b32.xlu0 %v1655, 8
        %v1728 = vpop.permute.xlu0 %1727
        %1729 = vrot.lane.b32.xlu0 %v1659, 8
        %v1730 = vpop.permute.xlu0 %1729
        %1731 = vrot.lane.b32.xlu0 %v1662, 8
        %v1732 = vpop.permute.xlu0 %1731
        %1733 = vrot.lane.b32.xlu0 %v1666, 8
        %v1734 = vpop.permute.xlu0 %1733
        %1735 = vrot.lane.b32.xlu0 %v1669, 8
        %v1736 = vpop.permute.xlu0 %1735
        %1737 = vrot.lane.b32.xlu0 %v1673, 8
        %v1738 = vpop.permute.xlu0 %1737
        %1739 = vrot.lane.b32.xlu0 %v1676, 8
        %v1740 = vpop.permute.xlu0 %1739
        %vm1773 = vcmask 93248
        %1774 = vst.msk [vmem:[#allocation3] sm:$0xf] %vm1773, %v1678
        %1775 = vst.msk [vmem:[#allocation3 + $0x4] sm:$0xf] %vm1773, %v1680
        %1776 = vst.msk [vmem:[#allocation3 + $0x8] sm:$0xf] %vm1773, %v1682
        %1777 = vst.msk [vmem:[#allocation3 + $0xc] sm:$0xf] %vm1773, %v1684
        %1778 = vst.msk [vmem:[#allocation3 + $0x10] sm:$0xf] %vm1773, %v1686
        %1779 = vst.msk [vmem:[#allocation3 + $0x14] sm:$0xf] %vm1773, %v1688
        %1780 = vst.msk [vmem:[#allocation3 + $0x18] sm:$0xf] %vm1773, %v1690
        %1781 = vst.msk [vmem:[#allocation3 + $0x1c] sm:$0xf] %vm1773, %v1692
        %1782 = vst.msk [vmem:[#allocation3 + $0x20] sm:$0xf] %vm1773, %v1694
        %1783 = vst.msk [vmem:[#allocation3 + $0x24] sm:$0xf] %vm1773, %v1696
        %1784 = vst.msk [vmem:[#allocation3 + $0x28] sm:$0xf] %vm1773, %v1698
        %1785 = vst.msk [vmem:[#allocation3 + $0x2c] sm:$0xf] %vm1773, %v1700
        %1786 = vst.msk [vmem:[#allocation3 + $0x30] sm:$0xf] %vm1773, %v1702
        %1787 = vst.msk [vmem:[#allocation3 + $0x34] sm:$0xf] %vm1773, %v1704
        %1788 = vst.msk [vmem:[#allocation3 + $0x38] sm:$0xf] %vm1773, %v1706
        %1789 = vst.msk [vmem:[#allocation3 + $0x3c] sm:$0xf] %vm1773, %v1708
        %1790 = vst.msk [vmem:[#allocation3 + $0x40] sm:$0xf] %vm1773, %v1710
        %1791 = vst.msk [vmem:[#allocation3 + $0x44] sm:$0xf] %vm1773, %v1712
        %1792 = vst.msk [vmem:[#allocation3 + $0x48] sm:$0xf] %vm1773, %v1714
        %1793 = vst.msk [vmem:[#allocation3 + $0x4c] sm:$0xf] %vm1773, %v1716
        %1794 = vst.msk [vmem:[#allocation3 + $0x50] sm:$0xf] %vm1773, %v1718
        %1795 = vst.msk [vmem:[#allocation3 + $0x54] sm:$0xf] %vm1773, %v1720
        %1796 = vst.msk [vmem:[#allocation3 + $0x58] sm:$0xf] %vm1773, %v1722
        %1797 = vst.msk [vmem:[#allocation3 + $0x5c] sm:$0xf] %vm1773, %v1724
        %1798 = vst.msk [vmem:[#allocation3 + $0x60] sm:$0xf] %vm1773, %v1726
        %1799 = vst.msk [vmem:[#allocation3 + $0x64] sm:$0xf] %vm1773, %v1728
        %1800 = vst.msk [vmem:[#allocation3 + $0x68] sm:$0xf] %vm1773, %v1730
        %1801 = vst.msk [vmem:[#allocation3 + $0x6c] sm:$0xf] %vm1773, %v1732
        %1802 = vst.msk [vmem:[#allocation3 + $0x70] sm:$0xf] %vm1773, %v1734
        %1803 = vst.msk [vmem:[#allocation3 + $0x74] sm:$0xf] %vm1773, %v1736
        %1804 = vst.msk [vmem:[#allocation3 + $0x78] sm:$0xf] %vm1773, %v1738
        %1805 = vst.msk [vmem:[#allocation3 + $0x7c] sm:$0xf] %vm1773, %v1740
        %v1806 = vld [vmem:[%s233] sm:$0xf]
        %v1807 = vld [vmem:[%s233 + $0x4] sm:$0xf]
        %v1808 = vld [vmem:[%s233 + $0xc] sm:$0xf]
        %v1809 = vld [vmem:[%s233 + $0x10] sm:$0xf]
        %v1810 = vld [vmem:[%s233 + $0x18] sm:$0xf]
        %v1811 = vld [vmem:[%s233 + $0x1c] sm:$0xf]
        %v1812 = vld [vmem:[%s233 + $0x24] sm:$0xf]
        %v1813 = vld [vmem:[%s233 + $0x28] sm:$0xf]
        %v1814 = vld [vmem:[%s233 + $0x30] sm:$0xf]
        %v1815 = vld [vmem:[%s233 + $0x34] sm:$0xf]
        %v1816 = vld [vmem:[%s233 + $0x3c] sm:$0xf]
        %v1817 = vld [vmem:[%s233 + $0x40] sm:$0xf]
        %v1818 = vld [vmem:[%s233 + $0x48] sm:$0xf]
        %v1819 = vld [vmem:[%s233 + $0x4c] sm:$0xf]
        %v1820 = vld [vmem:[%s233 + $0x54] sm:$0xf]
        %v1821 = vld [vmem:[%s233 + $0x58] sm:$0xf]
        %v1822 = vld [vmem:[%s233 + $0x60] sm:$0xf]
        %v1823 = vld [vmem:[%s233 + $0x64] sm:$0xf]
        %v1824 = vld [vmem:[%s233 + $0x6c] sm:$0xf]
        %v1825 = vld [vmem:[%s233 + $0x70] sm:$0xf]
        %v1826 = vld [vmem:[%s233 + $0x78] sm:$0xf]
        %v1827 = vld [vmem:[%s233 + $0x7c] sm:$0xf]
        %v1828 = vld [vmem:[%s233 + $0x84] sm:$0xf]
        %v1829 = vld [vmem:[%s233 + $0x88] sm:$0xf]
        %v1830 = vld [vmem:[%s233 + $0x90] sm:$0xf]
        %v1831 = vld [vmem:[%s233 + $0x94] sm:$0xf]
        %v1832 = vld [vmem:[%s233 + $0x9c] sm:$0xf]
        %v1833 = vld [vmem:[%s233 + $0xa0] sm:$0xf]
        %v1834 = vld [vmem:[%s233 + $0xa8] sm:$0xf]
        %v1835 = vld [vmem:[%s233 + $0xac] sm:$0xf]
        %v1836 = vld [vmem:[%s233 + $0xb4] sm:$0xf]
        %v1837 = vld [vmem:[%s233 + $0xb8] sm:$0xf]
        %1870 = vrot.lane.b32.xlu0 %v1806, 12
        %v1871 = vpop.permute.xlu0 %1870
        %1872 = vrot.lane.b32.xlu0 %v1807, 12
        %v1873 = vpop.permute.xlu0 %1872
        %1874 = vrot.lane.b32.xlu0 %v1808, 12
        %v1875 = vpop.permute.xlu0 %1874
        %1876 = vrot.lane.b32.xlu0 %v1809, 12
        %v1877 = vpop.permute.xlu0 %1876
        %1878 = vrot.lane.b32.xlu0 %v1810, 12
        %v1879 = vpop.permute.xlu0 %1878
        %1880 = vrot.lane.b32.xlu0 %v1811, 12
        %v1881 = vpop.permute.xlu0 %1880
        %1882 = vrot.lane.b32.xlu0 %v1812, 12
        %v1883 = vpop.permute.xlu0 %1882
        %1884 = vrot.lane.b32.xlu0 %v1813, 12
        %v1885 = vpop.permute.xlu0 %1884
        %1886 = vrot.lane.b32.xlu0 %v1814, 12
        %v1887 = vpop.permute.xlu0 %1886
        %1888 = vrot.lane.b32.xlu0 %v1815, 12
        %v1889 = vpop.permute.xlu0 %1888
        %1890 = vrot.lane.b32.xlu0 %v1816, 12
        %v1891 = vpop.permute.xlu0 %1890
        %1892 = vrot.lane.b32.xlu0 %v1817, 12
        %v1893 = vpop.permute.xlu0 %1892
        %1894 = vrot.lane.b32.xlu0 %v1818, 12
        %v1895 = vpop.permute.xlu0 %1894
        %1896 = vrot.lane.b32.xlu0 %v1819, 12
        %v1897 = vpop.permute.xlu0 %1896
        %1898 = vrot.lane.b32.xlu0 %v1820, 12
        %v1899 = vpop.permute.xlu0 %1898
        %1900 = vrot.lane.b32.xlu0 %v1821, 12
        %v1901 = vpop.permute.xlu0 %1900
        %1902 = vrot.lane.b32.xlu0 %v1822, 12
        %v1903 = vpop.permute.xlu0 %1902
        %1904 = vrot.lane.b32.xlu0 %v1823, 12
        %v1905 = vpop.permute.xlu0 %1904
        %1906 = vrot.lane.b32.xlu0 %v1824, 12
        %v1907 = vpop.permute.xlu0 %1906
        %1908 = vrot.lane.b32.xlu0 %v1825, 12
        %v1909 = vpop.permute.xlu0 %1908
        %1910 = vrot.lane.b32.xlu0 %v1826, 12
        %v1911 = vpop.permute.xlu0 %1910
        %1912 = vrot.lane.b32.xlu0 %v1827, 12
        %v1913 = vpop.permute.xlu0 %1912
        %1914 = vrot.lane.b32.xlu0 %v1828, 12
        %v1915 = vpop.permute.xlu0 %1914
        %1916 = vrot.lane.b32.xlu0 %v1829, 12
        %v1917 = vpop.permute.xlu0 %1916
        %1918 = vrot.lane.b32.xlu0 %v1830, 12
        %v1919 = vpop.permute.xlu0 %1918
        %1920 = vrot.lane.b32.xlu0 %v1831, 12
        %v1921 = vpop.permute.xlu0 %1920
        %1922 = vrot.lane.b32.xlu0 %v1832, 12
        %v1923 = vpop.permute.xlu0 %1922
        %1924 = vrot.lane.b32.xlu0 %v1833, 12
        %v1925 = vpop.permute.xlu0 %1924
        %1926 = vrot.lane.b32.xlu0 %v1834, 12
        %v1927 = vpop.permute.xlu0 %1926
        %1928 = vrot.lane.b32.xlu0 %v1835, 12
        %v1929 = vpop.permute.xlu0 %1928
        %1930 = vrot.lane.b32.xlu0 %v1836, 12
        %v1931 = vpop.permute.xlu0 %1930
        %1932 = vrot.lane.b32.xlu0 %v1837, 12
        %v1933 = vpop.permute.xlu0 %1932
        %vm1966 = vcmask 126048
        %1967 = vst.msk [vmem:[#allocation3] sm:$0xf] %vm1966, %v1871
        %1968 = vst.msk [vmem:[#allocation3 + $0x4] sm:$0xf] %vm1966, %v1873
        %1969 = vst.msk [vmem:[#allocation3 + $0x8] sm:$0xf] %vm1966, %v1875
        %1970 = vst.msk [vmem:[#allocation3 + $0xc] sm:$0xf] %vm1966, %v1877
        %1971 = vst.msk [vmem:[#allocation3 + $0x10] sm:$0xf] %vm1966, %v1879
        %1972 = vst.msk [vmem:[#allocation3 + $0x14] sm:$0xf] %vm1966, %v1881
        %1973 = vst.msk [vmem:[#allocation3 + $0x18] sm:$0xf] %vm1966, %v1883
        %1974 = vst.msk [vmem:[#allocation3 + $0x1c] sm:$0xf] %vm1966, %v1885
        %1975 = vst.msk [vmem:[#allocation3 + $0x20] sm:$0xf] %vm1966, %v1887
        %1976 = vst.msk [vmem:[#allocation3 + $0x24] sm:$0xf] %vm1966, %v1889
        %1977 = vst.msk [vmem:[#allocation3 + $0x28] sm:$0xf] %vm1966, %v1891
        %1978 = vst.msk [vmem:[#allocation3 + $0x2c] sm:$0xf] %vm1966, %v1893
        %1979 = vst.msk [vmem:[#allocation3 + $0x30] sm:$0xf] %vm1966, %v1895
        %1980 = vst.msk [vmem:[#allocation3 + $0x34] sm:$0xf] %vm1966, %v1897
        %1981 = vst.msk [vmem:[#allocation3 + $0x38] sm:$0xf] %vm1966, %v1899
        %1982 = vst.msk [vmem:[#allocation3 + $0x3c] sm:$0xf] %vm1966, %v1901
        %1983 = vst.msk [vmem:[#allocation3 + $0x40] sm:$0xf] %vm1966, %v1903
        %1984 = vst.msk [vmem:[#allocation3 + $0x44] sm:$0xf] %vm1966, %v1905
        %1985 = vst.msk [vmem:[#allocation3 + $0x48] sm:$0xf] %vm1966, %v1907
        %1986 = vst.msk [vmem:[#allocation3 + $0x4c] sm:$0xf] %vm1966, %v1909
        %1987 = vst.msk [vmem:[#allocation3 + $0x50] sm:$0xf] %vm1966, %v1911
        %1988 = vst.msk [vmem:[#allocation3 + $0x54] sm:$0xf] %vm1966, %v1913
        %1989 = vst.msk [vmem:[#allocation3 + $0x58] sm:$0xf] %vm1966, %v1915
        %1990 = vst.msk [vmem:[#allocation3 + $0x5c] sm:$0xf] %vm1966, %v1917
        %1991 = vst.msk [vmem:[#allocation3 + $0x60] sm:$0xf] %vm1966, %v1919
        %1992 = vst.msk [vmem:[#allocation3 + $0x64] sm:$0xf] %vm1966, %v1921
        %1993 = vst.msk [vmem:[#allocation3 + $0x68] sm:$0xf] %vm1966, %v1923
        %1994 = vst.msk [vmem:[#allocation3 + $0x6c] sm:$0xf] %vm1966, %v1925
        %1995 = vst.msk [vmem:[#allocation3 + $0x70] sm:$0xf] %vm1966, %v1927
        %1996 = vst.msk [vmem:[#allocation3 + $0x74] sm:$0xf] %vm1966, %v1929
        %1997 = vst.msk [vmem:[#allocation3 + $0x78] sm:$0xf] %vm1966, %v1931
        %1998 = vst.msk [vmem:[#allocation3 + $0x7c] sm:$0xf] %vm1966, %v1933
        %v1999 = vld [vmem:[%s233] sm:$0xf]
        %v2000 = vld [vmem:[%s233 + $0x4] sm:$0xf]
        %v2001 = vld [vmem:[%s233 + $0x8] sm:$0x1]
        %v2002 = vld [vmem:[%s233 + $0xc] sm:$0xf]
        %v2003 = vld [vmem:[%s233 + $0x10] sm:$0xf]
        %v2004 = vld [vmem:[%s233 + $0x14] sm:$0x1]
        %v2005 = vld [vmem:[%s233 + $0x18] sm:$0xf]
        %v2006 = vld [vmem:[%s233 + $0x1c] sm:$0xf]
        %v2007 = vld [vmem:[%s233 + $0x20] sm:$0x1]
        %v2008 = vld [vmem:[%s233 + $0x24] sm:$0xf]
        %v2009 = vld [vmem:[%s233 + $0x28] sm:$0xf]
        %v2010 = vld [vmem:[%s233 + $0x2c] sm:$0x1]
        %v2011 = vld [vmem:[%s233 + $0x30] sm:$0xf]
        %v2012 = vld [vmem:[%s233 + $0x34] sm:$0xf]
        %v2013 = vld [vmem:[%s233 + $0x38] sm:$0x1]
        %v2014 = vld [vmem:[%s233 + $0x3c] sm:$0xf]
        %v2015 = vld [vmem:[%s233 + $0x40] sm:$0xf]
        %v2016 = vld [vmem:[%s233 + $0x44] sm:$0x1]
        %v2017 = vld [vmem:[%s233 + $0x48] sm:$0xf]
        %v2018 = vld [vmem:[%s233 + $0x4c] sm:$0xf]
        %v2019 = vld [vmem:[%s233 + $0x50] sm:$0x1]
        %v2020 = vld [vmem:[%s233 + $0x54] sm:$0xf]
        %v2021 = vld [vmem:[%s233 + $0x58] sm:$0xf]
        %v2022 = vld [vmem:[%s233 + $0x5c] sm:$0x1]
        %v2023 = vld [vmem:[%s233 + $0x60] sm:$0xf]
        %v2024 = vld [vmem:[%s233 + $0x64] sm:$0xf]
        %v2025 = vld [vmem:[%s233 + $0x68] sm:$0x1]
        %v2026 = vld [vmem:[%s233 + $0x6c] sm:$0xf]
        %v2027 = vld [vmem:[%s233 + $0x70] sm:$0xf]
        %v2028 = vld [vmem:[%s233 + $0x74] sm:$0x1]
        %v2029 = vld [vmem:[%s233 + $0x78] sm:$0xf]
        %v2030 = vld [vmem:[%s233 + $0x7c] sm:$0xf]
        %v2031 = vld [vmem:[%s233 + $0x80] sm:$0x1]
        %v2032 = vld [vmem:[%s233 + $0x84] sm:$0xf]
        %v2033 = vld [vmem:[%s233 + $0x88] sm:$0xf]
        %v2034 = vld [vmem:[%s233 + $0x8c] sm:$0x1]
        %v2035 = vld [vmem:[%s233 + $0x90] sm:$0xf]
        %v2036 = vld [vmem:[%s233 + $0x94] sm:$0xf]
        %v2037 = vld [vmem:[%s233 + $0x98] sm:$0x1]
        %v2038 = vld [vmem:[%s233 + $0x9c] sm:$0xf]
        %v2039 = vld [vmem:[%s233 + $0xa0] sm:$0xf]
        %v2040 = vld [vmem:[%s233 + $0xa4] sm:$0x1]
        %v2041 = vld [vmem:[%s233 + $0xa8] sm:$0xf]
        %v2042 = vld [vmem:[%s233 + $0xac] sm:$0xf]
        %v2043 = vld [vmem:[%s233 + $0xb0] sm:$0x1]
        %v2044 = vld [vmem:[%s233 + $0xb4] sm:$0xf]
        %v2045 = vld [vmem:[%s233 + $0xb8] sm:$0xf]
        %v2046 = vld [vmem:[%s233 + $0xbc] sm:$0x1]
        %v2048 = vshrl.u32 %v1999, 16
        %v2050 = vrot.slane %v2048, 4
        %v2051 = vshll.u32 %v1999, 16
        %v2053 = vrot.slane %v2051, 5
        %v2054 = vor.u32 %v2050, %v2053
        %v2055 = vrot.slane %v2054, 4
        %v2057 = vshll.u32 %v2000, 16
        %v2059 = vrot.slane %v2057, 5
        %v2060 = vsel %vm952, %v2055, %v2059
        %v2061 = vshrl.u32 %v2000, 16
        %v2063 = vrot.slane %v2061, 4
        %v2064 = vor.u32 %v2063, %v2059
        %v2065 = vrot.slane %v2064, 4
        %v2067 = vshll.u32 %v2001, 16
        %v2069 = vrot.slane %v2067, 5
        %v2070 = vsel %vm952, %v2065, %v2069
        %v2072 = vshrl.u32 %v2002, 16
        %v2074 = vrot.slane %v2072, 4
        %v2075 = vshll.u32 %v2002, 16
        %v2077 = vrot.slane %v2075, 5
        %v2078 = vor.u32 %v2074, %v2077
        %v2079 = vrot.slane %v2078, 4
        %v2081 = vshll.u32 %v2003, 16
        %v2083 = vrot.slane %v2081, 5
        %v2084 = vsel %vm952, %v2079, %v2083
        %v2085 = vshrl.u32 %v2003, 16
        %v2087 = vrot.slane %v2085, 4
        %v2088 = vor.u32 %v2087, %v2083
        %v2089 = vrot.slane %v2088, 4
        %v2091 = vshll.u32 %v2004, 16
        %v2093 = vrot.slane %v2091, 5
        %v2094 = vsel %vm952, %v2089, %v2093
        %v2096 = vshrl.u32 %v2005, 16
        %v2098 = vrot.slane %v2096, 4
        %v2099 = vshll.u32 %v2005, 16
        %v2101 = vrot.slane %v2099, 5
        %v2102 = vor.u32 %v2098, %v2101
        %v2103 = vrot.slane %v2102, 4
        %v2105 = vshll.u32 %v2006, 16
        %v2107 = vrot.slane %v2105, 5
        %v2108 = vsel %vm952, %v2103, %v2107
        %v2109 = vshrl.u32 %v2006, 16
        %v2111 = vrot.slane %v2109, 4
        %v2112 = vor.u32 %v2111, %v2107
        %v2113 = vrot.slane %v2112, 4
        %v2115 = vshll.u32 %v2007, 16
        %v2117 = vrot.slane %v2115, 5
        %v2118 = vsel %vm952, %v2113, %v2117
        %v2120 = vshrl.u32 %v2008, 16
        %v2122 = vrot.slane %v2120, 4
        %v2123 = vshll.u32 %v2008, 16
        %v2125 = vrot.slane %v2123, 5
        %v2126 = vor.u32 %v2122, %v2125
        %v2127 = vrot.slane %v2126, 4
        %v2129 = vshll.u32 %v2009, 16
        %v2131 = vrot.slane %v2129, 5
        %v2132 = vsel %vm952, %v2127, %v2131
        %v2133 = vshrl.u32 %v2009, 16
        %v2135 = vrot.slane %v2133, 4
        %v2136 = vor.u32 %v2135, %v2131
        %v2137 = vrot.slane %v2136, 4
        %v2139 = vshll.u32 %v2010, 16
        %v2141 = vrot.slane %v2139, 5
        %v2142 = vsel %vm952, %v2137, %v2141
        %v2144 = vshrl.u32 %v2011, 16
        %v2146 = vrot.slane %v2144, 4
        %v2147 = vshll.u32 %v2011, 16
        %v2149 = vrot.slane %v2147, 5
        %v2150 = vor.u32 %v2146, %v2149
        %v2151 = vrot.slane %v2150, 4
        %v2153 = vshll.u32 %v2012, 16
        %v2155 = vrot.slane %v2153, 5
        %v2156 = vsel %vm952, %v2151, %v2155
        %v2157 = vshrl.u32 %v2012, 16
        %v2159 = vrot.slane %v2157, 4
        %v2160 = vor.u32 %v2159, %v2155
        %v2161 = vrot.slane %v2160, 4
        %v2163 = vshll.u32 %v2013, 16
        %v2165 = vrot.slane %v2163, 5
        %v2166 = vsel %vm952, %v2161, %v2165
        %v2168 = vshrl.u32 %v2014, 16
        %v2170 = vrot.slane %v2168, 4
        %v2171 = vshll.u32 %v2014, 16
        %v2173 = vrot.slane %v2171, 5
        %v2174 = vor.u32 %v2170, %v2173
        %v2175 = vrot.slane %v2174, 4
        %v2177 = vshll.u32 %v2015, 16
        %v2179 = vrot.slane %v2177, 5
        %v2180 = vsel %vm952, %v2175, %v2179
        %v2181 = vshrl.u32 %v2015, 16
        %v2183 = vrot.slane %v2181, 4
        %v2184 = vor.u32 %v2183, %v2179
        %v2185 = vrot.slane %v2184, 4
        %v2187 = vshll.u32 %v2016, 16
        %v2189 = vrot.slane %v2187, 5
        %v2190 = vsel %vm952, %v2185, %v2189
        %v2192 = vshrl.u32 %v2017, 16
        %v2194 = vrot.slane %v2192, 4
        %v2195 = vshll.u32 %v2017, 16
        %v2197 = vrot.slane %v2195, 5
        %v2198 = vor.u32 %v2194, %v2197
        %v2199 = vrot.slane %v2198, 4
        %v2201 = vshll.u32 %v2018, 16
        %v2203 = vrot.slane %v2201, 5
        %v2204 = vsel %vm952, %v2199, %v2203
        %v2205 = vshrl.u32 %v2018, 16
        %v2207 = vrot.slane %v2205, 4
        %v2208 = vor.u32 %v2207, %v2203
        %v2209 = vrot.slane %v2208, 4
        %v2211 = vshll.u32 %v2019, 16
        %v2213 = vrot.slane %v2211, 5
        %v2214 = vsel %vm952, %v2209, %v2213
        %v2216 = vshrl.u32 %v2020, 16
        %v2218 = vrot.slane %v2216, 4
        %v2219 = vshll.u32 %v2020, 16
        %v2221 = vrot.slane %v2219, 5
        %v2222 = vor.u32 %v2218, %v2221
        %v2223 = vrot.slane %v2222, 4
        %v2225 = vshll.u32 %v2021, 16
        %v2227 = vrot.slane %v2225, 5
        %v2228 = vsel %vm952, %v2223, %v2227
        %v2229 = vshrl.u32 %v2021, 16
        %v2231 = vrot.slane %v2229, 4
        %v2232 = vor.u32 %v2231, %v2227
        %v2233 = vrot.slane %v2232, 4
        %v2235 = vshll.u32 %v2022, 16
        %v2237 = vrot.slane %v2235, 5
        %v2238 = vsel %vm952, %v2233, %v2237
        %v2240 = vshrl.u32 %v2023, 16
        %v2242 = vrot.slane %v2240, 4
        %v2243 = vshll.u32 %v2023, 16
        %v2245 = vrot.slane %v2243, 5
        %v2246 = vor.u32 %v2242, %v2245
        %v2247 = vrot.slane %v2246, 4
        %v2249 = vshll.u32 %v2024, 16
        %v2251 = vrot.slane %v2249, 5
        %v2252 = vsel %vm952, %v2247, %v2251
        %v2253 = vshrl.u32 %v2024, 16
        %v2255 = vrot.slane %v2253, 4
        %v2256 = vor.u32 %v2255, %v2251
        %v2257 = vrot.slane %v2256, 4
        %v2259 = vshll.u32 %v2025, 16
        %v2261 = vrot.slane %v2259, 5
        %v2262 = vsel %vm952, %v2257, %v2261
        %v2264 = vshrl.u32 %v2026, 16
        %v2266 = vrot.slane %v2264, 4
        %v2267 = vshll.u32 %v2026, 16
        %v2269 = vrot.slane %v2267, 5
        %v2270 = vor.u32 %v2266, %v2269
        %v2271 = vrot.slane %v2270, 4
        %v2273 = vshll.u32 %v2027, 16
        %v2275 = vrot.slane %v2273, 5
        %v2276 = vsel %vm952, %v2271, %v2275
        %v2277 = vshrl.u32 %v2027, 16
        %v2279 = vrot.slane %v2277, 4
        %v2280 = vor.u32 %v2279, %v2275
        %v2281 = vrot.slane %v2280, 4
        %v2283 = vshll.u32 %v2028, 16
        %v2285 = vrot.slane %v2283, 5
        %v2286 = vsel %vm952, %v2281, %v2285
        %v2288 = vshrl.u32 %v2029, 16
        %v2290 = vrot.slane %v2288, 4
        %v2291 = vshll.u32 %v2029, 16
        %v2293 = vrot.slane %v2291, 5
        %v2294 = vor.u32 %v2290, %v2293
        %v2295 = vrot.slane %v2294, 4
        %v2297 = vshll.u32 %v2030, 16
        %v2299 = vrot.slane %v2297, 5
        %v2300 = vsel %vm952, %v2295, %v2299
        %v2301 = vshrl.u32 %v2030, 16
        %v2303 = vrot.slane %v2301, 4
        %v2304 = vor.u32 %v2303, %v2299
        %v2305 = vrot.slane %v2304, 4
        %v2307 = vshll.u32 %v2031, 16
        %v2309 = vrot.slane %v2307, 5
        %v2310 = vsel %vm952, %v2305, %v2309
        %v2312 = vshrl.u32 %v2032, 16
        %v2314 = vrot.slane %v2312, 4
        %v2315 = vshll.u32 %v2032, 16
        %v2317 = vrot.slane %v2315, 5
        %v2318 = vor.u32 %v2314, %v2317
        %v2319 = vrot.slane %v2318, 4
        %v2321 = vshll.u32 %v2033, 16
        %v2323 = vrot.slane %v2321, 5
        %v2324 = vsel %vm952, %v2319, %v2323
        %v2325 = vshrl.u32 %v2033, 16
        %v2327 = vrot.slane %v2325, 4
        %v2328 = vor.u32 %v2327, %v2323
        %v2329 = vrot.slane %v2328, 4
        %v2331 = vshll.u32 %v2034, 16
        %v2333 = vrot.slane %v2331, 5
        %v2334 = vsel %vm952, %v2329, %v2333
        %v2336 = vshrl.u32 %v2035, 16
        %v2338 = vrot.slane %v2336, 4
        %v2339 = vshll.u32 %v2035, 16
        %v2341 = vrot.slane %v2339, 5
        %v2342 = vor.u32 %v2338, %v2341
        %v2343 = vrot.slane %v2342, 4
        %v2345 = vshll.u32 %v2036, 16
        %v2347 = vrot.slane %v2345, 5
        %v2348 = vsel %vm952, %v2343, %v2347
        %v2349 = vshrl.u32 %v2036, 16
        %v2351 = vrot.slane %v2349, 4
        %v2352 = vor.u32 %v2351, %v2347
        %v2353 = vrot.slane %v2352, 4
        %v2355 = vshll.u32 %v2037, 16
        %v2357 = vrot.slane %v2355, 5
        %v2358 = vsel %vm952, %v2353, %v2357
        %v2360 = vshrl.u32 %v2038, 16
        %v2362 = vrot.slane %v2360, 4
        %v2363 = vshll.u32 %v2038, 16
        %v2365 = vrot.slane %v2363, 5
        %v2366 = vor.u32 %v2362, %v2365
        %v2367 = vrot.slane %v2366, 4
        %v2369 = vshll.u32 %v2039, 16
        %v2371 = vrot.slane %v2369, 5
        %v2372 = vsel %vm952, %v2367, %v2371
        %v2373 = vshrl.u32 %v2039, 16
        %v2375 = vrot.slane %v2373, 4
        %v2376 = vor.u32 %v2375, %v2371
        %v2377 = vrot.slane %v2376, 4
        %v2379 = vshll.u32 %v2040, 16
        %v2381 = vrot.slane %v2379, 5
        %v2382 = vsel %vm952, %v2377, %v2381
        %v2384 = vshrl.u32 %v2041, 16
        %v2386 = vrot.slane %v2384, 4
        %v2387 = vshll.u32 %v2041, 16
        %v2389 = vrot.slane %v2387, 5
        %v2390 = vor.u32 %v2386, %v2389
        %v2391 = vrot.slane %v2390, 4
        %v2393 = vshll.u32 %v2042, 16
        %v2395 = vrot.slane %v2393, 5
        %v2396 = vsel %vm952, %v2391, %v2395
        %v2397 = vshrl.u32 %v2042, 16
        %v2399 = vrot.slane %v2397, 4
        %v2400 = vor.u32 %v2399, %v2395
        %v2401 = vrot.slane %v2400, 4
        %v2403 = vshll.u32 %v2043, 16
        %v2405 = vrot.slane %v2403, 5
        %v2406 = vsel %vm952, %v2401, %v2405
        %v2408 = vshrl.u32 %v2044, 16
        %v2410 = vrot.slane %v2408, 4
        %v2411 = vshll.u32 %v2044, 16
        %v2413 = vrot.slane %v2411, 5
        %v2414 = vor.u32 %v2410, %v2413
        %v2415 = vrot.slane %v2414, 4
        %v2417 = vshll.u32 %v2045, 16
        %v2419 = vrot.slane %v2417, 5
        %v2420 = vsel %vm952, %v2415, %v2419
        %v2421 = vshrl.u32 %v2045, 16
        %v2423 = vrot.slane %v2421, 4
        %v2424 = vor.u32 %v2423, %v2419
        %v2425 = vrot.slane %v2424, 4
        %v2427 = vshll.u32 %v2046, 16
        %v2429 = vrot.slane %v2427, 5
        %v2430 = vsel %vm952, %v2425, %v2429
        %2431 = vrot.lane.b32.xlu0 %v2060, 16
        %v2432 = vpop.permute.xlu0 %2431
        %2433 = vrot.lane.b32.xlu0 %v2070, 16
        %v2434 = vpop.permute.xlu0 %2433
        %2435 = vrot.lane.b32.xlu0 %v2084, 16
        %v2436 = vpop.permute.xlu0 %2435
        %2437 = vrot.lane.b32.xlu0 %v2094, 16
        %v2438 = vpop.permute.xlu0 %2437
        %2439 = vrot.lane.b32.xlu0 %v2108, 16
        %v2440 = vpop.permute.xlu0 %2439
        %2441 = vrot.lane.b32.xlu0 %v2118, 16
        %v2442 = vpop.permute.xlu0 %2441
        %2443 = vrot.lane.b32.xlu0 %v2132, 16
        %v2444 = vpop.permute.xlu0 %2443
        %2445 = vrot.lane.b32.xlu0 %v2142, 16
        %v2446 = vpop.permute.xlu0 %2445
        %2447 = vrot.lane.b32.xlu0 %v2156, 16
        %v2448 = vpop.permute.xlu0 %2447
        %2449 = vrot.lane.b32.xlu0 %v2166, 16
        %v2450 = vpop.permute.xlu0 %2449
        %2451 = vrot.lane.b32.xlu0 %v2180, 16
        %v2452 = vpop.permute.xlu0 %2451
        %2453 = vrot.lane.b32.xlu0 %v2190, 16
        %v2454 = vpop.permute.xlu0 %2453
        %2455 = vrot.lane.b32.xlu0 %v2204, 16
        %v2456 = vpop.permute.xlu0 %2455
        %2457 = vrot.lane.b32.xlu0 %v2214, 16
        %v2458 = vpop.permute.xlu0 %2457
        %2459 = vrot.lane.b32.xlu0 %v2228, 16
        %v2460 = vpop.permute.xlu0 %2459
        %2461 = vrot.lane.b32.xlu0 %v2238, 16
        %v2462 = vpop.permute.xlu0 %2461
        %2463 = vrot.lane.b32.xlu0 %v2252, 16
        %v2464 = vpop.permute.xlu0 %2463
        %2465 = vrot.lane.b32.xlu0 %v2262, 16
        %v2466 = vpop.permute.xlu0 %2465
        %2467 = vrot.lane.b32.xlu0 %v2276, 16
        %v2468 = vpop.permute.xlu0 %2467
        %2469 = vrot.lane.b32.xlu0 %v2286, 16
        %v2470 = vpop.permute.xlu0 %2469
        %2471 = vrot.lane.b32.xlu0 %v2300, 16
        %v2472 = vpop.permute.xlu0 %2471
        %2473 = vrot.lane.b32.xlu0 %v2310, 16
        %v2474 = vpop.permute.xlu0 %2473
        %2475 = vrot.lane.b32.xlu0 %v2324, 16
        %v2476 = vpop.permute.xlu0 %2475
        %2477 = vrot.lane.b32.xlu0 %v2334, 16
        %v2478 = vpop.permute.xlu0 %2477
        %2479 = vrot.lane.b32.xlu0 %v2348, 16
        %v2480 = vpop.permute.xlu0 %2479
        %2481 = vrot.lane.b32.xlu0 %v2358, 16
        %v2482 = vpop.permute.xlu0 %2481
        %2483 = vrot.lane.b32.xlu0 %v2372, 16
        %v2484 = vpop.permute.xlu0 %2483
        %2485 = vrot.lane.b32.xlu0 %v2382, 16
        %v2486 = vpop.permute.xlu0 %2485
        %2487 = vrot.lane.b32.xlu0 %v2396, 16
        %v2488 = vpop.permute.xlu0 %2487
        %2489 = vrot.lane.b32.xlu0 %v2406, 16
        %v2490 = vpop.permute.xlu0 %2489
        %2491 = vrot.lane.b32.xlu0 %v2420, 16
        %v2492 = vpop.permute.xlu0 %2491
        %2493 = vrot.lane.b32.xlu0 %v2430, 16
        %v2494 = vpop.permute.xlu0 %2493
        %vm2527 = vcmask 158848
        %2528 = vst.msk [vmem:[#allocation3] sm:$0xf] %vm2527, %v2432
        %2529 = vst.msk [vmem:[#allocation3 + $0x4] sm:$0xf] %vm2527, %v2434
        %2530 = vst.msk [vmem:[#allocation3 + $0x8] sm:$0xf] %vm2527, %v2436
        %2531 = vst.msk [vmem:[#allocation3 + $0xc] sm:$0xf] %vm2527, %v2438
        %2532 = vst.msk [vmem:[#allocation3 + $0x10] sm:$0xf] %vm2527, %v2440
        %2533 = vst.msk [vmem:[#allocation3 + $0x14] sm:$0xf] %vm2527, %v2442
        %2534 = vst.msk [vmem:[#allocation3 + $0x18] sm:$0xf] %vm2527, %v2444
        %2535 = vst.msk [vmem:[#allocation3 + $0x1c] sm:$0xf] %vm2527, %v2446
        %2536 = vst.msk [vmem:[#allocation3 + $0x20] sm:$0xf] %vm2527, %v2448
        %2537 = vst.msk [vmem:[#allocation3 + $0x24] sm:$0xf] %vm2527, %v2450
        %2538 = vst.msk [vmem:[#allocation3 + $0x28] sm:$0xf] %vm2527, %v2452
        %2539 = vst.msk [vmem:[#allocation3 + $0x2c] sm:$0xf] %vm2527, %v2454
        %2540 = vst.msk [vmem:[#allocation3 + $0x30] sm:$0xf] %vm2527, %v2456
        %2541 = vst.msk [vmem:[#allocation3 + $0x34] sm:$0xf] %vm2527, %v2458
        %2542 = vst.msk [vmem:[#allocation3 + $0x38] sm:$0xf] %vm2527, %v2460
        %2543 = vst.msk [vmem:[#allocation3 + $0x3c] sm:$0xf] %vm2527, %v2462
        %2544 = vst.msk [vmem:[#allocation3 + $0x40] sm:$0xf] %vm2527, %v2464
        %2545 = vst.msk [vmem:[#allocation3 + $0x44] sm:$0xf] %vm2527, %v2466
        %2546 = vst.msk [vmem:[#allocation3 + $0x48] sm:$0xf] %vm2527, %v2468
        %2547 = vst.msk [vmem:[#allocation3 + $0x4c] sm:$0xf] %vm2527, %v2470
        %2548 = vst.msk [vmem:[#allocation3 + $0x50] sm:$0xf] %vm2527, %v2472
        %2549 = vst.msk [vmem:[#allocation3 + $0x54] sm:$0xf] %vm2527, %v2474
        %2550 = vst.msk [vmem:[#allocation3 + $0x58] sm:$0xf] %vm2527, %v2476
        %2551 = vst.msk [vmem:[#allocation3 + $0x5c] sm:$0xf] %vm2527, %v2478
        %2552 = vst.msk [vmem:[#allocation3 + $0x60] sm:$0xf] %vm2527, %v2480
        %2553 = vst.msk [vmem:[#allocation3 + $0x64] sm:$0xf] %vm2527, %v2482
        %2554 = vst.msk [vmem:[#allocation3 + $0x68] sm:$0xf] %vm2527, %v2484
        %2555 = vst.msk [vmem:[#allocation3 + $0x6c] sm:$0xf] %vm2527, %v2486
        %2556 = vst.msk [vmem:[#allocation3 + $0x70] sm:$0xf] %vm2527, %v2488
        %2557 = vst.msk [vmem:[#allocation3 + $0x74] sm:$0xf] %vm2527, %v2490
        %2558 = vst.msk [vmem:[#allocation3 + $0x78] sm:$0xf] %vm2527, %v2492
        %2559 = vst.msk [vmem:[#allocation3 + $0x7c] sm:$0xf] %vm2527, %v2494
        %v2560 = vld [vmem:[%s233] sm:$0xe]
        %v2561 = vld [vmem:[%s233 + $0x4] sm:$0xf]
        %v2562 = vld [vmem:[%s233 + $0x8] sm:$0x1]
        %v2563 = vld [vmem:[%s233 + $0xc] sm:$0xe]
        %v2564 = vld [vmem:[%s233 + $0x10] sm:$0xf]
        %v2565 = vld [vmem:[%s233 + $0x14] sm:$0x1]
        %v2566 = vld [vmem:[%s233 + $0x18] sm:$0xe]
        %v2567 = vld [vmem:[%s233 + $0x1c] sm:$0xf]
        %v2568 = vld [vmem:[%s233 + $0x20] sm:$0x1]
        %v2569 = vld [vmem:[%s233 + $0x24] sm:$0xe]
        %v2570 = vld [vmem:[%s233 + $0x28] sm:$0xf]
        %v2571 = vld [vmem:[%s233 + $0x2c] sm:$0x1]
        %v2572 = vld [vmem:[%s233 + $0x30] sm:$0xe]
        %v2573 = vld [vmem:[%s233 + $0x34] sm:$0xf]
        %v2574 = vld [vmem:[%s233 + $0x38] sm:$0x1]
        %v2575 = vld [vmem:[%s233 + $0x3c] sm:$0xe]
        %v2576 = vld [vmem:[%s233 + $0x40] sm:$0xf]
        %v2577 = vld [vmem:[%s233 + $0x44] sm:$0x1]
        %v2578 = vld [vmem:[%s233 + $0x48] sm:$0xe]
        %v2579 = vld [vmem:[%s233 + $0x4c] sm:$0xf]
        %v2580 = vld [vmem:[%s233 + $0x50] sm:$0x1]
        %v2581 = vld [vmem:[%s233 + $0x54] sm:$0xe]
        %v2582 = vld [vmem:[%s233 + $0x58] sm:$0xf]
        %v2583 = vld [vmem:[%s233 + $0x5c] sm:$0x1]
        %v2584 = vld [vmem:[%s233 + $0x60] sm:$0xe]
        %v2585 = vld [vmem:[%s233 + $0x64] sm:$0xf]
        %v2586 = vld [vmem:[%s233 + $0x68] sm:$0x1]
        %v2587 = vld [vmem:[%s233 + $0x6c] sm:$0xe]
        %v2588 = vld [vmem:[%s233 + $0x70] sm:$0xf]
        %v2589 = vld [vmem:[%s233 + $0x74] sm:$0x1]
        %v2590 = vld [vmem:[%s233 + $0x78] sm:$0xe]
        %v2591 = vld [vmem:[%s233 + $0x7c] sm:$0xf]
        %v2592 = vld [vmem:[%s233 + $0x80] sm:$0x1]
        %v2593 = vld [vmem:[%s233 + $0x84] sm:$0xe]
        %v2594 = vld [vmem:[%s233 + $0x88] sm:$0xf]
        %v2595 = vld [vmem:[%s233 + $0x8c] sm:$0x1]
        %v2596 = vld [vmem:[%s233 + $0x90] sm:$0xe]
        %v2597 = vld [vmem:[%s233 + $0x94] sm:$0xf]
        %v2598 = vld [vmem:[%s233 + $0x98] sm:$0x1]
        %v2599 = vld [vmem:[%s233 + $0x9c] sm:$0xe]
        %v2600 = vld [vmem:[%s233 + $0xa0] sm:$0xf]
        %v2601 = vld [vmem:[%s233 + $0xa4] sm:$0x1]
        %v2602 = vld [vmem:[%s233 + $0xa8] sm:$0xe]
        %v2603 = vld [vmem:[%s233 + $0xac] sm:$0xf]
        %v2604 = vld [vmem:[%s233 + $0xb0] sm:$0x1]
        %v2605 = vld [vmem:[%s233 + $0xb4] sm:$0xe]
        %v2606 = vld [vmem:[%s233 + $0xb8] sm:$0xf]
        %v2607 = vld [vmem:[%s233 + $0xbc] sm:$0x1]
        %v2656 = vrot.slane %v2560, 5
        %v2657 = vrot.slane %v2656, 4
        %v2658 = vrot.slane %v2561, 5
        %v2659 = vsel %vm1564, %v2657, %v2658
        %v2660 = vrot.slane %v2658, 4
        %v2661 = vrot.slane %v2562, 5
        %v2662 = vsel %vm1564, %v2660, %v2661
        %v2663 = vrot.slane %v2563, 5
        %v2664 = vrot.slane %v2663, 4
        %v2665 = vrot.slane %v2564, 5
        %v2666 = vsel %vm1564, %v2664, %v2665
        %v2667 = vrot.slane %v2665, 4
        %v2668 = vrot.slane %v2565, 5
        %v2669 = vsel %vm1564, %v2667, %v2668
        %v2670 = vrot.slane %v2566, 5
        %v2671 = vrot.slane %v2670, 4
        %v2672 = vrot.slane %v2567, 5
        %v2673 = vsel %vm1564, %v2671, %v2672
        %v2674 = vrot.slane %v2672, 4
        %v2675 = vrot.slane %v2568, 5
        %v2676 = vsel %vm1564, %v2674, %v2675
        %v2677 = vrot.slane %v2569, 5
        %v2678 = vrot.slane %v2677, 4
        %v2679 = vrot.slane %v2570, 5
        %v2680 = vsel %vm1564, %v2678, %v2679
        %v2681 = vrot.slane %v2679, 4
        %v2682 = vrot.slane %v2571, 5
        %v2683 = vsel %vm1564, %v2681, %v2682
        %v2684 = vrot.slane %v2572, 5
        %v2685 = vrot.slane %v2684, 4
        %v2686 = vrot.slane %v2573, 5
        %v2687 = vsel %vm1564, %v2685, %v2686
        %v2688 = vrot.slane %v2686, 4
        %v2689 = vrot.slane %v2574, 5
        %v2690 = vsel %vm1564, %v2688, %v2689
        %v2691 = vrot.slane %v2575, 5
        %v2692 = vrot.slane %v2691, 4
        %v2693 = vrot.slane %v2576, 5
        %v2694 = vsel %vm1564, %v2692, %v2693
        %v2695 = vrot.slane %v2693, 4
        %v2696 = vrot.slane %v2577, 5
        %v2697 = vsel %vm1564, %v2695, %v2696
        %v2698 = vrot.slane %v2578, 5
        %v2699 = vrot.slane %v2698, 4
        %v2700 = vrot.slane %v2579, 5
        %v2701 = vsel %vm1564, %v2699, %v2700
        %v2702 = vrot.slane %v2700, 4
        %v2703 = vrot.slane %v2580, 5
        %v2704 = vsel %vm1564, %v2702, %v2703
        %v2705 = vrot.slane %v2581, 5
        %v2706 = vrot.slane %v2705, 4
        %v2707 = vrot.slane %v2582, 5
        %v2708 = vsel %vm1564, %v2706, %v2707
        %v2709 = vrot.slane %v2707, 4
        %v2710 = vrot.slane %v2583, 5
        %v2711 = vsel %vm1564, %v2709, %v2710
        %v2712 = vrot.slane %v2584, 5
        %v2713 = vrot.slane %v2712, 4
        %v2714 = vrot.slane %v2585, 5
        %v2715 = vsel %vm1564, %v2713, %v2714
        %v2716 = vrot.slane %v2714, 4
        %v2717 = vrot.slane %v2586, 5
        %v2718 = vsel %vm1564, %v2716, %v2717
        %v2719 = vrot.slane %v2587, 5
        %v2720 = vrot.slane %v2719, 4
        %v2721 = vrot.slane %v2588, 5
        %v2722 = vsel %vm1564, %v2720, %v2721
        %v2723 = vrot.slane %v2721, 4
        %v2724 = vrot.slane %v2589, 5
        %v2725 = vsel %vm1564, %v2723, %v2724
        %v2726 = vrot.slane %v2590, 5
        %v2727 = vrot.slane %v2726, 4
        %v2728 = vrot.slane %v2591, 5
        %v2729 = vsel %vm1564, %v2727, %v2728
        %v2730 = vrot.slane %v2728, 4
        %v2731 = vrot.slane %v2592, 5
        %v2732 = vsel %vm1564, %v2730, %v2731
        %v2733 = vrot.slane %v2593, 5
        %v2734 = vrot.slane %v2733, 4
        %v2735 = vrot.slane %v2594, 5
        %v2736 = vsel %vm1564, %v2734, %v2735
        %v2737 = vrot.slane %v2735, 4
        %v2738 = vrot.slane %v2595, 5
        %v2739 = vsel %vm1564, %v2737, %v2738
        %v2740 = vrot.slane %v2596, 5
        %v2741 = vrot.slane %v2740, 4
        %v2742 = vrot.slane %v2597, 5
        %v2743 = vsel %vm1564, %v2741, %v2742
        %v2744 = vrot.slane %v2742, 4
        %v2745 = vrot.slane %v2598, 5
        %v2746 = vsel %vm1564, %v2744, %v2745
        %v2747 = vrot.slane %v2599, 5
        %v2748 = vrot.slane %v2747, 4
        %v2749 = vrot.slane %v2600, 5
        %v2750 = vsel %vm1564, %v2748, %v2749
        %v2751 = vrot.slane %v2749, 4
        %v2752 = vrot.slane %v2601, 5
        %v2753 = vsel %vm1564, %v2751, %v2752
        %v2754 = vrot.slane %v2602, 5
        %v2755 = vrot.slane %v2754, 4
        %v2756 = vrot.slane %v2603, 5
        %v2757 = vsel %vm1564, %v2755, %v2756
        %v2758 = vrot.slane %v2756, 4
        %v2759 = vrot.slane %v2604, 5
        %v2760 = vsel %vm1564, %v2758, %v2759
        %v2761 = vrot.slane %v2605, 5
        %v2762 = vrot.slane %v2761, 4
        %v2763 = vrot.slane %v2606, 5
        %v2764 = vsel %vm1564, %v2762, %v2763
        %v2765 = vrot.slane %v2763, 4
        %v2766 = vrot.slane %v2607, 5
        %v2767 = vsel %vm1564, %v2765, %v2766
        %2768 = vrot.lane.b32.xlu0 %v2659, 20
        %v2769 = vpop.permute.xlu0 %2768
        %2770 = vrot.lane.b32.xlu0 %v2662, 20
        %v2771 = vpop.permute.xlu0 %2770
        %2772 = vrot.lane.b32.xlu0 %v2666, 20
        %v2773 = vpop.permute.xlu0 %2772
        %2774 = vrot.lane.b32.xlu0 %v2669, 20
        %v2775 = vpop.permute.xlu0 %2774
        %2776 = vrot.lane.b32.xlu0 %v2673, 20
        %v2777 = vpop.permute.xlu0 %2776
        %2778 = vrot.lane.b32.xlu0 %v2676, 20
        %v2779 = vpop.permute.xlu0 %2778
        %2780 = vrot.lane.b32.xlu0 %v2680, 20
        %v2781 = vpop.permute.xlu0 %2780
        %2782 = vrot.lane.b32.xlu0 %v2683, 20
        %v2783 = vpop.permute.xlu0 %2782
        %2784 = vrot.lane.b32.xlu0 %v2687, 20
        %v2785 = vpop.permute.xlu0 %2784
        %2786 = vrot.lane.b32.xlu0 %v2690, 20
        %v2787 = vpop.permute.xlu0 %2786
        %2788 = vrot.lane.b32.xlu0 %v2694, 20
        %v2789 = vpop.permute.xlu0 %2788
        %2790 = vrot.lane.b32.xlu0 %v2697, 20
        %v2791 = vpop.permute.xlu0 %2790
        %2792 = vrot.lane.b32.xlu0 %v2701, 20
        %v2793 = vpop.permute.xlu0 %2792
        %2794 = vrot.lane.b32.xlu0 %v2704, 20
        %v2795 = vpop.permute.xlu0 %2794
        %2796 = vrot.lane.b32.xlu0 %v2708, 20
        %v2797 = vpop.permute.xlu0 %2796
        %2798 = vrot.lane.b32.xlu0 %v2711, 20
        %v2799 = vpop.permute.xlu0 %2798
        %2800 = vrot.lane.b32.xlu0 %v2715, 20
        %v2801 = vpop.permute.xlu0 %2800
        %2802 = vrot.lane.b32.xlu0 %v2718, 20
        %v2803 = vpop.permute.xlu0 %2802
        %2804 = vrot.lane.b32.xlu0 %v2722, 20
        %v2805 = vpop.permute.xlu0 %2804
        %2806 = vrot.lane.b32.xlu0 %v2725, 20
        %v2807 = vpop.permute.xlu0 %2806
        %2808 = vrot.lane.b32.xlu0 %v2729, 20
        %v2809 = vpop.permute.xlu0 %2808
        %2810 = vrot.lane.b32.xlu0 %v2732, 20
        %v2811 = vpop.permute.xlu0 %2810
        %2812 = vrot.lane.b32.xlu0 %v2736, 20
        %v2813 = vpop.permute.xlu0 %2812
        %2814 = vrot.lane.b32.xlu0 %v2739, 20
        %v2815 = vpop.permute.xlu0 %2814
        %2816 = vrot.lane.b32.xlu0 %v2743, 20
        %v2817 = vpop.permute.xlu0 %2816
        %2818 = vrot.lane.b32.xlu0 %v2746, 20
        %v2819 = vpop.permute.xlu0 %2818
        %2820 = vrot.lane.b32.xlu0 %v2750, 20
        %v2821 = vpop.permute.xlu0 %2820
        %2822 = vrot.lane.b32.xlu0 %v2753, 20
        %v2823 = vpop.permute.xlu0 %2822
        %2824 = vrot.lane.b32.xlu0 %v2757, 20
        %v2825 = vpop.permute.xlu0 %2824
        %2826 = vrot.lane.b32.xlu0 %v2760, 20
        %v2827 = vpop.permute.xlu0 %2826
        %2828 = vrot.lane.b32.xlu0 %v2764, 20
        %v2829 = vpop.permute.xlu0 %2828
        %2830 = vrot.lane.b32.xlu0 %v2767, 20
        %v2831 = vpop.permute.xlu0 %2830
        %vm2864 = vcmask 191648
        %2865 = vst.msk [vmem:[#allocation3] sm:$0xf] %vm2864, %v2769
        %2866 = vst.msk [vmem:[#allocation3 + $0x4] sm:$0xf] %vm2864, %v2771
        %2867 = vst.msk [vmem:[#allocation3 + $0x8] sm:$0xf] %vm2864, %v2773
        %2868 = vst.msk [vmem:[#allocation3 + $0xc] sm:$0xf] %vm2864, %v2775
        %2869 = vst.msk [vmem:[#allocation3 + $0x10] sm:$0xf] %vm2864, %v2777
        %2870 = vst.msk [vmem:[#allocation3 + $0x14] sm:$0xf] %vm2864, %v2779
        %2871 = vst.msk [vmem:[#allocation3 + $0x18] sm:$0xf] %vm2864, %v2781
        %2872 = vst.msk [vmem:[#allocation3 + $0x1c] sm:$0xf] %vm2864, %v2783
        %2873 = vst.msk [vmem:[#allocation3 + $0x20] sm:$0xf] %vm2864, %v2785
        %2874 = vst.msk [vmem:[#allocation3 + $0x24] sm:$0xf] %vm2864, %v2787
        %2875 = vst.msk [vmem:[#allocation3 + $0x28] sm:$0xf] %vm2864, %v2789
        %2876 = vst.msk [vmem:[#allocation3 + $0x2c] sm:$0xf] %vm2864, %v2791
        %2877 = vst.msk [vmem:[#allocation3 + $0x30] sm:$0xf] %vm2864, %v2793
        %2878 = vst.msk [vmem:[#allocation3 + $0x34] sm:$0xf] %vm2864, %v2795
        %2879 = vst.msk [vmem:[#allocation3 + $0x38] sm:$0xf] %vm2864, %v2797
        %2880 = vst.msk [vmem:[#allocation3 + $0x3c] sm:$0xf] %vm2864, %v2799
        %2881 = vst.msk [vmem:[#allocation3 + $0x40] sm:$0xf] %vm2864, %v2801
        %2882 = vst.msk [vmem:[#allocation3 + $0x44] sm:$0xf] %vm2864, %v2803
        %2883 = vst.msk [vmem:[#allocation3 + $0x48] sm:$0xf] %vm2864, %v2805
        %2884 = vst.msk [vmem:[#allocation3 + $0x4c] sm:$0xf] %vm2864, %v2807
        %2885 = vst.msk [vmem:[#allocation3 + $0x50] sm:$0xf] %vm2864, %v2809
        %2886 = vst.msk [vmem:[#allocation3 + $0x54] sm:$0xf] %vm2864, %v2811
        %2887 = vst.msk [vmem:[#allocation3 + $0x58] sm:$0xf] %vm2864, %v2813
        %2888 = vst.msk [vmem:[#allocation3 + $0x5c] sm:$0xf] %vm2864, %v2815
        %2889 = vst.msk [vmem:[#allocation3 + $0x60] sm:$0xf] %vm2864, %v2817
        %2890 = vst.msk [vmem:[#allocation3 + $0x64] sm:$0xf] %vm2864, %v2819
        %2891 = vst.msk [vmem:[#allocation3 + $0x68] sm:$0xf] %vm2864, %v2821
        %2892 = vst.msk [vmem:[#allocation3 + $0x6c] sm:$0xf] %vm2864, %v2823
        %2893 = vst.msk [vmem:[#allocation3 + $0x70] sm:$0xf] %vm2864, %v2825
        %2894 = vst.msk [vmem:[#allocation3 + $0x74] sm:$0xf] %vm2864, %v2827
        %2895 = vst.msk [vmem:[#allocation3 + $0x78] sm:$0xf] %vm2864, %v2829
        %2896 = vst.msk [vmem:[#allocation3 + $0x7c] sm:$0xf] %vm2864, %v2831
        %s2897 = scalar_lea.vmem [#allocation2], 24
        %v2898 = vld [vmem:[%s2897] sm:$0xf]
        %v2899 = vld [vmem:[%s2897 + $0x4] sm:$0xf]
        %v2900 = vld [vmem:[%s2897 + $0xc] sm:$0xf]
        %v2901 = vld [vmem:[%s2897 + $0x10] sm:$0xf]
        %v2902 = vld [vmem:[%s2897 + $0x18] sm:$0xf]
        %v2903 = vld [vmem:[%s2897 + $0x1c] sm:$0xf]
        %v2904 = vld [vmem:[%s2897 + $0x24] sm:$0xf]
        %v2905 = vld [vmem:[%s2897 + $0x28] sm:$0xf]
        %v2906 = vld [vmem:[%s2897 + $0x30] sm:$0xf]
        %v2907 = vld [vmem:[%s2897 + $0x34] sm:$0xf]
        %v2908 = vld [vmem:[%s2897 + $0x3c] sm:$0xf]
        %v2909 = vld [vmem:[%s2897 + $0x40] sm:$0xf]
        %v2910 = vld [vmem:[%s2897 + $0x48] sm:$0xf]
        %v2911 = vld [vmem:[%s2897 + $0x4c] sm:$0xf]
        %v2912 = vld [vmem:[%s2897 + $0x54] sm:$0xf]
        %v2913 = vld [vmem:[%s2897 + $0x58] sm:$0xf]
        %v2914 = vld [vmem:[%s2897 + $0x60] sm:$0xf]
        %v2915 = vld [vmem:[%s2897 + $0x64] sm:$0xf]
        %v2916 = vld [vmem:[%s2897 + $0x6c] sm:$0xf]
        %v2917 = vld [vmem:[%s2897 + $0x70] sm:$0xf]
        %v2918 = vld [vmem:[%s2897 + $0x78] sm:$0xf]
        %v2919 = vld [vmem:[%s2897 + $0x7c] sm:$0xf]
        %v2920 = vld [vmem:[%s2897 + $0x84] sm:$0xf]
        %v2921 = vld [vmem:[%s2897 + $0x88] sm:$0xf]
        %v2922 = vld [vmem:[%s2897 + $0x90] sm:$0xf]
        %v2923 = vld [vmem:[%s2897 + $0x94] sm:$0xf]
        %v2924 = vld [vmem:[%s2897 + $0x9c] sm:$0xf]
        %v2925 = vld [vmem:[%s2897 + $0xa0] sm:$0xf]
        %v2926 = vld [vmem:[%s2897 + $0xa8] sm:$0xf]
        %v2927 = vld [vmem:[%s2897 + $0xac] sm:$0xf]
        %v2928 = vld [vmem:[%s2897 + $0xb4] sm:$0xf]
        %v2929 = vld [vmem:[%s2897 + $0xb8] sm:$0xf]
        %2962 = vrot.lane.b32.xlu0 %v2898, 24
        %v2963 = vpop.permute.xlu0 %2962
        %2964 = vrot.lane.b32.xlu0 %v2899, 24
        %v2965 = vpop.permute.xlu0 %2964
        %2966 = vrot.lane.b32.xlu0 %v2900, 24
        %v2967 = vpop.permute.xlu0 %2966
        %2968 = vrot.lane.b32.xlu0 %v2901, 24
        %v2969 = vpop.permute.xlu0 %2968
        %2970 = vrot.lane.b32.xlu0 %v2902, 24
        %v2971 = vpop.permute.xlu0 %2970
        %2972 = vrot.lane.b32.xlu0 %v2903, 24
        %v2973 = vpop.permute.xlu0 %2972
        %2974 = vrot.lane.b32.xlu0 %v2904, 24
        %v2975 = vpop.permute.xlu0 %2974
        %2976 = vrot.lane.b32.xlu0 %v2905, 24
        %v2977 = vpop.permute.xlu0 %2976
        %2978 = vrot.lane.b32.xlu0 %v2906, 24
        %v2979 = vpop.permute.xlu0 %2978
        %2980 = vrot.lane.b32.xlu0 %v2907, 24
        %v2981 = vpop.permute.xlu0 %2980
        %2982 = vrot.lane.b32.xlu0 %v2908, 24
        %v2983 = vpop.permute.xlu0 %2982
        %2984 = vrot.lane.b32.xlu0 %v2909, 24
        %v2985 = vpop.permute.xlu0 %2984
        %2986 = vrot.lane.b32.xlu0 %v2910, 24
        %v2987 = vpop.permute.xlu0 %2986
        %2988 = vrot.lane.b32.xlu0 %v2911, 24
        %v2989 = vpop.permute.xlu0 %2988
        %2990 = vrot.lane.b32.xlu0 %v2912, 24
        %v2991 = vpop.permute.xlu0 %2990
        %2992 = vrot.lane.b32.xlu0 %v2913, 24
        %v2993 = vpop.permute.xlu0 %2992
        %2994 = vrot.lane.b32.xlu0 %v2914, 24
        %v2995 = vpop.permute.xlu0 %2994
        %2996 = vrot.lane.b32.xlu0 %v2915, 24
        %v2997 = vpop.permute.xlu0 %2996
        %2998 = vrot.lane.b32.xlu0 %v2916, 24
        %v2999 = vpop.permute.xlu0 %2998
        %3000 = vrot.lane.b32.xlu0 %v2917, 24
        %v3001 = vpop.permute.xlu0 %3000
        %3002 = vrot.lane.b32.xlu0 %v2918, 24
        %v3003 = vpop.permute.xlu0 %3002
        %3004 = vrot.lane.b32.xlu0 %v2919, 24
        %v3005 = vpop.permute.xlu0 %3004
        %3006 = vrot.lane.b32.xlu0 %v2920, 24
        %v3007 = vpop.permute.xlu0 %3006
        %3008 = vrot.lane.b32.xlu0 %v2921, 24
        %v3009 = vpop.permute.xlu0 %3008
        %3010 = vrot.lane.b32.xlu0 %v2922, 24
        %v3011 = vpop.permute.xlu0 %3010
        %3012 = vrot.lane.b32.xlu0 %v2923, 24
        %v3013 = vpop.permute.xlu0 %3012
        %3014 = vrot.lane.b32.xlu0 %v2924, 24
        %v3015 = vpop.permute.xlu0 %3014
        %3016 = vrot.lane.b32.xlu0 %v2925, 24
        %v3017 = vpop.permute.xlu0 %3016
        %3018 = vrot.lane.b32.xlu0 %v2926, 24
        %v3019 = vpop.permute.xlu0 %3018
        %3020 = vrot.lane.b32.xlu0 %v2927, 24
        %v3021 = vpop.permute.xlu0 %3020
        %3022 = vrot.lane.b32.xlu0 %v2928, 24
        %v3023 = vpop.permute.xlu0 %3022
        %3024 = vrot.lane.b32.xlu0 %v2929, 24
        %v3025 = vpop.permute.xlu0 %3024
        %vm3058 = vcmask 224448
        %3059 = vst.msk [vmem:[#allocation3] sm:$0xf] %vm3058, %v2963
        %3060 = vst.msk [vmem:[#allocation3 + $0x4] sm:$0xf] %vm3058, %v2965
        %3061 = vst.msk [vmem:[#allocation3 + $0x8] sm:$0xf] %vm3058, %v2967
        %3062 = vst.msk [vmem:[#allocation3 + $0xc] sm:$0xf] %vm3058, %v2969
        %3063 = vst.msk [vmem:[#allocation3 + $0x10] sm:$0xf] %vm3058, %v2971
        %3064 = vst.msk [vmem:[#allocation3 + $0x14] sm:$0xf] %vm3058, %v2973
        %3065 = vst.msk [vmem:[#allocation3 + $0x18] sm:$0xf] %vm3058, %v2975
        %3066 = vst.msk [vmem:[#allocation3 + $0x1c] sm:$0xf] %vm3058, %v2977
        %3067 = vst.msk [vmem:[#allocation3 + $0x20] sm:$0xf] %vm3058, %v2979
        %3068 = vst.msk [vmem:[#allocation3 + $0x24] sm:$0xf] %vm3058, %v2981
        %3069 = vst.msk [vmem:[#allocation3 + $0x28] sm:$0xf] %vm3058, %v2983
        %3070 = vst.msk [vmem:[#allocation3 + $0x2c] sm:$0xf] %vm3058, %v2985
        %3071 = vst.msk [vmem:[#allocation3 + $0x30] sm:$0xf] %vm3058, %v2987
        %3072 = vst.msk [vmem:[#allocation3 + $0x34] sm:$0xf] %vm3058, %v2989
        %3073 = vst.msk [vmem:[#allocation3 + $0x38] sm:$0xf] %vm3058, %v2991
        %3074 = vst.msk [vmem:[#allocation3 + $0x3c] sm:$0xf] %vm3058, %v2993
        %3075 = vst.msk [vmem:[#allocation3 + $0x40] sm:$0xf] %vm3058, %v2995
        %3076 = vst.msk [vmem:[#allocation3 + $0x44] sm:$0xf] %vm3058, %v2997
        %3077 = vst.msk [vmem:[#allocation3 + $0x48] sm:$0xf] %vm3058, %v2999
        %3078 = vst.msk [vmem:[#allocation3 + $0x4c] sm:$0xf] %vm3058, %v3001
        %3079 = vst.msk [vmem:[#allocation3 + $0x50] sm:$0xf] %vm3058, %v3003
        %3080 = vst.msk [vmem:[#allocation3 + $0x54] sm:$0xf] %vm3058, %v3005
        %3081 = vst.msk [vmem:[#allocation3 + $0x58] sm:$0xf] %vm3058, %v3007
        %3082 = vst.msk [vmem:[#allocation3 + $0x5c] sm:$0xf] %vm3058, %v3009
        %3083 = vst.msk [vmem:[#allocation3 + $0x60] sm:$0xf] %vm3058, %v3011
        %3084 = vst.msk [vmem:[#allocation3 + $0x64] sm:$0xf] %vm3058, %v3013
        %3085 = vst.msk [vmem:[#allocation3 + $0x68] sm:$0xf] %vm3058, %v3015
        %3086 = vst.msk [vmem:[#allocation3 + $0x6c] sm:$0xf] %vm3058, %v3017
        %3087 = vst.msk [vmem:[#allocation3 + $0x70] sm:$0xf] %vm3058, %v3019
        %3088 = vst.msk [vmem:[#allocation3 + $0x74] sm:$0xf] %vm3058, %v3021
        %3089 = vst.msk [vmem:[#allocation3 + $0x78] sm:$0xf] %vm3058, %v3023
        %3090 = vst.msk [vmem:[#allocation3 + $0x7c] sm:$0xf] %vm3058, %v3025
        %v3091 = vld [vmem:[%s2897] sm:$0xf]
        %v3092 = vld [vmem:[%s2897 + $0x4] sm:$0xf]
        %v3093 = vld [vmem:[%s2897 + $0x8] sm:$0x1]
        %v3094 = vld [vmem:[%s2897 + $0xc] sm:$0xf]
        %v3095 = vld [vmem:[%s2897 + $0x10] sm:$0xf]
        %v3096 = vld [vmem:[%s2897 + $0x14] sm:$0x1]
        %v3097 = vld [vmem:[%s2897 + $0x18] sm:$0xf]
        %v3098 = vld [vmem:[%s2897 + $0x1c] sm:$0xf]
        %v3099 = vld [vmem:[%s2897 + $0x20] sm:$0x1]
        %v3100 = vld [vmem:[%s2897 + $0x24] sm:$0xf]
        %v3101 = vld [vmem:[%s2897 + $0x28] sm:$0xf]
        %v3102 = vld [vmem:[%s2897 + $0x2c] sm:$0x1]
        %v3103 = vld [vmem:[%s2897 + $0x30] sm:$0xf]
        %v3104 = vld [vmem:[%s2897 + $0x34] sm:$0xf]
        %v3105 = vld [vmem:[%s2897 + $0x38] sm:$0x1]
        %v3106 = vld [vmem:[%s2897 + $0x3c] sm:$0xf]
        %v3107 = vld [vmem:[%s2897 + $0x40] sm:$0xf]
        %v3108 = vld [vmem:[%s2897 + $0x44] sm:$0x1]
        %v3109 = vld [vmem:[%s2897 + $0x48] sm:$0xf]
        %v3110 = vld [vmem:[%s2897 + $0x4c] sm:$0xf]
        %v3111 = vld [vmem:[%s2897 + $0x50] sm:$0x1]
        %v3112 = vld [vmem:[%s2897 + $0x54] sm:$0xf]
        %v3113 = vld [vmem:[%s2897 + $0x58] sm:$0xf]
        %v3114 = vld [vmem:[%s2897 + $0x5c] sm:$0x1]
        %v3115 = vld [vmem:[%s2897 + $0x60] sm:$0xf]
        %v3116 = vld [vmem:[%s2897 + $0x64] sm:$0xf]
        %v3117 = vld [vmem:[%s2897 + $0x68] sm:$0x1]
        %v3118 = vld [vmem:[%s2897 + $0x6c] sm:$0xf]
        %v3119 = vld [vmem:[%s2897 + $0x70] sm:$0xf]
        %v3120 = vld [vmem:[%s2897 + $0x74] sm:$0x1]
        %v3121 = vld [vmem:[%s2897 + $0x78] sm:$0xf]
        %v3122 = vld [vmem:[%s2897 + $0x7c] sm:$0xf]
        %v3123 = vld [vmem:[%s2897 + $0x80] sm:$0x1]
        %v3124 = vld [vmem:[%s2897 + $0x84] sm:$0xf]
        %v3125 = vld [vmem:[%s2897 + $0x88] sm:$0xf]
        %v3126 = vld [vmem:[%s2897 + $0x8c] sm:$0x1]
        %v3127 = vld [vmem:[%s2897 + $0x90] sm:$0xf]
        %v3128 = vld [vmem:[%s2897 + $0x94] sm:$0xf]
        %v3129 = vld [vmem:[%s2897 + $0x98] sm:$0x1]
        %v3130 = vld [vmem:[%s2897 + $0x9c] sm:$0xf]
        %v3131 = vld [vmem:[%s2897 + $0xa0] sm:$0xf]
        %v3132 = vld [vmem:[%s2897 + $0xa4] sm:$0x1]
        %v3133 = vld [vmem:[%s2897 + $0xa8] sm:$0xf]
        %v3134 = vld [vmem:[%s2897 + $0xac] sm:$0xf]
        %v3135 = vld [vmem:[%s2897 + $0xb0] sm:$0x1]
        %v3136 = vld [vmem:[%s2897 + $0xb4] sm:$0xf]
        %v3137 = vld [vmem:[%s2897 + $0xb8] sm:$0xf]
        %v3138 = vld [vmem:[%s2897 + $0xbc] sm:$0x1]
        %v3140 = vshrl.u32 %v3091, 16
        %v3142 = vrot.slane %v3140, 4
        %v3143 = vshll.u32 %v3091, 16
        %v3145 = vrot.slane %v3143, 5
        %v3146 = vor.u32 %v3142, %v3145
        %v3147 = vrot.slane %v3146, 4
        %v3149 = vshll.u32 %v3092, 16
        %v3151 = vrot.slane %v3149, 5
        %v3152 = vsel %vm952, %v3147, %v3151
        %v3153 = vshrl.u32 %v3092, 16
        %v3155 = vrot.slane %v3153, 4
        %v3156 = vor.u32 %v3155, %v3151
        %v3157 = vrot.slane %v3156, 4
        %v3159 = vshll.u32 %v3093, 16
        %v3161 = vrot.slane %v3159, 5
        %v3162 = vsel %vm952, %v3157, %v3161
        %v3164 = vshrl.u32 %v3094, 16
        %v3166 = vrot.slane %v3164, 4
        %v3167 = vshll.u32 %v3094, 16
        %v3169 = vrot.slane %v3167, 5
        %v3170 = vor.u32 %v3166, %v3169
        %v3171 = vrot.slane %v3170, 4
        %v3173 = vshll.u32 %v3095, 16
        %v3175 = vrot.slane %v3173, 5
        %v3176 = vsel %vm952, %v3171, %v3175
        %v3177 = vshrl.u32 %v3095, 16
        %v3179 = vrot.slane %v3177, 4
        %v3180 = vor.u32 %v3179, %v3175
        %v3181 = vrot.slane %v3180, 4
        %v3183 = vshll.u32 %v3096, 16
        %v3185 = vrot.slane %v3183, 5
        %v3186 = vsel %vm952, %v3181, %v3185
        %v3188 = vshrl.u32 %v3097, 16
        %v3190 = vrot.slane %v3188, 4
        %v3191 = vshll.u32 %v3097, 16
        %v3193 = vrot.slane %v3191, 5
        %v3194 = vor.u32 %v3190, %v3193
        %v3195 = vrot.slane %v3194, 4
        %v3197 = vshll.u32 %v3098, 16
        %v3199 = vrot.slane %v3197, 5
        %v3200 = vsel %vm952, %v3195, %v3199
        %v3201 = vshrl.u32 %v3098, 16
        %v3203 = vrot.slane %v3201, 4
        %v3204 = vor.u32 %v3203, %v3199
        %v3205 = vrot.slane %v3204, 4
        %v3207 = vshll.u32 %v3099, 16
        %v3209 = vrot.slane %v3207, 5
        %v3210 = vsel %vm952, %v3205, %v3209
        %v3212 = vshrl.u32 %v3100, 16
        %v3214 = vrot.slane %v3212, 4
        %v3215 = vshll.u32 %v3100, 16
        %v3217 = vrot.slane %v3215, 5
        %v3218 = vor.u32 %v3214, %v3217
        %v3219 = vrot.slane %v3218, 4
        %v3221 = vshll.u32 %v3101, 16
        %v3223 = vrot.slane %v3221, 5
        %v3224 = vsel %vm952, %v3219, %v3223
        %v3225 = vshrl.u32 %v3101, 16
        %v3227 = vrot.slane %v3225, 4
        %v3228 = vor.u32 %v3227, %v3223
        %v3229 = vrot.slane %v3228, 4
        %v3231 = vshll.u32 %v3102, 16
        %v3233 = vrot.slane %v3231, 5
        %v3234 = vsel %vm952, %v3229, %v3233
        %v3236 = vshrl.u32 %v3103, 16
        %v3238 = vrot.slane %v3236, 4
        %v3239 = vshll.u32 %v3103, 16
        %v3241 = vrot.slane %v3239, 5
        %v3242 = vor.u32 %v3238, %v3241
        %v3243 = vrot.slane %v3242, 4
        %v3245 = vshll.u32 %v3104, 16
        %v3247 = vrot.slane %v3245, 5
        %v3248 = vsel %vm952, %v3243, %v3247
        %v3249 = vshrl.u32 %v3104, 16
        %v3251 = vrot.slane %v3249, 4
        %v3252 = vor.u32 %v3251, %v3247
        %v3253 = vrot.slane %v3252, 4
        %v3255 = vshll.u32 %v3105, 16
        %v3257 = vrot.slane %v3255, 5
        %v3258 = vsel %vm952, %v3253, %v3257
        %v3260 = vshrl.u32 %v3106, 16
        %v3262 = vrot.slane %v3260, 4
        %v3263 = vshll.u32 %v3106, 16
        %v3265 = vrot.slane %v3263, 5
        %v3266 = vor.u32 %v3262, %v3265
        %v3267 = vrot.slane %v3266, 4
        %v3269 = vshll.u32 %v3107, 16
        %v3271 = vrot.slane %v3269, 5
        %v3272 = vsel %vm952, %v3267, %v3271
        %v3273 = vshrl.u32 %v3107, 16
        %v3275 = vrot.slane %v3273, 4
        %v3276 = vor.u32 %v3275, %v3271
        %v3277 = vrot.slane %v3276, 4
        %v3279 = vshll.u32 %v3108, 16
        %v3281 = vrot.slane %v3279, 5
        %v3282 = vsel %vm952, %v3277, %v3281
        %v3284 = vshrl.u32 %v3109, 16
        %v3286 = vrot.slane %v3284, 4
        %v3287 = vshll.u32 %v3109, 16
        %v3289 = vrot.slane %v3287, 5
        %v3290 = vor.u32 %v3286, %v3289
        %v3291 = vrot.slane %v3290, 4
        %v3293 = vshll.u32 %v3110, 16
        %v3295 = vrot.slane %v3293, 5
        %v3296 = vsel %vm952, %v3291, %v3295
        %v3297 = vshrl.u32 %v3110, 16
        %v3299 = vrot.slane %v3297, 4
        %v3300 = vor.u32 %v3299, %v3295
        %v3301 = vrot.slane %v3300, 4
        %v3303 = vshll.u32 %v3111, 16
        %v3305 = vrot.slane %v3303, 5
        %v3306 = vsel %vm952, %v3301, %v3305
        %v3308 = vshrl.u32 %v3112, 16
        %v3310 = vrot.slane %v3308, 4
        %v3311 = vshll.u32 %v3112, 16
        %v3313 = vrot.slane %v3311, 5
        %v3314 = vor.u32 %v3310, %v3313
        %v3315 = vrot.slane %v3314, 4
        %v3317 = vshll.u32 %v3113, 16
        %v3319 = vrot.slane %v3317, 5
        %v3320 = vsel %vm952, %v3315, %v3319
        %v3321 = vshrl.u32 %v3113, 16
        %v3323 = vrot.slane %v3321, 4
        %v3324 = vor.u32 %v3323, %v3319
        %v3325 = vrot.slane %v3324, 4
        %v3327 = vshll.u32 %v3114, 16
        %v3329 = vrot.slane %v3327, 5
        %v3330 = vsel %vm952, %v3325, %v3329
        %v3332 = vshrl.u32 %v3115, 16
        %v3334 = vrot.slane %v3332, 4
        %v3335 = vshll.u32 %v3115, 16
        %v3337 = vrot.slane %v3335, 5
        %v3338 = vor.u32 %v3334, %v3337
        %v3339 = vrot.slane %v3338, 4
        %v3341 = vshll.u32 %v3116, 16
        %v3343 = vrot.slane %v3341, 5
        %v3344 = vsel %vm952, %v3339, %v3343
        %v3345 = vshrl.u32 %v3116, 16
        %v3347 = vrot.slane %v3345, 4
        %v3348 = vor.u32 %v3347, %v3343
        %v3349 = vrot.slane %v3348, 4
        %v3351 = vshll.u32 %v3117, 16
        %v3353 = vrot.slane %v3351, 5
        %v3354 = vsel %vm952, %v3349, %v3353
        %v3356 = vshrl.u32 %v3118, 16
        %v3358 = vrot.slane %v3356, 4
        %v3359 = vshll.u32 %v3118, 16
        %v3361 = vrot.slane %v3359, 5
        %v3362 = vor.u32 %v3358, %v3361
        %v3363 = vrot.slane %v3362, 4
        %v3365 = vshll.u32 %v3119, 16
        %v3367 = vrot.slane %v3365, 5
        %v3368 = vsel %vm952, %v3363, %v3367
        %v3369 = vshrl.u32 %v3119, 16
        %v3371 = vrot.slane %v3369, 4
        %v3372 = vor.u32 %v3371, %v3367
        %v3373 = vrot.slane %v3372, 4
        %v3375 = vshll.u32 %v3120, 16
        %v3377 = vrot.slane %v3375, 5
        %v3378 = vsel %vm952, %v3373, %v3377
        %v3380 = vshrl.u32 %v3121, 16
        %v3382 = vrot.slane %v3380, 4
        %v3383 = vshll.u32 %v3121, 16
        %v3385 = vrot.slane %v3383, 5
        %v3386 = vor.u32 %v3382, %v3385
        %v3387 = vrot.slane %v3386, 4
        %v3389 = vshll.u32 %v3122, 16
        %v3391 = vrot.slane %v3389, 5
        %v3392 = vsel %vm952, %v3387, %v3391
        %v3393 = vshrl.u32 %v3122, 16
        %v3395 = vrot.slane %v3393, 4
        %v3396 = vor.u32 %v3395, %v3391
        %v3397 = vrot.slane %v3396, 4
        %v3399 = vshll.u32 %v3123, 16
        %v3401 = vrot.slane %v3399, 5
        %v3402 = vsel %vm952, %v3397, %v3401
        %v3404 = vshrl.u32 %v3124, 16
        %v3406 = vrot.slane %v3404, 4
        %v3407 = vshll.u32 %v3124, 16
        %v3409 = vrot.slane %v3407, 5
        %v3410 = vor.u32 %v3406, %v3409
        %v3411 = vrot.slane %v3410, 4
        %v3413 = vshll.u32 %v3125, 16
        %v3415 = vrot.slane %v3413, 5
        %v3416 = vsel %vm952, %v3411, %v3415
        %v3417 = vshrl.u32 %v3125, 16
        %v3419 = vrot.slane %v3417, 4
        %v3420 = vor.u32 %v3419, %v3415
        %v3421 = vrot.slane %v3420, 4
        %v3423 = vshll.u32 %v3126, 16
        %v3425 = vrot.slane %v3423, 5
        %v3426 = vsel %vm952, %v3421, %v3425
        %v3428 = vshrl.u32 %v3127, 16
        %v3430 = vrot.slane %v3428, 4
        %v3431 = vshll.u32 %v3127, 16
        %v3433 = vrot.slane %v3431, 5
        %v3434 = vor.u32 %v3430, %v3433
        %v3435 = vrot.slane %v3434, 4
        %v3437 = vshll.u32 %v3128, 16
        %v3439 = vrot.slane %v3437, 5
        %v3440 = vsel %vm952, %v3435, %v3439
        %v3441 = vshrl.u32 %v3128, 16
        %v3443 = vrot.slane %v3441, 4
        %v3444 = vor.u32 %v3443, %v3439
        %v3445 = vrot.slane %v3444, 4
        %v3447 = vshll.u32 %v3129, 16
        %v3449 = vrot.slane %v3447, 5
        %v3450 = vsel %vm952, %v3445, %v3449
        %v3452 = vshrl.u32 %v3130, 16
        %v3454 = vrot.slane %v3452, 4
        %v3455 = vshll.u32 %v3130, 16
        %v3457 = vrot.slane %v3455, 5
        %v3458 = vor.u32 %v3454, %v3457
        %v3459 = vrot.slane %v3458, 4
        %v3461 = vshll.u32 %v3131, 16
        %v3463 = vrot.slane %v3461, 5
        %v3464 = vsel %vm952, %v3459, %v3463
        %v3465 = vshrl.u32 %v3131, 16
        %v3467 = vrot.slane %v3465, 4
        %v3468 = vor.u32 %v3467, %v3463
        %v3469 = vrot.slane %v3468, 4
        %v3471 = vshll.u32 %v3132, 16
        %v3473 = vrot.slane %v3471, 5
        %v3474 = vsel %vm952, %v3469, %v3473
        %v3476 = vshrl.u32 %v3133, 16
        %v3478 = vrot.slane %v3476, 4
        %v3479 = vshll.u32 %v3133, 16
        %v3481 = vrot.slane %v3479, 5
        %v3482 = vor.u32 %v3478, %v3481
        %v3483 = vrot.slane %v3482, 4
        %v3485 = vshll.u32 %v3134, 16
        %v3487 = vrot.slane %v3485, 5
        %v3488 = vsel %vm952, %v3483, %v3487
        %v3489 = vshrl.u32 %v3134, 16
        %v3491 = vrot.slane %v3489, 4
        %v3492 = vor.u32 %v3491, %v3487
        %v3493 = vrot.slane %v3492, 4
        %v3495 = vshll.u32 %v3135, 16
        %v3497 = vrot.slane %v3495, 5
        %v3498 = vsel %vm952, %v3493, %v3497
        %v3500 = vshrl.u32 %v3136, 16
        %v3502 = vrot.slane %v3500, 4
        %v3503 = vshll.u32 %v3136, 16
        %v3505 = vrot.slane %v3503, 5
        %v3506 = vor.u32 %v3502, %v3505
        %v3507 = vrot.slane %v3506, 4
        %v3509 = vshll.u32 %v3137, 16
        %v3511 = vrot.slane %v3509, 5
        %v3512 = vsel %vm952, %v3507, %v3511
        %v3513 = vshrl.u32 %v3137, 16
        %v3515 = vrot.slane %v3513, 4
        %v3516 = vor.u32 %v3515, %v3511
        %v3517 = vrot.slane %v3516, 4
        %v3519 = vshll.u32 %v3138, 16
        %v3521 = vrot.slane %v3519, 5
        %v3522 = vsel %vm952, %v3517, %v3521
        %3523 = vrot.lane.b32.xlu0 %v3152, 28
        %v3524 = vpop.permute.xlu0 %3523
        %3525 = vrot.lane.b32.xlu0 %v3162, 28
        %v3526 = vpop.permute.xlu0 %3525
        %3527 = vrot.lane.b32.xlu0 %v3176, 28
        %v3528 = vpop.permute.xlu0 %3527
        %3529 = vrot.lane.b32.xlu0 %v3186, 28
        %v3530 = vpop.permute.xlu0 %3529
        %3531 = vrot.lane.b32.xlu0 %v3200, 28
        %v3532 = vpop.permute.xlu0 %3531
        %3533 = vrot.lane.b32.xlu0 %v3210, 28
        %v3534 = vpop.permute.xlu0 %3533
        %3535 = vrot.lane.b32.xlu0 %v3224, 28
        %v3536 = vpop.permute.xlu0 %3535
        %3537 = vrot.lane.b32.xlu0 %v3234, 28
        %v3538 = vpop.permute.xlu0 %3537
        %3539 = vrot.lane.b32.xlu0 %v3248, 28
        %v3540 = vpop.permute.xlu0 %3539
        %3541 = vrot.lane.b32.xlu0 %v3258, 28
        %v3542 = vpop.permute.xlu0 %3541
        %3543 = vrot.lane.b32.xlu0 %v3272, 28
        %v3544 = vpop.permute.xlu0 %3543
        %3545 = vrot.lane.b32.xlu0 %v3282, 28
        %v3546 = vpop.permute.xlu0 %3545
        %3547 = vrot.lane.b32.xlu0 %v3296, 28
        %v3548 = vpop.permute.xlu0 %3547
        %3549 = vrot.lane.b32.xlu0 %v3306, 28
        %v3550 = vpop.permute.xlu0 %3549
        %3551 = vrot.lane.b32.xlu0 %v3320, 28
        %v3552 = vpop.permute.xlu0 %3551
        %3553 = vrot.lane.b32.xlu0 %v3330, 28
        %v3554 = vpop.permute.xlu0 %3553
        %3555 = vrot.lane.b32.xlu0 %v3344, 28
        %v3556 = vpop.permute.xlu0 %3555
        %3557 = vrot.lane.b32.xlu0 %v3354, 28
        %v3558 = vpop.permute.xlu0 %3557
        %3559 = vrot.lane.b32.xlu0 %v3368, 28
        %v3560 = vpop.permute.xlu0 %3559
        %3561 = vrot.lane.b32.xlu0 %v3378, 28
        %v3562 = vpop.permute.xlu0 %3561
        %3563 = vrot.lane.b32.xlu0 %v3392, 28
        %v3564 = vpop.permute.xlu0 %3563
        %3565 = vrot.lane.b32.xlu0 %v3402, 28
        %v3566 = vpop.permute.xlu0 %3565
        %3567 = vrot.lane.b32.xlu0 %v3416, 28
        %v3568 = vpop.permute.xlu0 %3567
        %3569 = vrot.lane.b32.xlu0 %v3426, 28
        %v3570 = vpop.permute.xlu0 %3569
        %3571 = vrot.lane.b32.xlu0 %v3440, 28
        %v3572 = vpop.permute.xlu0 %3571
        %3573 = vrot.lane.b32.xlu0 %v3450, 28
        %v3574 = vpop.permute.xlu0 %3573
        %3575 = vrot.lane.b32.xlu0 %v3464, 28
        %v3576 = vpop.permute.xlu0 %3575
        %3577 = vrot.lane.b32.xlu0 %v3474, 28
        %v3578 = vpop.permute.xlu0 %3577
        %3579 = vrot.lane.b32.xlu0 %v3488, 28
        %v3580 = vpop.permute.xlu0 %3579
        %3581 = vrot.lane.b32.xlu0 %v3498, 28
        %v3582 = vpop.permute.xlu0 %3581
        %3583 = vrot.lane.b32.xlu0 %v3512, 28
        %v3584 = vpop.permute.xlu0 %3583
        %3585 = vrot.lane.b32.xlu0 %v3522, 28
        %v3586 = vpop.permute.xlu0 %3585
        %vm3619 = vcmask 257248
        %3620 = vst.msk [vmem:[#allocation3] sm:$0xf] %vm3619, %v3524
        %3621 = vst.msk [vmem:[#allocation3 + $0x4] sm:$0xf] %vm3619, %v3526
        %3622 = vst.msk [vmem:[#allocation3 + $0x8] sm:$0xf] %vm3619, %v3528
        %3623 = vst.msk [vmem:[#allocation3 + $0xc] sm:$0xf] %vm3619, %v3530
        %3624 = vst.msk [vmem:[#allocation3 + $0x10] sm:$0xf] %vm3619, %v3532
        %3625 = vst.msk [vmem:[#allocation3 + $0x14] sm:$0xf] %vm3619, %v3534
        %3626 = vst.msk [vmem:[#allocation3 + $0x18] sm:$0xf] %vm3619, %v3536
        %3627 = vst.msk [vmem:[#allocation3 + $0x1c] sm:$0xf] %vm3619, %v3538
        %3628 = vst.msk [vmem:[#allocation3 + $0x20] sm:$0xf] %vm3619, %v3540
        %3629 = vst.msk [vmem:[#allocation3 + $0x24] sm:$0xf] %vm3619, %v3542
        %3630 = vst.msk [vmem:[#allocation3 + $0x28] sm:$0xf] %vm3619, %v3544
        %3631 = vst.msk [vmem:[#allocation3 + $0x2c] sm:$0xf] %vm3619, %v3546
        %3632 = vst.msk [vmem:[#allocation3 + $0x30] sm:$0xf] %vm3619, %v3548
        %3633 = vst.msk [vmem:[#allocation3 + $0x34] sm:$0xf] %vm3619, %v3550
        %3634 = vst.msk [vmem:[#allocation3 + $0x38] sm:$0xf] %vm3619, %v3552
        %3635 = vst.msk [vmem:[#allocation3 + $0x3c] sm:$0xf] %vm3619, %v3554
        %3636 = vst.msk [vmem:[#allocation3 + $0x40] sm:$0xf] %vm3619, %v3556
        %3637 = vst.msk [vmem:[#allocation3 + $0x44] sm:$0xf] %vm3619, %v3558
        %3638 = vst.msk [vmem:[#allocation3 + $0x48] sm:$0xf] %vm3619, %v3560
        %3639 = vst.msk [vmem:[#allocation3 + $0x4c] sm:$0xf] %vm3619, %v3562
        %3640 = vst.msk [vmem:[#allocation3 + $0x50] sm:$0xf] %vm3619, %v3564
        %3641 = vst.msk [vmem:[#allocation3 + $0x54] sm:$0xf] %vm3619, %v3566
        %3642 = vst.msk [vmem:[#allocation3 + $0x58] sm:$0xf] %vm3619, %v3568
        %3643 = vst.msk [vmem:[#allocation3 + $0x5c] sm:$0xf] %vm3619, %v3570
        %3644 = vst.msk [vmem:[#allocation3 + $0x60] sm:$0xf] %vm3619, %v3572
        %3645 = vst.msk [vmem:[#allocation3 + $0x64] sm:$0xf] %vm3619, %v3574
        %3646 = vst.msk [vmem:[#allocation3 + $0x68] sm:$0xf] %vm3619, %v3576
        %3647 = vst.msk [vmem:[#allocation3 + $0x6c] sm:$0xf] %vm3619, %v3578
        %3648 = vst.msk [vmem:[#allocation3 + $0x70] sm:$0xf] %vm3619, %v3580
        %3649 = vst.msk [vmem:[#allocation3 + $0x74] sm:$0xf] %vm3619, %v3582
        %3650 = vst.msk [vmem:[#allocation3 + $0x78] sm:$0xf] %vm3619, %v3584
        %3651 = vst.msk [vmem:[#allocation3 + $0x7c] sm:$0xf] %vm3619, %v3586
        %v3652 = vld [vmem:[%s2897] sm:$0xe]
        %v3653 = vld [vmem:[%s2897 + $0x4] sm:$0xf]
        %v3654 = vld [vmem:[%s2897 + $0x8] sm:$0x1]
        %v3655 = vld [vmem:[%s2897 + $0xc] sm:$0xe]
        %v3656 = vld [vmem:[%s2897 + $0x10] sm:$0xf]
        %v3657 = vld [vmem:[%s2897 + $0x14] sm:$0x1]
        %v3658 = vld [vmem:[%s2897 + $0x18] sm:$0xe]
        %v3659 = vld [vmem:[%s2897 + $0x1c] sm:$0xf]
        %v3660 = vld [vmem:[%s2897 + $0x20] sm:$0x1]
        %v3661 = vld [vmem:[%s2897 + $0x24] sm:$0xe]
        %v3662 = vld [vmem:[%s2897 + $0x28] sm:$0xf]
        %v3663 = vld [vmem:[%s2897 + $0x2c] sm:$0x1]
        %v3664 = vld [vmem:[%s2897 + $0x30] sm:$0xe]
        %v3665 = vld [vmem:[%s2897 + $0x34] sm:$0xf]
        %v3666 = vld [vmem:[%s2897 + $0x38] sm:$0x1]
        %v3667 = vld [vmem:[%s2897 + $0x3c] sm:$0xe]
        %v3668 = vld [vmem:[%s2897 + $0x40] sm:$0xf]
        %v3669 = vld [vmem:[%s2897 + $0x44] sm:$0x1]
        %v3670 = vld [vmem:[%s2897 + $0x48] sm:$0xe]
        %v3671 = vld [vmem:[%s2897 + $0x4c] sm:$0xf]
        %v3672 = vld [vmem:[%s2897 + $0x50] sm:$0x1]
        %v3673 = vld [vmem:[%s2897 + $0x54] sm:$0xe]
        %v3674 = vld [vmem:[%s2897 + $0x58] sm:$0xf]
        %v3675 = vld [vmem:[%s2897 + $0x5c] sm:$0x1]
        %v3676 = vld [vmem:[%s2897 + $0x60] sm:$0xe]
        %v3677 = vld [vmem:[%s2897 + $0x64] sm:$0xf]
        %v3678 = vld [vmem:[%s2897 + $0x68] sm:$0x1]
        %v3679 = vld [vmem:[%s2897 + $0x6c] sm:$0xe]
        %v3680 = vld [vmem:[%s2897 + $0x70] sm:$0xf]
        %v3681 = vld [vmem:[%s2897 + $0x74] sm:$0x1]
        %v3682 = vld [vmem:[%s2897 + $0x78] sm:$0xe]
        %v3683 = vld [vmem:[%s2897 + $0x7c] sm:$0xf]
        %v3684 = vld [vmem:[%s2897 + $0x80] sm:$0x1]
        %v3685 = vld [vmem:[%s2897 + $0x84] sm:$0xe]
        %v3686 = vld [vmem:[%s2897 + $0x88] sm:$0xf]
        %v3687 = vld [vmem:[%s2897 + $0x8c] sm:$0x1]
        %v3688 = vld [vmem:[%s2897 + $0x90] sm:$0xe]
        %v3689 = vld [vmem:[%s2897 + $0x94] sm:$0xf]
        %v3690 = vld [vmem:[%s2897 + $0x98] sm:$0x1]
        %v3691 = vld [vmem:[%s2897 + $0x9c] sm:$0xe]
        %v3692 = vld [vmem:[%s2897 + $0xa0] sm:$0xf]
        %v3693 = vld [vmem:[%s2897 + $0xa4] sm:$0x1]
        %v3694 = vld [vmem:[%s2897 + $0xa8] sm:$0xe]
        %v3695 = vld [vmem:[%s2897 + $0xac] sm:$0xf]
        %v3696 = vld [vmem:[%s2897 + $0xb0] sm:$0x1]
        %v3697 = vld [vmem:[%s2897 + $0xb4] sm:$0xe]
        %v3698 = vld [vmem:[%s2897 + $0xb8] sm:$0xf]
        %v3699 = vld [vmem:[%s2897 + $0xbc] sm:$0x1]
        %v3748 = vrot.slane %v3652, 5
        %v3749 = vrot.slane %v3748, 4
        %v3750 = vrot.slane %v3653, 5
        %v3751 = vsel %vm1564, %v3749, %v3750
        %v3752 = vrot.slane %v3750, 4
        %v3753 = vrot.slane %v3654, 5
        %v3754 = vsel %vm1564, %v3752, %v3753
        %v3755 = vrot.slane %v3655, 5
        %v3756 = vrot.slane %v3755, 4
        %v3757 = vrot.slane %v3656, 5
        %v3758 = vsel %vm1564, %v3756, %v3757
        %v3759 = vrot.slane %v3757, 4
        %v3760 = vrot.slane %v3657, 5
        %v3761 = vsel %vm1564, %v3759, %v3760
        %v3762 = vrot.slane %v3658, 5
        %v3763 = vrot.slane %v3762, 4
        %v3764 = vrot.slane %v3659, 5
        %v3765 = vsel %vm1564, %v3763, %v3764
        %v3766 = vrot.slane %v3764, 4
        %v3767 = vrot.slane %v3660, 5
        %v3768 = vsel %vm1564, %v3766, %v3767
        %v3769 = vrot.slane %v3661, 5
        %v3770 = vrot.slane %v3769, 4
        %v3771 = vrot.slane %v3662, 5
        %v3772 = vsel %vm1564, %v3770, %v3771
        %v3773 = vrot.slane %v3771, 4
        %v3774 = vrot.slane %v3663, 5
        %v3775 = vsel %vm1564, %v3773, %v3774
        %v3776 = vrot.slane %v3664, 5
        %v3777 = vrot.slane %v3776, 4
        %v3778 = vrot.slane %v3665, 5
        %v3779 = vsel %vm1564, %v3777, %v3778
        %v3780 = vrot.slane %v3778, 4
        %v3781 = vrot.slane %v3666, 5
        %v3782 = vsel %vm1564, %v3780, %v3781
        %v3783 = vrot.slane %v3667, 5
        %v3784 = vrot.slane %v3783, 4
        %v3785 = vrot.slane %v3668, 5
        %v3786 = vsel %vm1564, %v3784, %v3785
        %v3787 = vrot.slane %v3785, 4
        %v3788 = vrot.slane %v3669, 5
        %v3789 = vsel %vm1564, %v3787, %v3788
        %v3790 = vrot.slane %v3670, 5
        %v3791 = vrot.slane %v3790, 4
        %v3792 = vrot.slane %v3671, 5
        %v3793 = vsel %vm1564, %v3791, %v3792
        %v3794 = vrot.slane %v3792, 4
        %v3795 = vrot.slane %v3672, 5
        %v3796 = vsel %vm1564, %v3794, %v3795
        %v3797 = vrot.slane %v3673, 5
        %v3798 = vrot.slane %v3797, 4
        %v3799 = vrot.slane %v3674, 5
        %v3800 = vsel %vm1564, %v3798, %v3799
        %v3801 = vrot.slane %v3799, 4
        %v3802 = vrot.slane %v3675, 5
        %v3803 = vsel %vm1564, %v3801, %v3802
        %v3804 = vrot.slane %v3676, 5
        %v3805 = vrot.slane %v3804, 4
        %v3806 = vrot.slane %v3677, 5
        %v3807 = vsel %vm1564, %v3805, %v3806
        %v3808 = vrot.slane %v3806, 4
        %v3809 = vrot.slane %v3678, 5
        %v3810 = vsel %vm1564, %v3808, %v3809
        %v3811 = vrot.slane %v3679, 5
        %v3812 = vrot.slane %v3811, 4
        %v3813 = vrot.slane %v3680, 5
        %v3814 = vsel %vm1564, %v3812, %v3813
        %v3815 = vrot.slane %v3813, 4
        %v3816 = vrot.slane %v3681, 5
        %v3817 = vsel %vm1564, %v3815, %v3816
        %v3818 = vrot.slane %v3682, 5
        %v3819 = vrot.slane %v3818, 4
        %v3820 = vrot.slane %v3683, 5
        %v3821 = vsel %vm1564, %v3819, %v3820
        %v3822 = vrot.slane %v3820, 4
        %v3823 = vrot.slane %v3684, 5
        %v3824 = vsel %vm1564, %v3822, %v3823
        %v3825 = vrot.slane %v3685, 5
        %v3826 = vrot.slane %v3825, 4
        %v3827 = vrot.slane %v3686, 5
        %v3828 = vsel %vm1564, %v3826, %v3827
        %v3829 = vrot.slane %v3827, 4
        %v3830 = vrot.slane %v3687, 5
        %v3831 = vsel %vm1564, %v3829, %v3830
        %v3832 = vrot.slane %v3688, 5
        %v3833 = vrot.slane %v3832, 4
        %v3834 = vrot.slane %v3689, 5
        %v3835 = vsel %vm1564, %v3833, %v3834
        %v3836 = vrot.slane %v3834, 4
        %v3837 = vrot.slane %v3690, 5
        %v3838 = vsel %vm1564, %v3836, %v3837
        %v3839 = vrot.slane %v3691, 5
        %v3840 = vrot.slane %v3839, 4
        %v3841 = vrot.slane %v3692, 5
        %v3842 = vsel %vm1564, %v3840, %v3841
        %v3843 = vrot.slane %v3841, 4
        %v3844 = vrot.slane %v3693, 5
        %v3845 = vsel %vm1564, %v3843, %v3844
        %v3846 = vrot.slane %v3694, 5
        %v3847 = vrot.slane %v3846, 4
        %v3848 = vrot.slane %v3695, 5
        %v3849 = vsel %vm1564, %v3847, %v3848
        %v3850 = vrot.slane %v3848, 4
        %v3851 = vrot.slane %v3696, 5
        %v3852 = vsel %vm1564, %v3850, %v3851
        %v3853 = vrot.slane %v3697, 5
        %v3854 = vrot.slane %v3853, 4
        %v3855 = vrot.slane %v3698, 5
        %v3856 = vsel %vm1564, %v3854, %v3855
        %v3857 = vrot.slane %v3855, 4
        %v3858 = vrot.slane %v3699, 5
        %v3859 = vsel %vm1564, %v3857, %v3858
        %3860 = vrot.lane.b32.xlu0 %v3751, 32
        %v3861 = vpop.permute.xlu0 %3860
        %3862 = vrot.lane.b32.xlu0 %v3754, 32
        %v3863 = vpop.permute.xlu0 %3862
        %3864 = vrot.lane.b32.xlu0 %v3758, 32
        %v3865 = vpop.permute.xlu0 %3864
        %3866 = vrot.lane.b32.xlu0 %v3761, 32
        %v3867 = vpop.permute.xlu0 %3866
        %3868 = vrot.lane.b32.xlu0 %v3765, 32
        %v3869 = vpop.permute.xlu0 %3868
        %3870 = vrot.lane.b32.xlu0 %v3768, 32
        %v3871 = vpop.permute.xlu0 %3870
        %3872 = vrot.lane.b32.xlu0 %v3772, 32
        %v3873 = vpop.permute.xlu0 %3872
        %3874 = vrot.lane.b32.xlu0 %v3775, 32
        %v3875 = vpop.permute.xlu0 %3874
        %3876 = vrot.lane.b32.xlu0 %v3779, 32
        %v3877 = vpop.permute.xlu0 %3876
        %3878 = vrot.lane.b32.xlu0 %v3782, 32
        %v3879 = vpop.permute.xlu0 %3878
        %3880 = vrot.lane.b32.xlu0 %v3786, 32
        %v3881 = vpop.permute.xlu0 %3880
        %3882 = vrot.lane.b32.xlu0 %v3789, 32
        %v3883 = vpop.permute.xlu0 %3882
        %3884 = vrot.lane.b32.xlu0 %v3793, 32
        %v3885 = vpop.permute.xlu0 %3884
        %3886 = vrot.lane.b32.xlu0 %v3796, 32
        %v3887 = vpop.permute.xlu0 %3886
        %3888 = vrot.lane.b32.xlu0 %v3800, 32
        %v3889 = vpop.permute.xlu0 %3888
        %3890 = vrot.lane.b32.xlu0 %v3803, 32
        %v3891 = vpop.permute.xlu0 %3890
        %3892 = vrot.lane.b32.xlu0 %v3807, 32
        %v3893 = vpop.permute.xlu0 %3892
        %3894 = vrot.lane.b32.xlu0 %v3810, 32
        %v3895 = vpop.permute.xlu0 %3894
        %3896 = vrot.lane.b32.xlu0 %v3814, 32
        %v3897 = vpop.permute.xlu0 %3896
        %3898 = vrot.lane.b32.xlu0 %v3817, 32
        %v3899 = vpop.permute.xlu0 %3898
        %3900 = vrot.lane.b32.xlu0 %v3821, 32
        %v3901 = vpop.permute.xlu0 %3900
        %3902 = vrot.lane.b32.xlu0 %v3824, 32
        %v3903 = vpop.permute.xlu0 %3902
        %3904 = vrot.lane.b32.xlu0 %v3828, 32
        %v3905 = vpop.permute.xlu0 %3904
        %3906 = vrot.lane.b32.xlu0 %v3831, 32
        %v3907 = vpop.permute.xlu0 %3906
        %3908 = vrot.lane.b32.xlu0 %v3835, 32
        %v3909 = vpop.permute.xlu0 %3908
        %3910 = vrot.lane.b32.xlu0 %v3838, 32
        %v3911 = vpop.permute.xlu0 %3910
        %3912 = vrot.lane.b32.xlu0 %v3842, 32
        %v3913 = vpop.permute.xlu0 %3912
        %3914 = vrot.lane.b32.xlu0 %v3845, 32
        %v3915 = vpop.permute.xlu0 %3914
        %3916 = vrot.lane.b32.xlu0 %v3849, 32
        %v3917 = vpop.permute.xlu0 %3916
        %3918 = vrot.lane.b32.xlu0 %v3852, 32
        %v3919 = vpop.permute.xlu0 %3918
        %3920 = vrot.lane.b32.xlu0 %v3856, 32
        %v3921 = vpop.permute.xlu0 %3920
        %3922 = vrot.lane.b32.xlu0 %v3859, 32
        %v3923 = vpop.permute.xlu0 %3922
        %vm3956 = vcmask 290048
        %3957 = vst.msk [vmem:[#allocation3] sm:$0xf] %vm3956, %v3861
        %3958 = vst.msk [vmem:[#allocation3 + $0x4] sm:$0xf] %vm3956, %v3863
        %3959 = vst.msk [vmem:[#allocation3 + $0x8] sm:$0xf] %vm3956, %v3865
        %3960 = vst.msk [vmem:[#allocation3 + $0xc] sm:$0xf] %vm3956, %v3867
        %3961 = vst.msk [vmem:[#allocation3 + $0x10] sm:$0xf] %vm3956, %v3869
        %3962 = vst.msk [vmem:[#allocation3 + $0x14] sm:$0xf] %vm3956, %v3871
        %3963 = vst.msk [vmem:[#allocation3 + $0x18] sm:$0xf] %vm3956, %v3873
        %3964 = vst.msk [vmem:[#allocation3 + $0x1c] sm:$0xf] %vm3956, %v3875
        %3965 = vst.msk [vmem:[#allocation3 + $0x20] sm:$0xf] %vm3956, %v3877
        %3966 = vst.msk [vmem:[#allocation3 + $0x24] sm:$0xf] %vm3956, %v3879
        %3967 = vst.msk [vmem:[#allocation3 + $0x28] sm:$0xf] %vm3956, %v3881
        %3968 = vst.msk [vmem:[#allocation3 + $0x2c] sm:$0xf] %vm3956, %v3883
        %3969 = vst.msk [vmem:[#allocation3 + $0x30] sm:$0xf] %vm3956, %v3885
        %3970 = vst.msk [vmem:[#allocation3 + $0x34] sm:$0xf] %vm3956, %v3887
        %3971 = vst.msk [vmem:[#allocation3 + $0x38] sm:$0xf] %vm3956, %v3889
        %3972 = vst.msk [vmem:[#allocation3 + $0x3c] sm:$0xf] %vm3956, %v3891
        %3973 = vst.msk [vmem:[#allocation3 + $0x40] sm:$0xf] %vm3956, %v3893
        %3974 = vst.msk [vmem:[#allocation3 + $0x44] sm:$0xf] %vm3956, %v3895
        %3975 = vst.msk [vmem:[#allocation3 + $0x48] sm:$0xf] %vm3956, %v3897
        %3976 = vst.msk [vmem:[#allocation3 + $0x4c] sm:$0xf] %vm3956, %v3899
        %3977 = vst.msk [vmem:[#allocation3 + $0x50] sm:$0xf] %vm3956, %v3901
        %3978 = vst.msk [vmem:[#allocation3 + $0x54] sm:$0xf] %vm3956, %v3903
        %3979 = vst.msk [vmem:[#allocation3 + $0x58] sm:$0xf] %vm3956, %v3905
        %3980 = vst.msk [vmem:[#allocation3 + $0x5c] sm:$0xf] %vm3956, %v3907
        %3981 = vst.msk [vmem:[#allocation3 + $0x60] sm:$0xf] %vm3956, %v3909
        %3982 = vst.msk [vmem:[#allocation3 + $0x64] sm:$0xf] %vm3956, %v3911
        %3983 = vst.msk [vmem:[#allocation3 + $0x68] sm:$0xf] %vm3956, %v3913
        %3984 = vst.msk [vmem:[#allocation3 + $0x6c] sm:$0xf] %vm3956, %v3915
        %3985 = vst.msk [vmem:[#allocation3 + $0x70] sm:$0xf] %vm3956, %v3917
        %3986 = vst.msk [vmem:[#allocation3 + $0x74] sm:$0xf] %vm3956, %v3919
        %3987 = vst.msk [vmem:[#allocation3 + $0x78] sm:$0xf] %vm3956, %v3921
        %3988 = vst.msk [vmem:[#allocation3 + $0x7c] sm:$0xf] %vm3956, %v3923
        %v3989 = vld [vmem:[#allocation3] sm:$0xf]
        %v3990 = vld [vmem:[#allocation3 + $0x4] sm:$0xf]
        %v3991 = vld [vmem:[#allocation3 + $0x8] sm:$0xf]
        %v3992 = vld [vmem:[#allocation3 + $0xc] sm:$0xf]
        %v3993 = vld [vmem:[#allocation3 + $0x10] sm:$0xf]
        %v3994 = vld [vmem:[#allocation3 + $0x14] sm:$0xf]
        %v3995 = vld [vmem:[#allocation3 + $0x18] sm:$0xf]
        %v3996 = vld [vmem:[#allocation3 + $0x1c] sm:$0xf]
        %v3997 = vld [vmem:[#allocation3 + $0x20] sm:$0xf]
        %v3998 = vld [vmem:[#allocation3 + $0x24] sm:$0xf]
        %v3999 = vld [vmem:[#allocation3 + $0x28] sm:$0xf]
        %v4000 = vld [vmem:[#allocation3 + $0x2c] sm:$0xf]
        %v4001 = vld [vmem:[#allocation3 + $0x30] sm:$0xf]
        %v4002 = vld [vmem:[#allocation3 + $0x34] sm:$0xf]
        %v4003 = vld [vmem:[#allocation3 + $0x38] sm:$0xf]
        %v4004 = vld [vmem:[#allocation3 + $0x3c] sm:$0xf]
        %v4005 = vld [vmem:[#allocation3 + $0x40] sm:$0xf]
        %v4006 = vld [vmem:[#allocation3 + $0x44] sm:$0xf]
        %v4007 = vld [vmem:[#allocation3 + $0x48] sm:$0xf]
        %v4008 = vld [vmem:[#allocation3 + $0x4c] sm:$0xf]
        %v4009 = vld [vmem:[#allocation3 + $0x50] sm:$0xf]
        %v4010 = vld [vmem:[#allocation3 + $0x54] sm:$0xf]
        %v4011 = vld [vmem:[#allocation3 + $0x58] sm:$0xf]
        %v4012 = vld [vmem:[#allocation3 + $0x5c] sm:$0xf]
        %v4013 = vld [vmem:[#allocation3 + $0x60] sm:$0xf]
        %v4014 = vld [vmem:[#allocation3 + $0x64] sm:$0xf]
        %v4015 = vld [vmem:[#allocation3 + $0x68] sm:$0xf]
        %v4016 = vld [vmem:[#allocation3 + $0x6c] sm:$0xf]
        %v4017 = vld [vmem:[#allocation3 + $0x70] sm:$0xf]
        %v4018 = vld [vmem:[#allocation3 + $0x74] sm:$0xf]
        %v4019 = vld [vmem:[#allocation3 + $0x78] sm:$0xf]
        %v4020 = vld [vmem:[#allocation3 + $0x7c] sm:$0xf]
        %v4021 = vld [vmem:[%s1] sm:$0xf]
        %v4022 = vld [vmem:[%s1 + $0x4] sm:$0xf]
        %v4023 = vld [vmem:[%s1 + $0x8] sm:$0xf]
        %v4024 = vld [vmem:[%s1 + $0xc] sm:$0xf]
        %v4025 = vld [vmem:[%s1 + $0x10] sm:$0x3]
        %v4026 = vld [vmem:[%s3] sm:$0x1]
        %v4028 = vperm.slane %v4026, 0
        %v4062 = vunpack.c.l.b16 %v3989
        %v4063 = vunpack.c.l.b16 %v3990
        %v4064 = vunpack.c.l.b16 %v3991
        %v4065 = vunpack.c.l.b16 %v3992
        %v4066 = vunpack.c.l.b16 %v3993
        %v4067 = vunpack.c.l.b16 %v3994
        %v4068 = vunpack.c.l.b16 %v3995
        %v4069 = vunpack.c.l.b16 %v3996
        %v4070 = vunpack.c.l.b16 %v3997
        %v4071 = vunpack.c.l.b16 %v3998
        %v4072 = vunpack.c.l.b16 %v3999
        %v4073 = vunpack.c.l.b16 %v4000
        %v4074 = vunpack.c.l.b16 %v4001
        %v4075 = vunpack.c.l.b16 %v4002
        %v4076 = vunpack.c.l.b16 %v4003
        %v4077 = vunpack.c.l.b16 %v4004
        %v4078 = vunpack.c.l.b16 %v4005
        %v4079 = vunpack.c.l.b16 %v4006
        %v4080 = vunpack.c.l.b16 %v4007
        %v4081 = vunpack.c.l.b16 %v4008
        %v4082 = vunpack.c.l.b16 %v4009
        %v4083 = vunpack.c.l.b16 %v4010
        %v4084 = vunpack.c.l.b16 %v4011
        %v4085 = vunpack.c.l.b16 %v4012
        %v4086 = vunpack.c.l.b16 %v4013
        %v4087 = vunpack.c.l.b16 %v4014
        %v4088 = vunpack.c.l.b16 %v4015
        %v4089 = vunpack.c.l.b16 %v4016
        %v4090 = vunpack.c.l.b16 %v4017
        %v4091 = vunpack.c.l.b16 %v4018
        %v4092 = vunpack.c.l.b16 %v4019
        %v4093 = vunpack.c.l.b16 %v4020
        %v4094 = vpack.c.b16 %v4063, %v4062
        %v4095 = vpack.c.b16 %v4065, %v4064
        %v4096 = vpack.c.b16 %v4067, %v4066
        %v4097 = vpack.c.b16 %v4069, %v4068
        %v4098 = vpack.c.b16 %v4071, %v4070
        %v4099 = vpack.c.b16 %v4073, %v4072
        %v4100 = vpack.c.b16 %v4075, %v4074
        %v4101 = vpack.c.b16 %v4077, %v4076
        %v4102 = vpack.c.b16 %v4079, %v4078
        %v4103 = vpack.c.b16 %v4081, %v4080
        %v4104 = vpack.c.b16 %v4083, %v4082
        %v4105 = vpack.c.b16 %v4085, %v4084
        %v4106 = vpack.c.b16 %v4087, %v4086
        %v4107 = vpack.c.b16 %v4089, %v4088
        %v4108 = vpack.c.b16 %v4091, %v4090
        %v4109 = vpack.c.b16 %v4093, %v4092
        %v4115 = vunpack.c.l.b16 %v4021
        %v4116 = vunpack.c.l.b16 %v4022
        %v4117 = vunpack.c.l.b16 %v4023
        %v4118 = vunpack.c.l.b16 %v4024
        %v4119 = vunpack.c.l.b16 %v4025
        %v4120 = vpack.c.b16 %v4116, %v4115
        %v4121 = vpack.c.b16 %v4118, %v4117
        %v4122 = vpack.c.b16 %v4119, %v4119
        %vm4125 = vcmask 293888
        %v4127 = vsel %vm4125, %v4094, 0
        %v4130 = vsel %vm4125, %v4095, 0
        %v4133 = vsel %vm4125, %v4096, 0
        %v4136 = vsel %vm4125, %v4097, 0
        %v4139 = vsel %vm4125, %v4098, 0
        %v4142 = vsel %vm4125, %v4099, 0
        %v4145 = vsel %vm4125, %v4100, 0
        %v4148 = vsel %vm4125, %v4101, 0
        %v4151 = vsel %vm4125, %v4102, 0
        %v4154 = vsel %vm4125, %v4103, 0
        %v4157 = vsel %vm4125, %v4104, 0
        %v4160 = vsel %vm4125, %v4105, 0
        %v4163 = vsel %vm4125, %v4106, 0
        %v4166 = vsel %vm4125, %v4107, 0
        %v4169 = vsel %vm4125, %v4108, 0
        %v4172 = vsel %vm4125, %v4109, 0
        %vm4174 = vcmask 1041408
        %v4176 = vsel %vm4174, %v4122, 0
        %4178 = vmatpush.bf16.msra.mxu0 0
        %4179 = vmatpush.bf16.msra.mxu0 0
        %4180 = vmatpush.bf16.msra.mxu0 0
        %4181 = vmatpush.bf16.msra.mxu0 0
        %4182 = vmatpush.bf16.msra.mxu0 0
        %4183 = vmatpush.bf16.msra.mxu0 %v4176
        %4184 = vmatpush.bf16.msra.mxu0 %v4121
        %4185 = vmatpush.bf16.msra.mxu0 %v4120
        %4186 = vmatmul.bf16.gmra.mxu0 %v4127
        %v4187 = vpop.f32.mrf.mxu0
        %v4188 = vadd.f32 %v4028, %v4187
        %v4189 = vpop.f32.mrf.mxu0
        %v4190 = vadd.f32 %v4028, %v4189
        %4191 = vmatmul.bf16.gmra.mxu0 %v4130
        %v4192 = vpop.f32.mrf.mxu0
        %v4193 = vadd.f32 %v4028, %v4192
        %v4194 = vpop.f32.mrf.mxu0
        %v4195 = vadd.f32 %v4028, %v4194
        %4196 = vmatmul.bf16.gmra.mxu0 %v4133
        %v4197 = vpop.f32.mrf.mxu0
        %v4198 = vadd.f32 %v4028, %v4197
        %v4199 = vpop.f32.mrf.mxu0
        %v4200 = vadd.f32 %v4028, %v4199
        %4201 = vmatmul.bf16.gmra.mxu0 %v4136
        %v4202 = vpop.f32.mrf.mxu0
        %v4203 = vadd.f32 %v4028, %v4202
        %v4204 = vpop.f32.mrf.mxu0
        %v4205 = vadd.f32 %v4028, %v4204
        %4206 = vmatmul.bf16.gmra.mxu0 %v4139
        %v4207 = vpop.f32.mrf.mxu0
        %v4208 = vadd.f32 %v4028, %v4207
        %v4209 = vpop.f32.mrf.mxu0
        %v4210 = vadd.f32 %v4028, %v4209
        %4211 = vmatmul.bf16.gmra.mxu0 %v4142
        %v4212 = vpop.f32.mrf.mxu0
        %v4213 = vadd.f32 %v4028, %v4212
        %v4214 = vpop.f32.mrf.mxu0
        %v4215 = vadd.f32 %v4028, %v4214
        %4216 = vmatmul.bf16.gmra.mxu0 %v4145
        %v4217 = vpop.f32.mrf.mxu0
        %v4218 = vadd.f32 %v4028, %v4217
        %v4219 = vpop.f32.mrf.mxu0
        %v4220 = vadd.f32 %v4028, %v4219
        %4221 = vmatmul.bf16.gmra.mxu0 %v4148
        %v4222 = vpop.f32.mrf.mxu0
        %v4223 = vadd.f32 %v4028, %v4222
        %v4224 = vpop.f32.mrf.mxu0
        %v4225 = vadd.f32 %v4028, %v4224
        %4226 = vmatmul.bf16.gmra.mxu0 %v4151
        %v4227 = vpop.f32.mrf.mxu0
        %v4228 = vadd.f32 %v4028, %v4227
        %v4229 = vpop.f32.mrf.mxu0
        %v4230 = vadd.f32 %v4028, %v4229
        %4231 = vmatmul.bf16.gmra.mxu0 %v4154
        %v4232 = vpop.f32.mrf.mxu0
        %v4233 = vadd.f32 %v4028, %v4232
        %v4234 = vpop.f32.mrf.mxu0
        %v4235 = vadd.f32 %v4028, %v4234
        %4236 = vmatmul.bf16.gmra.mxu0 %v4157
        %v4237 = vpop.f32.mrf.mxu0
        %v4238 = vadd.f32 %v4028, %v4237
        %v4239 = vpop.f32.mrf.mxu0
        %v4240 = vadd.f32 %v4028, %v4239
        %4241 = vmatmul.bf16.gmra.mxu0 %v4160
        %v4242 = vpop.f32.mrf.mxu0
        %v4243 = vadd.f32 %v4028, %v4242
        %v4244 = vpop.f32.mrf.mxu0
        %v4245 = vadd.f32 %v4028, %v4244
        %4246 = vmatmul.bf16.gmra.mxu0 %v4163
        %v4247 = vpop.f32.mrf.mxu0
        %v4248 = vadd.f32 %v4028, %v4247
        %v4249 = vpop.f32.mrf.mxu0
        %v4250 = vadd.f32 %v4028, %v4249
        %4251 = vmatmul.bf16.gmra.mxu0 %v4166
        %v4252 = vpop.f32.mrf.mxu0
        %v4253 = vadd.f32 %v4028, %v4252
        %v4254 = vpop.f32.mrf.mxu0
        %v4255 = vadd.f32 %v4028, %v4254
        %4256 = vmatmul.bf16.gmra.mxu0 %v4169
        %v4257 = vpop.f32.mrf.mxu0
        %v4258 = vadd.f32 %v4028, %v4257
        %v4259 = vpop.f32.mrf.mxu0
        %v4260 = vadd.f32 %v4028, %v4259
        %4261 = vmatmul.bf16.gmra.mxu0 %v4172
        %v4262 = vpop.f32.mrf.mxu0
        %v4263 = vadd.f32 %v4028, %v4262
        %v4264 = vpop.f32.mrf.mxu0
        %v4265 = vadd.f32 %v4028, %v4264
        %4266 = vdwg.mxu0
        %v4267 = vmax.f32 %v4188, 0.0
        %v4268 = vmax.f32 %v4190, 0.0
        %v4269 = vmax.f32 %v4193, 0.0
        %v4270 = vmax.f32 %v4195, 0.0
        %v4271 = vmax.f32 %v4198, 0.0
        %v4272 = vmax.f32 %v4200, 0.0
        %v4273 = vmax.f32 %v4203, 0.0
        %v4274 = vmax.f32 %v4205, 0.0
        %v4275 = vmax.f32 %v4208, 0.0
        %v4276 = vmax.f32 %v4210, 0.0
        %v4277 = vmax.f32 %v4213, 0.0
        %v4278 = vmax.f32 %v4215, 0.0
        %v4279 = vmax.f32 %v4218, 0.0
        %v4280 = vmax.f32 %v4220, 0.0
        %v4281 = vmax.f32 %v4223, 0.0
        %v4282 = vmax.f32 %v4225, 0.0
        %v4283 = vmax.f32 %v4228, 0.0
        %v4284 = vmax.f32 %v4230, 0.0
        %v4285 = vmax.f32 %v4233, 0.0
        %v4286 = vmax.f32 %v4235, 0.0
        %v4287 = vmax.f32 %v4238, 0.0
        %v4288 = vmax.f32 %v4240, 0.0
        %v4289 = vmax.f32 %v4243, 0.0
        %v4290 = vmax.f32 %v4245, 0.0
        %v4291 = vmax.f32 %v4248, 0.0
        %v4292 = vmax.f32 %v4250, 0.0
        %v4293 = vmax.f32 %v4253, 0.0
        %v4294 = vmax.f32 %v4255, 0.0
        %v4295 = vmax.f32 %v4258, 0.0
        %v4296 = vmax.f32 %v4260, 0.0
        %v4297 = vmax.f32 %v4263, 0.0
        %v4298 = vmax.f32 %v4265, 0.0
        %v4299 = vpack.c.bf16 %v4267, %v4267
        %v4300 = vpack.c.bf16 %v4268, %v4268
        %v4301 = vpack.c.bf16 %v4269, %v4269
        %v4302 = vpack.c.bf16 %v4270, %v4270
        %v4303 = vpack.c.bf16 %v4271, %v4271
        %v4304 = vpack.c.bf16 %v4272, %v4272
        %v4305 = vpack.c.bf16 %v4273, %v4273
        %v4306 = vpack.c.bf16 %v4274, %v4274
        %v4307 = vpack.c.bf16 %v4275, %v4275
        %v4308 = vpack.c.bf16 %v4276, %v4276
        %v4309 = vpack.c.bf16 %v4277, %v4277
        %v4310 = vpack.c.bf16 %v4278, %v4278
        %v4311 = vpack.c.bf16 %v4279, %v4279
        %v4312 = vpack.c.bf16 %v4280, %v4280
        %v4313 = vpack.c.bf16 %v4281, %v4281
        %v4314 = vpack.c.bf16 %v4282, %v4282
        %v4315 = vpack.c.bf16 %v4283, %v4283
        %v4316 = vpack.c.bf16 %v4284, %v4284
        %v4317 = vpack.c.bf16 %v4285, %v4285
        %v4318 = vpack.c.bf16 %v4286, %v4286
        %v4319 = vpack.c.bf16 %v4287, %v4287
        %v4320 = vpack.c.bf16 %v4288, %v4288
        %v4321 = vpack.c.bf16 %v4289, %v4289
        %v4322 = vpack.c.bf16 %v4290, %v4290
        %v4323 = vpack.c.bf16 %v4291, %v4291
        %v4324 = vpack.c.bf16 %v4292, %v4292
        %v4325 = vpack.c.bf16 %v4293, %v4293
        %v4326 = vpack.c.bf16 %v4294, %v4294
        %v4327 = vpack.c.bf16 %v4295, %v4295
        %v4328 = vpack.c.bf16 %v4296, %v4296
        %v4329 = vpack.c.bf16 %v4297, %v4297
        %v4330 = vpack.c.bf16 %v4298, %v4298
        %v4332 = vshrl.u32 %v4299, 16
        %v4334 = vrot.slane %v4332, 7
        %v4335 = vshll.u32 %v4299, 16
        %v4337 = vor.u32 %v4334, %v4335
        %v4338 = vrot.slane %v4334, 4
        %v4340 = vshrl.u32 %v4300, 16
        %v4342 = vrot.slane %v4340, 7
        %v4343 = vshll.u32 %v4300, 16
        %v4345 = vor.u32 %v4342, %v4343
        %v4346 = vsel %vm400, %v4338, %v4345
        %v4347 = vrot.slane %v4342, 4
        %v4349 = vshrl.u32 %v4301, 16
        %v4351 = vrot.slane %v4349, 7
        %v4352 = vshll.u32 %v4301, 16
        %v4354 = vor.u32 %v4351, %v4352
        %v4355 = vrot.slane %v4351, 4
        %v4357 = vshrl.u32 %v4302, 16
        %v4359 = vrot.slane %v4357, 7
        %v4360 = vshll.u32 %v4302, 16
        %v4362 = vor.u32 %v4359, %v4360
        %v4363 = vsel %vm400, %v4355, %v4362
        %v4364 = vrot.slane %v4359, 4
        %v4366 = vshrl.u32 %v4303, 16
        %v4368 = vrot.slane %v4366, 7
        %v4369 = vshll.u32 %v4303, 16
        %v4371 = vor.u32 %v4368, %v4369
        %v4372 = vrot.slane %v4368, 4
        %v4374 = vshrl.u32 %v4304, 16
        %v4376 = vrot.slane %v4374, 7
        %v4377 = vshll.u32 %v4304, 16
        %v4379 = vor.u32 %v4376, %v4377
        %v4380 = vsel %vm400, %v4372, %v4379
        %v4381 = vrot.slane %v4376, 4
        %v4383 = vshrl.u32 %v4305, 16
        %v4385 = vrot.slane %v4383, 7
        %v4386 = vshll.u32 %v4305, 16
        %v4388 = vor.u32 %v4385, %v4386
        %v4389 = vrot.slane %v4385, 4
        %v4391 = vshrl.u32 %v4306, 16
        %v4393 = vrot.slane %v4391, 7
        %v4394 = vshll.u32 %v4306, 16
        %v4396 = vor.u32 %v4393, %v4394
        %v4397 = vsel %vm400, %v4389, %v4396
        %v4398 = vrot.slane %v4393, 4
        %v4400 = vshrl.u32 %v4307, 16
        %v4402 = vrot.slane %v4400, 7
        %v4403 = vshll.u32 %v4307, 16
        %v4405 = vor.u32 %v4402, %v4403
        %v4406 = vrot.slane %v4402, 4
        %v4408 = vshrl.u32 %v4308, 16
        %v4410 = vrot.slane %v4408, 7
        %v4411 = vshll.u32 %v4308, 16
        %v4413 = vor.u32 %v4410, %v4411
        %v4414 = vsel %vm400, %v4406, %v4413
        %v4415 = vrot.slane %v4410, 4
        %v4417 = vshrl.u32 %v4309, 16
        %v4419 = vrot.slane %v4417, 7
        %v4420 = vshll.u32 %v4309, 16
        %v4422 = vor.u32 %v4419, %v4420
        %v4423 = vrot.slane %v4419, 4
        %v4425 = vshrl.u32 %v4310, 16
        %v4427 = vrot.slane %v4425, 7
        %v4428 = vshll.u32 %v4310, 16
        %v4430 = vor.u32 %v4427, %v4428
        %v4431 = vsel %vm400, %v4423, %v4430
        %v4432 = vrot.slane %v4427, 4
        %v4434 = vshrl.u32 %v4311, 16
        %v4436 = vrot.slane %v4434, 7
        %v4437 = vshll.u32 %v4311, 16
        %v4439 = vor.u32 %v4436, %v4437
        %v4440 = vrot.slane %v4436, 4
        %v4442 = vshrl.u32 %v4312, 16
        %v4444 = vrot.slane %v4442, 7
        %v4445 = vshll.u32 %v4312, 16
        %v4447 = vor.u32 %v4444, %v4445
        %v4448 = vsel %vm400, %v4440, %v4447
        %v4449 = vrot.slane %v4444, 4
        %v4451 = vshrl.u32 %v4313, 16
        %v4453 = vrot.slane %v4451, 7
        %v4454 = vshll.u32 %v4313, 16
        %v4456 = vor.u32 %v4453, %v4454
        %v4457 = vrot.slane %v4453, 4
        %v4459 = vshrl.u32 %v4314, 16
        %v4461 = vrot.slane %v4459, 7
        %v4462 = vshll.u32 %v4314, 16
        %v4464 = vor.u32 %v4461, %v4462
        %v4465 = vsel %vm400, %v4457, %v4464
        %v4466 = vrot.slane %v4461, 4
        %v4468 = vshrl.u32 %v4315, 16
        %v4470 = vrot.slane %v4468, 7
        %v4471 = vshll.u32 %v4315, 16
        %v4473 = vor.u32 %v4470, %v4471
        %v4474 = vrot.slane %v4470, 4
        %v4476 = vshrl.u32 %v4316, 16
        %v4478 = vrot.slane %v4476, 7
        %v4479 = vshll.u32 %v4316, 16
        %v4481 = vor.u32 %v4478, %v4479
        %v4482 = vsel %vm400, %v4474, %v4481
        %v4483 = vrot.slane %v4478, 4
        %v4485 = vshrl.u32 %v4317, 16
        %v4487 = vrot.slane %v4485, 7
        %v4488 = vshll.u32 %v4317, 16
        %v4490 = vor.u32 %v4487, %v4488
        %v4491 = vrot.slane %v4487, 4
        %v4493 = vshrl.u32 %v4318, 16
        %v4495 = vrot.slane %v4493, 7
        %v4496 = vshll.u32 %v4318, 16
        %v4498 = vor.u32 %v4495, %v4496
        %v4499 = vsel %vm400, %v4491, %v4498
        %v4500 = vrot.slane %v4495, 4
        %v4502 = vshrl.u32 %v4319, 16
        %v4504 = vrot.slane %v4502, 7
        %v4505 = vshll.u32 %v4319, 16
        %v4507 = vor.u32 %v4504, %v4505
        %v4508 = vrot.slane %v4504, 4
        %v4510 = vshrl.u32 %v4320, 16
        %v4512 = vrot.slane %v4510, 7
        %v4513 = vshll.u32 %v4320, 16
        %v4515 = vor.u32 %v4512, %v4513
        %v4516 = vsel %vm400, %v4508, %v4515
        %v4517 = vrot.slane %v4512, 4
        %v4519 = vshrl.u32 %v4321, 16
        %v4521 = vrot.slane %v4519, 7
        %v4522 = vshll.u32 %v4321, 16
        %v4524 = vor.u32 %v4521, %v4522
        %v4525 = vrot.slane %v4521, 4
        %v4527 = vshrl.u32 %v4322, 16
        %v4529 = vrot.slane %v4527, 7
        %v4530 = vshll.u32 %v4322, 16
        %v4532 = vor.u32 %v4529, %v4530
        %v4533 = vsel %vm400, %v4525, %v4532
        %v4534 = vrot.slane %v4529, 4
        %v4536 = vshrl.u32 %v4323, 16
        %v4538 = vrot.slane %v4536, 7
        %v4539 = vshll.u32 %v4323, 16
        %v4541 = vor.u32 %v4538, %v4539
        %v4542 = vrot.slane %v4538, 4
        %v4544 = vshrl.u32 %v4324, 16
        %v4546 = vrot.slane %v4544, 7
        %v4547 = vshll.u32 %v4324, 16
        %v4549 = vor.u32 %v4546, %v4547
        %v4550 = vsel %vm400, %v4542, %v4549
        %v4551 = vrot.slane %v4546, 4
        %v4553 = vshrl.u32 %v4325, 16
        %v4555 = vrot.slane %v4553, 7
        %v4556 = vshll.u32 %v4325, 16
        %v4558 = vor.u32 %v4555, %v4556
        %v4559 = vrot.slane %v4555, 4
        %v4561 = vshrl.u32 %v4326, 16
        %v4563 = vrot.slane %v4561, 7
        %v4564 = vshll.u32 %v4326, 16
        %v4566 = vor.u32 %v4563, %v4564
        %v4567 = vsel %vm400, %v4559, %v4566
        %v4568 = vrot.slane %v4563, 4
        %v4570 = vshrl.u32 %v4327, 16
        %v4572 = vrot.slane %v4570, 7
        %v4573 = vshll.u32 %v4327, 16
        %v4575 = vor.u32 %v4572, %v4573
        %v4576 = vrot.slane %v4572, 4
        %v4578 = vshrl.u32 %v4328, 16
        %v4580 = vrot.slane %v4578, 7
        %v4581 = vshll.u32 %v4328, 16
        %v4583 = vor.u32 %v4580, %v4581
        %v4584 = vsel %vm400, %v4576, %v4583
        %v4585 = vrot.slane %v4580, 4
        %v4587 = vshrl.u32 %v4329, 16
        %v4589 = vrot.slane %v4587, 7
        %v4590 = vshll.u32 %v4329, 16
        %v4592 = vor.u32 %v4589, %v4590
        %v4593 = vrot.slane %v4589, 4
        %v4595 = vshrl.u32 %v4330, 16
        %v4597 = vrot.slane %v4595, 7
        %v4598 = vshll.u32 %v4330, 16
        %v4600 = vor.u32 %v4597, %v4598
        %v4601 = vsel %vm400, %v4593, %v4600
        %v4602 = vrot.slane %v4597, 4
        %vm4651 = vcmask 60416
        %vm4652 = vmand %vm4651, %vm285
        %v4653 = vld [vmem:[%s233] sm:$0xf]
        %v4654 = vsel %vm4652, %v4337, %v4653
        %4655 = vst [vmem:[%s233] sm:$0xf] %v4654
        %4656 = vst.msk [vmem:[%s233 + $0x4] sm:$0xf] %vm224, %v4346
        %v4657 = vld [vmem:[%s233 + $0x8] sm:$0x1]
        %v4658 = vsel %vm236, %v4347, %v4657
        %4659 = vst [vmem:[%s233 + $0x8] sm:$0x1] %v4658
        %v4660 = vld [vmem:[%s233 + $0xc] sm:$0xf]
        %v4661 = vsel %vm4652, %v4354, %v4660
        %4662 = vst [vmem:[%s233 + $0xc] sm:$0xf] %v4661
        %4663 = vst.msk [vmem:[%s233 + $0x10] sm:$0xf] %vm224, %v4363
        %v4664 = vld [vmem:[%s233 + $0x14] sm:$0x1]
        %v4665 = vsel %vm236, %v4364, %v4664
        %4666 = vst [vmem:[%s233 + $0x14] sm:$0x1] %v4665
        %v4667 = vld [vmem:[%s233 + $0x18] sm:$0xf]
        %v4668 = vsel %vm4652, %v4371, %v4667
        %4669 = vst [vmem:[%s233 + $0x18] sm:$0xf] %v4668
        %4670 = vst.msk [vmem:[%s233 + $0x1c] sm:$0xf] %vm224, %v4380
        %v4671 = vld [vmem:[%s233 + $0x20] sm:$0x1]
        %v4672 = vsel %vm236, %v4381, %v4671
        %4673 = vst [vmem:[%s233 + $0x20] sm:$0x1] %v4672
        %v4674 = vld [vmem:[%s233 + $0x24] sm:$0xf]
        %v4675 = vsel %vm4652, %v4388, %v4674
        %4676 = vst [vmem:[%s233 + $0x24] sm:$0xf] %v4675
        %4677 = vst.msk [vmem:[%s233 + $0x28] sm:$0xf] %vm224, %v4397
        %v4678 = vld [vmem:[%s233 + $0x2c] sm:$0x1]
        %v4679 = vsel %vm236, %v4398, %v4678
        %4680 = vst [vmem:[%s233 + $0x2c] sm:$0x1] %v4679
        %v4681 = vld [vmem:[%s233 + $0x30] sm:$0xf]
        %v4682 = vsel %vm4652, %v4405, %v4681
        %4683 = vst [vmem:[%s233 + $0x30] sm:$0xf] %v4682
        %4684 = vst.msk [vmem:[%s233 + $0x34] sm:$0xf] %vm224, %v4414
        %v4685 = vld [vmem:[%s233 + $0x38] sm:$0x1]
        %v4686 = vsel %vm236, %v4415, %v4685
        %4687 = vst [vmem:[%s233 + $0x38] sm:$0x1] %v4686
        %v4688 = vld [vmem:[%s233 + $0x3c] sm:$0xf]
        %v4689 = vsel %vm4652, %v4422, %v4688
        %4690 = vst [vmem:[%s233 + $0x3c] sm:$0xf] %v4689
        %4691 = vst.msk [vmem:[%s233 + $0x40] sm:$0xf] %vm224, %v4431
        %v4692 = vld [vmem:[%s233 + $0x44] sm:$0x1]
        %v4693 = vsel %vm236, %v4432, %v4692
        %4694 = vst [vmem:[%s233 + $0x44] sm:$0x1] %v4693
        %v4695 = vld [vmem:[%s233 + $0x48] sm:$0xf]
        %v4696 = vsel %vm4652, %v4439, %v4695
        %4697 = vst [vmem:[%s233 + $0x48] sm:$0xf] %v4696
        %4698 = vst.msk [vmem:[%s233 + $0x4c] sm:$0xf] %vm224, %v4448
        %v4699 = vld [vmem:[%s233 + $0x50] sm:$0x1]
        %v4700 = vsel %vm236, %v4449, %v4699
        %4701 = vst [vmem:[%s233 + $0x50] sm:$0x1] %v4700
        %v4702 = vld [vmem:[%s233 + $0x54] sm:$0xf]
        %v4703 = vsel %vm4652, %v4456, %v4702
        %4704 = vst [vmem:[%s233 + $0x54] sm:$0xf] %v4703
        %4705 = vst.msk [vmem:[%s233 + $0x58] sm:$0xf] %vm224, %v4465
        %v4706 = vld [vmem:[%s233 + $0x5c] sm:$0x1]
        %v4707 = vsel %vm236, %v4466, %v4706
        %4708 = vst [vmem:[%s233 + $0x5c] sm:$0x1] %v4707
        %v4709 = vld [vmem:[%s233 + $0x60] sm:$0xf]
        %v4710 = vsel %vm4652, %v4473, %v4709
        %4711 = vst [vmem:[%s233 + $0x60] sm:$0xf] %v4710
        %4712 = vst.msk [vmem:[%s233 + $0x64] sm:$0xf] %vm224, %v4482
        %v4713 = vld [vmem:[%s233 + $0x68] sm:$0x1]
        %v4714 = vsel %vm236, %v4483, %v4713
        %4715 = vst [vmem:[%s233 + $0x68] sm:$0x1] %v4714
        %v4716 = vld [vmem:[%s233 + $0x6c] sm:$0xf]
        %v4717 = vsel %vm4652, %v4490, %v4716
        %4718 = vst [vmem:[%s233 + $0x6c] sm:$0xf] %v4717
        %4719 = vst.msk [vmem:[%s233 + $0x70] sm:$0xf] %vm224, %v4499
        %v4720 = vld [vmem:[%s233 + $0x74] sm:$0x1]
        %v4721 = vsel %vm236, %v4500, %v4720
        %4722 = vst [vmem:[%s233 + $0x74] sm:$0x1] %v4721
        %v4723 = vld [vmem:[%s233 + $0x78] sm:$0xf]
        %v4724 = vsel %vm4652, %v4507, %v4723
        %4725 = vst [vmem:[%s233 + $0x78] sm:$0xf] %v4724
        %4726 = vst.msk [vmem:[%s233 + $0x7c] sm:$0xf] %vm224, %v4516
        %v4727 = vld [vmem:[%s233 + $0x80] sm:$0x1]
        %v4728 = vsel %vm236, %v4517, %v4727
        %4729 = vst [vmem:[%s233 + $0x80] sm:$0x1] %v4728
        %v4730 = vld [vmem:[%s233 + $0x84] sm:$0xf]
        %v4731 = vsel %vm4652, %v4524, %v4730
        %4732 = vst [vmem:[%s233 + $0x84] sm:$0xf] %v4731
        %4733 = vst.msk [vmem:[%s233 + $0x88] sm:$0xf] %vm224, %v4533
        %v4734 = vld [vmem:[%s233 + $0x8c] sm:$0x1]
        %v4735 = vsel %vm236, %v4534, %v4734
        %4736 = vst [vmem:[%s233 + $0x8c] sm:$0x1] %v4735
        %v4737 = vld [vmem:[%s233 + $0x90] sm:$0xf]
        %v4738 = vsel %vm4652, %v4541, %v4737
        %4739 = vst [vmem:[%s233 + $0x90] sm:$0xf] %v4738
        %4740 = vst.msk [vmem:[%s233 + $0x94] sm:$0xf] %vm224, %v4550
        %v4741 = vld [vmem:[%s233 + $0x98] sm:$0x1]
        %v4742 = vsel %vm236, %v4551, %v4741
        %4743 = vst [vmem:[%s233 + $0x98] sm:$0x1] %v4742
        %v4744 = vld [vmem:[%s233 + $0x9c] sm:$0xf]
        %v4745 = vsel %vm4652, %v4558, %v4744
        %4746 = vst [vmem:[%s233 + $0x9c] sm:$0xf] %v4745
        %4747 = vst.msk [vmem:[%s233 + $0xa0] sm:$0xf] %vm224, %v4567
        %v4748 = vld [vmem:[%s233 + $0xa4] sm:$0x1]
        %v4749 = vsel %vm236, %v4568, %v4748
        %4750 = vst [vmem:[%s233 + $0xa4] sm:$0x1] %v4749
        %v4751 = vld [vmem:[%s233 + $0xa8] sm:$0xf]
        %v4752 = vsel %vm4652, %v4575, %v4751
        %4753 = vst [vmem:[%s233 + $0xa8] sm:$0xf] %v4752
        %4754 = vst.msk [vmem:[%s233 + $0xac] sm:$0xf] %vm224, %v4584
        %v4755 = vld [vmem:[%s233 + $0xb0] sm:$0x1]
        %v4756 = vsel %vm236, %v4585, %v4755
        %4757 = vst [vmem:[%s233 + $0xb0] sm:$0x1] %v4756
        %v4758 = vld [vmem:[%s233 + $0xb4] sm:$0xf]
        %v4759 = vsel %vm4652, %v4592, %v4758
        %4760 = vst [vmem:[%s233 + $0xb4] sm:$0xf] %v4759
        %4761 = vst.msk [vmem:[%s233 + $0xb8] sm:$0xf] %vm224, %v4601
        %v4762 = vld [vmem:[%s233 + $0xbc] sm:$0x1]
        %v4763 = vsel %vm236, %v4602, %v4762
        %4764 = vst [vmem:[%s233 + $0xbc] sm:$0x1] %v4763
        %v4765 = vld [vmem:[#allocation2] sm:$0xf]
        %v4766 = vld [vmem:[#allocation2 + $0x4] sm:$0xf]
        %v4767 = vld [vmem:[#allocation2 + $0xc] sm:$0xf]
        %v4768 = vld [vmem:[#allocation2 + $0x10] sm:$0xf]
        %v4769 = vld [vmem:[#allocation2 + $0x18] sm:$0xf]
        %v4770 = vld [vmem:[#allocation2 + $0x1c] sm:$0xf]
        %v4771 = vld [vmem:[#allocation2 + $0x24] sm:$0xf]
        %v4772 = vld [vmem:[#allocation2 + $0x28] sm:$0xf]
        %v4773 = vld [vmem:[#allocation2 + $0x30] sm:$0xf]
        %v4774 = vld [vmem:[#allocation2 + $0x34] sm:$0xf]
        %v4775 = vld [vmem:[#allocation2 + $0x3c] sm:$0xf]
        %v4776 = vld [vmem:[#allocation2 + $0x40] sm:$0xf]
        %v4777 = vld [vmem:[#allocation2 + $0x48] sm:$0xf]
        %v4778 = vld [vmem:[#allocation2 + $0x4c] sm:$0xf]
        %v4779 = vld [vmem:[#allocation2 + $0x54] sm:$0xf]
        %v4780 = vld [vmem:[#allocation2 + $0x58] sm:$0xf]
        %v4781 = vld [vmem:[#allocation2 + $0x60] sm:$0xf]
        %v4782 = vld [vmem:[#allocation2 + $0x64] sm:$0xf]
        %v4783 = vld [vmem:[#allocation2 + $0x6c] sm:$0xf]
        %v4784 = vld [vmem:[#allocation2 + $0x70] sm:$0xf]
        %v4785 = vld [vmem:[#allocation2 + $0x78] sm:$0xf]
        %v4786 = vld [vmem:[#allocation2 + $0x7c] sm:$0xf]
        %v4787 = vld [vmem:[#allocation2 + $0x84] sm:$0xf]
        %v4788 = vld [vmem:[#allocation2 + $0x88] sm:$0xf]
        %v4789 = vld [vmem:[#allocation2 + $0x90] sm:$0xf]
        %v4790 = vld [vmem:[#allocation2 + $0x94] sm:$0xf]
        %v4791 = vld [vmem:[#allocation2 + $0x9c] sm:$0xf]
        %v4792 = vld [vmem:[#allocation2 + $0xa0] sm:$0xf]
        %v4793 = vld [vmem:[#allocation2 + $0xa8] sm:$0xf]
        %v4794 = vld [vmem:[#allocation2 + $0xac] sm:$0xf]
        %v4795 = vld [vmem:[#allocation2 + $0xb4] sm:$0xf]
        %v4796 = vld [vmem:[#allocation2 + $0xb8] sm:$0xf]
        %4797 = vst.msk [vmem:[#allocation3] sm:$0xf] %vm224, %v4765
        %4798 = vst.msk [vmem:[#allocation3 + $0x4] sm:$0xf] %vm224, %v4766
        %4799 = vst.msk [vmem:[#allocation3 + $0x8] sm:$0xf] %vm224, %v4767
        %4800 = vst.msk [vmem:[#allocation3 + $0xc] sm:$0xf] %vm224, %v4768
        %4801 = vst.msk [vmem:[#allocation3 + $0x10] sm:$0xf] %vm224, %v4769
        %4802 = vst.msk [vmem:[#allocation3 + $0x14] sm:$0xf] %vm224, %v4770
        %4803 = vst.msk [vmem:[#allocation3 + $0x18] sm:$0xf] %vm224, %v4771
        %4804 = vst.msk [vmem:[#allocation3 + $0x1c] sm:$0xf] %vm224, %v4772
        %4805 = vst.msk [vmem:[#allocation3 + $0x20] sm:$0xf] %vm224, %v4773
        %4806 = vst.msk [vmem:[#allocation3 + $0x24] sm:$0xf] %vm224, %v4774
        %4807 = vst.msk [vmem:[#allocation3 + $0x28] sm:$0xf] %vm224, %v4775
        %4808 = vst.msk [vmem:[#allocation3 + $0x2c] sm:$0xf] %vm224, %v4776
        %4809 = vst.msk [vmem:[#allocation3 + $0x30] sm:$0xf] %vm224, %v4777
        %4810 = vst.msk [vmem:[#allocation3 + $0x34] sm:$0xf] %vm224, %v4778
        %4811 = vst.msk [vmem:[#allocation3 + $0x38] sm:$0xf] %vm224, %v4779
        %4812 = vst.msk [vmem:[#allocation3 + $0x3c] sm:$0xf] %vm224, %v4780
        %4813 = vst.msk [vmem:[#allocation3 + $0x40] sm:$0xf] %vm224, %v4781
        %4814 = vst.msk [vmem:[#allocation3 + $0x44] sm:$0xf] %vm224, %v4782
        %4815 = vst.msk [vmem:[#allocation3 + $0x48] sm:$0xf] %vm224, %v4783
        %4816 = vst.msk [vmem:[#allocation3 + $0x4c] sm:$0xf] %vm224, %v4784
        %4817 = vst.msk [vmem:[#allocation3 + $0x50] sm:$0xf] %vm224, %v4785
        %4818 = vst.msk [vmem:[#allocation3 + $0x54] sm:$0xf] %vm224, %v4786
        %4819 = vst.msk [vmem:[#allocation3 + $0x58] sm:$0xf] %vm224, %v4787
        %4820 = vst.msk [vmem:[#allocation3 + $0x5c] sm:$0xf] %vm224, %v4788
        %4821 = vst.msk [vmem:[#allocation3 + $0x60] sm:$0xf] %vm224, %v4789
        %4822 = vst.msk [vmem:[#allocation3 + $0x64] sm:$0xf] %vm224, %v4790
        %4823 = vst.msk [vmem:[#allocation3 + $0x68] sm:$0xf] %vm224, %v4791
        %4824 = vst.msk [vmem:[#allocation3 + $0x6c] sm:$0xf] %vm224, %v4792
        %4825 = vst.msk [vmem:[#allocation3 + $0x70] sm:$0xf] %vm224, %v4793
        %4826 = vst.msk [vmem:[#allocation3 + $0x74] sm:$0xf] %vm224, %v4794
        %4827 = vst.msk [vmem:[#allocation3 + $0x78] sm:$0xf] %vm224, %v4795
        %4828 = vst.msk [vmem:[#allocation3 + $0x7c] sm:$0xf] %vm224, %v4796
        %v4829 = vld [vmem:[#allocation2] sm:$0xf]
        %v4830 = vld [vmem:[#allocation2 + $0x4] sm:$0xf]
        %v4831 = vld [vmem:[#allocation2 + $0x8] sm:$0x1]
        %v4832 = vld [vmem:[#allocation2 + $0xc] sm:$0xf]
        %v4833 = vld [vmem:[#allocation2 + $0x10] sm:$0xf]
        %v4834 = vld [vmem:[#allocation2 + $0x14] sm:$0x1]
        %v4835 = vld [vmem:[#allocation2 + $0x18] sm:$0xf]
        %v4836 = vld [vmem:[#allocation2 + $0x1c] sm:$0xf]
        %v4837 = vld [vmem:[#allocation2 + $0x20] sm:$0x1]
        %v4838 = vld [vmem:[#allocation2 + $0x24] sm:$0xf]
        %v4839 = vld [vmem:[#allocation2 + $0x28] sm:$0xf]
        %v4840 = vld [vmem:[#allocation2 + $0x2c] sm:$0x1]
        %v4841 = vld [vmem:[#allocation2 + $0x30] sm:$0xf]
        %v4842 = vld [vmem:[#allocation2 + $0x34] sm:$0xf]
        %v4843 = vld [vmem:[#allocation2 + $0x38] sm:$0x1]
        %v4844 = vld [vmem:[#allocation2 + $0x3c] sm:$0xf]
        %v4845 = vld [vmem:[#allocation2 + $0x40] sm:$0xf]
        %v4846 = vld [vmem:[#allocation2 + $0x44] sm:$0x1]
        %v4847 = vld [vmem:[#allocation2 + $0x48] sm:$0xf]
        %v4848 = vld [vmem:[#allocation2 + $0x4c] sm:$0xf]
        %v4849 = vld [vmem:[#allocation2 + $0x50] sm:$0x1]
        %v4850 = vld [vmem:[#allocation2 + $0x54] sm:$0xf]
        %v4851 = vld [vmem:[#allocation2 + $0x58] sm:$0xf]
        %v4852 = vld [vmem:[#allocation2 + $0x5c] sm:$0x1]
        %v4853 = vld [vmem:[#allocation2 + $0x60] sm:$0xf]
        %v4854 = vld [vmem:[#allocation2 + $0x64] sm:$0xf]
        %v4855 = vld [vmem:[#allocation2 + $0x68] sm:$0x1]
        %v4856 = vld [vmem:[#allocation2 + $0x6c] sm:$0xf]
        %v4857 = vld [vmem:[#allocation2 + $0x70] sm:$0xf]
        %v4858 = vld [vmem:[#allocation2 + $0x74] sm:$0x1]
        %v4859 = vld [vmem:[#allocation2 + $0x78] sm:$0xf]
        %v4860 = vld [vmem:[#allocation2 + $0x7c] sm:$0xf]
        %v4861 = vld [vmem:[#allocation2 + $0x80] sm:$0x1]
        %v4862 = vld [vmem:[#allocation2 + $0x84] sm:$0xf]
        %v4863 = vld [vmem:[#allocation2 + $0x88] sm:$0xf]
        %v4864 = vld [vmem:[#allocation2 + $0x8c] sm:$0x1]
        %v4865 = vld [vmem:[#allocation2 + $0x90] sm:$0xf]
        %v4866 = vld [vmem:[#allocation2 + $0x94] sm:$0xf]
        %v4867 = vld [vmem:[#allocation2 + $0x98] sm:$0x1]
        %v4868 = vld [vmem:[#allocation2 + $0x9c] sm:$0xf]
        %v4869 = vld [vmem:[#allocation2 + $0xa0] sm:$0xf]
        %v4870 = vld [vmem:[#allocation2 + $0xa4] sm:$0x1]
        %v4871 = vld [vmem:[#allocation2 + $0xa8] sm:$0xf]
        %v4872 = vld [vmem:[#allocation2 + $0xac] sm:$0xf]
        %v4873 = vld [vmem:[#allocation2 + $0xb0] sm:$0x1]
        %v4874 = vld [vmem:[#allocation2 + $0xb4] sm:$0xf]
        %v4875 = vld [vmem:[#allocation2 + $0xb8] sm:$0xf]
        %v4876 = vld [vmem:[#allocation2 + $0xbc] sm:$0x1]
        %v4878 = vshrl.u32 %v4829, 16
        %v4880 = vrot.slane %v4878, 4
        %v4881 = vshll.u32 %v4829, 16
        %v4883 = vrot.slane %v4881, 5
        %v4884 = vor.u32 %v4880, %v4883
        %v4885 = vrot.slane %v4884, 4
        %v4887 = vshll.u32 %v4830, 16
        %v4889 = vrot.slane %v4887, 5
        %v4890 = vsel %vm952, %v4885, %v4889
        %v4891 = vshrl.u32 %v4830, 16
        %v4893 = vrot.slane %v4891, 4
        %v4894 = vor.u32 %v4893, %v4889
        %v4895 = vrot.slane %v4894, 4
        %v4897 = vshll.u32 %v4831, 16
        %v4899 = vrot.slane %v4897, 5
        %v4900 = vsel %vm952, %v4895, %v4899
        %v4902 = vshrl.u32 %v4832, 16
        %v4904 = vrot.slane %v4902, 4
        %v4905 = vshll.u32 %v4832, 16
        %v4907 = vrot.slane %v4905, 5
        %v4908 = vor.u32 %v4904, %v4907
        %v4909 = vrot.slane %v4908, 4
        %v4911 = vshll.u32 %v4833, 16
        %v4913 = vrot.slane %v4911, 5
        %v4914 = vsel %vm952, %v4909, %v4913
        %v4915 = vshrl.u32 %v4833, 16
        %v4917 = vrot.slane %v4915, 4
        %v4918 = vor.u32 %v4917, %v4913
        %v4919 = vrot.slane %v4918, 4
        %v4921 = vshll.u32 %v4834, 16
        %v4923 = vrot.slane %v4921, 5
        %v4924 = vsel %vm952, %v4919, %v4923
        %v4926 = vshrl.u32 %v4835, 16
        %v4928 = vrot.slane %v4926, 4
        %v4929 = vshll.u32 %v4835, 16
        %v4931 = vrot.slane %v4929, 5
        %v4932 = vor.u32 %v4928, %v4931
        %v4933 = vrot.slane %v4932, 4
        %v4935 = vshll.u32 %v4836, 16
        %v4937 = vrot.slane %v4935, 5
        %v4938 = vsel %vm952, %v4933, %v4937
        %v4939 = vshrl.u32 %v4836, 16
        %v4941 = vrot.slane %v4939, 4
        %v4942 = vor.u32 %v4941, %v4937
        %v4943 = vrot.slane %v4942, 4
        %v4945 = vshll.u32 %v4837, 16
        %v4947 = vrot.slane %v4945, 5
        %v4948 = vsel %vm952, %v4943, %v4947
        %v4950 = vshrl.u32 %v4838, 16
        %v4952 = vrot.slane %v4950, 4
        %v4953 = vshll.u32 %v4838, 16
        %v4955 = vrot.slane %v4953, 5
        %v4956 = vor.u32 %v4952, %v4955
        %v4957 = vrot.slane %v4956, 4
        %v4959 = vshll.u32 %v4839, 16
        %v4961 = vrot.slane %v4959, 5
        %v4962 = vsel %vm952, %v4957, %v4961
        %v4963 = vshrl.u32 %v4839, 16
        %v4965 = vrot.slane %v4963, 4
        %v4966 = vor.u32 %v4965, %v4961
        %v4967 = vrot.slane %v4966, 4
        %v4969 = vshll.u32 %v4840, 16
        %v4971 = vrot.slane %v4969, 5
        %v4972 = vsel %vm952, %v4967, %v4971
        %v4974 = vshrl.u32 %v4841, 16
        %v4976 = vrot.slane %v4974, 4
        %v4977 = vshll.u32 %v4841, 16
        %v4979 = vrot.slane %v4977, 5
        %v4980 = vor.u32 %v4976, %v4979
        %v4981 = vrot.slane %v4980, 4
        %v4983 = vshll.u32 %v4842, 16
        %v4985 = vrot.slane %v4983, 5
        %v4986 = vsel %vm952, %v4981, %v4985
        %v4987 = vshrl.u32 %v4842, 16
        %v4989 = vrot.slane %v4987, 4
        %v4990 = vor.u32 %v4989, %v4985
        %v4991 = vrot.slane %v4990, 4
        %v4993 = vshll.u32 %v4843, 16
        %v4995 = vrot.slane %v4993, 5
        %v4996 = vsel %vm952, %v4991, %v4995
        %v4998 = vshrl.u32 %v4844, 16
        %v5000 = vrot.slane %v4998, 4
        %v5001 = vshll.u32 %v4844, 16
        %v5003 = vrot.slane %v5001, 5
        %v5004 = vor.u32 %v5000, %v5003
        %v5005 = vrot.slane %v5004, 4
        %v5007 = vshll.u32 %v4845, 16
        %v5009 = vrot.slane %v5007, 5
        %v5010 = vsel %vm952, %v5005, %v5009
        %v5011 = vshrl.u32 %v4845, 16
        %v5013 = vrot.slane %v5011, 4
        %v5014 = vor.u32 %v5013, %v5009
        %v5015 = vrot.slane %v5014, 4
        %v5017 = vshll.u32 %v4846, 16
        %v5019 = vrot.slane %v5017, 5
        %v5020 = vsel %vm952, %v5015, %v5019
        %v5022 = vshrl.u32 %v4847, 16
        %v5024 = vrot.slane %v5022, 4
        %v5025 = vshll.u32 %v4847, 16
        %v5027 = vrot.slane %v5025, 5
        %v5028 = vor.u32 %v5024, %v5027
        %v5029 = vrot.slane %v5028, 4
        %v5031 = vshll.u32 %v4848, 16
        %v5033 = vrot.slane %v5031, 5
        %v5034 = vsel %vm952, %v5029, %v5033
        %v5035 = vshrl.u32 %v4848, 16
        %v5037 = vrot.slane %v5035, 4
        %v5038 = vor.u32 %v5037, %v5033
        %v5039 = vrot.slane %v5038, 4
        %v5041 = vshll.u32 %v4849, 16
        %v5043 = vrot.slane %v5041, 5
        %v5044 = vsel %vm952, %v5039, %v5043
        %v5046 = vshrl.u32 %v4850, 16
        %v5048 = vrot.slane %v5046, 4
        %v5049 = vshll.u32 %v4850, 16
        %v5051 = vrot.slane %v5049, 5
        %v5052 = vor.u32 %v5048, %v5051
        %v5053 = vrot.slane %v5052, 4
        %v5055 = vshll.u32 %v4851, 16
        %v5057 = vrot.slane %v5055, 5
        %v5058 = vsel %vm952, %v5053, %v5057
        %v5059 = vshrl.u32 %v4851, 16
        %v5061 = vrot.slane %v5059, 4
        %v5062 = vor.u32 %v5061, %v5057
        %v5063 = vrot.slane %v5062, 4
        %v5065 = vshll.u32 %v4852, 16
        %v5067 = vrot.slane %v5065, 5
        %v5068 = vsel %vm952, %v5063, %v5067
        %v5070 = vshrl.u32 %v4853, 16
        %v5072 = vrot.slane %v5070, 4
        %v5073 = vshll.u32 %v4853, 16
        %v5075 = vrot.slane %v5073, 5
        %v5076 = vor.u32 %v5072, %v5075
        %v5077 = vrot.slane %v5076, 4
        %v5079 = vshll.u32 %v4854, 16
        %v5081 = vrot.slane %v5079, 5
        %v5082 = vsel %vm952, %v5077, %v5081
        %v5083 = vshrl.u32 %v4854, 16
        %v5085 = vrot.slane %v5083, 4
        %v5086 = vor.u32 %v5085, %v5081
        %v5087 = vrot.slane %v5086, 4
        %v5089 = vshll.u32 %v4855, 16
        %v5091 = vrot.slane %v5089, 5
        %v5092 = vsel %vm952, %v5087, %v5091
        %v5094 = vshrl.u32 %v4856, 16
        %v5096 = vrot.slane %v5094, 4
        %v5097 = vshll.u32 %v4856, 16
        %v5099 = vrot.slane %v5097, 5
        %v5100 = vor.u32 %v5096, %v5099
        %v5101 = vrot.slane %v5100, 4
        %v5103 = vshll.u32 %v4857, 16
        %v5105 = vrot.slane %v5103, 5
        %v5106 = vsel %vm952, %v5101, %v5105
        %v5107 = vshrl.u32 %v4857, 16
        %v5109 = vrot.slane %v5107, 4
        %v5110 = vor.u32 %v5109, %v5105
        %v5111 = vrot.slane %v5110, 4
        %v5113 = vshll.u32 %v4858, 16
        %v5115 = vrot.slane %v5113, 5
        %v5116 = vsel %vm952, %v5111, %v5115
        %v5118 = vshrl.u32 %v4859, 16
        %v5120 = vrot.slane %v5118, 4
        %v5121 = vshll.u32 %v4859, 16
        %v5123 = vrot.slane %v5121, 5
        %v5124 = vor.u32 %v5120, %v5123
        %v5125 = vrot.slane %v5124, 4
        %v5127 = vshll.u32 %v4860, 16
        %v5129 = vrot.slane %v5127, 5
        %v5130 = vsel %vm952, %v5125, %v5129
        %v5131 = vshrl.u32 %v4860, 16
        %v5133 = vrot.slane %v5131, 4
        %v5134 = vor.u32 %v5133, %v5129
        %v5135 = vrot.slane %v5134, 4
        %v5137 = vshll.u32 %v4861, 16
        %v5139 = vrot.slane %v5137, 5
        %v5140 = vsel %vm952, %v5135, %v5139
        %v5142 = vshrl.u32 %v4862, 16
        %v5144 = vrot.slane %v5142, 4
        %v5145 = vshll.u32 %v4862, 16
        %v5147 = vrot.slane %v5145, 5
        %v5148 = vor.u32 %v5144, %v5147
        %v5149 = vrot.slane %v5148, 4
        %v5151 = vshll.u32 %v4863, 16
        %v5153 = vrot.slane %v5151, 5
        %v5154 = vsel %vm952, %v5149, %v5153
        %v5155 = vshrl.u32 %v4863, 16
        %v5157 = vrot.slane %v5155, 4
        %v5158 = vor.u32 %v5157, %v5153
        %v5159 = vrot.slane %v5158, 4
        %v5161 = vshll.u32 %v4864, 16
        %v5163 = vrot.slane %v5161, 5
        %v5164 = vsel %vm952, %v5159, %v5163
        %v5166 = vshrl.u32 %v4865, 16
        %v5168 = vrot.slane %v5166, 4
        %v5169 = vshll.u32 %v4865, 16
        %v5171 = vrot.slane %v5169, 5
        %v5172 = vor.u32 %v5168, %v5171
        %v5173 = vrot.slane %v5172, 4
        %v5175 = vshll.u32 %v4866, 16
        %v5177 = vrot.slane %v5175, 5
        %v5178 = vsel %vm952, %v5173, %v5177
        %v5179 = vshrl.u32 %v4866, 16
        %v5181 = vrot.slane %v5179, 4
        %v5182 = vor.u32 %v5181, %v5177
        %v5183 = vrot.slane %v5182, 4
        %v5185 = vshll.u32 %v4867, 16
        %v5187 = vrot.slane %v5185, 5
        %v5188 = vsel %vm952, %v5183, %v5187
        %v5190 = vshrl.u32 %v4868, 16
        %v5192 = vrot.slane %v5190, 4
        %v5193 = vshll.u32 %v4868, 16
        %v5195 = vrot.slane %v5193, 5
        %v5196 = vor.u32 %v5192, %v5195
        %v5197 = vrot.slane %v5196, 4
        %v5199 = vshll.u32 %v4869, 16
        %v5201 = vrot.slane %v5199, 5
        %v5202 = vsel %vm952, %v5197, %v5201
        %v5203 = vshrl.u32 %v4869, 16
        %v5205 = vrot.slane %v5203, 4
        %v5206 = vor.u32 %v5205, %v5201
        %v5207 = vrot.slane %v5206, 4
        %v5209 = vshll.u32 %v4870, 16
        %v5211 = vrot.slane %v5209, 5
        %v5212 = vsel %vm952, %v5207, %v5211
        %v5214 = vshrl.u32 %v4871, 16
        %v5216 = vrot.slane %v5214, 4
        %v5217 = vshll.u32 %v4871, 16
        %v5219 = vrot.slane %v5217, 5
        %v5220 = vor.u32 %v5216, %v5219
        %v5221 = vrot.slane %v5220, 4
        %v5223 = vshll.u32 %v4872, 16
        %v5225 = vrot.slane %v5223, 5
        %v5226 = vsel %vm952, %v5221, %v5225
        %v5227 = vshrl.u32 %v4872, 16
        %v5229 = vrot.slane %v5227, 4
        %v5230 = vor.u32 %v5229, %v5225
        %v5231 = vrot.slane %v5230, 4
        %v5233 = vshll.u32 %v4873, 16
        %v5235 = vrot.slane %v5233, 5
        %v5236 = vsel %vm952, %v5231, %v5235
        %v5238 = vshrl.u32 %v4874, 16
        %v5240 = vrot.slane %v5238, 4
        %v5241 = vshll.u32 %v4874, 16
        %v5243 = vrot.slane %v5241, 5
        %v5244 = vor.u32 %v5240, %v5243
        %v5245 = vrot.slane %v5244, 4
        %v5247 = vshll.u32 %v4875, 16
        %v5249 = vrot.slane %v5247, 5
        %v5250 = vsel %vm952, %v5245, %v5249
        %v5251 = vshrl.u32 %v4875, 16
        %v5253 = vrot.slane %v5251, 4
        %v5254 = vor.u32 %v5253, %v5249
        %v5255 = vrot.slane %v5254, 4
        %v5257 = vshll.u32 %v4876, 16
        %v5259 = vrot.slane %v5257, 5
        %v5260 = vsel %vm952, %v5255, %v5259
        %5261 = vrot.lane.b32.xlu0 %v4890, 8
        %v5262 = vpop.permute.xlu0 %5261
        %5263 = vrot.lane.b32.xlu0 %v4900, 8
        %v5264 = vpop.permute.xlu0 %5263
        %5265 = vrot.lane.b32.xlu0 %v4914, 8
        %v5266 = vpop.permute.xlu0 %5265
        %5267 = vrot.lane.b32.xlu0 %v4924, 8
        %v5268 = vpop.permute.xlu0 %5267
        %5269 = vrot.lane.b32.xlu0 %v4938, 8
        %v5270 = vpop.permute.xlu0 %5269
        %5271 = vrot.lane.b32.xlu0 %v4948, 8
        %v5272 = vpop.permute.xlu0 %5271
        %5273 = vrot.lane.b32.xlu0 %v4962, 8
        %v5274 = vpop.permute.xlu0 %5273
        %5275 = vrot.lane.b32.xlu0 %v4972, 8
        %v5276 = vpop.permute.xlu0 %5275
        %5277 = vrot.lane.b32.xlu0 %v4986, 8
        %v5278 = vpop.permute.xlu0 %5277
        %5279 = vrot.lane.b32.xlu0 %v4996, 8
        %v5280 = vpop.permute.xlu0 %5279
        %5281 = vrot.lane.b32.xlu0 %v5010, 8
        %v5282 = vpop.permute.xlu0 %5281
        %5283 = vrot.lane.b32.xlu0 %v5020, 8
        %v5284 = vpop.permute.xlu0 %5283
        %5285 = vrot.lane.b32.xlu0 %v5034, 8
        %v5286 = vpop.permute.xlu0 %5285
        %5287 = vrot.lane.b32.xlu0 %v5044, 8
        %v5288 = vpop.permute.xlu0 %5287
        %5289 = vrot.lane.b32.xlu0 %v5058, 8
        %v5290 = vpop.permute.xlu0 %5289
        %5291 = vrot.lane.b32.xlu0 %v5068, 8
        %v5292 = vpop.permute.xlu0 %5291
        %5293 = vrot.lane.b32.xlu0 %v5082, 8
        %v5294 = vpop.permute.xlu0 %5293
        %5295 = vrot.lane.b32.xlu0 %v5092, 8
        %v5296 = vpop.permute.xlu0 %5295
        %5297 = vrot.lane.b32.xlu0 %v5106, 8
        %v5298 = vpop.permute.xlu0 %5297
        %5299 = vrot.lane.b32.xlu0 %v5116, 8
        %v5300 = vpop.permute.xlu0 %5299
        %5301 = vrot.lane.b32.xlu0 %v5130, 8
        %v5302 = vpop.permute.xlu0 %5301
        %5303 = vrot.lane.b32.xlu0 %v5140, 8
        %v5304 = vpop.permute.xlu0 %5303
        %5305 = vrot.lane.b32.xlu0 %v5154, 8
        %v5306 = vpop.permute.xlu0 %5305
        %5307 = vrot.lane.b32.xlu0 %v5164, 8
        %v5308 = vpop.permute.xlu0 %5307
        %5309 = vrot.lane.b32.xlu0 %v5178, 8
        %v5310 = vpop.permute.xlu0 %5309
        %5311 = vrot.lane.b32.xlu0 %v5188, 8
        %v5312 = vpop.permute.xlu0 %5311
        %5313 = vrot.lane.b32.xlu0 %v5202, 8
        %v5314 = vpop.permute.xlu0 %5313
        %5315 = vrot.lane.b32.xlu0 %v5212, 8
        %v5316 = vpop.permute.xlu0 %5315
        %5317 = vrot.lane.b32.xlu0 %v5226, 8
        %v5318 = vpop.permute.xlu0 %5317
        %5319 = vrot.lane.b32.xlu0 %v5236, 8
        %v5320 = vpop.permute.xlu0 %5319
        %5321 = vrot.lane.b32.xlu0 %v5250, 8
        %v5322 = vpop.permute.xlu0 %5321
        %5323 = vrot.lane.b32.xlu0 %v5260, 8
        %v5324 = vpop.permute.xlu0 %5323
        %vm5357 = vcmask 126016
        %5358 = vst.msk [vmem:[#allocation3] sm:$0xf] %vm5357, %v5262
        %5359 = vst.msk [vmem:[#allocation3 + $0x4] sm:$0xf] %vm5357, %v5264
        %5360 = vst.msk [vmem:[#allocation3 + $0x8] sm:$0xf] %vm5357, %v5266
        %5361 = vst.msk [vmem:[#allocation3 + $0xc] sm:$0xf] %vm5357, %v5268
        %5362 = vst.msk [vmem:[#allocation3 + $0x10] sm:$0xf] %vm5357, %v5270
        %5363 = vst.msk [vmem:[#allocation3 + $0x14] sm:$0xf] %vm5357, %v5272
        %5364 = vst.msk [vmem:[#allocation3 + $0x18] sm:$0xf] %vm5357, %v5274
        %5365 = vst.msk [vmem:[#allocation3 + $0x1c] sm:$0xf] %vm5357, %v5276
        %5366 = vst.msk [vmem:[#allocation3 + $0x20] sm:$0xf] %vm5357, %v5278
        %5367 = vst.msk [vmem:[#allocation3 + $0x24] sm:$0xf] %vm5357, %v5280
        %5368 = vst.msk [vmem:[#allocation3 + $0x28] sm:$0xf] %vm5357, %v5282
        %5369 = vst.msk [vmem:[#allocation3 + $0x2c] sm:$0xf] %vm5357, %v5284
        %5370 = vst.msk [vmem:[#allocation3 + $0x30] sm:$0xf] %vm5357, %v5286
        %5371 = vst.msk [vmem:[#allocation3 + $0x34] sm:$0xf] %vm5357, %v5288
        %5372 = vst.msk [vmem:[#allocation3 + $0x38] sm:$0xf] %vm5357, %v5290
        %5373 = vst.msk [vmem:[#allocation3 + $0x3c] sm:$0xf] %vm5357, %v5292
        %5374 = vst.msk [vmem:[#allocation3 + $0x40] sm:$0xf] %vm5357, %v5294
        %5375 = vst.msk [vmem:[#allocation3 + $0x44] sm:$0xf] %vm5357, %v5296
        %5376 = vst.msk [vmem:[#allocation3 + $0x48] sm:$0xf] %vm5357, %v5298
        %5377 = vst.msk [vmem:[#allocation3 + $0x4c] sm:$0xf] %vm5357, %v5300
        %5378 = vst.msk [vmem:[#allocation3 + $0x50] sm:$0xf] %vm5357, %v5302
        %5379 = vst.msk [vmem:[#allocation3 + $0x54] sm:$0xf] %vm5357, %v5304
        %5380 = vst.msk [vmem:[#allocation3 + $0x58] sm:$0xf] %vm5357, %v5306
        %5381 = vst.msk [vmem:[#allocation3 + $0x5c] sm:$0xf] %vm5357, %v5308
        %5382 = vst.msk [vmem:[#allocation3 + $0x60] sm:$0xf] %vm5357, %v5310
        %5383 = vst.msk [vmem:[#allocation3 + $0x64] sm:$0xf] %vm5357, %v5312
        %5384 = vst.msk [vmem:[#allocation3 + $0x68] sm:$0xf] %vm5357, %v5314
        %5385 = vst.msk [vmem:[#allocation3 + $0x6c] sm:$0xf] %vm5357, %v5316
        %5386 = vst.msk [vmem:[#allocation3 + $0x70] sm:$0xf] %vm5357, %v5318
        %5387 = vst.msk [vmem:[#allocation3 + $0x74] sm:$0xf] %vm5357, %v5320
        %5388 = vst.msk [vmem:[#allocation3 + $0x78] sm:$0xf] %vm5357, %v5322
        %5389 = vst.msk [vmem:[#allocation3 + $0x7c] sm:$0xf] %vm5357, %v5324
        %v5390 = vld [vmem:[#allocation2] sm:$0xe]
        %v5391 = vld [vmem:[#allocation2 + $0x4] sm:$0xf]
        %v5392 = vld [vmem:[#allocation2 + $0x8] sm:$0x1]
        %v5393 = vld [vmem:[#allocation2 + $0xc] sm:$0xe]
        %v5394 = vld [vmem:[#allocation2 + $0x10] sm:$0xf]
        %v5395 = vld [vmem:[#allocation2 + $0x14] sm:$0x1]
        %v5396 = vld [vmem:[#allocation2 + $0x18] sm:$0xe]
        %v5397 = vld [vmem:[#allocation2 + $0x1c] sm:$0xf]
        %v5398 = vld [vmem:[#allocation2 + $0x20] sm:$0x1]
        %v5399 = vld [vmem:[#allocation2 + $0x24] sm:$0xe]
        %v5400 = vld [vmem:[#allocation2 + $0x28] sm:$0xf]
        %v5401 = vld [vmem:[#allocation2 + $0x2c] sm:$0x1]
        %v5402 = vld [vmem:[#allocation2 + $0x30] sm:$0xe]
        %v5403 = vld [vmem:[#allocation2 + $0x34] sm:$0xf]
        %v5404 = vld [vmem:[#allocation2 + $0x38] sm:$0x1]
        %v5405 = vld [vmem:[#allocation2 + $0x3c] sm:$0xe]
        %v5406 = vld [vmem:[#allocation2 + $0x40] sm:$0xf]
        %v5407 = vld [vmem:[#allocation2 + $0x44] sm:$0x1]
        %v5408 = vld [vmem:[#allocation2 + $0x48] sm:$0xe]
        %v5409 = vld [vmem:[#allocation2 + $0x4c] sm:$0xf]
        %v5410 = vld [vmem:[#allocation2 + $0x50] sm:$0x1]
        %v5411 = vld [vmem:[#allocation2 + $0x54] sm:$0xe]
        %v5412 = vld [vmem:[#allocation2 + $0x58] sm:$0xf]
        %v5413 = vld [vmem:[#allocation2 + $0x5c] sm:$0x1]
        %v5414 = vld [vmem:[#allocation2 + $0x60] sm:$0xe]
        %v5415 = vld [vmem:[#allocation2 + $0x64] sm:$0xf]
        %v5416 = vld [vmem:[#allocation2 + $0x68] sm:$0x1]
        %v5417 = vld [vmem:[#allocation2 + $0x6c] sm:$0xe]
        %v5418 = vld [vmem:[#allocation2 + $0x70] sm:$0xf]
        %v5419 = vld [vmem:[#allocation2 + $0x74] sm:$0x1]
        %v5420 = vld [vmem:[#allocation2 + $0x78] sm:$0xe]
        %v5421 = vld [vmem:[#allocation2 + $0x7c] sm:$0xf]
        %v5422 = vld [vmem:[#allocation2 + $0x80] sm:$0x1]
        %v5423 = vld [vmem:[#allocation2 + $0x84] sm:$0xe]
        %v5424 = vld [vmem:[#allocation2 + $0x88] sm:$0xf]
        %v5425 = vld [vmem:[#allocation2 + $0x8c] sm:$0x1]
        %v5426 = vld [vmem:[#allocation2 + $0x90] sm:$0xe]
        %v5427 = vld [vmem:[#allocation2 + $0x94] sm:$0xf]
        %v5428 = vld [vmem:[#allocation2 + $0x98] sm:$0x1]
        %v5429 = vld [vmem:[#allocation2 + $0x9c] sm:$0xe]
        %v5430 = vld [vmem:[#allocation2 + $0xa0] sm:$0xf]
        %v5431 = vld [vmem:[#allocation2 + $0xa4] sm:$0x1]
        %v5432 = vld [vmem:[#allocation2 + $0xa8] sm:$0xe]
        %v5433 = vld [vmem:[#allocation2 + $0xac] sm:$0xf]
        %v5434 = vld [vmem:[#allocation2 + $0xb0] sm:$0x1]
        %v5435 = vld [vmem:[#allocation2 + $0xb4] sm:$0xe]
        %v5436 = vld [vmem:[#allocation2 + $0xb8] sm:$0xf]
        %v5437 = vld [vmem:[#allocation2 + $0xbc] sm:$0x1]
        %v5486 = vrot.slane %v5390, 5
        %v5487 = vrot.slane %v5486, 4
        %v5488 = vrot.slane %v5391, 5
        %v5489 = vsel %vm1564, %v5487, %v5488
        %v5490 = vrot.slane %v5488, 4
        %v5491 = vrot.slane %v5392, 5
        %v5492 = vsel %vm1564, %v5490, %v5491
        %v5493 = vrot.slane %v5393, 5
        %v5494 = vrot.slane %v5493, 4
        %v5495 = vrot.slane %v5394, 5
        %v5496 = vsel %vm1564, %v5494, %v5495
        %v5497 = vrot.slane %v5495, 4
        %v5498 = vrot.slane %v5395, 5
        %v5499 = vsel %vm1564, %v5497, %v5498
        %v5500 = vrot.slane %v5396, 5
        %v5501 = vrot.slane %v5500, 4
        %v5502 = vrot.slane %v5397, 5
        %v5503 = vsel %vm1564, %v5501, %v5502
        %v5504 = vrot.slane %v5502, 4
        %v5505 = vrot.slane %v5398, 5
        %v5506 = vsel %vm1564, %v5504, %v5505
        %v5507 = vrot.slane %v5399, 5
        %v5508 = vrot.slane %v5507, 4
        %v5509 = vrot.slane %v5400, 5
        %v5510 = vsel %vm1564, %v5508, %v5509
        %v5511 = vrot.slane %v5509, 4
        %v5512 = vrot.slane %v5401, 5
        %v5513 = vsel %vm1564, %v5511, %v5512
        %v5514 = vrot.slane %v5402, 5
        %v5515 = vrot.slane %v5514, 4
        %v5516 = vrot.slane %v5403, 5
        %v5517 = vsel %vm1564, %v5515, %v5516
        %v5518 = vrot.slane %v5516, 4
        %v5519 = vrot.slane %v5404, 5
        %v5520 = vsel %vm1564, %v5518, %v5519
        %v5521 = vrot.slane %v5405, 5
        %v5522 = vrot.slane %v5521, 4
        %v5523 = vrot.slane %v5406, 5
        %v5524 = vsel %vm1564, %v5522, %v5523
        %v5525 = vrot.slane %v5523, 4
        %v5526 = vrot.slane %v5407, 5
        %v5527 = vsel %vm1564, %v5525, %v5526
        %v5528 = vrot.slane %v5408, 5
        %v5529 = vrot.slane %v5528, 4
        %v5530 = vrot.slane %v5409, 5
        %v5531 = vsel %vm1564, %v5529, %v5530
        %v5532 = vrot.slane %v5530, 4
        %v5533 = vrot.slane %v5410, 5
        %v5534 = vsel %vm1564, %v5532, %v5533
        %v5535 = vrot.slane %v5411, 5
        %v5536 = vrot.slane %v5535, 4
        %v5537 = vrot.slane %v5412, 5
        %v5538 = vsel %vm1564, %v5536, %v5537
        %v5539 = vrot.slane %v5537, 4
        %v5540 = vrot.slane %v5413, 5
        %v5541 = vsel %vm1564, %v5539, %v5540
        %v5542 = vrot.slane %v5414, 5
        %v5543 = vrot.slane %v5542, 4
        %v5544 = vrot.slane %v5415, 5
        %v5545 = vsel %vm1564, %v5543, %v5544
        %v5546 = vrot.slane %v5544, 4
        %v5547 = vrot.slane %v5416, 5
        %v5548 = vsel %vm1564, %v5546, %v5547
        %v5549 = vrot.slane %v5417, 5
        %v5550 = vrot.slane %v5549, 4
        %v5551 = vrot.slane %v5418, 5
        %v5552 = vsel %vm1564, %v5550, %v5551
        %v5553 = vrot.slane %v5551, 4
        %v5554 = vrot.slane %v5419, 5
        %v5555 = vsel %vm1564, %v5553, %v5554
        %v5556 = vrot.slane %v5420, 5
        %v5557 = vrot.slane %v5556, 4
        %v5558 = vrot.slane %v5421, 5
        %v5559 = vsel %vm1564, %v5557, %v5558
        %v5560 = vrot.slane %v5558, 4
        %v5561 = vrot.slane %v5422, 5
        %v5562 = vsel %vm1564, %v5560, %v5561
        %v5563 = vrot.slane %v5423, 5
        %v5564 = vrot.slane %v5563, 4
        %v5565 = vrot.slane %v5424, 5
        %v5566 = vsel %vm1564, %v5564, %v5565
        %v5567 = vrot.slane %v5565, 4
        %v5568 = vrot.slane %v5425, 5
        %v5569 = vsel %vm1564, %v5567, %v5568
        %v5570 = vrot.slane %v5426, 5
        %v5571 = vrot.slane %v5570, 4
        %v5572 = vrot.slane %v5427, 5
        %v5573 = vsel %vm1564, %v5571, %v5572
        %v5574 = vrot.slane %v5572, 4
        %v5575 = vrot.slane %v5428, 5
        %v5576 = vsel %vm1564, %v5574, %v5575
        %v5577 = vrot.slane %v5429, 5
        %v5578 = vrot.slane %v5577, 4
        %v5579 = vrot.slane %v5430, 5
        %v5580 = vsel %vm1564, %v5578, %v5579
        %v5581 = vrot.slane %v5579, 4
        %v5582 = vrot.slane %v5431, 5
        %v5583 = vsel %vm1564, %v5581, %v5582
        %v5584 = vrot.slane %v5432, 5
        %v5585 = vrot.slane %v5584, 4
        %v5586 = vrot.slane %v5433, 5
        %v5587 = vsel %vm1564, %v5585, %v5586
        %v5588 = vrot.slane %v5586, 4
        %v5589 = vrot.slane %v5434, 5
        %v5590 = vsel %vm1564, %v5588, %v5589
        %v5591 = vrot.slane %v5435, 5
        %v5592 = vrot.slane %v5591, 4
        %v5593 = vrot.slane %v5436, 5
        %v5594 = vsel %vm1564, %v5592, %v5593
        %v5595 = vrot.slane %v5593, 4
        %v5596 = vrot.slane %v5437, 5
        %v5597 = vsel %vm1564, %v5595, %v5596
        %5598 = vrot.lane.b32.xlu0 %v5489, 16
        %v5599 = vpop.permute.xlu0 %5598
        %5600 = vrot.lane.b32.xlu0 %v5492, 16
        %v5601 = vpop.permute.xlu0 %5600
        %5602 = vrot.lane.b32.xlu0 %v5496, 16
        %v5603 = vpop.permute.xlu0 %5602
        %5604 = vrot.lane.b32.xlu0 %v5499, 16
        %v5605 = vpop.permute.xlu0 %5604
        %5606 = vrot.lane.b32.xlu0 %v5503, 16
        %v5607 = vpop.permute.xlu0 %5606
        %5608 = vrot.lane.b32.xlu0 %v5506, 16
        %v5609 = vpop.permute.xlu0 %5608
        %5610 = vrot.lane.b32.xlu0 %v5510, 16
        %v5611 = vpop.permute.xlu0 %5610
        %5612 = vrot.lane.b32.xlu0 %v5513, 16
        %v5613 = vpop.permute.xlu0 %5612
        %5614 = vrot.lane.b32.xlu0 %v5517, 16
        %v5615 = vpop.permute.xlu0 %5614
        %5616 = vrot.lane.b32.xlu0 %v5520, 16
        %v5617 = vpop.permute.xlu0 %5616
        %5618 = vrot.lane.b32.xlu0 %v5524, 16
        %v5619 = vpop.permute.xlu0 %5618
        %5620 = vrot.lane.b32.xlu0 %v5527, 16
        %v5621 = vpop.permute.xlu0 %5620
        %5622 = vrot.lane.b32.xlu0 %v5531, 16
        %v5623 = vpop.permute.xlu0 %5622
        %5624 = vrot.lane.b32.xlu0 %v5534, 16
        %v5625 = vpop.permute.xlu0 %5624
        %5626 = vrot.lane.b32.xlu0 %v5538, 16
        %v5627 = vpop.permute.xlu0 %5626
        %5628 = vrot.lane.b32.xlu0 %v5541, 16
        %v5629 = vpop.permute.xlu0 %5628
        %5630 = vrot.lane.b32.xlu0 %v5545, 16
        %v5631 = vpop.permute.xlu0 %5630
        %5632 = vrot.lane.b32.xlu0 %v5548, 16
        %v5633 = vpop.permute.xlu0 %5632
        %5634 = vrot.lane.b32.xlu0 %v5552, 16
        %v5635 = vpop.permute.xlu0 %5634
        %5636 = vrot.lane.b32.xlu0 %v5555, 16
        %v5637 = vpop.permute.xlu0 %5636
        %5638 = vrot.lane.b32.xlu0 %v5559, 16
        %v5639 = vpop.permute.xlu0 %5638
        %5640 = vrot.lane.b32.xlu0 %v5562, 16
        %v5641 = vpop.permute.xlu0 %5640
        %5642 = vrot.lane.b32.xlu0 %v5566, 16
        %v5643 = vpop.permute.xlu0 %5642
        %5644 = vrot.lane.b32.xlu0 %v5569, 16
        %v5645 = vpop.permute.xlu0 %5644
        %5646 = vrot.lane.b32.xlu0 %v5573, 16
        %v5647 = vpop.permute.xlu0 %5646
        %5648 = vrot.lane.b32.xlu0 %v5576, 16
        %v5649 = vpop.permute.xlu0 %5648
        %5650 = vrot.lane.b32.xlu0 %v5580, 16
        %v5651 = vpop.permute.xlu0 %5650
        %5652 = vrot.lane.b32.xlu0 %v5583, 16
        %v5653 = vpop.permute.xlu0 %5652
        %5654 = vrot.lane.b32.xlu0 %v5587, 16
        %v5655 = vpop.permute.xlu0 %5654
        %5656 = vrot.lane.b32.xlu0 %v5590, 16
        %v5657 = vpop.permute.xlu0 %5656
        %5658 = vrot.lane.b32.xlu0 %v5594, 16
        %v5659 = vpop.permute.xlu0 %5658
        %5660 = vrot.lane.b32.xlu0 %v5597, 16
        %v5661 = vpop.permute.xlu0 %5660
        %vm5694 = vcmask 191616
        %5695 = vst.msk [vmem:[#allocation3] sm:$0xf] %vm5694, %v5599
        %5696 = vst.msk [vmem:[#allocation3 + $0x4] sm:$0xf] %vm5694, %v5601
        %5697 = vst.msk [vmem:[#allocation3 + $0x8] sm:$0xf] %vm5694, %v5603
        %5698 = vst.msk [vmem:[#allocation3 + $0xc] sm:$0xf] %vm5694, %v5605
        %5699 = vst.msk [vmem:[#allocation3 + $0x10] sm:$0xf] %vm5694, %v5607
        %5700 = vst.msk [vmem:[#allocation3 + $0x14] sm:$0xf] %vm5694, %v5609
        %5701 = vst.msk [vmem:[#allocation3 + $0x18] sm:$0xf] %vm5694, %v5611
        %5702 = vst.msk [vmem:[#allocation3 + $0x1c] sm:$0xf] %vm5694, %v5613
        %5703 = vst.msk [vmem:[#allocation3 + $0x20] sm:$0xf] %vm5694, %v5615
        %5704 = vst.msk [vmem:[#allocation3 + $0x24] sm:$0xf] %vm5694, %v5617
        %5705 = vst.msk [vmem:[#allocation3 + $0x28] sm:$0xf] %vm5694, %v5619
        %5706 = vst.msk [vmem:[#allocation3 + $0x2c] sm:$0xf] %vm5694, %v5621
        %5707 = vst.msk [vmem:[#allocation3 + $0x30] sm:$0xf] %vm5694, %v5623
        %5708 = vst.msk [vmem:[#allocation3 + $0x34] sm:$0xf] %vm5694, %v5625
        %5709 = vst.msk [vmem:[#allocation3 + $0x38] sm:$0xf] %vm5694, %v5627
        %5710 = vst.msk [vmem:[#allocation3 + $0x3c] sm:$0xf] %vm5694, %v5629
        %5711 = vst.msk [vmem:[#allocation3 + $0x40] sm:$0xf] %vm5694, %v5631
        %5712 = vst.msk [vmem:[#allocation3 + $0x44] sm:$0xf] %vm5694, %v5633
        %5713 = vst.msk [vmem:[#allocation3 + $0x48] sm:$0xf] %vm5694, %v5635
        %5714 = vst.msk [vmem:[#allocation3 + $0x4c] sm:$0xf] %vm5694, %v5637
        %5715 = vst.msk [vmem:[#allocation3 + $0x50] sm:$0xf] %vm5694, %v5639
        %5716 = vst.msk [vmem:[#allocation3 + $0x54] sm:$0xf] %vm5694, %v5641
        %5717 = vst.msk [vmem:[#allocation3 + $0x58] sm:$0xf] %vm5694, %v5643
        %5718 = vst.msk [vmem:[#allocation3 + $0x5c] sm:$0xf] %vm5694, %v5645
        %5719 = vst.msk [vmem:[#allocation3 + $0x60] sm:$0xf] %vm5694, %v5647
        %5720 = vst.msk [vmem:[#allocation3 + $0x64] sm:$0xf] %vm5694, %v5649
        %5721 = vst.msk [vmem:[#allocation3 + $0x68] sm:$0xf] %vm5694, %v5651
        %5722 = vst.msk [vmem:[#allocation3 + $0x6c] sm:$0xf] %vm5694, %v5653
        %5723 = vst.msk [vmem:[#allocation3 + $0x70] sm:$0xf] %vm5694, %v5655
        %5724 = vst.msk [vmem:[#allocation3 + $0x74] sm:$0xf] %vm5694, %v5657
        %5725 = vst.msk [vmem:[#allocation3 + $0x78] sm:$0xf] %vm5694, %v5659
        %5726 = vst.msk [vmem:[#allocation3 + $0x7c] sm:$0xf] %vm5694, %v5661
        %v5727 = vld [vmem:[%s233] sm:$0xf]
        %v5728 = vld [vmem:[%s233 + $0x4] sm:$0xf]
        %v5729 = vld [vmem:[%s233 + $0xc] sm:$0xf]
        %v5730 = vld [vmem:[%s233 + $0x10] sm:$0xf]
        %v5731 = vld [vmem:[%s233 + $0x18] sm:$0xf]
        %v5732 = vld [vmem:[%s233 + $0x1c] sm:$0xf]
        %v5733 = vld [vmem:[%s233 + $0x24] sm:$0xf]
        %v5734 = vld [vmem:[%s233 + $0x28] sm:$0xf]
        %v5735 = vld [vmem:[%s233 + $0x30] sm:$0xf]
        %v5736 = vld [vmem:[%s233 + $0x34] sm:$0xf]
        %v5737 = vld [vmem:[%s233 + $0x3c] sm:$0xf]
        %v5738 = vld [vmem:[%s233 + $0x40] sm:$0xf]
        %v5739 = vld [vmem:[%s233 + $0x48] sm:$0xf]
        %v5740 = vld [vmem:[%s233 + $0x4c] sm:$0xf]
        %v5741 = vld [vmem:[%s233 + $0x54] sm:$0xf]
        %v5742 = vld [vmem:[%s233 + $0x58] sm:$0xf]
        %v5743 = vld [vmem:[%s233 + $0x60] sm:$0xf]
        %v5744 = vld [vmem:[%s233 + $0x64] sm:$0xf]
        %v5745 = vld [vmem:[%s233 + $0x6c] sm:$0xf]
        %v5746 = vld [vmem:[%s233 + $0x70] sm:$0xf]
        %v5747 = vld [vmem:[%s233 + $0x78] sm:$0xf]
        %v5748 = vld [vmem:[%s233 + $0x7c] sm:$0xf]
        %v5749 = vld [vmem:[%s233 + $0x84] sm:$0xf]
        %v5750 = vld [vmem:[%s233 + $0x88] sm:$0xf]
        %v5751 = vld [vmem:[%s233 + $0x90] sm:$0xf]
        %v5752 = vld [vmem:[%s233 + $0x94] sm:$0xf]
        %v5753 = vld [vmem:[%s233 + $0x9c] sm:$0xf]
        %v5754 = vld [vmem:[%s233 + $0xa0] sm:$0xf]
        %v5755 = vld [vmem:[%s233 + $0xa8] sm:$0xf]
        %v5756 = vld [vmem:[%s233 + $0xac] sm:$0xf]
        %v5757 = vld [vmem:[%s233 + $0xb4] sm:$0xf]
        %v5758 = vld [vmem:[%s233 + $0xb8] sm:$0xf]
        %5791 = vrot.lane.b32.xlu0 %v5727, 24
        %v5792 = vpop.permute.xlu0 %5791
        %5793 = vrot.lane.b32.xlu0 %v5728, 24
        %v5794 = vpop.permute.xlu0 %5793
        %5795 = vrot.lane.b32.xlu0 %v5729, 24
        %v5796 = vpop.permute.xlu0 %5795
        %5797 = vrot.lane.b32.xlu0 %v5730, 24
        %v5798 = vpop.permute.xlu0 %5797
        %5799 = vrot.lane.b32.xlu0 %v5731, 24
        %v5800 = vpop.permute.xlu0 %5799
        %5801 = vrot.lane.b32.xlu0 %v5732, 24
        %v5802 = vpop.permute.xlu0 %5801
        %5803 = vrot.lane.b32.xlu0 %v5733, 24
        %v5804 = vpop.permute.xlu0 %5803
        %5805 = vrot.lane.b32.xlu0 %v5734, 24
        %v5806 = vpop.permute.xlu0 %5805
        %5807 = vrot.lane.b32.xlu0 %v5735, 24
        %v5808 = vpop.permute.xlu0 %5807
        %5809 = vrot.lane.b32.xlu0 %v5736, 24
        %v5810 = vpop.permute.xlu0 %5809
        %5811 = vrot.lane.b32.xlu0 %v5737, 24
        %v5812 = vpop.permute.xlu0 %5811
        %5813 = vrot.lane.b32.xlu0 %v5738, 24
        %v5814 = vpop.permute.xlu0 %5813
        %5815 = vrot.lane.b32.xlu0 %v5739, 24
        %v5816 = vpop.permute.xlu0 %5815
        %5817 = vrot.lane.b32.xlu0 %v5740, 24
        %v5818 = vpop.permute.xlu0 %5817
        %5819 = vrot.lane.b32.xlu0 %v5741, 24
        %v5820 = vpop.permute.xlu0 %5819
        %5821 = vrot.lane.b32.xlu0 %v5742, 24
        %v5822 = vpop.permute.xlu0 %5821
        %5823 = vrot.lane.b32.xlu0 %v5743, 24
        %v5824 = vpop.permute.xlu0 %5823
        %5825 = vrot.lane.b32.xlu0 %v5744, 24
        %v5826 = vpop.permute.xlu0 %5825
        %5827 = vrot.lane.b32.xlu0 %v5745, 24
        %v5828 = vpop.permute.xlu0 %5827
        %5829 = vrot.lane.b32.xlu0 %v5746, 24
        %v5830 = vpop.permute.xlu0 %5829
        %5831 = vrot.lane.b32.xlu0 %v5747, 24
        %v5832 = vpop.permute.xlu0 %5831
        %5833 = vrot.lane.b32.xlu0 %v5748, 24
        %v5834 = vpop.permute.xlu0 %5833
        %5835 = vrot.lane.b32.xlu0 %v5749, 24
        %v5836 = vpop.permute.xlu0 %5835
        %5837 = vrot.lane.b32.xlu0 %v5750, 24
        %v5838 = vpop.permute.xlu0 %5837
        %5839 = vrot.lane.b32.xlu0 %v5751, 24
        %v5840 = vpop.permute.xlu0 %5839
        %5841 = vrot.lane.b32.xlu0 %v5752, 24
        %v5842 = vpop.permute.xlu0 %5841
        %5843 = vrot.lane.b32.xlu0 %v5753, 24
        %v5844 = vpop.permute.xlu0 %5843
        %5845 = vrot.lane.b32.xlu0 %v5754, 24
        %v5846 = vpop.permute.xlu0 %5845
        %5847 = vrot.lane.b32.xlu0 %v5755, 24
        %v5848 = vpop.permute.xlu0 %5847
        %5849 = vrot.lane.b32.xlu0 %v5756, 24
        %v5850 = vpop.permute.xlu0 %5849
        %5851 = vrot.lane.b32.xlu0 %v5757, 24
        %v5852 = vpop.permute.xlu0 %5851
        %5853 = vrot.lane.b32.xlu0 %v5758, 24
        %v5854 = vpop.permute.xlu0 %5853
        %vm5887 = vcmask 257216
        %5888 = vst.msk [vmem:[#allocation3] sm:$0xf] %vm5887, %v5792
        %5889 = vst.msk [vmem:[#allocation3 + $0x4] sm:$0xf] %vm5887, %v5794
        %5890 = vst.msk [vmem:[#allocation3 + $0x8] sm:$0xf] %vm5887, %v5796
        %5891 = vst.msk [vmem:[#allocation3 + $0xc] sm:$0xf] %vm5887, %v5798
        %5892 = vst.msk [vmem:[#allocation3 + $0x10] sm:$0xf] %vm5887, %v5800
        %5893 = vst.msk [vmem:[#allocation3 + $0x14] sm:$0xf] %vm5887, %v5802
        %5894 = vst.msk [vmem:[#allocation3 + $0x18] sm:$0xf] %vm5887, %v5804
        %5895 = vst.msk [vmem:[#allocation3 + $0x1c] sm:$0xf] %vm5887, %v5806
        %5896 = vst.msk [vmem:[#allocation3 + $0x20] sm:$0xf] %vm5887, %v5808
        %5897 = vst.msk [vmem:[#allocation3 + $0x24] sm:$0xf] %vm5887, %v5810
        %5898 = vst.msk [vmem:[#allocation3 + $0x28] sm:$0xf] %vm5887, %v5812
        %5899 = vst.msk [vmem:[#allocation3 + $0x2c] sm:$0xf] %vm5887, %v5814
        %5900 = vst.msk [vmem:[#allocation3 + $0x30] sm:$0xf] %vm5887, %v5816
        %5901 = vst.msk [vmem:[#allocation3 + $0x34] sm:$0xf] %vm5887, %v5818
        %5902 = vst.msk [vmem:[#allocation3 + $0x38] sm:$0xf] %vm5887, %v5820
        %5903 = vst.msk [vmem:[#allocation3 + $0x3c] sm:$0xf] %vm5887, %v5822
        %5904 = vst.msk [vmem:[#allocation3 + $0x40] sm:$0xf] %vm5887, %v5824
        %5905 = vst.msk [vmem:[#allocation3 + $0x44] sm:$0xf] %vm5887, %v5826
        %5906 = vst.msk [vmem:[#allocation3 + $0x48] sm:$0xf] %vm5887, %v5828
        %5907 = vst.msk [vmem:[#allocation3 + $0x4c] sm:$0xf] %vm5887, %v5830
        %5908 = vst.msk [vmem:[#allocation3 + $0x50] sm:$0xf] %vm5887, %v5832
        %5909 = vst.msk [vmem:[#allocation3 + $0x54] sm:$0xf] %vm5887, %v5834
        %5910 = vst.msk [vmem:[#allocation3 + $0x58] sm:$0xf] %vm5887, %v5836
        %5911 = vst.msk [vmem:[#allocation3 + $0x5c] sm:$0xf] %vm5887, %v5838
        %5912 = vst.msk [vmem:[#allocation3 + $0x60] sm:$0xf] %vm5887, %v5840
        %5913 = vst.msk [vmem:[#allocation3 + $0x64] sm:$0xf] %vm5887, %v5842
        %5914 = vst.msk [vmem:[#allocation3 + $0x68] sm:$0xf] %vm5887, %v5844
        %5915 = vst.msk [vmem:[#allocation3 + $0x6c] sm:$0xf] %vm5887, %v5846
        %5916 = vst.msk [vmem:[#allocation3 + $0x70] sm:$0xf] %vm5887, %v5848
        %5917 = vst.msk [vmem:[#allocation3 + $0x74] sm:$0xf] %vm5887, %v5850
        %5918 = vst.msk [vmem:[#allocation3 + $0x78] sm:$0xf] %vm5887, %v5852
        %5919 = vst.msk [vmem:[#allocation3 + $0x7c] sm:$0xf] %vm5887, %v5854
        %v5920 = vld [vmem:[%s233] sm:$0xf]
        %v5921 = vld [vmem:[%s233 + $0x4] sm:$0xf]
        %v5922 = vld [vmem:[%s233 + $0x8] sm:$0x1]
        %v5923 = vld [vmem:[%s233 + $0xc] sm:$0xf]
        %v5924 = vld [vmem:[%s233 + $0x10] sm:$0xf]
        %v5925 = vld [vmem:[%s233 + $0x14] sm:$0x1]
        %v5926 = vld [vmem:[%s233 + $0x18] sm:$0xf]
        %v5927 = vld [vmem:[%s233 + $0x1c] sm:$0xf]
        %v5928 = vld [vmem:[%s233 + $0x20] sm:$0x1]
        %v5929 = vld [vmem:[%s233 + $0x24] sm:$0xf]
        %v5930 = vld [vmem:[%s233 + $0x28] sm:$0xf]
        %v5931 = vld [vmem:[%s233 + $0x2c] sm:$0x1]
        %v5932 = vld [vmem:[%s233 + $0x30] sm:$0xf]
        %v5933 = vld [vmem:[%s233 + $0x34] sm:$0xf]
        %v5934 = vld [vmem:[%s233 + $0x38] sm:$0x1]
        %v5935 = vld [vmem:[%s233 + $0x3c] sm:$0xf]
        %v5936 = vld [vmem:[%s233 + $0x40] sm:$0xf]
        %v5937 = vld [vmem:[%s233 + $0x44] sm:$0x1]
        %v5938 = vld [vmem:[%s233 + $0x48] sm:$0xf]
        %v5939 = vld [vmem:[%s233 + $0x4c] sm:$0xf]
        %v5940 = vld [vmem:[%s233 + $0x50] sm:$0x1]
        %v5941 = vld [vmem:[%s233 + $0x54] sm:$0xf]
        %v5942 = vld [vmem:[%s233 + $0x58] sm:$0xf]
        %v5943 = vld [vmem:[%s233 + $0x5c] sm:$0x1]
        %v5944 = vld [vmem:[%s233 + $0x60] sm:$0xf]
        %v5945 = vld [vmem:[%s233 + $0x64] sm:$0xf]
        %v5946 = vld [vmem:[%s233 + $0x68] sm:$0x1]
        %v5947 = vld [vmem:[%s233 + $0x6c] sm:$0xf]
        %v5948 = vld [vmem:[%s233 + $0x70] sm:$0xf]
        %v5949 = vld [vmem:[%s233 + $0x74] sm:$0x1]
        %v5950 = vld [vmem:[%s233 + $0x78] sm:$0xf]
        %v5951 = vld [vmem:[%s233 + $0x7c] sm:$0xf]
        %v5952 = vld [vmem:[%s233 + $0x80] sm:$0x1]
        %v5953 = vld [vmem:[%s233 + $0x84] sm:$0xf]
        %v5954 = vld [vmem:[%s233 + $0x88] sm:$0xf]
        %v5955 = vld [vmem:[%s233 + $0x8c] sm:$0x1]
        %v5956 = vld [vmem:[%s233 + $0x90] sm:$0xf]
        %v5957 = vld [vmem:[%s233 + $0x94] sm:$0xf]
        %v5958 = vld [vmem:[%s233 + $0x98] sm:$0x1]
        %v5959 = vld [vmem:[%s233 + $0x9c] sm:$0xf]
        %v5960 = vld [vmem:[%s233 + $0xa0] sm:$0xf]
        %v5961 = vld [vmem:[%s233 + $0xa4] sm:$0x1]
        %v5962 = vld [vmem:[%s233 + $0xa8] sm:$0xf]
        %v5963 = vld [vmem:[%s233 + $0xac] sm:$0xf]
        %v5964 = vld [vmem:[%s233 + $0xb0] sm:$0x1]
        %v5965 = vld [vmem:[%s233 + $0xb4] sm:$0xf]
        %v5966 = vld [vmem:[%s233 + $0xb8] sm:$0xf]
        %v5967 = vld [vmem:[%s233 + $0xbc] sm:$0x1]
        %v5969 = vshrl.u32 %v5920, 16
        %v5971 = vrot.slane %v5969, 4
        %v5972 = vshll.u32 %v5920, 16
        %v5974 = vrot.slane %v5972, 5
        %v5975 = vor.u32 %v5971, %v5974
        %v5976 = vrot.slane %v5975, 4
        %v5978 = vshll.u32 %v5921, 16
        %v5980 = vrot.slane %v5978, 5
        %v5981 = vsel %vm952, %v5976, %v5980
        %v5982 = vshrl.u32 %v5921, 16
        %v5984 = vrot.slane %v5982, 4
        %v5985 = vor.u32 %v5984, %v5980
        %v5986 = vrot.slane %v5985, 4
        %v5988 = vshll.u32 %v5922, 16
        %v5990 = vrot.slane %v5988, 5
        %v5991 = vsel %vm952, %v5986, %v5990
        %v5993 = vshrl.u32 %v5923, 16
        %v5995 = vrot.slane %v5993, 4
        %v5996 = vshll.u32 %v5923, 16
        %v5998 = vrot.slane %v5996, 5
        %v5999 = vor.u32 %v5995, %v5998
        %v6000 = vrot.slane %v5999, 4
        %v6002 = vshll.u32 %v5924, 16
        %v6004 = vrot.slane %v6002, 5
        %v6005 = vsel %vm952, %v6000, %v6004
        %v6006 = vshrl.u32 %v5924, 16
        %v6008 = vrot.slane %v6006, 4
        %v6009 = vor.u32 %v6008, %v6004
        %v6010 = vrot.slane %v6009, 4
        %v6012 = vshll.u32 %v5925, 16
        %v6014 = vrot.slane %v6012, 5
        %v6015 = vsel %vm952, %v6010, %v6014
        %v6017 = vshrl.u32 %v5926, 16
        %v6019 = vrot.slane %v6017, 4
        %v6020 = vshll.u32 %v5926, 16
        %v6022 = vrot.slane %v6020, 5
        %v6023 = vor.u32 %v6019, %v6022
        %v6024 = vrot.slane %v6023, 4
        %v6026 = vshll.u32 %v5927, 16
        %v6028 = vrot.slane %v6026, 5
        %v6029 = vsel %vm952, %v6024, %v6028
        %v6030 = vshrl.u32 %v5927, 16
        %v6032 = vrot.slane %v6030, 4
        %v6033 = vor.u32 %v6032, %v6028
        %v6034 = vrot.slane %v6033, 4
        %v6036 = vshll.u32 %v5928, 16
        %v6038 = vrot.slane %v6036, 5
        %v6039 = vsel %vm952, %v6034, %v6038
        %v6041 = vshrl.u32 %v5929, 16
        %v6043 = vrot.slane %v6041, 4
        %v6044 = vshll.u32 %v5929, 16
        %v6046 = vrot.slane %v6044, 5
        %v6047 = vor.u32 %v6043, %v6046
        %v6048 = vrot.slane %v6047, 4
        %v6050 = vshll.u32 %v5930, 16
        %v6052 = vrot.slane %v6050, 5
        %v6053 = vsel %vm952, %v6048, %v6052
        %v6054 = vshrl.u32 %v5930, 16
        %v6056 = vrot.slane %v6054, 4
        %v6057 = vor.u32 %v6056, %v6052
        %v6058 = vrot.slane %v6057, 4
        %v6060 = vshll.u32 %v5931, 16
        %v6062 = vrot.slane %v6060, 5
        %v6063 = vsel %vm952, %v6058, %v6062
        %v6065 = vshrl.u32 %v5932, 16
        %v6067 = vrot.slane %v6065, 4
        %v6068 = vshll.u32 %v5932, 16
        %v6070 = vrot.slane %v6068, 5
        %v6071 = vor.u32 %v6067, %v6070
        %v6072 = vrot.slane %v6071, 4
        %v6074 = vshll.u32 %v5933, 16
        %v6076 = vrot.slane %v6074, 5
        %v6077 = vsel %vm952, %v6072, %v6076
        %v6078 = vshrl.u32 %v5933, 16
        %v6080 = vrot.slane %v6078, 4
        %v6081 = vor.u32 %v6080, %v6076
        %v6082 = vrot.slane %v6081, 4
        %v6084 = vshll.u32 %v5934, 16
        %v6086 = vrot.slane %v6084, 5
        %v6087 = vsel %vm952, %v6082, %v6086
        %v6089 = vshrl.u32 %v5935, 16
        %v6091 = vrot.slane %v6089, 4
        %v6092 = vshll.u32 %v5935, 16
        %v6094 = vrot.slane %v6092, 5
        %v6095 = vor.u32 %v6091, %v6094
        %v6096 = vrot.slane %v6095, 4
        %v6098 = vshll.u32 %v5936, 16
        %v6100 = vrot.slane %v6098, 5
        %v6101 = vsel %vm952, %v6096, %v6100
        %v6102 = vshrl.u32 %v5936, 16
        %v6104 = vrot.slane %v6102, 4
        %v6105 = vor.u32 %v6104, %v6100
        %v6106 = vrot.slane %v6105, 4
        %v6108 = vshll.u32 %v5937, 16
        %v6110 = vrot.slane %v6108, 5
        %v6111 = vsel %vm952, %v6106, %v6110
        %v6113 = vshrl.u32 %v5938, 16
        %v6115 = vrot.slane %v6113, 4
        %v6116 = vshll.u32 %v5938, 16
        %v6118 = vrot.slane %v6116, 5
        %v6119 = vor.u32 %v6115, %v6118
        %v6120 = vrot.slane %v6119, 4
        %v6122 = vshll.u32 %v5939, 16
        %v6124 = vrot.slane %v6122, 5
        %v6125 = vsel %vm952, %v6120, %v6124
        %v6126 = vshrl.u32 %v5939, 16
        %v6128 = vrot.slane %v6126, 4
        %v6129 = vor.u32 %v6128, %v6124
        %v6130 = vrot.slane %v6129, 4
        %v6132 = vshll.u32 %v5940, 16
        %v6134 = vrot.slane %v6132, 5
        %v6135 = vsel %vm952, %v6130, %v6134
        %v6137 = vshrl.u32 %v5941, 16
        %v6139 = vrot.slane %v6137, 4
        %v6140 = vshll.u32 %v5941, 16
        %v6142 = vrot.slane %v6140, 5
        %v6143 = vor.u32 %v6139, %v6142
        %v6144 = vrot.slane %v6143, 4
        %v6146 = vshll.u32 %v5942, 16
        %v6148 = vrot.slane %v6146, 5
        %v6149 = vsel %vm952, %v6144, %v6148
        %v6150 = vshrl.u32 %v5942, 16
        %v6152 = vrot.slane %v6150, 4
        %v6153 = vor.u32 %v6152, %v6148
        %v6154 = vrot.slane %v6153, 4
        %v6156 = vshll.u32 %v5943, 16
        %v6158 = vrot.slane %v6156, 5
        %v6159 = vsel %vm952, %v6154, %v6158
        %v6161 = vshrl.u32 %v5944, 16
        %v6163 = vrot.slane %v6161, 4
        %v6164 = vshll.u32 %v5944, 16
        %v6166 = vrot.slane %v6164, 5
        %v6167 = vor.u32 %v6163, %v6166
        %v6168 = vrot.slane %v6167, 4
        %v6170 = vshll.u32 %v5945, 16
        %v6172 = vrot.slane %v6170, 5
        %v6173 = vsel %vm952, %v6168, %v6172
        %v6174 = vshrl.u32 %v5945, 16
        %v6176 = vrot.slane %v6174, 4
        %v6177 = vor.u32 %v6176, %v6172
        %v6178 = vrot.slane %v6177, 4
        %v6180 = vshll.u32 %v5946, 16
        %v6182 = vrot.slane %v6180, 5
        %v6183 = vsel %vm952, %v6178, %v6182
        %v6185 = vshrl.u32 %v5947, 16
        %v6187 = vrot.slane %v6185, 4
        %v6188 = vshll.u32 %v5947, 16
        %v6190 = vrot.slane %v6188, 5
        %v6191 = vor.u32 %v6187, %v6190
        %v6192 = vrot.slane %v6191, 4
        %v6194 = vshll.u32 %v5948, 16
        %v6196 = vrot.slane %v6194, 5
        %v6197 = vsel %vm952, %v6192, %v6196
        %v6198 = vshrl.u32 %v5948, 16
        %v6200 = vrot.slane %v6198, 4
        %v6201 = vor.u32 %v6200, %v6196
        %v6202 = vrot.slane %v6201, 4
        %v6204 = vshll.u32 %v5949, 16
        %v6206 = vrot.slane %v6204, 5
        %v6207 = vsel %vm952, %v6202, %v6206
        %v6209 = vshrl.u32 %v5950, 16
        %v6211 = vrot.slane %v6209, 4
        %v6212 = vshll.u32 %v5950, 16
        %v6214 = vrot.slane %v6212, 5
        %v6215 = vor.u32 %v6211, %v6214
        %v6216 = vrot.slane %v6215, 4
        %v6218 = vshll.u32 %v5951, 16
        %v6220 = vrot.slane %v6218, 5
        %v6221 = vsel %vm952, %v6216, %v6220
        %v6222 = vshrl.u32 %v5951, 16
        %v6224 = vrot.slane %v6222, 4
        %v6225 = vor.u32 %v6224, %v6220
        %v6226 = vrot.slane %v6225, 4
        %v6228 = vshll.u32 %v5952, 16
        %v6230 = vrot.slane %v6228, 5
        %v6231 = vsel %vm952, %v6226, %v6230
        %v6233 = vshrl.u32 %v5953, 16
        %v6235 = vrot.slane %v6233, 4
        %v6236 = vshll.u32 %v5953, 16
        %v6238 = vrot.slane %v6236, 5
        %v6239 = vor.u32 %v6235, %v6238
        %v6240 = vrot.slane %v6239, 4
        %v6242 = vshll.u32 %v5954, 16
        %v6244 = vrot.slane %v6242, 5
        %v6245 = vsel %vm952, %v6240, %v6244
        %v6246 = vshrl.u32 %v5954, 16
        %v6248 = vrot.slane %v6246, 4
        %v6249 = vor.u32 %v6248, %v6244
        %v6250 = vrot.slane %v6249, 4
        %v6252 = vshll.u32 %v5955, 16
        %v6254 = vrot.slane %v6252, 5
        %v6255 = vsel %vm952, %v6250, %v6254
        %v6257 = vshrl.u32 %v5956, 16
        %v6259 = vrot.slane %v6257, 4
        %v6260 = vshll.u32 %v5956, 16
        %v6262 = vrot.slane %v6260, 5
        %v6263 = vor.u32 %v6259, %v6262
        %v6264 = vrot.slane %v6263, 4
        %v6266 = vshll.u32 %v5957, 16
        %v6268 = vrot.slane %v6266, 5
        %v6269 = vsel %vm952, %v6264, %v6268
        %v6270 = vshrl.u32 %v5957, 16
        %v6272 = vrot.slane %v6270, 4
        %v6273 = vor.u32 %v6272, %v6268
        %v6274 = vrot.slane %v6273, 4
        %v6276 = vshll.u32 %v5958, 16
        %v6278 = vrot.slane %v6276, 5
        %v6279 = vsel %vm952, %v6274, %v6278
        %v6281 = vshrl.u32 %v5959, 16
        %v6283 = vrot.slane %v6281, 4
        %v6284 = vshll.u32 %v5959, 16
        %v6286 = vrot.slane %v6284, 5
        %v6287 = vor.u32 %v6283, %v6286
        %v6288 = vrot.slane %v6287, 4
        %v6290 = vshll.u32 %v5960, 16
        %v6292 = vrot.slane %v6290, 5
        %v6293 = vsel %vm952, %v6288, %v6292
        %v6294 = vshrl.u32 %v5960, 16
        %v6296 = vrot.slane %v6294, 4
        %v6297 = vor.u32 %v6296, %v6292
        %v6298 = vrot.slane %v6297, 4
        %v6300 = vshll.u32 %v5961, 16
        %v6302 = vrot.slane %v6300, 5
        %v6303 = vsel %vm952, %v6298, %v6302
        %v6305 = vshrl.u32 %v5962, 16
        %v6307 = vrot.slane %v6305, 4
        %v6308 = vshll.u32 %v5962, 16
        %v6310 = vrot.slane %v6308, 5
        %v6311 = vor.u32 %v6307, %v6310
        %v6312 = vrot.slane %v6311, 4
        %v6314 = vshll.u32 %v5963, 16
        %v6316 = vrot.slane %v6314, 5
        %v6317 = vsel %vm952, %v6312, %v6316
        %v6318 = vshrl.u32 %v5963, 16
        %v6320 = vrot.slane %v6318, 4
        %v6321 = vor.u32 %v6320, %v6316
        %v6322 = vrot.slane %v6321, 4
        %v6324 = vshll.u32 %v5964, 16
        %v6326 = vrot.slane %v6324, 5
        %v6327 = vsel %vm952, %v6322, %v6326
        %v6329 = vshrl.u32 %v5965, 16
        %v6331 = vrot.slane %v6329, 4
        %v6332 = vshll.u32 %v5965, 16
        %v6334 = vrot.slane %v6332, 5
        %v6335 = vor.u32 %v6331, %v6334
        %v6336 = vrot.slane %v6335, 4
        %v6338 = vshll.u32 %v5966, 16
        %v6340 = vrot.slane %v6338, 5
        %v6341 = vsel %vm952, %v6336, %v6340
        %v6342 = vshrl.u32 %v5966, 16
        %v6344 = vrot.slane %v6342, 4
        %v6345 = vor.u32 %v6344, %v6340
        %v6346 = vrot.slane %v6345, 4
        %v6348 = vshll.u32 %v5967, 16
        %v6350 = vrot.slane %v6348, 5
        %v6351 = vsel %vm952, %v6346, %v6350
        %6352 = vrot.lane.b32.xlu0 %v5981, 32
        %v6353 = vpop.permute.xlu0 %6352
        %6354 = vrot.lane.b32.xlu0 %v5991, 32
        %v6355 = vpop.permute.xlu0 %6354
        %6356 = vrot.lane.b32.xlu0 %v6005, 32
        %v6357 = vpop.permute.xlu0 %6356
        %6358 = vrot.lane.b32.xlu0 %v6015, 32
        %v6359 = vpop.permute.xlu0 %6358
        %6360 = vrot.lane.b32.xlu0 %v6029, 32
        %v6361 = vpop.permute.xlu0 %6360
        %6362 = vrot.lane.b32.xlu0 %v6039, 32
        %v6363 = vpop.permute.xlu0 %6362
        %6364 = vrot.lane.b32.xlu0 %v6053, 32
        %v6365 = vpop.permute.xlu0 %6364
        %6366 = vrot.lane.b32.xlu0 %v6063, 32
        %v6367 = vpop.permute.xlu0 %6366
        %6368 = vrot.lane.b32.xlu0 %v6077, 32
        %v6369 = vpop.permute.xlu0 %6368
        %6370 = vrot.lane.b32.xlu0 %v6087, 32
        %v6371 = vpop.permute.xlu0 %6370
        %6372 = vrot.lane.b32.xlu0 %v6101, 32
        %v6373 = vpop.permute.xlu0 %6372
        %6374 = vrot.lane.b32.xlu0 %v6111, 32
        %v6375 = vpop.permute.xlu0 %6374
        %6376 = vrot.lane.b32.xlu0 %v6125, 32
        %v6377 = vpop.permute.xlu0 %6376
        %6378 = vrot.lane.b32.xlu0 %v6135, 32
        %v6379 = vpop.permute.xlu0 %6378
        %6380 = vrot.lane.b32.xlu0 %v6149, 32
        %v6381 = vpop.permute.xlu0 %6380
        %6382 = vrot.lane.b32.xlu0 %v6159, 32
        %v6383 = vpop.permute.xlu0 %6382
        %6384 = vrot.lane.b32.xlu0 %v6173, 32
        %v6385 = vpop.permute.xlu0 %6384
        %6386 = vrot.lane.b32.xlu0 %v6183, 32
        %v6387 = vpop.permute.xlu0 %6386
        %6388 = vrot.lane.b32.xlu0 %v6197, 32
        %v6389 = vpop.permute.xlu0 %6388
        %6390 = vrot.lane.b32.xlu0 %v6207, 32
        %v6391 = vpop.permute.xlu0 %6390
        %6392 = vrot.lane.b32.xlu0 %v6221, 32
        %v6393 = vpop.permute.xlu0 %6392
        %6394 = vrot.lane.b32.xlu0 %v6231, 32
        %v6395 = vpop.permute.xlu0 %6394
        %6396 = vrot.lane.b32.xlu0 %v6245, 32
        %v6397 = vpop.permute.xlu0 %6396
        %6398 = vrot.lane.b32.xlu0 %v6255, 32
        %v6399 = vpop.permute.xlu0 %6398
        %6400 = vrot.lane.b32.xlu0 %v6269, 32
        %v6401 = vpop.permute.xlu0 %6400
        %6402 = vrot.lane.b32.xlu0 %v6279, 32
        %v6403 = vpop.permute.xlu0 %6402
        %6404 = vrot.lane.b32.xlu0 %v6293, 32
        %v6405 = vpop.permute.xlu0 %6404
        %6406 = vrot.lane.b32.xlu0 %v6303, 32
        %v6407 = vpop.permute.xlu0 %6406
        %6408 = vrot.lane.b32.xlu0 %v6317, 32
        %v6409 = vpop.permute.xlu0 %6408
        %6410 = vrot.lane.b32.xlu0 %v6327, 32
        %v6411 = vpop.permute.xlu0 %6410
        %6412 = vrot.lane.b32.xlu0 %v6341, 32
        %v6413 = vpop.permute.xlu0 %6412
        %6414 = vrot.lane.b32.xlu0 %v6351, 32
        %v6415 = vpop.permute.xlu0 %6414
        %vm6448 = vcmask 322816
        %6449 = vst.msk [vmem:[#allocation3] sm:$0xf] %vm6448, %v6353
        %6450 = vst.msk [vmem:[#allocation3 + $0x4] sm:$0xf] %vm6448, %v6355
        %6451 = vst.msk [vmem:[#allocation3 + $0x8] sm:$0xf] %vm6448, %v6357
        %6452 = vst.msk [vmem:[#allocation3 + $0xc] sm:$0xf] %vm6448, %v6359
        %6453 = vst.msk [vmem:[#allocation3 + $0x10] sm:$0xf] %vm6448, %v6361
        %6454 = vst.msk [vmem:[#allocation3 + $0x14] sm:$0xf] %vm6448, %v6363
        %6455 = vst.msk [vmem:[#allocation3 + $0x18] sm:$0xf] %vm6448, %v6365
        %6456 = vst.msk [vmem:[#allocation3 + $0x1c] sm:$0xf] %vm6448, %v6367
        %6457 = vst.msk [vmem:[#allocation3 + $0x20] sm:$0xf] %vm6448, %v6369
        %6458 = vst.msk [vmem:[#allocation3 + $0x24] sm:$0xf] %vm6448, %v6371
        %6459 = vst.msk [vmem:[#allocation3 + $0x28] sm:$0xf] %vm6448, %v6373
        %6460 = vst.msk [vmem:[#allocation3 + $0x2c] sm:$0xf] %vm6448, %v6375
        %6461 = vst.msk [vmem:[#allocation3 + $0x30] sm:$0xf] %vm6448, %v6377
        %6462 = vst.msk [vmem:[#allocation3 + $0x34] sm:$0xf] %vm6448, %v6379
        %6463 = vst.msk [vmem:[#allocation3 + $0x38] sm:$0xf] %vm6448, %v6381
        %6464 = vst.msk [vmem:[#allocation3 + $0x3c] sm:$0xf] %vm6448, %v6383
        %6465 = vst.msk [vmem:[#allocation3 + $0x40] sm:$0xf] %vm6448, %v6385
        %6466 = vst.msk [vmem:[#allocation3 + $0x44] sm:$0xf] %vm6448, %v6387
        %6467 = vst.msk [vmem:[#allocation3 + $0x48] sm:$0xf] %vm6448, %v6389
        %6468 = vst.msk [vmem:[#allocation3 + $0x4c] sm:$0xf] %vm6448, %v6391
        %6469 = vst.msk [vmem:[#allocation3 + $0x50] sm:$0xf] %vm6448, %v6393
        %6470 = vst.msk [vmem:[#allocation3 + $0x54] sm:$0xf] %vm6448, %v6395
        %6471 = vst.msk [vmem:[#allocation3 + $0x58] sm:$0xf] %vm6448, %v6397
        %6472 = vst.msk [vmem:[#allocation3 + $0x5c] sm:$0xf] %vm6448, %v6399
        %6473 = vst.msk [vmem:[#allocation3 + $0x60] sm:$0xf] %vm6448, %v6401
        %6474 = vst.msk [vmem:[#allocation3 + $0x64] sm:$0xf] %vm6448, %v6403
        %6475 = vst.msk [vmem:[#allocation3 + $0x68] sm:$0xf] %vm6448, %v6405
        %6476 = vst.msk [vmem:[#allocation3 + $0x6c] sm:$0xf] %vm6448, %v6407
        %6477 = vst.msk [vmem:[#allocation3 + $0x70] sm:$0xf] %vm6448, %v6409
        %6478 = vst.msk [vmem:[#allocation3 + $0x74] sm:$0xf] %vm6448, %v6411
        %6479 = vst.msk [vmem:[#allocation3 + $0x78] sm:$0xf] %vm6448, %v6413
        %6480 = vst.msk [vmem:[#allocation3 + $0x7c] sm:$0xf] %vm6448, %v6415
        %v6481 = vld [vmem:[%s233] sm:$0xe]
        %v6482 = vld [vmem:[%s233 + $0x4] sm:$0xf]
        %v6483 = vld [vmem:[%s233 + $0x8] sm:$0x1]
        %v6484 = vld [vmem:[%s233 + $0xc] sm:$0xe]
        %v6485 = vld [vmem:[%s233 + $0x10] sm:$0xf]
        %v6486 = vld [vmem:[%s233 + $0x14] sm:$0x1]
        %v6487 = vld [vmem:[%s233 + $0x18] sm:$0xe]
        %v6488 = vld [vmem:[%s233 + $0x1c] sm:$0xf]
        %v6489 = vld [vmem:[%s233 + $0x20] sm:$0x1]
        %v6490 = vld [vmem:[%s233 + $0x24] sm:$0xe]
        %v6491 = vld [vmem:[%s233 + $0x28] sm:$0xf]
        %v6492 = vld [vmem:[%s233 + $0x2c] sm:$0x1]
        %v6493 = vld [vmem:[%s233 + $0x30] sm:$0xe]
        %v6494 = vld [vmem:[%s233 + $0x34] sm:$0xf]
        %v6495 = vld [vmem:[%s233 + $0x38] sm:$0x1]
        %v6496 = vld [vmem:[%s233 + $0x3c] sm:$0xe]
        %v6497 = vld [vmem:[%s233 + $0x40] sm:$0xf]
        %v6498 = vld [vmem:[%s233 + $0x44] sm:$0x1]
        %v6499 = vld [vmem:[%s233 + $0x48] sm:$0xe]
        %v6500 = vld [vmem:[%s233 + $0x4c] sm:$0xf]
        %v6501 = vld [vmem:[%s233 + $0x50] sm:$0x1]
        %v6502 = vld [vmem:[%s233 + $0x54] sm:$0xe]
        %v6503 = vld [vmem:[%s233 + $0x58] sm:$0xf]
        %v6504 = vld [vmem:[%s233 + $0x5c] sm:$0x1]
        %v6505 = vld [vmem:[%s233 + $0x60] sm:$0xe]
        %v6506 = vld [vmem:[%s233 + $0x64] sm:$0xf]
        %v6507 = vld [vmem:[%s233 + $0x68] sm:$0x1]
        %v6508 = vld [vmem:[%s233 + $0x6c] sm:$0xe]
        %v6509 = vld [vmem:[%s233 + $0x70] sm:$0xf]
        %v6510 = vld [vmem:[%s233 + $0x74] sm:$0x1]
        %v6511 = vld [vmem:[%s233 + $0x78] sm:$0xe]
        %v6512 = vld [vmem:[%s233 + $0x7c] sm:$0xf]
        %v6513 = vld [vmem:[%s233 + $0x80] sm:$0x1]
        %v6514 = vld [vmem:[%s233 + $0x84] sm:$0xe]
        %v6515 = vld [vmem:[%s233 + $0x88] sm:$0xf]
        %v6516 = vld [vmem:[%s233 + $0x8c] sm:$0x1]
        %v6517 = vld [vmem:[%s233 + $0x90] sm:$0xe]
        %v6518 = vld [vmem:[%s233 + $0x94] sm:$0xf]
        %v6519 = vld [vmem:[%s233 + $0x98] sm:$0x1]
        %v6520 = vld [vmem:[%s233 + $0x9c] sm:$0xe]
        %v6521 = vld [vmem:[%s233 + $0xa0] sm:$0xf]
        %v6522 = vld [vmem:[%s233 + $0xa4] sm:$0x1]
        %v6523 = vld [vmem:[%s233 + $0xa8] sm:$0xe]
        %v6524 = vld [vmem:[%s233 + $0xac] sm:$0xf]
        %v6525 = vld [vmem:[%s233 + $0xb0] sm:$0x1]
        %v6526 = vld [vmem:[%s233 + $0xb4] sm:$0xe]
        %v6527 = vld [vmem:[%s233 + $0xb8] sm:$0xf]
        %v6528 = vld [vmem:[%s233 + $0xbc] sm:$0x1]
        %v6577 = vrot.slane %v6481, 5
        %v6578 = vrot.slane %v6577, 4
        %v6579 = vrot.slane %v6482, 5
        %v6580 = vsel %vm1564, %v6578, %v6579
        %v6581 = vrot.slane %v6579, 4
        %v6582 = vrot.slane %v6483, 5
        %v6583 = vsel %vm1564, %v6581, %v6582
        %v6584 = vrot.slane %v6484, 5
        %v6585 = vrot.slane %v6584, 4
        %v6586 = vrot.slane %v6485, 5
        %v6587 = vsel %vm1564, %v6585, %v6586
        %v6588 = vrot.slane %v6586, 4
        %v6589 = vrot.slane %v6486, 5
        %v6590 = vsel %vm1564, %v6588, %v6589
        %v6591 = vrot.slane %v6487, 5
        %v6592 = vrot.slane %v6591, 4
        %v6593 = vrot.slane %v6488, 5
        %v6594 = vsel %vm1564, %v6592, %v6593
        %v6595 = vrot.slane %v6593, 4
        %v6596 = vrot.slane %v6489, 5
        %v6597 = vsel %vm1564, %v6595, %v6596
        %v6598 = vrot.slane %v6490, 5
        %v6599 = vrot.slane %v6598, 4
        %v6600 = vrot.slane %v6491, 5
        %v6601 = vsel %vm1564, %v6599, %v6600
        %v6602 = vrot.slane %v6600, 4
        %v6603 = vrot.slane %v6492, 5
        %v6604 = vsel %vm1564, %v6602, %v6603
        %v6605 = vrot.slane %v6493, 5
        %v6606 = vrot.slane %v6605, 4
        %v6607 = vrot.slane %v6494, 5
        %v6608 = vsel %vm1564, %v6606, %v6607
        %v6609 = vrot.slane %v6607, 4
        %v6610 = vrot.slane %v6495, 5
        %v6611 = vsel %vm1564, %v6609, %v6610
        %v6612 = vrot.slane %v6496, 5
        %v6613 = vrot.slane %v6612, 4
        %v6614 = vrot.slane %v6497, 5
        %v6615 = vsel %vm1564, %v6613, %v6614
        %v6616 = vrot.slane %v6614, 4
        %v6617 = vrot.slane %v6498, 5
        %v6618 = vsel %vm1564, %v6616, %v6617
        %v6619 = vrot.slane %v6499, 5
        %v6620 = vrot.slane %v6619, 4
        %v6621 = vrot.slane %v6500, 5
        %v6622 = vsel %vm1564, %v6620, %v6621
        %v6623 = vrot.slane %v6621, 4
        %v6624 = vrot.slane %v6501, 5
        %v6625 = vsel %vm1564, %v6623, %v6624
        %v6626 = vrot.slane %v6502, 5
        %v6627 = vrot.slane %v6626, 4
        %v6628 = vrot.slane %v6503, 5
        %v6629 = vsel %vm1564, %v6627, %v6628
        %v6630 = vrot.slane %v6628, 4
        %v6631 = vrot.slane %v6504, 5
        %v6632 = vsel %vm1564, %v6630, %v6631
        %v6633 = vrot.slane %v6505, 5
        %v6634 = vrot.slane %v6633, 4
        %v6635 = vrot.slane %v6506, 5
        %v6636 = vsel %vm1564, %v6634, %v6635
        %v6637 = vrot.slane %v6635, 4
        %v6638 = vrot.slane %v6507, 5
        %v6639 = vsel %vm1564, %v6637, %v6638
        %v6640 = vrot.slane %v6508, 5
        %v6641 = vrot.slane %v6640, 4
        %v6642 = vrot.slane %v6509, 5
        %v6643 = vsel %vm1564, %v6641, %v6642
        %v6644 = vrot.slane %v6642, 4
        %v6645 = vrot.slane %v6510, 5
        %v6646 = vsel %vm1564, %v6644, %v6645
        %v6647 = vrot.slane %v6511, 5
        %v6648 = vrot.slane %v6647, 4
        %v6649 = vrot.slane %v6512, 5
        %v6650 = vsel %vm1564, %v6648, %v6649
        %v6651 = vrot.slane %v6649, 4
        %v6652 = vrot.slane %v6513, 5
        %v6653 = vsel %vm1564, %v6651, %v6652
        %v6654 = vrot.slane %v6514, 5
        %v6655 = vrot.slane %v6654, 4
        %v6656 = vrot.slane %v6515, 5
        %v6657 = vsel %vm1564, %v6655, %v6656
        %v6658 = vrot.slane %v6656, 4
        %v6659 = vrot.slane %v6516, 5
        %v6660 = vsel %vm1564, %v6658, %v6659
        %v6661 = vrot.slane %v6517, 5
        %v6662 = vrot.slane %v6661, 4
        %v6663 = vrot.slane %v6518, 5
        %v6664 = vsel %vm1564, %v6662, %v6663
        %v6665 = vrot.slane %v6663, 4
        %v6666 = vrot.slane %v6519, 5
        %v6667 = vsel %vm1564, %v6665, %v6666
        %v6668 = vrot.slane %v6520, 5
        %v6669 = vrot.slane %v6668, 4
        %v6670 = vrot.slane %v6521, 5
        %v6671 = vsel %vm1564, %v6669, %v6670
        %v6672 = vrot.slane %v6670, 4
        %v6673 = vrot.slane %v6522, 5
        %v6674 = vsel %vm1564, %v6672, %v6673
        %v6675 = vrot.slane %v6523, 5
        %v6676 = vrot.slane %v6675, 4
        %v6677 = vrot.slane %v6524, 5
        %v6678 = vsel %vm1564, %v6676, %v6677
        %v6679 = vrot.slane %v6677, 4
        %v6680 = vrot.slane %v6525, 5
        %v6681 = vsel %vm1564, %v6679, %v6680
        %v6682 = vrot.slane %v6526, 5
        %v6683 = vrot.slane %v6682, 4
        %v6684 = vrot.slane %v6527, 5
        %v6685 = vsel %vm1564, %v6683, %v6684
        %v6686 = vrot.slane %v6684, 4
        %v6687 = vrot.slane %v6528, 5
        %v6688 = vsel %vm1564, %v6686, %v6687
        %6689 = vrot.lane.b32.xlu0 %v6580, 40
        %v6690 = vpop.permute.xlu0 %6689
        %6691 = vrot.lane.b32.xlu0 %v6583, 40
        %v6692 = vpop.permute.xlu0 %6691
        %6693 = vrot.lane.b32.xlu0 %v6587, 40
        %v6694 = vpop.permute.xlu0 %6693
        %6695 = vrot.lane.b32.xlu0 %v6590, 40
        %v6696 = vpop.permute.xlu0 %6695
        %6697 = vrot.lane.b32.xlu0 %v6594, 40
        %v6698 = vpop.permute.xlu0 %6697
        %6699 = vrot.lane.b32.xlu0 %v6597, 40
        %v6700 = vpop.permute.xlu0 %6699
        %6701 = vrot.lane.b32.xlu0 %v6601, 40
        %v6702 = vpop.permute.xlu0 %6701
        %6703 = vrot.lane.b32.xlu0 %v6604, 40
        %v6704 = vpop.permute.xlu0 %6703
        %6705 = vrot.lane.b32.xlu0 %v6608, 40
        %v6706 = vpop.permute.xlu0 %6705
        %6707 = vrot.lane.b32.xlu0 %v6611, 40
        %v6708 = vpop.permute.xlu0 %6707
        %6709 = vrot.lane.b32.xlu0 %v6615, 40
        %v6710 = vpop.permute.xlu0 %6709
        %6711 = vrot.lane.b32.xlu0 %v6618, 40
        %v6712 = vpop.permute.xlu0 %6711
        %6713 = vrot.lane.b32.xlu0 %v6622, 40
        %v6714 = vpop.permute.xlu0 %6713
        %6715 = vrot.lane.b32.xlu0 %v6625, 40
        %v6716 = vpop.permute.xlu0 %6715
        %6717 = vrot.lane.b32.xlu0 %v6629, 40
        %v6718 = vpop.permute.xlu0 %6717
        %6719 = vrot.lane.b32.xlu0 %v6632, 40
        %v6720 = vpop.permute.xlu0 %6719
        %6721 = vrot.lane.b32.xlu0 %v6636, 40
        %v6722 = vpop.permute.xlu0 %6721
        %6723 = vrot.lane.b32.xlu0 %v6639, 40
        %v6724 = vpop.permute.xlu0 %6723
        %6725 = vrot.lane.b32.xlu0 %v6643, 40
        %v6726 = vpop.permute.xlu0 %6725
        %6727 = vrot.lane.b32.xlu0 %v6646, 40
        %v6728 = vpop.permute.xlu0 %6727
        %6729 = vrot.lane.b32.xlu0 %v6650, 40
        %v6730 = vpop.permute.xlu0 %6729
        %6731 = vrot.lane.b32.xlu0 %v6653, 40
        %v6732 = vpop.permute.xlu0 %6731
        %6733 = vrot.lane.b32.xlu0 %v6657, 40
        %v6734 = vpop.permute.xlu0 %6733
        %6735 = vrot.lane.b32.xlu0 %v6660, 40
        %v6736 = vpop.permute.xlu0 %6735
        %6737 = vrot.lane.b32.xlu0 %v6664, 40
        %v6738 = vpop.permute.xlu0 %6737
        %6739 = vrot.lane.b32.xlu0 %v6667, 40
        %v6740 = vpop.permute.xlu0 %6739
        %6741 = vrot.lane.b32.xlu0 %v6671, 40
        %v6742 = vpop.permute.xlu0 %6741
        %6743 = vrot.lane.b32.xlu0 %v6674, 40
        %v6744 = vpop.permute.xlu0 %6743
        %6745 = vrot.lane.b32.xlu0 %v6678, 40
        %v6746 = vpop.permute.xlu0 %6745
        %6747 = vrot.lane.b32.xlu0 %v6681, 40
        %v6748 = vpop.permute.xlu0 %6747
        %6749 = vrot.lane.b32.xlu0 %v6685, 40
        %v6750 = vpop.permute.xlu0 %6749
        %6751 = vrot.lane.b32.xlu0 %v6688, 40
        %v6752 = vpop.permute.xlu0 %6751
        %vm6785 = vcmask 388416
        %6786 = vst.msk [vmem:[#allocation3] sm:$0xf] %vm6785, %v6690
        %6787 = vst.msk [vmem:[#allocation3 + $0x4] sm:$0xf] %vm6785, %v6692
        %6788 = vst.msk [vmem:[#allocation3 + $0x8] sm:$0xf] %vm6785, %v6694
        %6789 = vst.msk [vmem:[#allocation3 + $0xc] sm:$0xf] %vm6785, %v6696
        %6790 = vst.msk [vmem:[#allocation3 + $0x10] sm:$0xf] %vm6785, %v6698
        %6791 = vst.msk [vmem:[#allocation3 + $0x14] sm:$0xf] %vm6785, %v6700
        %6792 = vst.msk [vmem:[#allocation3 + $0x18] sm:$0xf] %vm6785, %v6702
        %6793 = vst.msk [vmem:[#allocation3 + $0x1c] sm:$0xf] %vm6785, %v6704
        %6794 = vst.msk [vmem:[#allocation3 + $0x20] sm:$0xf] %vm6785, %v6706
        %6795 = vst.msk [vmem:[#allocation3 + $0x24] sm:$0xf] %vm6785, %v6708
        %6796 = vst.msk [vmem:[#allocation3 + $0x28] sm:$0xf] %vm6785, %v6710
        %6797 = vst.msk [vmem:[#allocation3 + $0x2c] sm:$0xf] %vm6785, %v6712
        %6798 = vst.msk [vmem:[#allocation3 + $0x30] sm:$0xf] %vm6785, %v6714
        %6799 = vst.msk [vmem:[#allocation3 + $0x34] sm:$0xf] %vm6785, %v6716
        %6800 = vst.msk [vmem:[#allocation3 + $0x38] sm:$0xf] %vm6785, %v6718
        %6801 = vst.msk [vmem:[#allocation3 + $0x3c] sm:$0xf] %vm6785, %v6720
        %6802 = vst.msk [vmem:[#allocation3 + $0x40] sm:$0xf] %vm6785, %v6722
        %6803 = vst.msk [vmem:[#allocation3 + $0x44] sm:$0xf] %vm6785, %v6724
        %6804 = vst.msk [vmem:[#allocation3 + $0x48] sm:$0xf] %vm6785, %v6726
        %6805 = vst.msk [vmem:[#allocation3 + $0x4c] sm:$0xf] %vm6785, %v6728
        %6806 = vst.msk [vmem:[#allocation3 + $0x50] sm:$0xf] %vm6785, %v6730
        %6807 = vst.msk [vmem:[#allocation3 + $0x54] sm:$0xf] %vm6785, %v6732
        %6808 = vst.msk [vmem:[#allocation3 + $0x58] sm:$0xf] %vm6785, %v6734
        %6809 = vst.msk [vmem:[#allocation3 + $0x5c] sm:$0xf] %vm6785, %v6736
        %6810 = vst.msk [vmem:[#allocation3 + $0x60] sm:$0xf] %vm6785, %v6738
        %6811 = vst.msk [vmem:[#allocation3 + $0x64] sm:$0xf] %vm6785, %v6740
        %6812 = vst.msk [vmem:[#allocation3 + $0x68] sm:$0xf] %vm6785, %v6742
        %6813 = vst.msk [vmem:[#allocation3 + $0x6c] sm:$0xf] %vm6785, %v6744
        %6814 = vst.msk [vmem:[#allocation3 + $0x70] sm:$0xf] %vm6785, %v6746
        %6815 = vst.msk [vmem:[#allocation3 + $0x74] sm:$0xf] %vm6785, %v6748
        %6816 = vst.msk [vmem:[#allocation3 + $0x78] sm:$0xf] %vm6785, %v6750
        %6817 = vst.msk [vmem:[#allocation3 + $0x7c] sm:$0xf] %vm6785, %v6752
        %v6818 = vld [vmem:[%s2897] sm:$0xf]
        %v6819 = vld [vmem:[%s2897 + $0x4] sm:$0xf]
        %v6820 = vld [vmem:[%s2897 + $0xc] sm:$0xf]
        %v6821 = vld [vmem:[%s2897 + $0x10] sm:$0xf]
        %v6822 = vld [vmem:[%s2897 + $0x18] sm:$0xf]
        %v6823 = vld [vmem:[%s2897 + $0x1c] sm:$0xf]
        %v6824 = vld [vmem:[%s2897 + $0x24] sm:$0xf]
        %v6825 = vld [vmem:[%s2897 + $0x28] sm:$0xf]
        %v6826 = vld [vmem:[%s2897 + $0x30] sm:$0xf]
        %v6827 = vld [vmem:[%s2897 + $0x34] sm:$0xf]
        %v6828 = vld [vmem:[%s2897 + $0x3c] sm:$0xf]
        %v6829 = vld [vmem:[%s2897 + $0x40] sm:$0xf]
        %v6830 = vld [vmem:[%s2897 + $0x48] sm:$0xf]
        %v6831 = vld [vmem:[%s2897 + $0x4c] sm:$0xf]
        %v6832 = vld [vmem:[%s2897 + $0x54] sm:$0xf]
        %v6833 = vld [vmem:[%s2897 + $0x58] sm:$0xf]
        %v6834 = vld [vmem:[%s2897 + $0x60] sm:$0xf]
        %v6835 = vld [vmem:[%s2897 + $0x64] sm:$0xf]
        %v6836 = vld [vmem:[%s2897 + $0x6c] sm:$0xf]
        %v6837 = vld [vmem:[%s2897 + $0x70] sm:$0xf]
        %v6838 = vld [vmem:[%s2897 + $0x78] sm:$0xf]
        %v6839 = vld [vmem:[%s2897 + $0x7c] sm:$0xf]
        %v6840 = vld [vmem:[%s2897 + $0x84] sm:$0xf]
        %v6841 = vld [vmem:[%s2897 + $0x88] sm:$0xf]
        %v6842 = vld [vmem:[%s2897 + $0x90] sm:$0xf]
        %v6843 = vld [vmem:[%s2897 + $0x94] sm:$0xf]
        %v6844 = vld [vmem:[%s2897 + $0x9c] sm:$0xf]
        %v6845 = vld [vmem:[%s2897 + $0xa0] sm:$0xf]
        %v6846 = vld [vmem:[%s2897 + $0xa8] sm:$0xf]
        %v6847 = vld [vmem:[%s2897 + $0xac] sm:$0xf]
        %v6848 = vld [vmem:[%s2897 + $0xb4] sm:$0xf]
        %v6849 = vld [vmem:[%s2897 + $0xb8] sm:$0xf]
        %6882 = vrot.lane.b32.xlu0 %v6818, 48
        %v6883 = vpop.permute.xlu0 %6882
        %6884 = vrot.lane.b32.xlu0 %v6819, 48
        %v6885 = vpop.permute.xlu0 %6884
        %6886 = vrot.lane.b32.xlu0 %v6820, 48
        %v6887 = vpop.permute.xlu0 %6886
        %6888 = vrot.lane.b32.xlu0 %v6821, 48
        %v6889 = vpop.permute.xlu0 %6888
        %6890 = vrot.lane.b32.xlu0 %v6822, 48
        %v6891 = vpop.permute.xlu0 %6890
        %6892 = vrot.lane.b32.xlu0 %v6823, 48
        %v6893 = vpop.permute.xlu0 %6892
        %6894 = vrot.lane.b32.xlu0 %v6824, 48
        %v6895 = vpop.permute.xlu0 %6894
        %6896 = vrot.lane.b32.xlu0 %v6825, 48
        %v6897 = vpop.permute.xlu0 %6896
        %6898 = vrot.lane.b32.xlu0 %v6826, 48
        %v6899 = vpop.permute.xlu0 %6898
        %6900 = vrot.lane.b32.xlu0 %v6827, 48
        %v6901 = vpop.permute.xlu0 %6900
        %6902 = vrot.lane.b32.xlu0 %v6828, 48
        %v6903 = vpop.permute.xlu0 %6902
        %6904 = vrot.lane.b32.xlu0 %v6829, 48
        %v6905 = vpop.permute.xlu0 %6904
        %6906 = vrot.lane.b32.xlu0 %v6830, 48
        %v6907 = vpop.permute.xlu0 %6906
        %6908 = vrot.lane.b32.xlu0 %v6831, 48
        %v6909 = vpop.permute.xlu0 %6908
        %6910 = vrot.lane.b32.xlu0 %v6832, 48
        %v6911 = vpop.permute.xlu0 %6910
        %6912 = vrot.lane.b32.xlu0 %v6833, 48
        %v6913 = vpop.permute.xlu0 %6912
        %6914 = vrot.lane.b32.xlu0 %v6834, 48
        %v6915 = vpop.permute.xlu0 %6914
        %6916 = vrot.lane.b32.xlu0 %v6835, 48
        %v6917 = vpop.permute.xlu0 %6916
        %6918 = vrot.lane.b32.xlu0 %v6836, 48
        %v6919 = vpop.permute.xlu0 %6918
        %6920 = vrot.lane.b32.xlu0 %v6837, 48
        %v6921 = vpop.permute.xlu0 %6920
        %6922 = vrot.lane.b32.xlu0 %v6838, 48
        %v6923 = vpop.permute.xlu0 %6922
        %6924 = vrot.lane.b32.xlu0 %v6839, 48
        %v6925 = vpop.permute.xlu0 %6924
        %6926 = vrot.lane.b32.xlu0 %v6840, 48
        %v6927 = vpop.permute.xlu0 %6926
        %6928 = vrot.lane.b32.xlu0 %v6841, 48
        %v6929 = vpop.permute.xlu0 %6928
        %6930 = vrot.lane.b32.xlu0 %v6842, 48
        %v6931 = vpop.permute.xlu0 %6930
        %6932 = vrot.lane.b32.xlu0 %v6843, 48
        %v6933 = vpop.permute.xlu0 %6932
        %6934 = vrot.lane.b32.xlu0 %v6844, 48
        %v6935 = vpop.permute.xlu0 %6934
        %6936 = vrot.lane.b32.xlu0 %v6845, 48
        %v6937 = vpop.permute.xlu0 %6936
        %6938 = vrot.lane.b32.xlu0 %v6846, 48
        %v6939 = vpop.permute.xlu0 %6938
        %6940 = vrot.lane.b32.xlu0 %v6847, 48
        %v6941 = vpop.permute.xlu0 %6940
        %6942 = vrot.lane.b32.xlu0 %v6848, 48
        %v6943 = vpop.permute.xlu0 %6942
        %6944 = vrot.lane.b32.xlu0 %v6849, 48
        %v6945 = vpop.permute.xlu0 %6944
        %vm6978 = vcmask 454016
        %6979 = vst.msk [vmem:[#allocation3] sm:$0xf] %vm6978, %v6883
        %6980 = vst.msk [vmem:[#allocation3 + $0x4] sm:$0xf] %vm6978, %v6885
        %6981 = vst.msk [vmem:[#allocation3 + $0x8] sm:$0xf] %vm6978, %v6887
        %6982 = vst.msk [vmem:[#allocation3 + $0xc] sm:$0xf] %vm6978, %v6889
        %6983 = vst.msk [vmem:[#allocation3 + $0x10] sm:$0xf] %vm6978, %v6891
        %6984 = vst.msk [vmem:[#allocation3 + $0x14] sm:$0xf] %vm6978, %v6893
        %6985 = vst.msk [vmem:[#allocation3 + $0x18] sm:$0xf] %vm6978, %v6895
        %6986 = vst.msk [vmem:[#allocation3 + $0x1c] sm:$0xf] %vm6978, %v6897
        %6987 = vst.msk [vmem:[#allocation3 + $0x20] sm:$0xf] %vm6978, %v6899
        %6988 = vst.msk [vmem:[#allocation3 + $0x24] sm:$0xf] %vm6978, %v6901
        %6989 = vst.msk [vmem:[#allocation3 + $0x28] sm:$0xf] %vm6978, %v6903
        %6990 = vst.msk [vmem:[#allocation3 + $0x2c] sm:$0xf] %vm6978, %v6905
        %6991 = vst.msk [vmem:[#allocation3 + $0x30] sm:$0xf] %vm6978, %v6907
        %6992 = vst.msk [vmem:[#allocation3 + $0x34] sm:$0xf] %vm6978, %v6909
        %6993 = vst.msk [vmem:[#allocation3 + $0x38] sm:$0xf] %vm6978, %v6911
        %6994 = vst.msk [vmem:[#allocation3 + $0x3c] sm:$0xf] %vm6978, %v6913
        %6995 = vst.msk [vmem:[#allocation3 + $0x40] sm:$0xf] %vm6978, %v6915
        %6996 = vst.msk [vmem:[#allocation3 + $0x44] sm:$0xf] %vm6978, %v6917
        %6997 = vst.msk [vmem:[#allocation3 + $0x48] sm:$0xf] %vm6978, %v6919
        %6998 = vst.msk [vmem:[#allocation3 + $0x4c] sm:$0xf] %vm6978, %v6921
        %6999 = vst.msk [vmem:[#allocation3 + $0x50] sm:$0xf] %vm6978, %v6923
        %7000 = vst.msk [vmem:[#allocation3 + $0x54] sm:$0xf] %vm6978, %v6925
        %7001 = vst.msk [vmem:[#allocation3 + $0x58] sm:$0xf] %vm6978, %v6927
        %7002 = vst.msk [vmem:[#allocation3 + $0x5c] sm:$0xf] %vm6978, %v6929
        %7003 = vst.msk [vmem:[#allocation3 + $0x60] sm:$0xf] %vm6978, %v6931
        %7004 = vst.msk [vmem:[#allocation3 + $0x64] sm:$0xf] %vm6978, %v6933
        %7005 = vst.msk [vmem:[#allocation3 + $0x68] sm:$0xf] %vm6978, %v6935
        %7006 = vst.msk [vmem:[#allocation3 + $0x6c] sm:$0xf] %vm6978, %v6937
        %7007 = vst.msk [vmem:[#allocation3 + $0x70] sm:$0xf] %vm6978, %v6939
        %7008 = vst.msk [vmem:[#allocation3 + $0x74] sm:$0xf] %vm6978, %v6941
        %7009 = vst.msk [vmem:[#allocation3 + $0x78] sm:$0xf] %vm6978, %v6943
        %7010 = vst.msk [vmem:[#allocation3 + $0x7c] sm:$0xf] %vm6978, %v6945
        %v7011 = vld [vmem:[%s2897] sm:$0xf]
        %v7012 = vld [vmem:[%s2897 + $0x4] sm:$0xf]
        %v7013 = vld [vmem:[%s2897 + $0x8] sm:$0x1]
        %v7014 = vld [vmem:[%s2897 + $0xc] sm:$0xf]
        %v7015 = vld [vmem:[%s2897 + $0x10] sm:$0xf]
        %v7016 = vld [vmem:[%s2897 + $0x14] sm:$0x1]
        %v7017 = vld [vmem:[%s2897 + $0x18] sm:$0xf]
        %v7018 = vld [vmem:[%s2897 + $0x1c] sm:$0xf]
        %v7019 = vld [vmem:[%s2897 + $0x20] sm:$0x1]
        %v7020 = vld [vmem:[%s2897 + $0x24] sm:$0xf]
        %v7021 = vld [vmem:[%s2897 + $0x28] sm:$0xf]
        %v7022 = vld [vmem:[%s2897 + $0x2c] sm:$0x1]
        %v7023 = vld [vmem:[%s2897 + $0x30] sm:$0xf]
        %v7024 = vld [vmem:[%s2897 + $0x34] sm:$0xf]
        %v7025 = vld [vmem:[%s2897 + $0x38] sm:$0x1]
        %v7026 = vld [vmem:[%s2897 + $0x3c] sm:$0xf]
        %v7027 = vld [vmem:[%s2897 + $0x40] sm:$0xf]
        %v7028 = vld [vmem:[%s2897 + $0x44] sm:$0x1]
        %v7029 = vld [vmem:[%s2897 + $0x48] sm:$0xf]
        %v7030 = vld [vmem:[%s2897 + $0x4c] sm:$0xf]
        %v7031 = vld [vmem:[%s2897 + $0x50] sm:$0x1]
        %v7032 = vld [vmem:[%s2897 + $0x54] sm:$0xf]
        %v7033 = vld [vmem:[%s2897 + $0x58] sm:$0xf]
        %v7034 = vld [vmem:[%s2897 + $0x5c] sm:$0x1]
        %v7035 = vld [vmem:[%s2897 + $0x60] sm:$0xf]
        %v7036 = vld [vmem:[%s2897 + $0x64] sm:$0xf]
        %v7037 = vld [vmem:[%s2897 + $0x68] sm:$0x1]
        %v7038 = vld [vmem:[%s2897 + $0x6c] sm:$0xf]
        %v7039 = vld [vmem:[%s2897 + $0x70] sm:$0xf]
        %v7040 = vld [vmem:[%s2897 + $0x74] sm:$0x1]
        %v7041 = vld [vmem:[%s2897 + $0x78] sm:$0xf]
        %v7042 = vld [vmem:[%s2897 + $0x7c] sm:$0xf]
        %v7043 = vld [vmem:[%s2897 + $0x80] sm:$0x1]
        %v7044 = vld [vmem:[%s2897 + $0x84] sm:$0xf]
        %v7045 = vld [vmem:[%s2897 + $0x88] sm:$0xf]
        %v7046 = vld [vmem:[%s2897 + $0x8c] sm:$0x1]
        %v7047 = vld [vmem:[%s2897 + $0x90] sm:$0xf]
        %v7048 = vld [vmem:[%s2897 + $0x94] sm:$0xf]
        %v7049 = vld [vmem:[%s2897 + $0x98] sm:$0x1]
        %v7050 = vld [vmem:[%s2897 + $0x9c] sm:$0xf]
        %v7051 = vld [vmem:[%s2897 + $0xa0] sm:$0xf]
        %v7052 = vld [vmem:[%s2897 + $0xa4] sm:$0x1]
        %v7053 = vld [vmem:[%s2897 + $0xa8] sm:$0xf]
        %v7054 = vld [vmem:[%s2897 + $0xac] sm:$0xf]
        %v7055 = vld [vmem:[%s2897 + $0xb0] sm:$0x1]
        %v7056 = vld [vmem:[%s2897 + $0xb4] sm:$0xf]
        %v7057 = vld [vmem:[%s2897 + $0xb8] sm:$0xf]
        %v7058 = vld [vmem:[%s2897 + $0xbc] sm:$0x1]
        %v7060 = vshrl.u32 %v7011, 16
        %v7062 = vrot.slane %v7060, 4
        %v7063 = vshll.u32 %v7011, 16
        %v7065 = vrot.slane %v7063, 5
        %v7066 = vor.u32 %v7062, %v7065
        %v7067 = vrot.slane %v7066, 4
        %v7069 = vshll.u32 %v7012, 16
        %v7071 = vrot.slane %v7069, 5
        %v7072 = vsel %vm952, %v7067, %v7071
        %v7073 = vshrl.u32 %v7012, 16
        %v7075 = vrot.slane %v7073, 4
        %v7076 = vor.u32 %v7075, %v7071
        %v7077 = vrot.slane %v7076, 4
        %v7079 = vshll.u32 %v7013, 16
        %v7081 = vrot.slane %v7079, 5
        %v7082 = vsel %vm952, %v7077, %v7081
        %v7084 = vshrl.u32 %v7014, 16
        %v7086 = vrot.slane %v7084, 4
        %v7087 = vshll.u32 %v7014, 16
        %v7089 = vrot.slane %v7087, 5
        %v7090 = vor.u32 %v7086, %v7089
        %v7091 = vrot.slane %v7090, 4
        %v7093 = vshll.u32 %v7015, 16
        %v7095 = vrot.slane %v7093, 5
        %v7096 = vsel %vm952, %v7091, %v7095
        %v7097 = vshrl.u32 %v7015, 16
        %v7099 = vrot.slane %v7097, 4
        %v7100 = vor.u32 %v7099, %v7095
        %v7101 = vrot.slane %v7100, 4
        %v7103 = vshll.u32 %v7016, 16
        %v7105 = vrot.slane %v7103, 5
        %v7106 = vsel %vm952, %v7101, %v7105
        %v7108 = vshrl.u32 %v7017, 16
        %v7110 = vrot.slane %v7108, 4
        %v7111 = vshll.u32 %v7017, 16
        %v7113 = vrot.slane %v7111, 5
        %v7114 = vor.u32 %v7110, %v7113
        %v7115 = vrot.slane %v7114, 4
        %v7117 = vshll.u32 %v7018, 16
        %v7119 = vrot.slane %v7117, 5
        %v7120 = vsel %vm952, %v7115, %v7119
        %v7121 = vshrl.u32 %v7018, 16
        %v7123 = vrot.slane %v7121, 4
        %v7124 = vor.u32 %v7123, %v7119
        %v7125 = vrot.slane %v7124, 4
        %v7127 = vshll.u32 %v7019, 16
        %v7129 = vrot.slane %v7127, 5
        %v7130 = vsel %vm952, %v7125, %v7129
        %v7132 = vshrl.u32 %v7020, 16
        %v7134 = vrot.slane %v7132, 4
        %v7135 = vshll.u32 %v7020, 16
        %v7137 = vrot.slane %v7135, 5
        %v7138 = vor.u32 %v7134, %v7137
        %v7139 = vrot.slane %v7138, 4
        %v7141 = vshll.u32 %v7021, 16
        %v7143 = vrot.slane %v7141, 5
        %v7144 = vsel %vm952, %v7139, %v7143
        %v7145 = vshrl.u32 %v7021, 16
        %v7147 = vrot.slane %v7145, 4
        %v7148 = vor.u32 %v7147, %v7143
        %v7149 = vrot.slane %v7148, 4
        %v7151 = vshll.u32 %v7022, 16
        %v7153 = vrot.slane %v7151, 5
        %v7154 = vsel %vm952, %v7149, %v7153
        %v7156 = vshrl.u32 %v7023, 16
        %v7158 = vrot.slane %v7156, 4
        %v7159 = vshll.u32 %v7023, 16
        %v7161 = vrot.slane %v7159, 5
        %v7162 = vor.u32 %v7158, %v7161
        %v7163 = vrot.slane %v7162, 4
        %v7165 = vshll.u32 %v7024, 16
        %v7167 = vrot.slane %v7165, 5
        %v7168 = vsel %vm952, %v7163, %v7167
        %v7169 = vshrl.u32 %v7024, 16
        %v7171 = vrot.slane %v7169, 4
        %v7172 = vor.u32 %v7171, %v7167
        %v7173 = vrot.slane %v7172, 4
        %v7175 = vshll.u32 %v7025, 16
        %v7177 = vrot.slane %v7175, 5
        %v7178 = vsel %vm952, %v7173, %v7177
        %v7180 = vshrl.u32 %v7026, 16
        %v7182 = vrot.slane %v7180, 4
        %v7183 = vshll.u32 %v7026, 16
        %v7185 = vrot.slane %v7183, 5
        %v7186 = vor.u32 %v7182, %v7185
        %v7187 = vrot.slane %v7186, 4
        %v7189 = vshll.u32 %v7027, 16
        %v7191 = vrot.slane %v7189, 5
        %v7192 = vsel %vm952, %v7187, %v7191
        %v7193 = vshrl.u32 %v7027, 16
        %v7195 = vrot.slane %v7193, 4
        %v7196 = vor.u32 %v7195, %v7191
        %v7197 = vrot.slane %v7196, 4
        %v7199 = vshll.u32 %v7028, 16
        %v7201 = vrot.slane %v7199, 5
        %v7202 = vsel %vm952, %v7197, %v7201
        %v7204 = vshrl.u32 %v7029, 16
        %v7206 = vrot.slane %v7204, 4
        %v7207 = vshll.u32 %v7029, 16
        %v7209 = vrot.slane %v7207, 5
        %v7210 = vor.u32 %v7206, %v7209
        %v7211 = vrot.slane %v7210, 4
        %v7213 = vshll.u32 %v7030, 16
        %v7215 = vrot.slane %v7213, 5
        %v7216 = vsel %vm952, %v7211, %v7215
        %v7217 = vshrl.u32 %v7030, 16
        %v7219 = vrot.slane %v7217, 4
        %v7220 = vor.u32 %v7219, %v7215
        %v7221 = vrot.slane %v7220, 4
        %v7223 = vshll.u32 %v7031, 16
        %v7225 = vrot.slane %v7223, 5
        %v7226 = vsel %vm952, %v7221, %v7225
        %v7228 = vshrl.u32 %v7032, 16
        %v7230 = vrot.slane %v7228, 4
        %v7231 = vshll.u32 %v7032, 16
        %v7233 = vrot.slane %v7231, 5
        %v7234 = vor.u32 %v7230, %v7233
        %v7235 = vrot.slane %v7234, 4
        %v7237 = vshll.u32 %v7033, 16
        %v7239 = vrot.slane %v7237, 5
        %v7240 = vsel %vm952, %v7235, %v7239
        %v7241 = vshrl.u32 %v7033, 16
        %v7243 = vrot.slane %v7241, 4
        %v7244 = vor.u32 %v7243, %v7239
        %v7245 = vrot.slane %v7244, 4
        %v7247 = vshll.u32 %v7034, 16
        %v7249 = vrot.slane %v7247, 5
        %v7250 = vsel %vm952, %v7245, %v7249
        %v7252 = vshrl.u32 %v7035, 16
        %v7254 = vrot.slane %v7252, 4
        %v7255 = vshll.u32 %v7035, 16
        %v7257 = vrot.slane %v7255, 5
        %v7258 = vor.u32 %v7254, %v7257
        %v7259 = vrot.slane %v7258, 4
        %v7261 = vshll.u32 %v7036, 16
        %v7263 = vrot.slane %v7261, 5
        %v7264 = vsel %vm952, %v7259, %v7263
        %v7265 = vshrl.u32 %v7036, 16
        %v7267 = vrot.slane %v7265, 4
        %v7268 = vor.u32 %v7267, %v7263
        %v7269 = vrot.slane %v7268, 4
        %v7271 = vshll.u32 %v7037, 16
        %v7273 = vrot.slane %v7271, 5
        %v7274 = vsel %vm952, %v7269, %v7273
        %v7276 = vshrl.u32 %v7038, 16
        %v7278 = vrot.slane %v7276, 4
        %v7279 = vshll.u32 %v7038, 16
        %v7281 = vrot.slane %v7279, 5
        %v7282 = vor.u32 %v7278, %v7281
        %v7283 = vrot.slane %v7282, 4
        %v7285 = vshll.u32 %v7039, 16
        %v7287 = vrot.slane %v7285, 5
        %v7288 = vsel %vm952, %v7283, %v7287
        %v7289 = vshrl.u32 %v7039, 16
        %v7291 = vrot.slane %v7289, 4
        %v7292 = vor.u32 %v7291, %v7287
        %v7293 = vrot.slane %v7292, 4
        %v7295 = vshll.u32 %v7040, 16
        %v7297 = vrot.slane %v7295, 5
        %v7298 = vsel %vm952, %v7293, %v7297
        %v7300 = vshrl.u32 %v7041, 16
        %v7302 = vrot.slane %v7300, 4
        %v7303 = vshll.u32 %v7041, 16
        %v7305 = vrot.slane %v7303, 5
        %v7306 = vor.u32 %v7302, %v7305
        %v7307 = vrot.slane %v7306, 4
        %v7309 = vshll.u32 %v7042, 16
        %v7311 = vrot.slane %v7309, 5
        %v7312 = vsel %vm952, %v7307, %v7311
        %v7313 = vshrl.u32 %v7042, 16
        %v7315 = vrot.slane %v7313, 4
        %v7316 = vor.u32 %v7315, %v7311
        %v7317 = vrot.slane %v7316, 4
        %v7319 = vshll.u32 %v7043, 16
        %v7321 = vrot.slane %v7319, 5
        %v7322 = vsel %vm952, %v7317, %v7321
        %v7324 = vshrl.u32 %v7044, 16
        %v7326 = vrot.slane %v7324, 4
        %v7327 = vshll.u32 %v7044, 16
        %v7329 = vrot.slane %v7327, 5
        %v7330 = vor.u32 %v7326, %v7329
        %v7331 = vrot.slane %v7330, 4
        %v7333 = vshll.u32 %v7045, 16
        %v7335 = vrot.slane %v7333, 5
        %v7336 = vsel %vm952, %v7331, %v7335
        %v7337 = vshrl.u32 %v7045, 16
        %v7339 = vrot.slane %v7337, 4
        %v7340 = vor.u32 %v7339, %v7335
        %v7341 = vrot.slane %v7340, 4
        %v7343 = vshll.u32 %v7046, 16
        %v7345 = vrot.slane %v7343, 5
        %v7346 = vsel %vm952, %v7341, %v7345
        %v7348 = vshrl.u32 %v7047, 16
        %v7350 = vrot.slane %v7348, 4
        %v7351 = vshll.u32 %v7047, 16
        %v7353 = vrot.slane %v7351, 5
        %v7354 = vor.u32 %v7350, %v7353
        %v7355 = vrot.slane %v7354, 4
        %v7357 = vshll.u32 %v7048, 16
        %v7359 = vrot.slane %v7357, 5
        %v7360 = vsel %vm952, %v7355, %v7359
        %v7361 = vshrl.u32 %v7048, 16
        %v7363 = vrot.slane %v7361, 4
        %v7364 = vor.u32 %v7363, %v7359
        %v7365 = vrot.slane %v7364, 4
        %v7367 = vshll.u32 %v7049, 16
        %v7369 = vrot.slane %v7367, 5
        %v7370 = vsel %vm952, %v7365, %v7369
        %v7372 = vshrl.u32 %v7050, 16
        %v7374 = vrot.slane %v7372, 4
        %v7375 = vshll.u32 %v7050, 16
        %v7377 = vrot.slane %v7375, 5
        %v7378 = vor.u32 %v7374, %v7377
        %v7379 = vrot.slane %v7378, 4
        %v7381 = vshll.u32 %v7051, 16
        %v7383 = vrot.slane %v7381, 5
        %v7384 = vsel %vm952, %v7379, %v7383
        %v7385 = vshrl.u32 %v7051, 16
        %v7387 = vrot.slane %v7385, 4
        %v7388 = vor.u32 %v7387, %v7383
        %v7389 = vrot.slane %v7388, 4
        %v7391 = vshll.u32 %v7052, 16
        %v7393 = vrot.slane %v7391, 5
        %v7394 = vsel %vm952, %v7389, %v7393
        %v7396 = vshrl.u32 %v7053, 16
        %v7398 = vrot.slane %v7396, 4
        %v7399 = vshll.u32 %v7053, 16
        %v7401 = vrot.slane %v7399, 5
        %v7402 = vor.u32 %v7398, %v7401
        %v7403 = vrot.slane %v7402, 4
        %v7405 = vshll.u32 %v7054, 16
        %v7407 = vrot.slane %v7405, 5
        %v7408 = vsel %vm952, %v7403, %v7407
        %v7409 = vshrl.u32 %v7054, 16
        %v7411 = vrot.slane %v7409, 4
        %v7412 = vor.u32 %v7411, %v7407
        %v7413 = vrot.slane %v7412, 4
        %v7415 = vshll.u32 %v7055, 16
        %v7417 = vrot.slane %v7415, 5
        %v7418 = vsel %vm952, %v7413, %v7417
        %v7420 = vshrl.u32 %v7056, 16
        %v7422 = vrot.slane %v7420, 4
        %v7423 = vshll.u32 %v7056, 16
        %v7425 = vrot.slane %v7423, 5
        %v7426 = vor.u32 %v7422, %v7425
        %v7427 = vrot.slane %v7426, 4
        %v7429 = vshll.u32 %v7057, 16
        %v7431 = vrot.slane %v7429, 5
        %v7432 = vsel %vm952, %v7427, %v7431
        %v7433 = vshrl.u32 %v7057, 16
        %v7435 = vrot.slane %v7433, 4
        %v7436 = vor.u32 %v7435, %v7431
        %v7437 = vrot.slane %v7436, 4
        %v7439 = vshll.u32 %v7058, 16
        %v7441 = vrot.slane %v7439, 5
        %v7442 = vsel %vm952, %v7437, %v7441
        %7443 = vrot.lane.b32.xlu0 %v7072, 56
        %v7444 = vpop.permute.xlu0 %7443
        %7445 = vrot.lane.b32.xlu0 %v7082, 56
        %v7446 = vpop.permute.xlu0 %7445
        %7447 = vrot.lane.b32.xlu0 %v7096, 56
        %v7448 = vpop.permute.xlu0 %7447
        %7449 = vrot.lane.b32.xlu0 %v7106, 56
        %v7450 = vpop.permute.xlu0 %7449
        %7451 = vrot.lane.b32.xlu0 %v7120, 56
        %v7452 = vpop.permute.xlu0 %7451
        %7453 = vrot.lane.b32.xlu0 %v7130, 56
        %v7454 = vpop.permute.xlu0 %7453
        %7455 = vrot.lane.b32.xlu0 %v7144, 56
        %v7456 = vpop.permute.xlu0 %7455
        %7457 = vrot.lane.b32.xlu0 %v7154, 56
        %v7458 = vpop.permute.xlu0 %7457
        %7459 = vrot.lane.b32.xlu0 %v7168, 56
        %v7460 = vpop.permute.xlu0 %7459
        %7461 = vrot.lane.b32.xlu0 %v7178, 56
        %v7462 = vpop.permute.xlu0 %7461
        %7463 = vrot.lane.b32.xlu0 %v7192, 56
        %v7464 = vpop.permute.xlu0 %7463
        %7465 = vrot.lane.b32.xlu0 %v7202, 56
        %v7466 = vpop.permute.xlu0 %7465
        %7467 = vrot.lane.b32.xlu0 %v7216, 56
        %v7468 = vpop.permute.xlu0 %7467
        %7469 = vrot.lane.b32.xlu0 %v7226, 56
        %v7470 = vpop.permute.xlu0 %7469
        %7471 = vrot.lane.b32.xlu0 %v7240, 56
        %v7472 = vpop.permute.xlu0 %7471
        %7473 = vrot.lane.b32.xlu0 %v7250, 56
        %v7474 = vpop.permute.xlu0 %7473
        %7475 = vrot.lane.b32.xlu0 %v7264, 56
        %v7476 = vpop.permute.xlu0 %7475
        %7477 = vrot.lane.b32.xlu0 %v7274, 56
        %v7478 = vpop.permute.xlu0 %7477
        %7479 = vrot.lane.b32.xlu0 %v7288, 56
        %v7480 = vpop.permute.xlu0 %7479
        %7481 = vrot.lane.b32.xlu0 %v7298, 56
        %v7482 = vpop.permute.xlu0 %7481
        %7483 = vrot.lane.b32.xlu0 %v7312, 56
        %v7484 = vpop.permute.xlu0 %7483
        %7485 = vrot.lane.b32.xlu0 %v7322, 56
        %v7486 = vpop.permute.xlu0 %7485
        %7487 = vrot.lane.b32.xlu0 %v7336, 56
        %v7488 = vpop.permute.xlu0 %7487
        %7489 = vrot.lane.b32.xlu0 %v7346, 56
        %v7490 = vpop.permute.xlu0 %7489
        %7491 = vrot.lane.b32.xlu0 %v7360, 56
        %v7492 = vpop.permute.xlu0 %7491
        %7493 = vrot.lane.b32.xlu0 %v7370, 56
        %v7494 = vpop.permute.xlu0 %7493
        %7495 = vrot.lane.b32.xlu0 %v7384, 56
        %v7496 = vpop.permute.xlu0 %7495
        %7497 = vrot.lane.b32.xlu0 %v7394, 56
        %v7498 = vpop.permute.xlu0 %7497
        %7499 = vrot.lane.b32.xlu0 %v7408, 56
        %v7500 = vpop.permute.xlu0 %7499
        %7501 = vrot.lane.b32.xlu0 %v7418, 56
        %v7502 = vpop.permute.xlu0 %7501
        %7503 = vrot.lane.b32.xlu0 %v7432, 56
        %v7504 = vpop.permute.xlu0 %7503
        %7505 = vrot.lane.b32.xlu0 %v7442, 56
        %v7506 = vpop.permute.xlu0 %7505
        %vm7539 = vcmask 519616
        %7540 = vst.msk [vmem:[#allocation3] sm:$0xf] %vm7539, %v7444
        %7541 = vst.msk [vmem:[#allocation3 + $0x4] sm:$0xf] %vm7539, %v7446
        %7542 = vst.msk [vmem:[#allocation3 + $0x8] sm:$0xf] %vm7539, %v7448
        %7543 = vst.msk [vmem:[#allocation3 + $0xc] sm:$0xf] %vm7539, %v7450
        %7544 = vst.msk [vmem:[#allocation3 + $0x10] sm:$0xf] %vm7539, %v7452
        %7545 = vst.msk [vmem:[#allocation3 + $0x14] sm:$0xf] %vm7539, %v7454
        %7546 = vst.msk [vmem:[#allocation3 + $0x18] sm:$0xf] %vm7539, %v7456
        %7547 = vst.msk [vmem:[#allocation3 + $0x1c] sm:$0xf] %vm7539, %v7458
        %7548 = vst.msk [vmem:[#allocation3 + $0x20] sm:$0xf] %vm7539, %v7460
        %7549 = vst.msk [vmem:[#allocation3 + $0x24] sm:$0xf] %vm7539, %v7462
        %7550 = vst.msk [vmem:[#allocation3 + $0x28] sm:$0xf] %vm7539, %v7464
        %7551 = vst.msk [vmem:[#allocation3 + $0x2c] sm:$0xf] %vm7539, %v7466
        %7552 = vst.msk [vmem:[#allocation3 + $0x30] sm:$0xf] %vm7539, %v7468
        %7553 = vst.msk [vmem:[#allocation3 + $0x34] sm:$0xf] %vm7539, %v7470
        %7554 = vst.msk [vmem:[#allocation3 + $0x38] sm:$0xf] %vm7539, %v7472
        %7555 = vst.msk [vmem:[#allocation3 + $0x3c] sm:$0xf] %vm7539, %v7474
        %7556 = vst.msk [vmem:[#allocation3 + $0x40] sm:$0xf] %vm7539, %v7476
        %7557 = vst.msk [vmem:[#allocation3 + $0x44] sm:$0xf] %vm7539, %v7478
        %7558 = vst.msk [vmem:[#allocation3 + $0x48] sm:$0xf] %vm7539, %v7480
        %7559 = vst.msk [vmem:[#allocation3 + $0x4c] sm:$0xf] %vm7539, %v7482
        %7560 = vst.msk [vmem:[#allocation3 + $0x50] sm:$0xf] %vm7539, %v7484
        %7561 = vst.msk [vmem:[#allocation3 + $0x54] sm:$0xf] %vm7539, %v7486
        %7562 = vst.msk [vmem:[#allocation3 + $0x58] sm:$0xf] %vm7539, %v7488
        %7563 = vst.msk [vmem:[#allocation3 + $0x5c] sm:$0xf] %vm7539, %v7490
        %7564 = vst.msk [vmem:[#allocation3 + $0x60] sm:$0xf] %vm7539, %v7492
        %7565 = vst.msk [vmem:[#allocation3 + $0x64] sm:$0xf] %vm7539, %v7494
        %7566 = vst.msk [vmem:[#allocation3 + $0x68] sm:$0xf] %vm7539, %v7496
        %7567 = vst.msk [vmem:[#allocation3 + $0x6c] sm:$0xf] %vm7539, %v7498
        %7568 = vst.msk [vmem:[#allocation3 + $0x70] sm:$0xf] %vm7539, %v7500
        %7569 = vst.msk [vmem:[#allocation3 + $0x74] sm:$0xf] %vm7539, %v7502
        %7570 = vst.msk [vmem:[#allocation3 + $0x78] sm:$0xf] %vm7539, %v7504
        %7571 = vst.msk [vmem:[#allocation3 + $0x7c] sm:$0xf] %vm7539, %v7506
        %v7572 = vld [vmem:[%s2897] sm:$0xe]
        %v7573 = vld [vmem:[%s2897 + $0x4] sm:$0xf]
        %v7574 = vld [vmem:[%s2897 + $0x8] sm:$0x1]
        %v7575 = vld [vmem:[%s2897 + $0xc] sm:$0xe]
        %v7576 = vld [vmem:[%s2897 + $0x10] sm:$0xf]
        %v7577 = vld [vmem:[%s2897 + $0x14] sm:$0x1]
        %v7578 = vld [vmem:[%s2897 + $0x18] sm:$0xe]
        %v7579 = vld [vmem:[%s2897 + $0x1c] sm:$0xf]
        %v7580 = vld [vmem:[%s2897 + $0x20] sm:$0x1]
        %v7581 = vld [vmem:[%s2897 + $0x24] sm:$0xe]
        %v7582 = vld [vmem:[%s2897 + $0x28] sm:$0xf]
        %v7583 = vld [vmem:[%s2897 + $0x2c] sm:$0x1]
        %v7584 = vld [vmem:[%s2897 + $0x30] sm:$0xe]
        %v7585 = vld [vmem:[%s2897 + $0x34] sm:$0xf]
        %v7586 = vld [vmem:[%s2897 + $0x38] sm:$0x1]
        %v7587 = vld [vmem:[%s2897 + $0x3c] sm:$0xe]
        %v7588 = vld [vmem:[%s2897 + $0x40] sm:$0xf]
        %v7589 = vld [vmem:[%s2897 + $0x44] sm:$0x1]
        %v7590 = vld [vmem:[%s2897 + $0x48] sm:$0xe]
        %v7591 = vld [vmem:[%s2897 + $0x4c] sm:$0xf]
        %v7592 = vld [vmem:[%s2897 + $0x50] sm:$0x1]
        %v7593 = vld [vmem:[%s2897 + $0x54] sm:$0xe]
        %v7594 = vld [vmem:[%s2897 + $0x58] sm:$0xf]
        %v7595 = vld [vmem:[%s2897 + $0x5c] sm:$0x1]
        %v7596 = vld [vmem:[%s2897 + $0x60] sm:$0xe]
        %v7597 = vld [vmem:[%s2897 + $0x64] sm:$0xf]
        %v7598 = vld [vmem:[%s2897 + $0x68] sm:$0x1]
        %v7599 = vld [vmem:[%s2897 + $0x6c] sm:$0xe]
        %v7600 = vld [vmem:[%s2897 + $0x70] sm:$0xf]
        %v7601 = vld [vmem:[%s2897 + $0x74] sm:$0x1]
        %v7602 = vld [vmem:[%s2897 + $0x78] sm:$0xe]
        %v7603 = vld [vmem:[%s2897 + $0x7c] sm:$0xf]
        %v7604 = vld [vmem:[%s2897 + $0x80] sm:$0x1]
        %v7605 = vld [vmem:[%s2897 + $0x84] sm:$0xe]
        %v7606 = vld [vmem:[%s2897 + $0x88] sm:$0xf]
        %v7607 = vld [vmem:[%s2897 + $0x8c] sm:$0x1]
        %v7608 = vld [vmem:[%s2897 + $0x90] sm:$0xe]
        %v7609 = vld [vmem:[%s2897 + $0x94] sm:$0xf]
        %v7610 = vld [vmem:[%s2897 + $0x98] sm:$0x1]
        %v7611 = vld [vmem:[%s2897 + $0x9c] sm:$0xe]
        %v7612 = vld [vmem:[%s2897 + $0xa0] sm:$0xf]
        %v7613 = vld [vmem:[%s2897 + $0xa4] sm:$0x1]
        %v7614 = vld [vmem:[%s2897 + $0xa8] sm:$0xe]
        %v7615 = vld [vmem:[%s2897 + $0xac] sm:$0xf]
        %v7616 = vld [vmem:[%s2897 + $0xb0] sm:$0x1]
        %v7617 = vld [vmem:[%s2897 + $0xb4] sm:$0xe]
        %v7618 = vld [vmem:[%s2897 + $0xb8] sm:$0xf]
        %v7619 = vld [vmem:[%s2897 + $0xbc] sm:$0x1]
        %v7668 = vrot.slane %v7572, 5
        %v7669 = vrot.slane %v7668, 4
        %v7670 = vrot.slane %v7573, 5
        %v7671 = vsel %vm1564, %v7669, %v7670
        %v7672 = vrot.slane %v7670, 4
        %v7673 = vrot.slane %v7574, 5
        %v7674 = vsel %vm1564, %v7672, %v7673
        %v7675 = vrot.slane %v7575, 5
        %v7676 = vrot.slane %v7675, 4
        %v7677 = vrot.slane %v7576, 5
        %v7678 = vsel %vm1564, %v7676, %v7677
        %v7679 = vrot.slane %v7677, 4
        %v7680 = vrot.slane %v7577, 5
        %v7681 = vsel %vm1564, %v7679, %v7680
        %v7682 = vrot.slane %v7578, 5
        %v7683 = vrot.slane %v7682, 4
        %v7684 = vrot.slane %v7579, 5
        %v7685 = vsel %vm1564, %v7683, %v7684
        %v7686 = vrot.slane %v7684, 4
        %v7687 = vrot.slane %v7580, 5
        %v7688 = vsel %vm1564, %v7686, %v7687
        %v7689 = vrot.slane %v7581, 5
        %v7690 = vrot.slane %v7689, 4
        %v7691 = vrot.slane %v7582, 5
        %v7692 = vsel %vm1564, %v7690, %v7691
        %v7693 = vrot.slane %v7691, 4
        %v7694 = vrot.slane %v7583, 5
        %v7695 = vsel %vm1564, %v7693, %v7694
        %v7696 = vrot.slane %v7584, 5
        %v7697 = vrot.slane %v7696, 4
        %v7698 = vrot.slane %v7585, 5
        %v7699 = vsel %vm1564, %v7697, %v7698
        %v7700 = vrot.slane %v7698, 4
        %v7701 = vrot.slane %v7586, 5
        %v7702 = vsel %vm1564, %v7700, %v7701
        %v7703 = vrot.slane %v7587, 5
        %v7704 = vrot.slane %v7703, 4
        %v7705 = vrot.slane %v7588, 5
        %v7706 = vsel %vm1564, %v7704, %v7705
        %v7707 = vrot.slane %v7705, 4
        %v7708 = vrot.slane %v7589, 5
        %v7709 = vsel %vm1564, %v7707, %v7708
        %v7710 = vrot.slane %v7590, 5
        %v7711 = vrot.slane %v7710, 4
        %v7712 = vrot.slane %v7591, 5
        %v7713 = vsel %vm1564, %v7711, %v7712
        %v7714 = vrot.slane %v7712, 4
        %v7715 = vrot.slane %v7592, 5
        %v7716 = vsel %vm1564, %v7714, %v7715
        %v7717 = vrot.slane %v7593, 5
        %v7718 = vrot.slane %v7717, 4
        %v7719 = vrot.slane %v7594, 5
        %v7720 = vsel %vm1564, %v7718, %v7719
        %v7721 = vrot.slane %v7719, 4
        %v7722 = vrot.slane %v7595, 5
        %v7723 = vsel %vm1564, %v7721, %v7722
        %v7724 = vrot.slane %v7596, 5
        %v7725 = vrot.slane %v7724, 4
        %v7726 = vrot.slane %v7597, 5
        %v7727 = vsel %vm1564, %v7725, %v7726
        %v7728 = vrot.slane %v7726, 4
        %v7729 = vrot.slane %v7598, 5
        %v7730 = vsel %vm1564, %v7728, %v7729
        %v7731 = vrot.slane %v7599, 5
        %v7732 = vrot.slane %v7731, 4
        %v7733 = vrot.slane %v7600, 5
        %v7734 = vsel %vm1564, %v7732, %v7733
        %v7735 = vrot.slane %v7733, 4
        %v7736 = vrot.slane %v7601, 5
        %v7737 = vsel %vm1564, %v7735, %v7736
        %v7738 = vrot.slane %v7602, 5
        %v7739 = vrot.slane %v7738, 4
        %v7740 = vrot.slane %v7603, 5
        %v7741 = vsel %vm1564, %v7739, %v7740
        %v7742 = vrot.slane %v7740, 4
        %v7743 = vrot.slane %v7604, 5
        %v7744 = vsel %vm1564, %v7742, %v7743
        %v7745 = vrot.slane %v7605, 5
        %v7746 = vrot.slane %v7745, 4
        %v7747 = vrot.slane %v7606, 5
        %v7748 = vsel %vm1564, %v7746, %v7747
        %v7749 = vrot.slane %v7747, 4
        %v7750 = vrot.slane %v7607, 5
        %v7751 = vsel %vm1564, %v7749, %v7750
        %v7752 = vrot.slane %v7608, 5
        %v7753 = vrot.slane %v7752, 4
        %v7754 = vrot.slane %v7609, 5
        %v7755 = vsel %vm1564, %v7753, %v7754
        %v7756 = vrot.slane %v7754, 4
        %v7757 = vrot.slane %v7610, 5
        %v7758 = vsel %vm1564, %v7756, %v7757
        %v7759 = vrot.slane %v7611, 5
        %v7760 = vrot.slane %v7759, 4
        %v7761 = vrot.slane %v7612, 5
        %v7762 = vsel %vm1564, %v7760, %v7761
        %v7763 = vrot.slane %v7761, 4
        %v7764 = vrot.slane %v7613, 5
        %v7765 = vsel %vm1564, %v7763, %v7764
        %v7766 = vrot.slane %v7614, 5
        %v7767 = vrot.slane %v7766, 4
        %v7768 = vrot.slane %v7615, 5
        %v7769 = vsel %vm1564, %v7767, %v7768
        %v7770 = vrot.slane %v7768, 4
        %v7771 = vrot.slane %v7616, 5
        %v7772 = vsel %vm1564, %v7770, %v7771
        %v7773 = vrot.slane %v7617, 5
        %v7774 = vrot.slane %v7773, 4
        %v7775 = vrot.slane %v7618, 5
        %v7776 = vsel %vm1564, %v7774, %v7775
        %v7777 = vrot.slane %v7775, 4
        %v7778 = vrot.slane %v7619, 5
        %v7779 = vsel %vm1564, %v7777, %v7778
        %7780 = vrot.lane.b32.xlu0 %v7671, 64
        %v7781 = vpop.permute.xlu0 %7780
        %7782 = vrot.lane.b32.xlu0 %v7674, 64
        %v7783 = vpop.permute.xlu0 %7782
        %7784 = vrot.lane.b32.xlu0 %v7678, 64
        %v7785 = vpop.permute.xlu0 %7784
        %7786 = vrot.lane.b32.xlu0 %v7681, 64
        %v7787 = vpop.permute.xlu0 %7786
        %7788 = vrot.lane.b32.xlu0 %v7685, 64
        %v7789 = vpop.permute.xlu0 %7788
        %7790 = vrot.lane.b32.xlu0 %v7688, 64
        %v7791 = vpop.permute.xlu0 %7790
        %7792 = vrot.lane.b32.xlu0 %v7692, 64
        %v7793 = vpop.permute.xlu0 %7792
        %7794 = vrot.lane.b32.xlu0 %v7695, 64
        %v7795 = vpop.permute.xlu0 %7794
        %7796 = vrot.lane.b32.xlu0 %v7699, 64
        %v7797 = vpop.permute.xlu0 %7796
        %7798 = vrot.lane.b32.xlu0 %v7702, 64
        %v7799 = vpop.permute.xlu0 %7798
        %7800 = vrot.lane.b32.xlu0 %v7706, 64
        %v7801 = vpop.permute.xlu0 %7800
        %7802 = vrot.lane.b32.xlu0 %v7709, 64
        %v7803 = vpop.permute.xlu0 %7802
        %7804 = vrot.lane.b32.xlu0 %v7713, 64
        %v7805 = vpop.permute.xlu0 %7804
        %7806 = vrot.lane.b32.xlu0 %v7716, 64
        %v7807 = vpop.permute.xlu0 %7806
        %7808 = vrot.lane.b32.xlu0 %v7720, 64
        %v7809 = vpop.permute.xlu0 %7808
        %7810 = vrot.lane.b32.xlu0 %v7723, 64
        %v7811 = vpop.permute.xlu0 %7810
        %7812 = vrot.lane.b32.xlu0 %v7727, 64
        %v7813 = vpop.permute.xlu0 %7812
        %7814 = vrot.lane.b32.xlu0 %v7730, 64
        %v7815 = vpop.permute.xlu0 %7814
        %7816 = vrot.lane.b32.xlu0 %v7734, 64
        %v7817 = vpop.permute.xlu0 %7816
        %7818 = vrot.lane.b32.xlu0 %v7737, 64
        %v7819 = vpop.permute.xlu0 %7818
        %7820 = vrot.lane.b32.xlu0 %v7741, 64
        %v7821 = vpop.permute.xlu0 %7820
        %7822 = vrot.lane.b32.xlu0 %v7744, 64
        %v7823 = vpop.permute.xlu0 %7822
        %7824 = vrot.lane.b32.xlu0 %v7748, 64
        %v7825 = vpop.permute.xlu0 %7824
        %7826 = vrot.lane.b32.xlu0 %v7751, 64
        %v7827 = vpop.permute.xlu0 %7826
        %7828 = vrot.lane.b32.xlu0 %v7755, 64
        %v7829 = vpop.permute.xlu0 %7828
        %7830 = vrot.lane.b32.xlu0 %v7758, 64
        %v7831 = vpop.permute.xlu0 %7830
        %7832 = vrot.lane.b32.xlu0 %v7762, 64
        %v7833 = vpop.permute.xlu0 %7832
        %7834 = vrot.lane.b32.xlu0 %v7765, 64
        %v7835 = vpop.permute.xlu0 %7834
        %7836 = vrot.lane.b32.xlu0 %v7769, 64
        %v7837 = vpop.permute.xlu0 %7836
        %7838 = vrot.lane.b32.xlu0 %v7772, 64
        %v7839 = vpop.permute.xlu0 %7838
        %7840 = vrot.lane.b32.xlu0 %v7776, 64
        %v7841 = vpop.permute.xlu0 %7840
        %7842 = vrot.lane.b32.xlu0 %v7779, 64
        %v7843 = vpop.permute.xlu0 %7842
        %vm7876 = vcmask 585216
        %7877 = vst.msk [vmem:[#allocation3] sm:$0xf] %vm7876, %v7781
        %7878 = vst.msk [vmem:[#allocation3 + $0x4] sm:$0xf] %vm7876, %v7783
        %7879 = vst.msk [vmem:[#allocation3 + $0x8] sm:$0xf] %vm7876, %v7785
        %7880 = vst.msk [vmem:[#allocation3 + $0xc] sm:$0xf] %vm7876, %v7787
        %7881 = vst.msk [vmem:[#allocation3 + $0x10] sm:$0xf] %vm7876, %v7789
        %7882 = vst.msk [vmem:[#allocation3 + $0x14] sm:$0xf] %vm7876, %v7791
        %7883 = vst.msk [vmem:[#allocation3 + $0x18] sm:$0xf] %vm7876, %v7793
        %7884 = vst.msk [vmem:[#allocation3 + $0x1c] sm:$0xf] %vm7876, %v7795
        %7885 = vst.msk [vmem:[#allocation3 + $0x20] sm:$0xf] %vm7876, %v7797
        %7886 = vst.msk [vmem:[#allocation3 + $0x24] sm:$0xf] %vm7876, %v7799
        %7887 = vst.msk [vmem:[#allocation3 + $0x28] sm:$0xf] %vm7876, %v7801
        %7888 = vst.msk [vmem:[#allocation3 + $0x2c] sm:$0xf] %vm7876, %v7803
        %7889 = vst.msk [vmem:[#allocation3 + $0x30] sm:$0xf] %vm7876, %v7805
        %7890 = vst.msk [vmem:[#allocation3 + $0x34] sm:$0xf] %vm7876, %v7807
        %7891 = vst.msk [vmem:[#allocation3 + $0x38] sm:$0xf] %vm7876, %v7809
        %7892 = vst.msk [vmem:[#allocation3 + $0x3c] sm:$0xf] %vm7876, %v7811
        %7893 = vst.msk [vmem:[#allocation3 + $0x40] sm:$0xf] %vm7876, %v7813
        %7894 = vst.msk [vmem:[#allocation3 + $0x44] sm:$0xf] %vm7876, %v7815
        %7895 = vst.msk [vmem:[#allocation3 + $0x48] sm:$0xf] %vm7876, %v7817
        %7896 = vst.msk [vmem:[#allocation3 + $0x4c] sm:$0xf] %vm7876, %v7819
        %7897 = vst.msk [vmem:[#allocation3 + $0x50] sm:$0xf] %vm7876, %v7821
        %7898 = vst.msk [vmem:[#allocation3 + $0x54] sm:$0xf] %vm7876, %v7823
        %7899 = vst.msk [vmem:[#allocation3 + $0x58] sm:$0xf] %vm7876, %v7825
        %7900 = vst.msk [vmem:[#allocation3 + $0x5c] sm:$0xf] %vm7876, %v7827
        %7901 = vst.msk [vmem:[#allocation3 + $0x60] sm:$0xf] %vm7876, %v7829
        %7902 = vst.msk [vmem:[#allocation3 + $0x64] sm:$0xf] %vm7876, %v7831
        %7903 = vst.msk [vmem:[#allocation3 + $0x68] sm:$0xf] %vm7876, %v7833
        %7904 = vst.msk [vmem:[#allocation3 + $0x6c] sm:$0xf] %vm7876, %v7835
        %7905 = vst.msk [vmem:[#allocation3 + $0x70] sm:$0xf] %vm7876, %v7837
        %7906 = vst.msk [vmem:[#allocation3 + $0x74] sm:$0xf] %vm7876, %v7839
        %7907 = vst.msk [vmem:[#allocation3 + $0x78] sm:$0xf] %vm7876, %v7841
        %7908 = vst.msk [vmem:[#allocation3 + $0x7c] sm:$0xf] %vm7876, %v7843
        %v7909 = vld [vmem:[#allocation3] sm:$0xf]
        %v7910 = vld [vmem:[#allocation3 + $0x4] sm:$0xf]
        %v7911 = vld [vmem:[#allocation3 + $0x8] sm:$0xf]
        %v7912 = vld [vmem:[#allocation3 + $0xc] sm:$0xf]
        %v7913 = vld [vmem:[#allocation3 + $0x10] sm:$0xf]
        %v7914 = vld [vmem:[#allocation3 + $0x14] sm:$0xf]
        %v7915 = vld [vmem:[#allocation3 + $0x18] sm:$0xf]
        %v7916 = vld [vmem:[#allocation3 + $0x1c] sm:$0xf]
        %v7917 = vld [vmem:[#allocation3 + $0x20] sm:$0xf]
        %v7918 = vld [vmem:[#allocation3 + $0x24] sm:$0xf]
        %v7919 = vld [vmem:[#allocation3 + $0x28] sm:$0xf]
        %v7920 = vld [vmem:[#allocation3 + $0x2c] sm:$0xf]
        %v7921 = vld [vmem:[#allocation3 + $0x30] sm:$0xf]
        %v7922 = vld [vmem:[#allocation3 + $0x34] sm:$0xf]
        %v7923 = vld [vmem:[#allocation3 + $0x38] sm:$0xf]
        %v7924 = vld [vmem:[#allocation3 + $0x3c] sm:$0xf]
        %v7925 = vld [vmem:[#allocation3 + $0x40] sm:$0xf]
        %v7926 = vld [vmem:[#allocation3 + $0x44] sm:$0xf]
        %v7927 = vld [vmem:[#allocation3 + $0x48] sm:$0xf]
        %v7928 = vld [vmem:[#allocation3 + $0x4c] sm:$0xf]
        %v7929 = vld [vmem:[#allocation3 + $0x50] sm:$0xf]
        %v7930 = vld [vmem:[#allocation3 + $0x54] sm:$0xf]
        %v7931 = vld [vmem:[#allocation3 + $0x58] sm:$0xf]
        %v7932 = vld [vmem:[#allocation3 + $0x5c] sm:$0xf]
        %v7933 = vld [vmem:[#allocation3 + $0x60] sm:$0xf]
        %v7934 = vld [vmem:[#allocation3 + $0x64] sm:$0xf]
        %v7935 = vld [vmem:[#allocation3 + $0x68] sm:$0xf]
        %v7936 = vld [vmem:[#allocation3 + $0x6c] sm:$0xf]
        %v7937 = vld [vmem:[#allocation3 + $0x70] sm:$0xf]
        %v7938 = vld [vmem:[#allocation3 + $0x74] sm:$0xf]
        %v7939 = vld [vmem:[#allocation3 + $0x78] sm:$0xf]
        %v7940 = vld [vmem:[#allocation3 + $0x7c] sm:$0xf]
        %v7941 = vld [vmem:[%s2] sm:$0xf]
        %v7942 = vld [vmem:[%s2 + $0x4] sm:$0xf]
        %v7943 = vld [vmem:[%s2 + $0x8] sm:$0xf]
        %v7944 = vld [vmem:[%s2 + $0xc] sm:$0xf]
        %v7945 = vld [vmem:[%s2 + $0x10] sm:$0xf]
        %v7946 = vld [vmem:[%s2 + $0x14] sm:$0xf]
        %v7947 = vld [vmem:[%s2 + $0x18] sm:$0xf]
        %v7948 = vld [vmem:[%s2 + $0x1c] sm:$0xf]
        %v7949 = vld [vmem:[%s2 + $0x20] sm:$0xf]
        %v7950 = vld [vmem:[%s4] sm:$0x1]
        %v7952 = vperm.slane %v7950, 0
        %v7986 = vunpack.c.l.b16 %v7909
        %v7987 = vunpack.c.l.b16 %v7910
        %v7988 = vunpack.c.l.b16 %v7911
        %v7989 = vunpack.c.l.b16 %v7912
        %v7990 = vunpack.c.l.b16 %v7913
        %v7991 = vunpack.c.l.b16 %v7914
        %v7992 = vunpack.c.l.b16 %v7915
        %v7993 = vunpack.c.l.b16 %v7916
        %v7994 = vunpack.c.l.b16 %v7917
        %v7995 = vunpack.c.l.b16 %v7918
        %v7996 = vunpack.c.l.b16 %v7919
        %v7997 = vunpack.c.l.b16 %v7920
        %v7998 = vunpack.c.l.b16 %v7921
        %v7999 = vunpack.c.l.b16 %v7922
        %v8000 = vunpack.c.l.b16 %v7923
        %v8001 = vunpack.c.l.b16 %v7924
        %v8002 = vunpack.c.l.b16 %v7925
        %v8003 = vunpack.c.l.b16 %v7926
        %v8004 = vunpack.c.l.b16 %v7927
        %v8005 = vunpack.c.l.b16 %v7928
        %v8006 = vunpack.c.l.b16 %v7929
        %v8007 = vunpack.c.l.b16 %v7930
        %v8008 = vunpack.c.l.b16 %v7931
        %v8009 = vunpack.c.l.b16 %v7932
        %v8010 = vunpack.c.l.b16 %v7933
        %v8011 = vunpack.c.l.b16 %v7934
        %v8012 = vunpack.c.l.b16 %v7935
        %v8013 = vunpack.c.l.b16 %v7936
        %v8014 = vunpack.c.l.b16 %v7937
        %v8015 = vunpack.c.l.b16 %v7938
        %v8016 = vunpack.c.l.b16 %v7939
        %v8017 = vunpack.c.l.b16 %v7940
        %v8018 = vpack.c.b16 %v7987, %v7986
        %v8019 = vpack.c.b16 %v7989, %v7988
        %v8020 = vpack.c.b16 %v7991, %v7990
        %v8021 = vpack.c.b16 %v7993, %v7992
        %v8022 = vpack.c.b16 %v7995, %v7994
        %v8023 = vpack.c.b16 %v7997, %v7996
        %v8024 = vpack.c.b16 %v7999, %v7998
        %v8025 = vpack.c.b16 %v8001, %v8000
        %v8026 = vpack.c.b16 %v8003, %v8002
        %v8027 = vpack.c.b16 %v8005, %v8004
        %v8028 = vpack.c.b16 %v8007, %v8006
        %v8029 = vpack.c.b16 %v8009, %v8008
        %v8030 = vpack.c.b16 %v8011, %v8010
        %v8031 = vpack.c.b16 %v8013, %v8012
        %v8032 = vpack.c.b16 %v8015, %v8014
        %v8033 = vpack.c.b16 %v8017, %v8016
        %v8043 = vunpack.c.l.b16 %v7941
        %v8044 = vunpack.c.l.b16 %v7942
        %v8045 = vunpack.c.l.b16 %v7943
        %v8046 = vunpack.c.l.b16 %v7944
        %v8047 = vunpack.c.l.b16 %v7945
        %v8048 = vunpack.c.l.b16 %v7946
        %v8049 = vunpack.c.l.b16 %v7947
        %v8050 = vunpack.c.l.b16 %v7948
        %v8051 = vunpack.c.l.b16 %v7949
        %v8052 = vpack.c.b16 %v8044, %v8043
        %v8053 = vpack.c.b16 %v8046, %v8045
        %v8054 = vpack.c.b16 %v8048, %v8047
        %v8055 = vpack.c.b16 %v8050, %v8049
        %v8056 = vpack.c.b16 %v8051, %v8051
        %vm8061 = vcmask 588800
        %v8063 = vsel %vm8061, %v8018, 0
        %v8066 = vsel %vm8061, %v8019, 0
        %v8069 = vsel %vm8061, %v8020, 0
        %v8072 = vsel %vm8061, %v8021, 0
        %v8075 = vsel %vm8061, %v8022, 0
        %v8078 = vsel %vm8061, %v8023, 0
        %v8081 = vsel %vm8061, %v8024, 0
        %v8084 = vsel %vm8061, %v8025, 0
        %v8087 = vsel %vm8061, %v8026, 0
        %v8090 = vsel %vm8061, %v8027, 0
        %v8093 = vsel %vm8061, %v8028, 0
        %v8096 = vsel %vm8061, %v8029, 0
        %v8099 = vsel %vm8061, %v8030, 0
        %v8102 = vsel %vm8061, %v8031, 0
        %v8105 = vsel %vm8061, %v8032, 0
        %v8108 = vsel %vm8061, %v8033, 0
        %vm8110 = vcmask 1043456
        %v8112 = vsel %vm8110, %v8056, 0
        %8114 = vmatpush.bf16.msra.mxu0 0
        %8115 = vmatpush.bf16.msra.mxu0 0
        %8116 = vmatpush.bf16.msra.mxu0 0
        %8117 = vmatpush.bf16.msra.mxu0 %v8112
        %8118 = vmatpush.bf16.msra.mxu0 %v8055
        %8119 = vmatpush.bf16.msra.mxu0 %v8054
        %8120 = vmatpush.bf16.msra.mxu0 %v8053
        %8121 = vmatpush.bf16.msra.mxu0 %v8052
        %8122 = vmatmul.bf16.gmra.mxu0 %v8063
        %v8123 = vpop.f32.mrf.mxu0
        %v8124 = vadd.f32 %v7952, %v8123
        %v8125 = vpop.f32.mrf.mxu0
        %v8126 = vadd.f32 %v7952, %v8125
        %8127 = vmatmul.bf16.gmra.mxu0 %v8066
        %v8128 = vpop.f32.mrf.mxu0
        %v8129 = vadd.f32 %v7952, %v8128
        %v8130 = vpop.f32.mrf.mxu0
        %v8131 = vadd.f32 %v7952, %v8130
        %8132 = vmatmul.bf16.gmra.mxu0 %v8069
        %v8133 = vpop.f32.mrf.mxu0
        %v8134 = vadd.f32 %v7952, %v8133
        %v8135 = vpop.f32.mrf.mxu0
        %v8136 = vadd.f32 %v7952, %v8135
        %8137 = vmatmul.bf16.gmra.mxu0 %v8072
        %v8138 = vpop.f32.mrf.mxu0
        %v8139 = vadd.f32 %v7952, %v8138
        %v8140 = vpop.f32.mrf.mxu0
        %v8141 = vadd.f32 %v7952, %v8140
        %8142 = vmatmul.bf16.gmra.mxu0 %v8075
        %v8143 = vpop.f32.mrf.mxu0
        %v8144 = vadd.f32 %v7952, %v8143
        %v8145 = vpop.f32.mrf.mxu0
        %v8146 = vadd.f32 %v7952, %v8145
        %8147 = vmatmul.bf16.gmra.mxu0 %v8078
        %v8148 = vpop.f32.mrf.mxu0
        %v8149 = vadd.f32 %v7952, %v8148
        %v8150 = vpop.f32.mrf.mxu0
        %v8151 = vadd.f32 %v7952, %v8150
        %8152 = vmatmul.bf16.gmra.mxu0 %v8081
        %v8153 = vpop.f32.mrf.mxu0
        %v8154 = vadd.f32 %v7952, %v8153
        %v8155 = vpop.f32.mrf.mxu0
        %v8156 = vadd.f32 %v7952, %v8155
        %8157 = vmatmul.bf16.gmra.mxu0 %v8084
        %v8158 = vpop.f32.mrf.mxu0
        %v8159 = vadd.f32 %v7952, %v8158
        %v8160 = vpop.f32.mrf.mxu0
        %v8161 = vadd.f32 %v7952, %v8160
        %8162 = vmatmul.bf16.gmra.mxu0 %v8087
        %v8163 = vpop.f32.mrf.mxu0
        %v8164 = vadd.f32 %v7952, %v8163
        %v8165 = vpop.f32.mrf.mxu0
        %v8166 = vadd.f32 %v7952, %v8165
        %8167 = vmatmul.bf16.gmra.mxu0 %v8090
        %v8168 = vpop.f32.mrf.mxu0
        %v8169 = vadd.f32 %v7952, %v8168
        %v8170 = vpop.f32.mrf.mxu0
        %v8171 = vadd.f32 %v7952, %v8170
        %8172 = vmatmul.bf16.gmra.mxu0 %v8093
        %v8173 = vpop.f32.mrf.mxu0
        %v8174 = vadd.f32 %v7952, %v8173
        %v8175 = vpop.f32.mrf.mxu0
        %v8176 = vadd.f32 %v7952, %v8175
        %8177 = vmatmul.bf16.gmra.mxu0 %v8096
        %v8178 = vpop.f32.mrf.mxu0
        %v8179 = vadd.f32 %v7952, %v8178
        %v8180 = vpop.f32.mrf.mxu0
        %v8181 = vadd.f32 %v7952, %v8180
        %8182 = vmatmul.bf16.gmra.mxu0 %v8099
        %v8183 = vpop.f32.mrf.mxu0
        %v8184 = vadd.f32 %v7952, %v8183
        %v8185 = vpop.f32.mrf.mxu0
        %v8186 = vadd.f32 %v7952, %v8185
        %8187 = vmatmul.bf16.gmra.mxu0 %v8102
        %v8188 = vpop.f32.mrf.mxu0
        %v8189 = vadd.f32 %v7952, %v8188
        %v8190 = vpop.f32.mrf.mxu0
        %v8191 = vadd.f32 %v7952, %v8190
        %8192 = vmatmul.bf16.gmra.mxu0 %v8105
        %v8193 = vpop.f32.mrf.mxu0
        %v8194 = vadd.f32 %v7952, %v8193
        %v8195 = vpop.f32.mrf.mxu0
        %v8196 = vadd.f32 %v7952, %v8195
        %8197 = vmatmul.bf16.gmra.mxu0 %v8108
        %v8198 = vpop.f32.mrf.mxu0
        %v8199 = vadd.f32 %v7952, %v8198
        %v8200 = vpop.f32.mrf.mxu0
        %v8201 = vadd.f32 %v7952, %v8200
        %8202 = vdwg.mxu0
        %v8203 = vmax.f32 %v8124, 0.0
        %v8204 = vmax.f32 %v8126, 0.0
        %v8205 = vmax.f32 %v8129, 0.0
        %v8206 = vmax.f32 %v8131, 0.0
        %v8207 = vmax.f32 %v8134, 0.0
        %v8208 = vmax.f32 %v8136, 0.0
        %v8209 = vmax.f32 %v8139, 0.0
        %v8210 = vmax.f32 %v8141, 0.0
        %v8211 = vmax.f32 %v8144, 0.0
        %v8212 = vmax.f32 %v8146, 0.0
        %v8213 = vmax.f32 %v8149, 0.0
        %v8214 = vmax.f32 %v8151, 0.0
        %v8215 = vmax.f32 %v8154, 0.0
        %v8216 = vmax.f32 %v8156, 0.0
        %v8217 = vmax.f32 %v8159, 0.0
        %v8218 = vmax.f32 %v8161, 0.0
        %v8219 = vmax.f32 %v8164, 0.0
        %v8220 = vmax.f32 %v8166, 0.0
        %v8221 = vmax.f32 %v8169, 0.0
        %v8222 = vmax.f32 %v8171, 0.0
        %v8223 = vmax.f32 %v8174, 0.0
        %v8224 = vmax.f32 %v8176, 0.0
        %v8225 = vmax.f32 %v8179, 0.0
        %v8226 = vmax.f32 %v8181, 0.0
        %v8227 = vmax.f32 %v8184, 0.0
        %v8228 = vmax.f32 %v8186, 0.0
        %v8229 = vmax.f32 %v8189, 0.0
        %v8230 = vmax.f32 %v8191, 0.0
        %v8231 = vmax.f32 %v8194, 0.0
        %v8232 = vmax.f32 %v8196, 0.0
        %v8233 = vmax.f32 %v8199, 0.0
        %v8234 = vmax.f32 %v8201, 0.0
        %v8235 = vmax.f32 %v8203, %v8205
        %v8236 = vmax.f32 %v8204, %v8206
        %v8237 = vmax.f32 %v8207, %v8209
        %v8238 = vmax.f32 %v8208, %v8210
        %v8239 = vmax.f32 %v8211, %v8213
        %v8240 = vmax.f32 %v8212, %v8214
        %v8241 = vmax.f32 %v8215, %v8217
        %v8242 = vmax.f32 %v8216, %v8218
        %v8243 = vmax.f32 %v8219, %v8221
        %v8244 = vmax.f32 %v8220, %v8222
        %v8245 = vmax.f32 %v8223, %v8225
        %v8246 = vmax.f32 %v8224, %v8226
        %v8247 = vmax.f32 %v8227, %v8229
        %v8248 = vmax.f32 %v8228, %v8230
        %v8249 = vmax.f32 %v8231, %v8233
        %v8250 = vmax.f32 %v8232, %v8234
        %vm8251 = vcmask 64512
        %8252 = vst.msk [vmem:[#allocation4] sm:$0xff] %vm8251, %v8235
        %8253 = vst.msk [vmem:[#allocation4 + $0x8] sm:$0xff] %vm8251, %v8236
        %8254 = vst.msk [vmem:[#allocation4 + $0x10] sm:$0xff] %vm8251, %v8237
        %8255 = vst.msk [vmem:[#allocation4 + $0x18] sm:$0xff] %vm8251, %v8238
        %8256 = vst.msk [vmem:[#allocation4 + $0x20] sm:$0xff] %vm8251, %v8239
        %8257 = vst.msk [vmem:[#allocation4 + $0x28] sm:$0xff] %vm8251, %v8240
        %8258 = vst.msk [vmem:[#allocation4 + $0x30] sm:$0xff] %vm8251, %v8241
        %8259 = vst.msk [vmem:[#allocation4 + $0x38] sm:$0xff] %vm8251, %v8242
        %8260 = vst.msk [vmem:[#allocation4 + $0x40] sm:$0xff] %vm8251, %v8243
        %8261 = vst.msk [vmem:[#allocation4 + $0x48] sm:$0xff] %vm8251, %v8244
        %8262 = vst.msk [vmem:[#allocation4 + $0x50] sm:$0xff] %vm8251, %v8245
        %8263 = vst.msk [vmem:[#allocation4 + $0x58] sm:$0xff] %vm8251, %v8246
        %8264 = vst.msk [vmem:[#allocation4 + $0x60] sm:$0xff] %vm8251, %v8247
        %8265 = vst.msk [vmem:[#allocation4 + $0x68] sm:$0xff] %vm8251, %v8248
        %8266 = vst.msk [vmem:[#allocation4 + $0x70] sm:$0xff] %vm8251, %v8249
        %8267 = vst.msk [vmem:[#allocation4 + $0x78] sm:$0xff] %vm8251, %v8250
        %v8268 = vld [vmem:[#allocation4] ss:$2 sm:$0xff]
        %s8269 = scalar_lea.vmem [#allocation4], 16
        %v8270 = vld [vmem:[%s8269] ss:$2 sm:$0xff]
        %s8271 = scalar_lea.vmem [#allocation4], 32
        %v8272 = vld [vmem:[%s8271] ss:$2 sm:$0xff]
        %s8273 = scalar_lea.vmem [#allocation4], 48
        %v8274 = vld [vmem:[%s8273] ss:$2 sm:$0xff]
        %s8275 = scalar_lea.vmem [#allocation4], 64
        %v8276 = vld [vmem:[%s8275] ss:$2 sm:$0xff]
        %s8277 = scalar_lea.vmem [#allocation4], 80
        %v8278 = vld [vmem:[%s8277] ss:$2 sm:$0xff]
        %s8279 = scalar_lea.vmem [#allocation4], 96
        %v8280 = vld [vmem:[%s8279] ss:$2 sm:$0xff]
        %s8281 = scalar_lea.vmem [#allocation4], 112
        %v8282 = vld [vmem:[%s8281] ss:$2 sm:$0xff]
        %s8283 = scalar_lea.vmem [#allocation4], 1
        %v8284 = vld [vmem:[%s8283] ss:$2 sm:$0xff]
        %s8285 = scalar_lea.vmem [#allocation4], 17
        %v8286 = vld [vmem:[%s8285] ss:$2 sm:$0xff]
        %s8287 = scalar_lea.vmem [#allocation4], 33
        %v8288 = vld [vmem:[%s8287] ss:$2 sm:$0xff]
        %s8289 = scalar_lea.vmem [#allocation4], 49
        %v8290 = vld [vmem:[%s8289] ss:$2 sm:$0xff]
        %s8291 = scalar_lea.vmem [#allocation4], 65
        %v8292 = vld [vmem:[%s8291] ss:$2 sm:$0xff]
        %s8293 = scalar_lea.vmem [#allocation4], 81
        %v8294 = vld [vmem:[%s8293] ss:$2 sm:$0xff]
        %s8295 = scalar_lea.vmem [#allocation4], 97
        %v8296 = vld [vmem:[%s8295] ss:$2 sm:$0xff]
        %s8297 = scalar_lea.vmem [#allocation4], 113
        %v8298 = vld [vmem:[%s8297] ss:$2 sm:$0xff]
        %v8299 = vmax.f32 %v8268, %v8284
        %v8300 = vmax.f32 %v8270, %v8286
        %v8301 = vmax.f32 %v8272, %v8288
        %v8302 = vmax.f32 %v8274, %v8290
        %v8303 = vmax.f32 %v8276, %v8292
        %v8304 = vmax.f32 %v8278, %v8294
        %v8305 = vmax.f32 %v8280, %v8296
        %v8306 = vmax.f32 %v8282, %v8298
        %8307 = vst.msk [vmem:[%s217] sm:$0xff] %vm8251, %v8299
        %8308 = vst.msk [vmem:[%s217 + $0x8] sm:$0xff] %vm8251, %v8300
        %8309 = vst.msk [vmem:[%s217 + $0x10] sm:$0xff] %vm8251, %v8301
        %8310 = vst.msk [vmem:[%s217 + $0x18] sm:$0xff] %vm8251, %v8302
        %8311 = vst.msk [vmem:[%s217 + $0x20] sm:$0xff] %vm8251, %v8303
        %8312 = vst.msk [vmem:[%s217 + $0x28] sm:$0xff] %vm8251, %v8304
        %8313 = vst.msk [vmem:[%s217 + $0x30] sm:$0xff] %vm8251, %v8305
        %8314 = vst.msk [vmem:[%s217 + $0x38] sm:$0xff] %vm8251, %v8306
        %s8315 = sand.u32 %s137, 1
        %s8316 = scalar_lea.sflag [#allocation6], %s8315
        %s8317 = sand.u32 %s137, 1
        %s8318 = smul.addr %s8317, 64
        %s8319 = scalar_lea.vmem [#allocation5], %s8318
        // Predicated region
        $region41: #{tpu_custom_call.1} parent=39 // pred_check
          %p8320 = pneg %p147
        $region42: #{tpu_custom_call.1} parent=39 // pred_check_branch
          %8322 = sbr.rel (%p8320) target = $region44
        $region43: #{tpu_custom_call.1} parent=39 // pred_region
          %8324 = vsyncadd %s8316, 0
          %s8325 = smul.addr %s19, 8
          %s8326 = smul.addr %s8325, 8
          %s8327 = scalar_lea.hbm %s5, %s8326
          %s8328 = sshll.u32 %s8319, 4
          %s8329 = int_to_ptr.vmem [resolvable:$true] %s8328
          %s8330 = sshll.u32 %s8327, 4
          %s8331 = int_to_ptr.hbm [resolvable:$true] %s8330
          %8336 = dma.vmem_to_hbm [thread:$0]  %s8329, 1024, %s8331, %s8316, 128, 128, 8
        $region44: #{tpu_custom_call.1} parent=39 // pred_fallthru
          _
      $region40: #{tpu_custom_call.1} parent=5 // pred_fallthru
        _
      %p8337 = scmp.le.s32.totalorder 2, %s14
      // Predicated region
      $region45: #{tpu_custom_call.1} parent=5 // pred_check
        %p8338 = pneg %p8337
      $region46: #{tpu_custom_call.1} parent=5 // pred_check_branch
        %8340 = sbr.rel (%p8338) target = $region48
      $region47: #{tpu_custom_call.1} parent=5 // pred_region
        %s8341 = ssub.s32 %s14, 2
        // Predicated region
        $region49: #{tpu_custom_call.1} parent=47 // pred_check
          %p8342 = pneg %p153
        $region50: #{tpu_custom_call.1} parent=47 // pred_check_branch
          %8344 = sbr.rel (%p8342) target = $region52
        $region51: #{tpu_custom_call.1} parent=47 // pred_region
          %s8345 = sand.u32 %s138, 1
          %s8346 = scalar_lea.sflag [#allocation6], %s8345
          %s8347 = sand.u32 %s138, 1
          %s8348 = smul.addr %s8347, 64
          %s8349 = scalar_lea.vmem [#allocation5], %s8348
          %8351 = dma.done %s8346, 1024
        $region52: #{tpu_custom_call.1} parent=47 // pred_fallthru
          _
      $region48: #{tpu_custom_call.1} parent=5 // pred_fallthru
        _
    $region6: #{tpu_custom_call.1} parent=1 // loop_footer
      %s18 = sadd.s32 1, %s14
    $region7: #{tpu_custom_call.1} parent=1 // loop_footer_branch
      %13 = sbr.rel target = $region3
    $region8: #{tpu_custom_call.1} parent=1 // loop_exit
      _
    %8352 = vsyncpa [#allocation6], 1
    %s8353 = scalar_lea.sflag [#allocation6], 1
    %8354 = vsyncpa %s8353, 1

</llo_original>
